<compile_context>
chip_gen: v7x
topology: tpu7x:2x2x1
jax: 0.10.0
libtpu: 0.0.40
codegen_flags: <defaults>
</compile_context>

<pallas_src>
import functools
import math

import jax
import jax.numpy as jnp
import numpy as np
from jax.experimental import pallas as pl
from jax.experimental.pallas import tpu as pltpu


# ----------------------------------------------------------------------------
# Pallas kernels
# ----------------------------------------------------------------------------

def _conv_pool_relu_kernel(x_ref, w_ref, b_ref, o_ref, *, wq, r_out, cout):
    """Fused Conv2d(5x5,'same') -> MaxPool2d(2,2) -> ReLU for one batch tile.

    x_ref: (1, R_in, 12*Cin) bf16  space-to-depth raster of the padded input;
           rows are ordered (img, i, j) over the (Ho+2, Wo+2) quad grid, the
           lane axis carries 3 column offsets x 4 quad planes x Cin.
    w_ref: (3, 12*Cin, 4*Cout) bf16 fused weight; slab `a` holds the taps for
           row offset a, with the four 2x2-pool candidates packed on lanes.
    b_ref: (1, Cout) f32
    o_ref: (1, R_out, Cout) bf16  pooled+ReLU output on the same raster.
    """
    acc = None
    for a in range(3):                                   # 3 row offsets of taps
        piece = x_ref[0, a * wq:a * wq + r_out, :]       # (R_out, 12*Cin)
        wa = w_ref[a]                                    # (12*Cin, 4*Cout)
        d = jnp.dot(piece, wa, preferred_element_type=jnp.float32)
        acc = d if acc is None else acc + d              # (R_out, 4*Cout) f32
    # 2x2 max-pool: the four candidates live in four lane segments.
    pooled = jnp.maximum(
        jnp.maximum(acc[:, 0 * cout:1 * cout], acc[:, 1 * cout:2 * cout]),
        jnp.maximum(acc[:, 2 * cout:3 * cout], acc[:, 3 * cout:4 * cout]))
    o_ref[0, :, :] = jnp.maximum(pooled + b_ref[...], 0.0).astype(o_ref.dtype)


def _mlp_softmax_kernel(x_ref, w0_ref, b0_ref, w1_ref, b1_ref, o_ref):
    """Fused Linear -> ReLU -> Linear -> softmax over a tile of rows.

    The class axis is pre-padded to 128 lanes (pad logits = -1e30 -> prob 0)
    so the MXU output and the store are lane-dense.
    """
    h = jnp.dot(x_ref[...], w0_ref[...],
                preferred_element_type=jnp.float32) + b0_ref[...]
    h = jnp.maximum(h, 0.0).astype(jnp.bfloat16)
    logits = jnp.dot(h, w1_ref[...],
                     preferred_element_type=jnp.float32) + b1_ref[...]
    m = jnp.max(logits, axis=1, keepdims=True)
    e = jnp.exp(logits - m)
    s = jnp.sum(e, axis=1, keepdims=True)
    o_ref[...] = e * pl.reciprocal(s, approx=False)


# ----------------------------------------------------------------------------
# Pallas wrappers (gridded, double-buffered)
# ----------------------------------------------------------------------------

def _prep_conv_input(feat, nbt):
    """(N_pad, H, W, Cin) feature map -> (num_bt, R_in, 12*Cin) bf16 raster."""
    n_pad, H, W, cin = feat.shape
    Ho, Wo = H // 2, W // 2
    Hq, Wq = Ho + 2, Wo + 2
    num_bt = n_pad // nbt
    r_out = nbt * Hq * Wq
    halo = ((2 * Wq + 7) // 8) * 8                       # in-kernel row overreach

    xp = jnp.pad(feat, ((0, 0), (2, 2), (2, 2), (0, 0)))           # 'same' pad
    # space-to-depth (2x2 quads -> lanes): (N, Hq, Wq, 4*Cin)
    xq = xp.reshape(n_pad, Hq, 2, Wq, 2, cin).transpose(0, 1, 3, 2, 4, 5)
    xq = xq.reshape(n_pad, Hq, Wq, 4 * cin)
    # unfold the 3 column offsets of the 5x5 taps onto the lane axis (3x only)
    xqp = jnp.pad(xq, ((0, 0), (0, 0), (0, 2), (0, 0)))
    xq3 = jnp.concatenate([xqp[:, :, b:b + Wq, :] for b in range(3)], axis=-1)
    # flatten raster, group into batch tiles, append halo rows
    xq3 = xq3.reshape(num_bt, r_out, 12 * cin)
    xq3 = jnp.pad(xq3, ((0, 0), (0, halo), (0, 0)))
    return xq3.astype(jnp.bfloat16), num_bt, r_out, Hq, Wq


def conv_pool_relu_layer(feat, wfused, bias, nbt):
    """feat: (N_pad, H, W, Cin) bf16 -> (N_pad, H//2, W//2, Cout) bf16."""
    n_pad, H, W, cin = feat.shape
    cout = bias.shape[-1]
    Ho, Wo = H // 2, W // 2
    xq3, num_bt, r_out, Hq, Wq = _prep_conv_input(feat, nbt)
    r_in = xq3.shape[1]

    kernel = functools.partial(_conv_pool_relu_kernel,
                               wq=Wq, r_out=r_out, cout=cout)
    y = pl.pallas_call(
        kernel,
        out_shape=jax.ShapeDtypeStruct((num_bt, r_out, cout), jnp.bfloat16),
        grid=(num_bt,),
        in_specs=[
            pl.BlockSpec((1, r_in, 12 * cin), lambda t: (t, 0, 0)),
            pl.BlockSpec(wfused.shape, lambda t: (0, 0, 0)),   # resident
            pl.BlockSpec(bias.shape, lambda t: (0, 0)),        # resident
        ],
        out_specs=pl.BlockSpec((1, r_out, cout), lambda t: (t, 0, 0)),
        compiler_params=pltpu.CompilerParams(
            dimension_semantics=("parallel",)),
    )(xq3, wfused, bias)

    # drop the padded raster positions -> valid (Ho, Wo) feature map
    y = y.reshape(n_pad, Hq, Wq, cout)[:, :Ho, :Wo, :]
    return y


def mlp_softmax(feat, w0, b0, w1, b1, tb):
    n, d = feat.shape
    num_t = n // tb
    ncls_pad = w1.shape[1]
    return pl.pallas_call(
        _mlp_softmax_kernel,
        out_shape=jax.ShapeDtypeStruct((n, ncls_pad), jnp.float32),
        grid=(num_t,),
        in_specs=[
            pl.BlockSpec((tb, d), lambda i: (i, 0)),
            pl.BlockSpec(w0.shape, lambda i: (0, 0)),   # resident across tiles
            pl.BlockSpec(b0.shape, lambda i: (0, 0)),
            pl.BlockSpec(w1.shape, lambda i: (0, 0)),
            pl.BlockSpec(b1.shape, lambda i: (0, 0)),
        ],
        out_specs=pl.BlockSpec((tb, ncls_pad), lambda i: (i, 0)),
        compiler_params=pltpu.CompilerParams(
            dimension_semantics=("parallel",)),
    )(feat, w0, b0, w1, b1)


# ----------------------------------------------------------------------------
# Parameter setup (done ONCE, outside the jitted forward)
# ----------------------------------------------------------------------------

def _fuse_conv_weight(w_oihw):
    """(Cout, Cin, 5, 5) -> (3, 12*Cin, 4*Cout) fused conv/pool weight.

    Row index inside slab a: (b*4 + pu*2 + pv)*Cin + ci, where (a, b) is the
    quad-grid offset and (pu, pv) the space-to-depth parity plane.
    Column index: (dh*2 + dw)*Cout + co -- one block per 2x2 pool candidate.
    Taps that fall outside the 5x5 kernel for a given pool position are zero.
    """
    w = np.asarray(w_oihw, np.float32)
    cout, cin = w.shape[0], w.shape[1]
    wf = np.zeros((36 * cin, 4 * cout), np.float32)
    for dh in range(2):
        for dw in range(2):
            g = dh * 2 + dw
            for a in range(3):
                for b in range(3):
                    for pu in range(2):
                        for pv in range(2):
                            kh = 2 * a + pu - dh
                            kw = 2 * b + pv - dw
                            if 0 <= kh < 5 and 0 <= kw < 5:
                                r0 = ((a * 3 + b) * 4 + (pu * 2 + pv)) * cin
                                wf[r0:r0 + cin, g * cout:(g + 1) * cout] = \
                                    w[:, :, kh, kw].T
    return jnp.asarray(wf.reshape(3, 12 * cin, 4 * cout), jnp.bfloat16)


def prepare_kernel_params(params):
    """One-time conversion of module params into kernel-ready operands."""
    kp = {"conv": []}
    for w_oihw, b in params["conv"]:
        kp["conv"].append((_fuse_conv_weight(w_oihw),
                           jnp.asarray(b, jnp.float32).reshape(1, -1)))
    # TODO(synk): only the 2-layer FC head (no_layers=2 / flatten <= 2048) is fused.
    assert len(params["fc"]) == 2
    (w0, b0), (w1, b1) = params["fc"]
    c2 = params["conv"][-1][0].shape[0]
    hidden, total = w0.shape
    hw = int(round(math.sqrt(total // c2)))
    # Fold PyTorch's NCHW flatten into a row permutation of W0 so the conv
    # output can be consumed directly in its native (h, w, c) order.
    w0r = np.asarray(w0, np.float32).reshape(hidden, c2, hw, hw)
    w0k = np.transpose(w0r, (2, 3, 1, 0)).reshape(hw * hw * c2, hidden)
    n_cls = w1.shape[0]
    w1p = np.zeros((hidden, 128), np.float32)
    w1p[:, :n_cls] = np.asarray(w1, np.float32).T
    b1p = np.full((1, 128), -1e30, np.float32)          # padded classes -> prob 0
    b1p[0, :n_cls] = np.asarray(b1, np.float32)
    kp["w0"] = jnp.asarray(w0k, jnp.bfloat16)
    kp["b0"] = jnp.asarray(b0, jnp.float32).reshape(1, -1)
    kp["w1"] = jnp.asarray(w1p, jnp.bfloat16)
    kp["b1"] = jnp.asarray(b1p, jnp.float32)
    return kp


def init_params(key, no_layers=2):
    """Deterministic kaiming-normal weights, zero biases (matches __init__ shapes)."""
    params = {"conv": [], "fc": []}
    in_c, out_c, input_dim = 1, 16, 28
    keys = jax.random.split(key, no_layers + 3)
    ki = 0
    for _ in range(no_layers):
        fan_in = in_c * 5 * 5
        w = jax.random.normal(keys[ki], (out_c, in_c, 5, 5),
                              jnp.float32) * math.sqrt(2.0 / fan_in)
        params["conv"].append((w, jnp.zeros((out_c,), jnp.float32)))
        ki += 1
        in_c, out_c = out_c, out_c * 2
        input_dim = round(input_dim / 2)
    total = input_dim ** 2 * in_c
    fc_dims = ([(total, 1024), (1024, 512), (512, 10)] if total > 2048
               else [(total, 512), (512, 10)])
    for fin, fout in fc_dims:
        w = jax.random.normal(keys[ki], (fout, fin),
                              jnp.float32) * math.sqrt(2.0 / fin)
        params["fc"].append((w, jnp.zeros((fout,), jnp.float32)))
        ki += 1
    return params


# ----------------------------------------------------------------------------
# Forward pass
# ----------------------------------------------------------------------------

@jax.jit
def conv_model_forward(x, kp):
    x = x.reshape(-1, 1, 28, 28).astype(jnp.float32)
    x = jnp.transpose(x, (0, 2, 3, 1))                  # NCHW -> NHWC
    n = x.shape[0]
    nbt = min(16, n)                                    # images per conv grid step
    n_pad = ((n + nbt - 1) // nbt) * nbt
    if n_pad != n:
        x = jnp.pad(x, ((0, n_pad - n), (0, 0), (0, 0), (0, 0)))
    feat = x.astype(jnp.bfloat16)
    for wf, bias in kp["conv"]:
        feat = conv_pool_relu_layer(feat, wf, bias, nbt)
    flat = feat.reshape(n_pad, -1)                      # (h, w, c) order; FC1 rows match
    tb = min(256, n_pad)
    fc_n = ((n_pad + tb - 1) // tb) * tb
    if fc_n != n_pad:
        flat = jnp.pad(flat, ((0, fc_n - n_pad), (0, 0)))
    probs = mlp_softmax(flat, kp["w0"], kp["b0"], kp["w1"], kp["b1"], tb)
    return probs[:n, :10]


# Pure-JAX reference matching the kernels' bf16-input / f32-accumulate math.
def reference_forward(x, params):
    x = x.reshape(-1, 1, 28, 28).astype(jnp.float32)
    x = jnp.transpose(x, (0, 2, 3, 1))
    for w_oihw, b in params["conv"]:
        w_hwio = jnp.transpose(w_oihw, (2, 3, 1, 0)).astype(jnp.bfloat16)
        y = jax.lax.conv_general_dilated(
            x.astype(jnp.bfloat16), w_hwio, window_strides=(1, 1), padding="SAME",
            dimension_numbers=("NHWC", "HWIO", "NHWC"),
            preferred_element_type=jnp.float32) + b
        n, h, w, c = y.shape
        y = y.reshape(n, h // 2, 2, w // 2, 2, c).max(axis=(2, 4))
        x = jnp.maximum(y, 0.0)
    n = x.shape[0]
    feat = jnp.transpose(x, (0, 3, 1, 2)).reshape(n, -1)
    (w0, b0), (w1, b1) = params["fc"]
    h = jnp.dot(feat.astype(jnp.bfloat16), w0.T.astype(jnp.bfloat16),
                preferred_element_type=jnp.float32) + b0
    h = jnp.maximum(h, 0.0)
    logits = jnp.dot(h.astype(jnp.bfloat16), w1.T.astype(jnp.bfloat16),
                     preferred_element_type=jnp.float32) + b1
    return jax.nn.softmax(logits, axis=1)


if __name__ == "__main__":
    key = jax.random.PRNGKey(0)
    kx, kparam = jax.random.split(key)
    # The FC head fixes the spatial size to 28x28; small batch of 2 images.
    x = jax.random.normal(kx, (2, 1, 28, 28), jnp.float32)
    params = init_params(kparam, no_layers=2)
    kparams = prepare_kernel_params(params)

    out = jax.block_until_ready(conv_model_forward(x, kparams))
    assert out.shape == (2, 10), out.shape
    assert bool(jnp.all(jnp.abs(jnp.sum(out, axis=1) - 1.0) < 1e-4))

    ref = jax.block_until_ready(jax.jit(reference_forward)(x, params))
    err = float(jnp.max(jnp.abs(out - ref)))
    assert err < 1e-2, err

    print("KERNEL_OK")
</pallas_src>

<mosaic_0001>
module attributes {stable_mosaic.version = 11 : i64} {
  func.func @_conv_pool_relu_kernel(%arg0: i32, %arg1: memref<1x544x12xbf16, #tpu.memory_space<vmem>>, %arg2: memref<3x12x64xbf16, #tpu.memory_space<vmem>>, %arg3: memref<1x16xf32, #tpu.memory_space<vmem>>, %arg4: memref<1x512x16xbf16, #tpu.memory_space<vmem>>) attributes {dimension_semantics = [#tpu.dimension_semantics<parallel>], iteration_bounds = array<i64: 1>, scalar_prefetch = 0 : i64, scratch_operands = 0 : i64, tpu.core_type = #tpu.core_type<tc>, window_params = [{transform_indices = @transform_0, window_bounds = array<i64: 1, 544, 12>}, {pipeline_mode = #tpu.pipeline_mode<synchronous>, transform_indices = @transform_1, window_bounds = array<i64: 3, 12, 64>}, {pipeline_mode = #tpu.pipeline_mode<synchronous>, transform_indices = @transform_2, window_bounds = array<i64: 1, 16>}, {transform_indices = @transform_3, window_bounds = array<i64: 1, 512, 16>}]} {
    %c0 = arith.constant 0 : index
    %c0_0 = arith.constant 0 : index
    %c0_1 = arith.constant 0 : index
    %0 = vector.load %arg1[%c0, %c0_0, %c0_1] : memref<1x544x12xbf16, #tpu.memory_space<vmem>>, vector<1x512x12xbf16>
    %1 = vector.shape_cast %0 : vector<1x512x12xbf16> to vector<512x12xbf16>
    %c0_2 = arith.constant 0 : index
    %c0_3 = arith.constant 0 : index
    %c0_4 = arith.constant 0 : index
    %2 = vector.load %arg2[%c0_2, %c0_3, %c0_4] : memref<3x12x64xbf16, #tpu.memory_space<vmem>>, vector<1x12x64xbf16>
    %3 = vector.shape_cast %2 : vector<1x12x64xbf16> to vector<12x64xbf16>
    %cst = arith.constant dense<0.000000e+00> : vector<512x64xf32>
    %4 = tpu.matmul %1, %3, %cst {dimension_numbers = #tpu.dot_dimension_numbers<[1], [0], [0], [1], [0, 0, 1, 1], [], []>} : vector<512x12xbf16>, vector<12x64xbf16>, vector<512x64xf32> -> vector<512x64xf32>
    %c0_5 = arith.constant 0 : index
    %c16 = arith.constant 16 : index
    %c0_6 = arith.constant 0 : index
    %5 = vector.load %arg1[%c0_5, %c16, %c0_6] : memref<1x544x12xbf16, #tpu.memory_space<vmem>>, vector<1x512x12xbf16>
    %6 = vector.shape_cast %5 : vector<1x512x12xbf16> to vector<512x12xbf16>
    %c1 = arith.constant 1 : index
    %c0_7 = arith.constant 0 : index
    %c0_8 = arith.constant 0 : index
    %7 = vector.load %arg2[%c1, %c0_7, %c0_8] : memref<3x12x64xbf16, #tpu.memory_space<vmem>>, vector<1x12x64xbf16>
    %8 = vector.shape_cast %7 : vector<1x12x64xbf16> to vector<12x64xbf16>
    %cst_9 = arith.constant dense<0.000000e+00> : vector<512x64xf32>
    %9 = tpu.matmul %6, %8, %cst_9 {dimension_numbers = #tpu.dot_dimension_numbers<[1], [0], [0], [1], [0, 0, 1, 1], [], []>} : vector<512x12xbf16>, vector<12x64xbf16>, vector<512x64xf32> -> vector<512x64xf32>
    %10 = arith.addf %4, %9 : vector<512x64xf32>
    %c0_10 = arith.constant 0 : index
    %c32 = arith.constant 32 : index
    %c0_11 = arith.constant 0 : index
    %11 = vector.load %arg1[%c0_10, %c32, %c0_11] : memref<1x544x12xbf16, #tpu.memory_space<vmem>>, vector<1x512x12xbf16>
    %12 = vector.shape_cast %11 : vector<1x512x12xbf16> to vector<512x12xbf16>
    %c2 = arith.constant 2 : index
    %c0_12 = arith.constant 0 : index
    %c0_13 = arith.constant 0 : index
    %13 = vector.load %arg2[%c2, %c0_12, %c0_13] : memref<3x12x64xbf16, #tpu.memory_space<vmem>>, vector<1x12x64xbf16>
    %14 = vector.shape_cast %13 : vector<1x12x64xbf16> to vector<12x64xbf16>
    %cst_14 = arith.constant dense<0.000000e+00> : vector<512x64xf32>
    %15 = tpu.matmul %12, %14, %cst_14 {dimension_numbers = #tpu.dot_dimension_numbers<[1], [0], [0], [1], [0, 0, 1, 1], [], []>} : vector<512x12xbf16>, vector<12x64xbf16>, vector<512x64xf32> -> vector<512x64xf32>
    %16 = arith.addf %10, %15 : vector<512x64xf32>
    %17 = vector.extract_strided_slice %16 {offsets = [0, 0], sizes = [512, 16], strides = [1, 1]} : vector<512x64xf32> to vector<512x16xf32>
    %18 = vector.extract_strided_slice %16 {offsets = [0, 16], sizes = [512, 16], strides = [1, 1]} : vector<512x64xf32> to vector<512x16xf32>
    %19 = arith.maximumf %17, %18 : vector<512x16xf32>
    %20 = vector.extract_strided_slice %16 {offsets = [0, 32], sizes = [512, 16], strides = [1, 1]} : vector<512x64xf32> to vector<512x16xf32>
    %21 = vector.extract_strided_slice %16 {offsets = [0, 48], sizes = [512, 16], strides = [1, 1]} : vector<512x64xf32> to vector<512x16xf32>
    %22 = arith.maximumf %20, %21 : vector<512x16xf32>
    %23 = arith.maximumf %19, %22 : vector<512x16xf32>
    %c0_15 = arith.constant 0 : index
    %c0_16 = arith.constant 0 : index
    %24 = vector.load %arg3[%c0_15, %c0_16] : memref<1x16xf32, #tpu.memory_space<vmem>>, vector<1x16xf32>
    %25 = vector.broadcast %24 : vector<1x16xf32> to vector<512x16xf32>
    %26 = arith.addf %23, %25 : vector<512x16xf32>
    %cst_17 = arith.constant 0.000000e+00 : f32
    %27 = vector.broadcast %cst_17 : f32 to vector<512x16xf32>
    %28 = arith.maximumf %26, %27 : vector<512x16xf32>
    %29 = arith.truncf %28 : vector<512x16xf32> to vector<512x16xbf16>
    %c0_18 = arith.constant 0 : index
    %c0_19 = arith.constant 0 : index
    %c0_20 = arith.constant 0 : index
    %30 = vector.load %arg4[%c0_18, %c0_19, %c0_20] : memref<1x512x16xbf16, #tpu.memory_space<vmem>>, vector<1x512x16xbf16>
    %31 = vector.shape_cast %30 : vector<1x512x16xbf16> to vector<512x16xbf16>
    %32 = vector.shape_cast %29 : vector<512x16xbf16> to vector<1x512x16xbf16>
    tpu.vector_store %arg4[%c0_18, %c0_19, %c0_20], %32 {strides = array<i32>} : memref<1x512x16xbf16, #tpu.memory_space<vmem>>, vector<1x512x16xbf16>,
    return
  }
  func.func @transform_0(%arg0: i32) -> (i32, i32, i32) {
    %c0_i32 = arith.constant 0 : i32
    %c0_i32_0 = arith.constant 0 : i32
    %c0_i32_1 = arith.constant 0 : i32
    return %arg0, %c0_i32, %c0_i32_0 : i32, i32, i32
  }
  func.func @transform_1(%arg0: i32) -> (i32, i32, i32) {
    %c0_i32 = arith.constant 0 : i32
    %c0_i32_0 = arith.constant 0 : i32
    %c0_i32_1 = arith.constant 0 : i32
    %c0_i32_2 = arith.constant 0 : i32
    return %c0_i32, %c0_i32_0, %c0_i32_1 : i32, i32, i32
  }
  func.func @transform_2(%arg0: i32) -> (i32, i32) {
    %c0_i32 = arith.constant 0 : i32
    %c0_i32_0 = arith.constant 0 : i32
    %c0_i32_1 = arith.constant 0 : i32
    return %c0_i32, %c0_i32_0 : i32, i32
  }
  func.func @transform_3(%arg0: i32) -> (i32, i32, i32) {
    %c0_i32 = arith.constant 0 : i32
    %c0_i32_0 = arith.constant 0 : i32
    %c0_i32_1 = arith.constant 0 : i32
    return %arg0, %c0_i32, %c0_i32_0 : i32, i32, i32
  }
}

module attributes {stable_mosaic.version = 11 : i64} {
  func.func @_conv_pool_relu_kernel(%arg0: i32, %arg1: memref<1x186x192xbf16, #tpu.memory_space<vmem>>, %arg2: memref<3x192x128xbf16, #tpu.memory_space<vmem>>, %arg3: memref<1x32xf32, #tpu.memory_space<vmem>>, %arg4: memref<1x162x32xbf16, #tpu.memory_space<vmem>>) attributes {dimension_semantics = [#tpu.dimension_semantics<parallel>], iteration_bounds = array<i64: 1>, scalar_prefetch = 0 : i64, scratch_operands = 0 : i64, tpu.core_type = #tpu.core_type<tc>, window_params = [{transform_indices = @transform_0, window_bounds = array<i64: 1, 186, 192>}, {pipeline_mode = #tpu.pipeline_mode<synchronous>, transform_indices = @transform_1, window_bounds = array<i64: 3, 192, 128>}, {pipeline_mode = #tpu.pipeline_mode<synchronous>, transform_indices = @transform_2, window_bounds = array<i64: 1, 32>}, {transform_indices = @transform_3, window_bounds = array<i64: 1, 162, 32>}]} {
    %c0 = arith.constant 0 : index
    %c0_0 = arith.constant 0 : index
    %c0_1 = arith.constant 0 : index
    %0 = vector.load %arg1[%c0, %c0_0, %c0_1] : memref<1x186x192xbf16, #tpu.memory_space<vmem>>, vector<1x162x192xbf16>
    %1 = vector.shape_cast %0 : vector<1x162x192xbf16> to vector<162x192xbf16>
    %c0_2 = arith.constant 0 : index
    %c0_3 = arith.constant 0 : index
    %c0_4 = arith.constant 0 : index
    %2 = vector.load %arg2[%c0_2, %c0_3, %c0_4] : memref<3x192x128xbf16, #tpu.memory_space<vmem>>, vector<1x192x128xbf16>
    %3 = vector.shape_cast %2 : vector<1x192x128xbf16> to vector<192x128xbf16>
    %cst = arith.constant dense<0.000000e+00> : vector<162x128xf32>
    %4 = tpu.matmul %1, %3, %cst {dimension_numbers = #tpu.dot_dimension_numbers<[1], [0], [0], [1], [0, 0, 1, 1], [], []>} : vector<162x192xbf16>, vector<192x128xbf16>, vector<162x128xf32> -> vector<162x128xf32>
    %c0_5 = arith.constant 0 : index
    %c9 = arith.constant 9 : index
    %c0_6 = arith.constant 0 : index
    %5 = vector.load %arg1[%c0_5, %c9, %c0_6] : memref<1x186x192xbf16, #tpu.memory_space<vmem>>, vector<1x162x192xbf16>
    %6 = vector.shape_cast %5 : vector<1x162x192xbf16> to vector<162x192xbf16>
    %c1 = arith.constant 1 : index
    %c0_7 = arith.constant 0 : index
    %c0_8 = arith.constant 0 : index
    %7 = vector.load %arg2[%c1, %c0_7, %c0_8] : memref<3x192x128xbf16, #tpu.memory_space<vmem>>, vector<1x192x128xbf16>
    %8 = vector.shape_cast %7 : vector<1x192x128xbf16> to vector<192x128xbf16>
    %cst_9 = arith.constant dense<0.000000e+00> : vector<162x128xf32>
    %9 = tpu.matmul %6, %8, %cst_9 {dimension_numbers = #tpu.dot_dimension_numbers<[1], [0], [0], [1], [0, 0, 1, 1], [], []>} : vector<162x192xbf16>, vector<192x128xbf16>, vector<162x128xf32> -> vector<162x128xf32>
    %10 = arith.addf %4, %9 : vector<162x128xf32>
    %c0_10 = arith.constant 0 : index
    %c18 = arith.constant 18 : index
    %c0_11 = arith.constant 0 : index
    %11 = vector.load %arg1[%c0_10, %c18, %c0_11] : memref<1x186x192xbf16, #tpu.memory_space<vmem>>, vector<1x162x192xbf16>
    %12 = vector.shape_cast %11 : vector<1x162x192xbf16> to vector<162x192xbf16>
    %c2 = arith.constant 2 : index
    %c0_12 = arith.constant 0 : index
    %c0_13 = arith.constant 0 : index
    %13 = vector.load %arg2[%c2, %c0_12, %c0_13] : memref<3x192x128xbf16, #tpu.memory_space<vmem>>, vector<1x192x128xbf16>
    %14 = vector.shape_cast %13 : vector<1x192x128xbf16> to vector<192x128xbf16>
    %cst_14 = arith.constant dense<0.000000e+00> : vector<162x128xf32>
    %15 = tpu.matmul %12, %14, %cst_14 {dimension_numbers = #tpu.dot_dimension_numbers<[1], [0], [0], [1], [0, 0, 1, 1], [], []>} : vector<162x192xbf16>, vector<192x128xbf16>, vector<162x128xf32> -> vector<162x128xf32>
    %16 = arith.addf %10, %15 : vector<162x128xf32>
    %17 = vector.extract_strided_slice %16 {offsets = [0, 0], sizes = [162, 32], strides = [1, 1]} : vector<162x128xf32> to vector<162x32xf32>
    %18 = vector.extract_strided_slice %16 {offsets = [0, 32], sizes = [162, 32], strides = [1, 1]} : vector<162x128xf32> to vector<162x32xf32>
    %19 = arith.maximumf %17, %18 : vector<162x32xf32>
    %20 = vector.extract_strided_slice %16 {offsets = [0, 64], sizes = [162, 32], strides = [1, 1]} : vector<162x128xf32> to vector<162x32xf32>
    %21 = vector.extract_strided_slice %16 {offsets = [0, 96], sizes = [162, 32], strides = [1, 1]} : vector<162x128xf32> to vector<162x32xf32>
    %22 = arith.maximumf %20, %21 : vector<162x32xf32>
    %23 = arith.maximumf %19, %22 : vector<162x32xf32>
    %c0_15 = arith.constant 0 : index
    %c0_16 = arith.constant 0 : index
    %24 = vector.load %arg3[%c0_15, %c0_16] : memref<1x32xf32, #tpu.memory_space<vmem>>, vector<1x32xf32>
    %25 = vector.broadcast %24 : vector<1x32xf32> to vector<162x32xf32>
    %26 = arith.addf %23, %25 : vector<162x32xf32>
    %cst_17 = arith.constant 0.000000e+00 : f32
    %27 = vector.broadcast %cst_17 : f32 to vector<162x32xf32>
    %28 = arith.maximumf %26, %27 : vector<162x32xf32>
    %29 = arith.truncf %28 : vector<162x32xf32> to vector<162x32xbf16>
    %c0_18 = arith.constant 0 : index
    %c0_19 = arith.constant 0 : index
    %c0_20 = arith.constant 0 : index
    %30 = vector.load %arg4[%c0_18, %c0_19, %c0_20] : memref<1x162x32xbf16, #tpu.memory_space<vmem>>, vector<1x162x32xbf16>
    %31 = vector.shape_cast %30 : vector<1x162x32xbf16> to vector<162x32xbf16>
    %32 = vector.shape_cast %29 : vector<162x32xbf16> to vector<1x162x32xbf16>
    tpu.vector_store %arg4[%c0_18, %c0_19, %c0_20], %32 {strides = array<i32>} : memref<1x162x32xbf16, #tpu.memory_space<vmem>>, vector<1x162x32xbf16>,
    return
  }
  func.func @transform_0(%arg0: i32) -> (i32, i32, i32) {
    %c0_i32 = arith.constant 0 : i32
    %c0_i32_0 = arith.constant 0 : i32
    %c0_i32_1 = arith.constant 0 : i32
    return %arg0, %c0_i32, %c0_i32_0 : i32, i32, i32
  }
  func.func @transform_1(%arg0: i32) -> (i32, i32, i32) {
    %c0_i32 = arith.constant 0 : i32
    %c0_i32_0 = arith.constant 0 : i32
    %c0_i32_1 = arith.constant 0 : i32
    %c0_i32_2 = arith.constant 0 : i32
    return %c0_i32, %c0_i32_0, %c0_i32_1 : i32, i32, i32
  }
  func.func @transform_2(%arg0: i32) -> (i32, i32) {
    %c0_i32 = arith.constant 0 : i32
    %c0_i32_0 = arith.constant 0 : i32
    %c0_i32_1 = arith.constant 0 : i32
    return %c0_i32, %c0_i32_0 : i32, i32
  }
  func.func @transform_3(%arg0: i32) -> (i32, i32, i32) {
    %c0_i32 = arith.constant 0 : i32
    %c0_i32_0 = arith.constant 0 : i32
    %c0_i32_1 = arith.constant 0 : i32
    return %arg0, %c0_i32, %c0_i32_0 : i32, i32, i32
  }
}

module attributes {stable_mosaic.version = 11 : i64} {
  func.func @_mlp_softmax_kernel(%arg0: i32, %arg1: memref<2x1568xbf16, #tpu.memory_space<vmem>>, %arg2: memref<1568x512xbf16, #tpu.memory_space<vmem>>, %arg3: memref<1x512xf32, #tpu.memory_space<vmem>>, %arg4: memref<512x128xbf16, #tpu.memory_space<vmem>>, %arg5: memref<1x128xf32, #tpu.memory_space<vmem>>, %arg6: memref<2x128xf32, #tpu.memory_space<vmem>>) attributes {dimension_semantics = [#tpu.dimension_semantics<parallel>], iteration_bounds = array<i64: 1>, scalar_prefetch = 0 : i64, scratch_operands = 0 : i64, tpu.core_type = #tpu.core_type<tc>, window_params = [{transform_indices = @transform_0, window_bounds = array<i64: 2, 1568>}, {pipeline_mode = #tpu.pipeline_mode<synchronous>, transform_indices = @transform_1, window_bounds = array<i64: 1568, 512>}, {pipeline_mode = #tpu.pipeline_mode<synchronous>, transform_indices = @transform_2, window_bounds = array<i64: 1, 512>}, {pipeline_mode = #tpu.pipeline_mode<synchronous>, transform_indices = @transform_3, window_bounds = array<i64: 512, 128>}, {pipeline_mode = #tpu.pipeline_mode<synchronous>, transform_indices = @transform_4, window_bounds = array<i64: 1, 128>}, {transform_indices = @transform_5, window_bounds = array<i64: 2, 128>}]} {
    %c0 = arith.constant 0 : index
    %c0_0 = arith.constant 0 : index
    %0 = vector.load %arg1[%c0, %c0_0] : memref<2x1568xbf16, #tpu.memory_space<vmem>>, vector<2x1568xbf16>
    %c0_1 = arith.constant 0 : index
    %c0_2 = arith.constant 0 : index
    %1 = vector.load %arg2[%c0_1, %c0_2] : memref<1568x512xbf16, #tpu.memory_space<vmem>>, vector<1568x512xbf16>
    %cst = arith.constant dense<0.000000e+00> : vector<2x512xf32>
    %2 = tpu.matmul %0, %1, %cst {dimension_numbers = #tpu.dot_dimension_numbers<[1], [0], [0], [1], [0, 0, 1, 1], [], []>} : vector<2x1568xbf16>, vector<1568x512xbf16>, vector<2x512xf32> -> vector<2x512xf32>
    %c0_3 = arith.constant 0 : index
    %c0_4 = arith.constant 0 : index
    %3 = vector.load %arg3[%c0_3, %c0_4] : memref<1x512xf32, #tpu.memory_space<vmem>>, vector<1x512xf32>
    %4 = vector.broadcast %3 : vector<1x512xf32> to vector<2x512xf32>
    %5 = arith.addf %2, %4 : vector<2x512xf32>
    %cst_5 = arith.constant 0.000000e+00 : f32
    %6 = vector.broadcast %cst_5 : f32 to vector<2x512xf32>
    %7 = arith.maximumf %5, %6 : vector<2x512xf32>
    %8 = arith.truncf %7 : vector<2x512xf32> to vector<2x512xbf16>
    %c0_6 = arith.constant 0 : index
    %c0_7 = arith.constant 0 : index
    %9 = vector.load %arg4[%c0_6, %c0_7] : memref<512x128xbf16, #tpu.memory_space<vmem>>, vector<512x128xbf16>
    %cst_8 = arith.constant dense<0.000000e+00> : vector<2x128xf32>
    %10 = tpu.matmul %8, %9, %cst_8 {dimension_numbers = #tpu.dot_dimension_numbers<[1], [0], [0], [1], [0, 0, 1, 1], [], []>} : vector<2x512xbf16>, vector<512x128xbf16>, vector<2x128xf32> -> vector<2x128xf32>
    %c0_9 = arith.constant 0 : index
    %c0_10 = arith.constant 0 : index
    %11 = vector.load %arg5[%c0_9, %c0_10] : memref<1x128xf32, #tpu.memory_space<vmem>>, vector<1x128xf32>
    %12 = vector.broadcast %11 : vector<1x128xf32> to vector<2x128xf32>
    %13 = arith.addf %10, %12 : vector<2x128xf32>
    %cst_11 = arith.constant dense<0xFF800000> : vector<2xf32>
    %14 = vector.multi_reduction <maximumf>, %13, %cst_11 [1] : vector<2x128xf32> to vector<2xf32>
    %15 = vector.shape_cast %14 : vector<2xf32> to vector<2x1xf32>
    %16 = vector.broadcast %15 : vector<2x1xf32> to vector<2x128xf32>
    %17 = arith.subf %13, %16 : vector<2x128xf32>
    %18 = math.exp %17 : vector<2x128xf32>
    %cst_12 = arith.constant dense<0.000000e+00> : vector<2xf32>
    %19 = vector.multi_reduction <add>, %18, %cst_12 [1] : vector<2x128xf32> to vector<2xf32>
    %20 = vector.shape_cast %19 : vector<2xf32> to vector<2x1xf32>
    %21 = tpu.reciprocal %20 : vector<2x1xf32> -> vector<2x1xf32>
    %22 = vector.broadcast %21 : vector<2x1xf32> to vector<2x128xf32>
    %23 = arith.mulf %18, %22 : vector<2x128xf32>
    %c0_13 = arith.constant 0 : index
    %c0_14 = arith.constant 0 : index
    %24 = vector.load %arg6[%c0_13, %c0_14] : memref<2x128xf32, #tpu.memory_space<vmem>>, vector<2x128xf32>
    tpu.vector_store %arg6[%c0_13, %c0_14], %23 {strides = array<i32>} : memref<2x128xf32, #tpu.memory_space<vmem>>, vector<2x128xf32>,
    return
  }
  func.func @transform_0(%arg0: i32) -> (i32, i32) {
    %c0_i32 = arith.constant 0 : i32
    %c0_i32_0 = arith.constant 0 : i32
    return %arg0, %c0_i32 : i32, i32
  }
  func.func @transform_1(%arg0: i32) -> (i32, i32) {
    %c0_i32 = arith.constant 0 : i32
    %c0_i32_0 = arith.constant 0 : i32
    %c0_i32_1 = arith.constant 0 : i32
    return %c0_i32, %c0_i32_0 : i32, i32
  }
  func.func @transform_2(%arg0: i32) -> (i32, i32) {
    %c0_i32 = arith.constant 0 : i32
    %c0_i32_0 = arith.constant 0 : i32
    %c0_i32_1 = arith.constant 0 : i32
    return %c0_i32, %c0_i32_0 : i32, i32
  }
  func.func @transform_3(%arg0: i32) -> (i32, i32) {
    %c0_i32 = arith.constant 0 : i32
    %c0_i32_0 = arith.constant 0 : i32
    %c0_i32_1 = arith.constant 0 : i32
    return %c0_i32, %c0_i32_0 : i32, i32
  }
  func.func @transform_4(%arg0: i32) -> (i32, i32) {
    %c0_i32 = arith.constant 0 : i32
    %c0_i32_0 = arith.constant 0 : i32
    %c0_i32_1 = arith.constant 0 : i32
    return %c0_i32, %c0_i32_0 : i32, i32
  }
  func.func @transform_5(%arg0: i32) -> (i32, i32) {
    %c0_i32 = arith.constant 0 : i32
    %c0_i32_0 = arith.constant 0 : i32
    return %arg0, %c0_i32 : i32, i32
  }
}

</mosaic_0001>

<llo_original>
// kernel: conv_model_forward.3
$region0: #{conv_model_forward.3}
  #allocation0 [shape = 'u32[]', space=smem, size = 0x4, offset = 0x4, fixed_abs, tag = 'smem constant byte address 0x4 - core index']
  #allocation1 [shape = 'u32[144,128]{1,0:T(1,128)}', space=vmem, size = 0x12000, scoped, tag = 'internal scratch']
  %s0 = inlined_call_operand.vmem [shape: bf16[1,544,12], index: 0, kind: input, shape index: {}]
  %s1 = inlined_call_operand.vmem [shape: bf16[3,12,64], index: 1, kind: input, shape index: {}]
  %s2 = inlined_call_operand.vmem [shape: f32[1,16], index: 2, kind: input, shape index: {}]
  %s3 = inlined_call_operand.vmem [shape: bf16[1,512,16], index: 3, kind: output, shape index: {}]
  %s4 = sld [smem:[#allocation0]]
  $region22: #{conv_model_forward.3} parent=0
    _
  %s6 = ssub.s32 1, %s4
  %s7 = scalar_select 0, %s6, %s4
  // Predicated region
  $region2: #{conv_model_forward.3} parent=0 // pred_check
    _
  $region3: #{conv_model_forward.3} parent=0 // pred_check_branch
    %9 = sbr.rel (0) target = $region5
  $region4: #{conv_model_forward.3} parent=0 // pred_region
    _
  $region5: #{conv_model_forward.3} parent=0 // pred_fallthru
    _
  // Predicated region
  $region6: #{conv_model_forward.3} parent=0 // pred_check
    _
  $region7: #{conv_model_forward.3} parent=0 // pred_check_branch
    %11 = sbr.rel (0) target = $region9
  $region8: #{conv_model_forward.3} parent=0 // pred_region
    _
  $region9: #{conv_model_forward.3} parent=0 // pred_fallthru
    _
  // Predicated region
  $region10: #{conv_model_forward.3} parent=0 // pred_check
    _
  $region11: #{conv_model_forward.3} parent=0 // pred_check_branch
    %13 = sbr.rel (0) target = $region13
  $region12: #{conv_model_forward.3} parent=0 // pred_region
    _
  $region13: #{conv_model_forward.3} parent=0 // pred_fallthru
    _
  %v15 = vld [vmem:[%s0] sm:$0xf]
  %v16 = vld [vmem:[%s0 + $0x4] sm:$0xf]
  %v17 = vld [vmem:[%s0 + $0x8] sm:$0xf]
  %v18 = vld [vmem:[%s0 + $0xc] sm:$0xf]
  %v19 = vld [vmem:[%s0 + $0x10] sm:$0xf]
  %v20 = vld [vmem:[%s0 + $0x14] sm:$0xf]
  %v21 = vld [vmem:[%s0 + $0x18] sm:$0xf]
  %v22 = vld [vmem:[%s0 + $0x1c] sm:$0xf]
  %v23 = vld [vmem:[%s0 + $0x20] sm:$0xf]
  %v24 = vld [vmem:[%s0 + $0x24] sm:$0xf]
  %v25 = vld [vmem:[%s0 + $0x28] sm:$0xf]
  %v26 = vld [vmem:[%s0 + $0x2c] sm:$0xf]
  %v27 = vld [vmem:[%s0 + $0x30] sm:$0xf]
  %v28 = vld [vmem:[%s0 + $0x34] sm:$0xf]
  %v29 = vld [vmem:[%s0 + $0x38] sm:$0xf]
  %v30 = vld [vmem:[%s0 + $0x3c] sm:$0xf]
  %v31 = vld [vmem:[%s0 + $0x40] sm:$0xf]
  %v32 = vld [vmem:[%s0 + $0x44] sm:$0xf]
  %v33 = vld [vmem:[%s0 + $0x48] sm:$0xf]
  %v34 = vld [vmem:[%s0 + $0x4c] sm:$0xf]
  %v35 = vld [vmem:[%s0 + $0x50] sm:$0xf]
  %v36 = vld [vmem:[%s0 + $0x54] sm:$0xf]
  %v37 = vld [vmem:[%s0 + $0x58] sm:$0xf]
  %v38 = vld [vmem:[%s0 + $0x5c] sm:$0xf]
  %v39 = vld [vmem:[%s0 + $0x60] sm:$0xf]
  %v40 = vld [vmem:[%s0 + $0x64] sm:$0xf]
  %v41 = vld [vmem:[%s0 + $0x68] sm:$0xf]
  %v42 = vld [vmem:[%s0 + $0x6c] sm:$0xf]
  %v43 = vld [vmem:[%s0 + $0x70] sm:$0xf]
  %v44 = vld [vmem:[%s0 + $0x74] sm:$0xf]
  %v45 = vld [vmem:[%s0 + $0x78] sm:$0xf]
  %v46 = vld [vmem:[%s0 + $0x7c] sm:$0xf]
  %v47 = vld [vmem:[%s0 + $0x80] sm:$0xf]
  %v48 = vld [vmem:[%s0 + $0x84] sm:$0xf]
  %v49 = vld [vmem:[%s0 + $0x88] sm:$0xf]
  %v50 = vld [vmem:[%s0 + $0x8c] sm:$0xf]
  %v51 = vld [vmem:[%s0 + $0x90] sm:$0xf]
  %v52 = vld [vmem:[%s0 + $0x94] sm:$0xf]
  %v53 = vld [vmem:[%s0 + $0x98] sm:$0xf]
  %v54 = vld [vmem:[%s0 + $0x9c] sm:$0xf]
  %v55 = vld [vmem:[%s0 + $0xa0] sm:$0xf]
  %v56 = vld [vmem:[%s0 + $0xa4] sm:$0xf]
  %v57 = vld [vmem:[%s0 + $0xa8] sm:$0xf]
  %v58 = vld [vmem:[%s0 + $0xac] sm:$0xf]
  %v59 = vld [vmem:[%s0 + $0xb0] sm:$0xf]
  %v60 = vld [vmem:[%s0 + $0xb4] sm:$0xf]
  %v61 = vld [vmem:[%s0 + $0xb8] sm:$0xf]
  %v62 = vld [vmem:[%s0 + $0xbc] sm:$0xf]
  %v63 = vld [vmem:[%s0 + $0xc0] sm:$0xf]
  %v64 = vld [vmem:[%s0 + $0xc4] sm:$0xf]
  %v65 = vld [vmem:[%s0 + $0xc8] sm:$0xf]
  %v66 = vld [vmem:[%s0 + $0xcc] sm:$0xf]
  %v67 = vld [vmem:[%s0 + $0xd0] sm:$0xf]
  %v68 = vld [vmem:[%s0 + $0xd4] sm:$0xf]
  %v69 = vld [vmem:[%s0 + $0xd8] sm:$0xf]
  %v70 = vld [vmem:[%s0 + $0xdc] sm:$0xf]
  %v71 = vld [vmem:[%s0 + $0xe0] sm:$0xf]
  %v72 = vld [vmem:[%s0 + $0xe4] sm:$0xf]
  %v73 = vld [vmem:[%s0 + $0xe8] sm:$0xf]
  %v74 = vld [vmem:[%s0 + $0xec] sm:$0xf]
  %v75 = vld [vmem:[%s0 + $0xf0] sm:$0xf]
  %v76 = vld [vmem:[%s0 + $0xf4] sm:$0xf]
  %v77 = vld [vmem:[%s0 + $0xf8] sm:$0xf]
  %v78 = vld [vmem:[%s0 + $0xfc] sm:$0xf]
  %v79 = vld [vmem:[%s1] sm:$0xf]
  %v80 = vld [vmem:[%s1 + $0x4] sm:$0x3]
  %v81 = vld [vmem:[%s0 + $0x100] sm:$0xf]
  %v82 = vld [vmem:[%s0 + $0x104] sm:$0xf]
  %s83 = scalar_lea.vmem %s1, 8
  %v84 = vld [vmem:[%s83] sm:$0xf]
  %v85 = vld [vmem:[%s83 + $0x4] sm:$0x3]
  %v150 = vunpack.c.l.b16 %v17
  %v151 = vunpack.c.l.b16 %v18
  %v152 = vunpack.c.l.b16 %v19
  %v153 = vunpack.c.l.b16 %v20
  %v154 = vunpack.c.l.b16 %v21
  %v155 = vunpack.c.l.b16 %v22
  %v156 = vunpack.c.l.b16 %v23
  %v157 = vunpack.c.l.b16 %v24
  %v158 = vunpack.c.l.b16 %v25
  %v159 = vunpack.c.l.b16 %v26
  %v160 = vunpack.c.l.b16 %v27
  %v161 = vunpack.c.l.b16 %v28
  %v162 = vunpack.c.l.b16 %v29
  %v163 = vunpack.c.l.b16 %v30
  %v164 = vunpack.c.l.b16 %v31
  %v165 = vunpack.c.l.b16 %v32
  %v166 = vunpack.c.l.b16 %v33
  %v167 = vunpack.c.l.b16 %v34
  %v168 = vunpack.c.l.b16 %v35
  %v169 = vunpack.c.l.b16 %v36
  %v170 = vunpack.c.l.b16 %v37
  %v171 = vunpack.c.l.b16 %v38
  %v172 = vunpack.c.l.b16 %v39
  %v173 = vunpack.c.l.b16 %v40
  %v174 = vunpack.c.l.b16 %v41
  %v175 = vunpack.c.l.b16 %v42
  %v176 = vunpack.c.l.b16 %v43
  %v177 = vunpack.c.l.b16 %v44
  %v178 = vunpack.c.l.b16 %v45
  %v179 = vunpack.c.l.b16 %v46
  %v180 = vunpack.c.l.b16 %v47
  %v181 = vunpack.c.l.b16 %v48
  %v182 = vunpack.c.l.b16 %v49
  %v183 = vunpack.c.l.b16 %v50
  %v184 = vunpack.c.l.b16 %v51
  %v185 = vunpack.c.l.b16 %v52
  %v186 = vunpack.c.l.b16 %v53
  %v187 = vunpack.c.l.b16 %v54
  %v188 = vunpack.c.l.b16 %v55
  %v189 = vunpack.c.l.b16 %v56
  %v190 = vunpack.c.l.b16 %v57
  %v191 = vunpack.c.l.b16 %v58
  %v192 = vunpack.c.l.b16 %v59
  %v193 = vunpack.c.l.b16 %v60
  %v194 = vunpack.c.l.b16 %v61
  %v195 = vunpack.c.l.b16 %v62
  %v196 = vunpack.c.l.b16 %v63
  %v197 = vunpack.c.l.b16 %v64
  %v198 = vunpack.c.l.b16 %v65
  %v199 = vunpack.c.l.b16 %v66
  %v200 = vunpack.c.l.b16 %v67
  %v201 = vunpack.c.l.b16 %v68
  %v202 = vunpack.c.l.b16 %v69
  %v203 = vunpack.c.l.b16 %v70
  %v204 = vunpack.c.l.b16 %v71
  %v205 = vunpack.c.l.b16 %v72
  %v206 = vunpack.c.l.b16 %v73
  %v207 = vunpack.c.l.b16 %v74
  %v208 = vunpack.c.l.b16 %v75
  %v209 = vunpack.c.l.b16 %v76
  %v210 = vunpack.c.l.b16 %v77
  %v211 = vunpack.c.l.b16 %v78
  %v212 = vunpack.c.l.b16 %v81
  %v213 = vunpack.c.l.b16 %v82
  %v214 = vpack.c.b16 %v151, %v150
  %v215 = vpack.c.b16 %v153, %v152
  %v216 = vpack.c.b16 %v155, %v154
  %v217 = vpack.c.b16 %v157, %v156
  %v218 = vpack.c.b16 %v159, %v158
  %v219 = vpack.c.b16 %v161, %v160
  %v220 = vpack.c.b16 %v163, %v162
  %v221 = vpack.c.b16 %v165, %v164
  %v222 = vpack.c.b16 %v167, %v166
  %v223 = vpack.c.b16 %v169, %v168
  %v224 = vpack.c.b16 %v171, %v170
  %v225 = vpack.c.b16 %v173, %v172
  %v226 = vpack.c.b16 %v175, %v174
  %v227 = vpack.c.b16 %v177, %v176
  %v228 = vpack.c.b16 %v179, %v178
  %v229 = vpack.c.b16 %v181, %v180
  %v230 = vpack.c.b16 %v183, %v182
  %v231 = vpack.c.b16 %v185, %v184
  %v232 = vpack.c.b16 %v187, %v186
  %v233 = vpack.c.b16 %v189, %v188
  %v234 = vpack.c.b16 %v191, %v190
  %v235 = vpack.c.b16 %v193, %v192
  %v236 = vpack.c.b16 %v195, %v194
  %v237 = vpack.c.b16 %v197, %v196
  %v238 = vpack.c.b16 %v199, %v198
  %v239 = vpack.c.b16 %v201, %v200
  %v240 = vpack.c.b16 %v203, %v202
  %v241 = vpack.c.b16 %v205, %v204
  %v242 = vpack.c.b16 %v207, %v206
  %v243 = vpack.c.b16 %v209, %v208
  %v244 = vpack.c.b16 %v211, %v210
  %v245 = vpack.c.b16 %v213, %v212
  %v248 = vunpack.c.l.b16 %v84
  %v249 = vunpack.c.l.b16 %v85
  %v250 = vpack.c.b16 %v249, %v248
  %vm251 = vcmask 97280
  %v253 = vsel %vm251, %v214, 0
  %v256 = vsel %vm251, %v215, 0
  %v259 = vsel %vm251, %v216, 0
  %v262 = vsel %vm251, %v217, 0
  %v265 = vsel %vm251, %v218, 0
  %v268 = vsel %vm251, %v219, 0
  %v271 = vsel %vm251, %v220, 0
  %v274 = vsel %vm251, %v221, 0
  %v277 = vsel %vm251, %v222, 0
  %v280 = vsel %vm251, %v223, 0
  %v283 = vsel %vm251, %v224, 0
  %v286 = vsel %vm251, %v225, 0
  %v289 = vsel %vm251, %v226, 0
  %v292 = vsel %vm251, %v227, 0
  %v295 = vsel %vm251, %v228, 0
  %v298 = vsel %vm251, %v229, 0
  %v301 = vsel %vm251, %v230, 0
  %v304 = vsel %vm251, %v231, 0
  %v307 = vsel %vm251, %v232, 0
  %v310 = vsel %vm251, %v233, 0
  %v313 = vsel %vm251, %v234, 0
  %v316 = vsel %vm251, %v235, 0
  %v319 = vsel %vm251, %v236, 0
  %v322 = vsel %vm251, %v237, 0
  %v325 = vsel %vm251, %v238, 0
  %v328 = vsel %vm251, %v239, 0
  %v331 = vsel %vm251, %v240, 0
  %v334 = vsel %vm251, %v241, 0
  %v337 = vsel %vm251, %v242, 0
  %v340 = vsel %vm251, %v243, 0
  %v343 = vsel %vm251, %v244, 0
  %v346 = vsel %vm251, %v245, 0
  %vm348 = vcmask 1045504
  %v350 = vsel %vm348, %v250, 0
  %352 = vmatprep.subr.bf16.mxu0 0
  %353 = vmatpush1.bf16.msra.mxu0 %v350
  %354 = vmatprep.subr.bf16.mxu0 0
  %355 = vmatpush1.bf16.msra.mxu0 0
  %356 = vmatprep.subr.bf16.mxu0 0
  %357 = vmatpush1.bf16.msra.mxu0 0
  %358 = vmatprep.subr.bf16.mxu0 0
  %359 = vmatpush1.bf16.msra.mxu0 0
  %360 = vmatprep.subr.bf16.mxu0 0
  %361 = vmatpush1.bf16.msra.mxu0 0
  %362 = vmatprep.subr.bf16.mxu0 0
  %363 = vmatpush1.bf16.msra.mxu0 0
  %364 = vmatprep.subr.bf16.mxu0 0
  %365 = vmatpush1.bf16.msra.mxu0 0
  %366 = vmatprep.subr.bf16.mxu0 0
  %367 = vmatpush1.bf16.msra.mxu0 0
  %368 = vmatprep.subr.bf16.mxu0 0
  %369 = vmatpush1.bf16.msra.mxu0 0
  %370 = vmatprep.subr.bf16.mxu0 0
  %371 = vmatpush1.bf16.msra.mxu0 0
  %372 = vmatprep.subr.bf16.mxu0 0
  %373 = vmatpush1.bf16.msra.mxu0 0
  %374 = vmatprep.subr.bf16.mxu0 0
  %375 = vmatpush1.bf16.msra.mxu0 0
  %376 = vmatprep.subr.bf16.mxu0 0
  %377 = vmatpush1.bf16.msra.mxu0 0
  %378 = vmatprep.subr.bf16.mxu0 0
  %379 = vmatpush1.bf16.msra.mxu0 0
  %380 = vmatprep.subr.bf16.mxu0 0
  %381 = vmatpush1.bf16.msra.mxu0 0
  %382 = vmatprep.subr.bf16.mxu0 0
  %383 = vmatpush1.bf16.msra.mxu0 0
  %384 = vmatprep.mubr.bf16.mxu0 0
  %385 = vmatmul.mubr.bf16.gmra.mrb[0].mxu0 %v253
  %v386 = vpop.f32.mrb[0].mxu0
  %v387 = vadd.f32 0.0, %v386
  %v388 = vpop.f32.mrb[0].mxu0
  %v389 = vpop.f32.mrb[0].mxu0
  %v390 = vadd.f32 0.0, %v389
  %v391 = vpop.f32.mrb[0].mxu0
  %392 = vmatprep.mubr.bf16.mxu0 0
  %393 = vmatmul.mubr.bf16.gmra.mrb[0].mxu0 %v256
  %v394 = vpop.f32.mrb[0].mxu0
  %v395 = vadd.f32 0.0, %v394
  %v396 = vpop.f32.mrb[0].mxu0
  %v397 = vpop.f32.mrb[0].mxu0
  %v398 = vadd.f32 0.0, %v397
  %v399 = vpop.f32.mrb[0].mxu0
  %400 = vmatprep.mubr.bf16.mxu0 0
  %401 = vmatmul.mubr.bf16.gmra.mrb[0].mxu0 %v259
  %v402 = vpop.f32.mrb[0].mxu0
  %v403 = vadd.f32 0.0, %v402
  %v404 = vpop.f32.mrb[0].mxu0
  %v405 = vpop.f32.mrb[0].mxu0
  %v406 = vadd.f32 0.0, %v405
  %v407 = vpop.f32.mrb[0].mxu0
  %408 = vmatprep.mubr.bf16.mxu0 0
  %409 = vmatmul.mubr.bf16.gmra.mrb[0].mxu0 %v262
  %v410 = vpop.f32.mrb[0].mxu0
  %v411 = vadd.f32 0.0, %v410
  %v412 = vpop.f32.mrb[0].mxu0
  %v413 = vpop.f32.mrb[0].mxu0
  %v414 = vadd.f32 0.0, %v413
  %v415 = vpop.f32.mrb[0].mxu0
  %416 = vmatprep.mubr.bf16.mxu0 0
  %417 = vmatmul.mubr.bf16.gmra.mrb[0].mxu0 %v265
  %v418 = vpop.f32.mrb[0].mxu0
  %v419 = vadd.f32 0.0, %v418
  %v420 = vpop.f32.mrb[0].mxu0
  %v421 = vpop.f32.mrb[0].mxu0
  %v422 = vadd.f32 0.0, %v421
  %v423 = vpop.f32.mrb[0].mxu0
  %424 = vmatprep.mubr.bf16.mxu0 0
  %425 = vmatmul.mubr.bf16.gmra.mrb[0].mxu0 %v268
  %v426 = vpop.f32.mrb[0].mxu0
  %v427 = vadd.f32 0.0, %v426
  %v428 = vpop.f32.mrb[0].mxu0
  %v429 = vpop.f32.mrb[0].mxu0
  %v430 = vadd.f32 0.0, %v429
  %v431 = vpop.f32.mrb[0].mxu0
  %432 = vmatprep.mubr.bf16.mxu0 0
  %433 = vmatmul.mubr.bf16.gmra.mrb[0].mxu0 %v271
  %v434 = vpop.f32.mrb[0].mxu0
  %v435 = vadd.f32 0.0, %v434
  %v436 = vpop.f32.mrb[0].mxu0
  %v437 = vpop.f32.mrb[0].mxu0
  %v438 = vadd.f32 0.0, %v437
  %v439 = vpop.f32.mrb[0].mxu0
  %440 = vmatprep.mubr.bf16.mxu0 0
  %441 = vmatmul.mubr.bf16.gmra.mrb[0].mxu0 %v274
  %v442 = vpop.f32.mrb[0].mxu0
  %v443 = vadd.f32 0.0, %v442
  %v444 = vpop.f32.mrb[0].mxu0
  %v445 = vpop.f32.mrb[0].mxu0
  %v446 = vadd.f32 0.0, %v445
  %v447 = vpop.f32.mrb[0].mxu0
  %448 = vmatprep.mubr.bf16.mxu0 0
  %449 = vmatmul.mubr.bf16.gmra.mrb[0].mxu0 %v277
  %v450 = vpop.f32.mrb[0].mxu0
  %v451 = vadd.f32 0.0, %v450
  %v452 = vpop.f32.mrb[0].mxu0
  %v453 = vpop.f32.mrb[0].mxu0
  %v454 = vadd.f32 0.0, %v453
  %v455 = vpop.f32.mrb[0].mxu0
  %456 = vmatprep.mubr.bf16.mxu0 0
  %457 = vmatmul.mubr.bf16.gmra.mrb[0].mxu0 %v280
  %v458 = vpop.f32.mrb[0].mxu0
  %v459 = vadd.f32 0.0, %v458
  %v460 = vpop.f32.mrb[0].mxu0
  %v461 = vpop.f32.mrb[0].mxu0
  %v462 = vadd.f32 0.0, %v461
  %v463 = vpop.f32.mrb[0].mxu0
  %464 = vmatprep.mubr.bf16.mxu0 0
  %465 = vmatmul.mubr.bf16.gmra.mrb[0].mxu0 %v283
  %v466 = vpop.f32.mrb[0].mxu0
  %v467 = vadd.f32 0.0, %v466
  %v468 = vpop.f32.mrb[0].mxu0
  %v469 = vpop.f32.mrb[0].mxu0
  %v470 = vadd.f32 0.0, %v469
  %v471 = vpop.f32.mrb[0].mxu0
  %472 = vmatprep.mubr.bf16.mxu0 0
  %473 = vmatmul.mubr.bf16.gmra.mrb[0].mxu0 %v286
  %v474 = vpop.f32.mrb[0].mxu0
  %v475 = vadd.f32 0.0, %v474
  %v476 = vpop.f32.mrb[0].mxu0
  %v477 = vpop.f32.mrb[0].mxu0
  %v478 = vadd.f32 0.0, %v477
  %v479 = vpop.f32.mrb[0].mxu0
  %480 = vmatprep.mubr.bf16.mxu0 0
  %481 = vmatmul.mubr.bf16.gmra.mrb[0].mxu0 %v289
  %v482 = vpop.f32.mrb[0].mxu0
  %v483 = vadd.f32 0.0, %v482
  %v484 = vpop.f32.mrb[0].mxu0
  %v485 = vpop.f32.mrb[0].mxu0
  %v486 = vadd.f32 0.0, %v485
  %v487 = vpop.f32.mrb[0].mxu0
  %488 = vmatprep.mubr.bf16.mxu0 0
  %489 = vmatmul.mubr.bf16.gmra.mrb[0].mxu0 %v292
  %v490 = vpop.f32.mrb[0].mxu0
  %v491 = vadd.f32 0.0, %v490
  %v492 = vpop.f32.mrb[0].mxu0
  %v493 = vpop.f32.mrb[0].mxu0
  %v494 = vadd.f32 0.0, %v493
  %v495 = vpop.f32.mrb[0].mxu0
  %496 = vmatprep.mubr.bf16.mxu0 0
  %497 = vmatmul.mubr.bf16.gmra.mrb[0].mxu0 %v295
  %v498 = vpop.f32.mrb[0].mxu0
  %v499 = vadd.f32 0.0, %v498
  %v500 = vpop.f32.mrb[0].mxu0
  %v501 = vpop.f32.mrb[0].mxu0
  %v502 = vadd.f32 0.0, %v501
  %v503 = vpop.f32.mrb[0].mxu0
  %504 = vmatprep.mubr.bf16.mxu0 0
  %505 = vmatmul.mubr.bf16.gmra.mrb[0].mxu0 %v298
  %v506 = vpop.f32.mrb[0].mxu0
  %v507 = vadd.f32 0.0, %v506
  %v508 = vpop.f32.mrb[0].mxu0
  %v509 = vpop.f32.mrb[0].mxu0
  %v510 = vadd.f32 0.0, %v509
  %v511 = vpop.f32.mrb[0].mxu0
  %512 = vmatprep.mubr.bf16.mxu0 0
  %513 = vmatmul.mubr.bf16.gmra.mrb[0].mxu0 %v301
  %v514 = vpop.f32.mrb[0].mxu0
  %v515 = vadd.f32 0.0, %v514
  %v516 = vpop.f32.mrb[0].mxu0
  %v517 = vpop.f32.mrb[0].mxu0
  %v518 = vadd.f32 0.0, %v517
  %v519 = vpop.f32.mrb[0].mxu0
  %520 = vmatprep.mubr.bf16.mxu0 0
  %521 = vmatmul.mubr.bf16.gmra.mrb[0].mxu0 %v304
  %v522 = vpop.f32.mrb[0].mxu0
  %v523 = vadd.f32 0.0, %v522
  %v524 = vpop.f32.mrb[0].mxu0
  %v525 = vpop.f32.mrb[0].mxu0
  %v526 = vadd.f32 0.0, %v525
  %v527 = vpop.f32.mrb[0].mxu0
  %528 = vmatprep.mubr.bf16.mxu0 0
  %529 = vmatmul.mubr.bf16.gmra.mrb[0].mxu0 %v307
  %v530 = vpop.f32.mrb[0].mxu0
  %v531 = vadd.f32 0.0, %v530
  %v532 = vpop.f32.mrb[0].mxu0
  %v533 = vpop.f32.mrb[0].mxu0
  %v534 = vadd.f32 0.0, %v533
  %v535 = vpop.f32.mrb[0].mxu0
  %536 = vmatprep.mubr.bf16.mxu0 0
  %537 = vmatmul.mubr.bf16.gmra.mrb[0].mxu0 %v310
  %v538 = vpop.f32.mrb[0].mxu0
  %v539 = vadd.f32 0.0, %v538
  %v540 = vpop.f32.mrb[0].mxu0
  %v541 = vpop.f32.mrb[0].mxu0
  %v542 = vadd.f32 0.0, %v541
  %v543 = vpop.f32.mrb[0].mxu0
  %544 = vmatprep.mubr.bf16.mxu0 0
  %545 = vmatmul.mubr.bf16.gmra.mrb[0].mxu0 %v313
  %v546 = vpop.f32.mrb[0].mxu0
  %v547 = vadd.f32 0.0, %v546
  %v548 = vpop.f32.mrb[0].mxu0
  %v549 = vpop.f32.mrb[0].mxu0
  %v550 = vadd.f32 0.0, %v549
  %v551 = vpop.f32.mrb[0].mxu0
  %552 = vmatprep.mubr.bf16.mxu0 0
  %553 = vmatmul.mubr.bf16.gmra.mrb[0].mxu0 %v316
  %v554 = vpop.f32.mrb[0].mxu0
  %v555 = vadd.f32 0.0, %v554
  %v556 = vpop.f32.mrb[0].mxu0
  %v557 = vpop.f32.mrb[0].mxu0
  %v558 = vadd.f32 0.0, %v557
  %v559 = vpop.f32.mrb[0].mxu0
  %560 = vmatprep.mubr.bf16.mxu0 0
  %561 = vmatmul.mubr.bf16.gmra.mrb[0].mxu0 %v319
  %v562 = vpop.f32.mrb[0].mxu0
  %v563 = vadd.f32 0.0, %v562
  %v564 = vpop.f32.mrb[0].mxu0
  %v565 = vpop.f32.mrb[0].mxu0
  %v566 = vadd.f32 0.0, %v565
  %v567 = vpop.f32.mrb[0].mxu0
  %568 = vmatprep.mubr.bf16.mxu0 0
  %569 = vmatmul.mubr.bf16.gmra.mrb[0].mxu0 %v322
  %v570 = vpop.f32.mrb[0].mxu0
  %v571 = vadd.f32 0.0, %v570
  %v572 = vpop.f32.mrb[0].mxu0
  %v573 = vpop.f32.mrb[0].mxu0
  %v574 = vadd.f32 0.0, %v573
  %v575 = vpop.f32.mrb[0].mxu0
  %576 = vmatprep.mubr.bf16.mxu0 0
  %577 = vmatmul.mubr.bf16.gmra.mrb[0].mxu0 %v325
  %v578 = vpop.f32.mrb[0].mxu0
  %v579 = vadd.f32 0.0, %v578
  %v580 = vpop.f32.mrb[0].mxu0
  %v581 = vpop.f32.mrb[0].mxu0
  %v582 = vadd.f32 0.0, %v581
  %v583 = vpop.f32.mrb[0].mxu0
  %584 = vmatprep.mubr.bf16.mxu0 0
  %585 = vmatmul.mubr.bf16.gmra.mrb[0].mxu0 %v328
  %v586 = vpop.f32.mrb[0].mxu0
  %v587 = vadd.f32 0.0, %v586
  %v588 = vpop.f32.mrb[0].mxu0
  %v589 = vpop.f32.mrb[0].mxu0
  %v590 = vadd.f32 0.0, %v589
  %v591 = vpop.f32.mrb[0].mxu0
  %592 = vmatprep.mubr.bf16.mxu0 0
  %593 = vmatmul.mubr.bf16.gmra.mrb[0].mxu0 %v331
  %v594 = vpop.f32.mrb[0].mxu0
  %v595 = vadd.f32 0.0, %v594
  %v596 = vpop.f32.mrb[0].mxu0
  %v597 = vpop.f32.mrb[0].mxu0
  %v598 = vadd.f32 0.0, %v597
  %v599 = vpop.f32.mrb[0].mxu0
  %600 = vmatprep.mubr.bf16.mxu0 0
  %601 = vmatmul.mubr.bf16.gmra.mrb[0].mxu0 %v334
  %v602 = vpop.f32.mrb[0].mxu0
  %v603 = vadd.f32 0.0, %v602
  %v604 = vpop.f32.mrb[0].mxu0
  %v605 = vpop.f32.mrb[0].mxu0
  %v606 = vadd.f32 0.0, %v605
  %v607 = vpop.f32.mrb[0].mxu0
  %608 = vmatprep.mubr.bf16.mxu0 0
  %609 = vmatmul.mubr.bf16.gmra.mrb[0].mxu0 %v337
  %v610 = vpop.f32.mrb[0].mxu0
  %v611 = vadd.f32 0.0, %v610
  %v612 = vpop.f32.mrb[0].mxu0
  %v613 = vpop.f32.mrb[0].mxu0
  %v614 = vadd.f32 0.0, %v613
  %v615 = vpop.f32.mrb[0].mxu0
  %616 = vmatprep.mubr.bf16.mxu0 0
  %617 = vmatmul.mubr.bf16.gmra.mrb[0].mxu0 %v340
  %v618 = vpop.f32.mrb[0].mxu0
  %v619 = vadd.f32 0.0, %v618
  %v620 = vpop.f32.mrb[0].mxu0
  %v621 = vpop.f32.mrb[0].mxu0
  %v622 = vadd.f32 0.0, %v621
  %v623 = vpop.f32.mrb[0].mxu0
  %624 = vmatprep.mubr.bf16.mxu0 0
  %625 = vmatmul.mubr.bf16.gmra.mrb[0].mxu0 %v343
  %v626 = vpop.f32.mrb[0].mxu0
  %v627 = vadd.f32 0.0, %v626
  %v628 = vpop.f32.mrb[0].mxu0
  %v629 = vpop.f32.mrb[0].mxu0
  %v630 = vadd.f32 0.0, %v629
  %v631 = vpop.f32.mrb[0].mxu0
  %632 = vmatprep.mubr.bf16.mxu0 0
  %633 = vmatmul.mubr.bf16.gmra.mrb[0].mxu0 %v346
  %v634 = vpop.f32.mrb[0].mxu0
  %v635 = vadd.f32 0.0, %v634
  %v636 = vpop.f32.mrb[0].mxu0
  %v637 = vpop.f32.mrb[0].mxu0
  %v638 = vadd.f32 0.0, %v637
  %v639 = vpop.f32.mrb[0].mxu0
  %640 = vdwg.mxu0
  %v643 = vunpack.c.l.b16 %v15
  %v644 = vunpack.c.l.b16 %v16
  %v645 = vpack.c.b16 %v644, %v643
  %v648 = vunpack.c.l.b16 %v79
  %v649 = vunpack.c.l.b16 %v80
  %v650 = vpack.c.b16 %v649, %v648
  %v652 = vsel %vm251, %v645, 0
  %v655 = vsel %vm348, %v650, 0
  %657 = vmatprep.subr.bf16.mxu0 0
  %658 = vmatpush1.bf16.msra.mxu0 %v655
  %659 = vmatprep.subr.bf16.mxu0 0
  %660 = vmatpush1.bf16.msra.mxu0 0
  %661 = vmatprep.subr.bf16.mxu0 0
  %662 = vmatpush1.bf16.msra.mxu0 0
  %663 = vmatprep.subr.bf16.mxu0 0
  %664 = vmatpush1.bf16.msra.mxu0 0
  %665 = vmatprep.subr.bf16.mxu0 0
  %666 = vmatpush1.bf16.msra.mxu0 0
  %667 = vmatprep.subr.bf16.mxu0 0
  %668 = vmatpush1.bf16.msra.mxu0 0
  %669 = vmatprep.subr.bf16.mxu0 0
  %670 = vmatpush1.bf16.msra.mxu0 0
  %671 = vmatprep.subr.bf16.mxu0 0
  %672 = vmatpush1.bf16.msra.mxu0 0
  %673 = vmatprep.subr.bf16.mxu0 0
  %674 = vmatpush1.bf16.msra.mxu0 0
  %675 = vmatprep.subr.bf16.mxu0 0
  %676 = vmatpush1.bf16.msra.mxu0 0
  %677 = vmatprep.subr.bf16.mxu0 0
  %678 = vmatpush1.bf16.msra.mxu0 0
  %679 = vmatprep.subr.bf16.mxu0 0
  %680 = vmatpush1.bf16.msra.mxu0 0
  %681 = vmatprep.subr.bf16.mxu0 0
  %682 = vmatpush1.bf16.msra.mxu0 0
  %683 = vmatprep.subr.bf16.mxu0 0
  %684 = vmatpush1.bf16.msra.mxu0 0
  %685 = vmatprep.subr.bf16.mxu0 0
  %686 = vmatpush1.bf16.msra.mxu0 0
  %687 = vmatprep.subr.bf16.mxu0 0
  %688 = vmatpush1.bf16.msra.mxu0 0
  %689 = vmatprep.mubr.bf16.mxu0 0
  %690 = vmatmul.mubr.bf16.gmra.mrb[0].mxu0 %v652
  %v691 = vpop.f32.mrb[0].mxu0
  %v692 = vadd.f32 %v387, %v691
  %v693 = vpop.f32.mrb[0].mxu0
  %v694 = vpop.f32.mrb[0].mxu0
  %v695 = vadd.f32 %v390, %v694
  %v696 = vpop.f32.mrb[0].mxu0
  %697 = vmatprep.mubr.bf16.mxu0 0
  %698 = vmatmul.mubr.bf16.gmra.mrb[0].mxu0 %v253
  %v699 = vpop.f32.mrb[0].mxu0
  %v700 = vadd.f32 %v395, %v699
  %v701 = vpop.f32.mrb[0].mxu0
  %v702 = vpop.f32.mrb[0].mxu0
  %v703 = vadd.f32 %v398, %v702
  %v704 = vpop.f32.mrb[0].mxu0
  %705 = vmatprep.mubr.bf16.mxu0 0
  %706 = vmatmul.mubr.bf16.gmra.mrb[0].mxu0 %v256
  %v707 = vpop.f32.mrb[0].mxu0
  %v708 = vadd.f32 %v403, %v707
  %v709 = vpop.f32.mrb[0].mxu0
  %v710 = vpop.f32.mrb[0].mxu0
  %v711 = vadd.f32 %v406, %v710
  %v712 = vpop.f32.mrb[0].mxu0
  %713 = vmatprep.mubr.bf16.mxu0 0
  %714 = vmatmul.mubr.bf16.gmra.mrb[0].mxu0 %v259
  %v715 = vpop.f32.mrb[0].mxu0
  %v716 = vadd.f32 %v411, %v715
  %v717 = vpop.f32.mrb[0].mxu0
  %v718 = vpop.f32.mrb[0].mxu0
  %v719 = vadd.f32 %v414, %v718
  %v720 = vpop.f32.mrb[0].mxu0
  %721 = vmatprep.mubr.bf16.mxu0 0
  %722 = vmatmul.mubr.bf16.gmra.mrb[0].mxu0 %v262
  %v723 = vpop.f32.mrb[0].mxu0
  %v724 = vadd.f32 %v419, %v723
  %v725 = vpop.f32.mrb[0].mxu0
  %v726 = vpop.f32.mrb[0].mxu0
  %v727 = vadd.f32 %v422, %v726
  %v728 = vpop.f32.mrb[0].mxu0
  %729 = vmatprep.mubr.bf16.mxu0 0
  %730 = vmatmul.mubr.bf16.gmra.mrb[0].mxu0 %v265
  %v731 = vpop.f32.mrb[0].mxu0
  %v732 = vadd.f32 %v427, %v731
  %v733 = vpop.f32.mrb[0].mxu0
  %v734 = vpop.f32.mrb[0].mxu0
  %v735 = vadd.f32 %v430, %v734
  %v736 = vpop.f32.mrb[0].mxu0
  %737 = vmatprep.mubr.bf16.mxu0 0
  %738 = vmatmul.mubr.bf16.gmra.mrb[0].mxu0 %v268
  %v739 = vpop.f32.mrb[0].mxu0
  %v740 = vadd.f32 %v435, %v739
  %v741 = vpop.f32.mrb[0].mxu0
  %v742 = vpop.f32.mrb[0].mxu0
  %v743 = vadd.f32 %v438, %v742
  %v744 = vpop.f32.mrb[0].mxu0
  %745 = vmatprep.mubr.bf16.mxu0 0
  %746 = vmatmul.mubr.bf16.gmra.mrb[0].mxu0 %v271
  %v747 = vpop.f32.mrb[0].mxu0
  %v748 = vadd.f32 %v443, %v747
  %v749 = vpop.f32.mrb[0].mxu0
  %v750 = vpop.f32.mrb[0].mxu0
  %v751 = vadd.f32 %v446, %v750
  %v752 = vpop.f32.mrb[0].mxu0
  %753 = vmatprep.mubr.bf16.mxu0 0
  %754 = vmatmul.mubr.bf16.gmra.mrb[0].mxu0 %v274
  %v755 = vpop.f32.mrb[0].mxu0
  %v756 = vadd.f32 %v451, %v755
  %v757 = vpop.f32.mrb[0].mxu0
  %v758 = vpop.f32.mrb[0].mxu0
  %v759 = vadd.f32 %v454, %v758
  %v760 = vpop.f32.mrb[0].mxu0
  %761 = vmatprep.mubr.bf16.mxu0 0
  %762 = vmatmul.mubr.bf16.gmra.mrb[0].mxu0 %v277
  %v763 = vpop.f32.mrb[0].mxu0
  %v764 = vadd.f32 %v459, %v763
  %v765 = vpop.f32.mrb[0].mxu0
  %v766 = vpop.f32.mrb[0].mxu0
  %v767 = vadd.f32 %v462, %v766
  %v768 = vpop.f32.mrb[0].mxu0
  %769 = vmatprep.mubr.bf16.mxu0 0
  %770 = vmatmul.mubr.bf16.gmra.mrb[0].mxu0 %v280
  %v771 = vpop.f32.mrb[0].mxu0
  %v772 = vadd.f32 %v467, %v771
  %v773 = vpop.f32.mrb[0].mxu0
  %v774 = vpop.f32.mrb[0].mxu0
  %v775 = vadd.f32 %v470, %v774
  %v776 = vpop.f32.mrb[0].mxu0
  %777 = vmatprep.mubr.bf16.mxu0 0
  %778 = vmatmul.mubr.bf16.gmra.mrb[0].mxu0 %v283
  %v779 = vpop.f32.mrb[0].mxu0
  %v780 = vadd.f32 %v475, %v779
  %v781 = vpop.f32.mrb[0].mxu0
  %v782 = vpop.f32.mrb[0].mxu0
  %v783 = vadd.f32 %v478, %v782
  %v784 = vpop.f32.mrb[0].mxu0
  %785 = vmatprep.mubr.bf16.mxu0 0
  %786 = vmatmul.mubr.bf16.gmra.mrb[0].mxu0 %v286
  %v787 = vpop.f32.mrb[0].mxu0
  %v788 = vadd.f32 %v483, %v787
  %v789 = vpop.f32.mrb[0].mxu0
  %v790 = vpop.f32.mrb[0].mxu0
  %v791 = vadd.f32 %v486, %v790
  %v792 = vpop.f32.mrb[0].mxu0
  %793 = vmatprep.mubr.bf16.mxu0 0
  %794 = vmatmul.mubr.bf16.gmra.mrb[0].mxu0 %v289
  %v795 = vpop.f32.mrb[0].mxu0
  %v796 = vadd.f32 %v491, %v795
  %v797 = vpop.f32.mrb[0].mxu0
  %v798 = vpop.f32.mrb[0].mxu0
  %v799 = vadd.f32 %v494, %v798
  %v800 = vpop.f32.mrb[0].mxu0
  %801 = vmatprep.mubr.bf16.mxu0 0
  %802 = vmatmul.mubr.bf16.gmra.mrb[0].mxu0 %v292
  %v803 = vpop.f32.mrb[0].mxu0
  %v804 = vadd.f32 %v499, %v803
  %v805 = vpop.f32.mrb[0].mxu0
  %v806 = vpop.f32.mrb[0].mxu0
  %v807 = vadd.f32 %v502, %v806
  %v808 = vpop.f32.mrb[0].mxu0
  %809 = vmatprep.mubr.bf16.mxu0 0
  %810 = vmatmul.mubr.bf16.gmra.mrb[0].mxu0 %v295
  %v811 = vpop.f32.mrb[0].mxu0
  %v812 = vadd.f32 %v507, %v811
  %v813 = vpop.f32.mrb[0].mxu0
  %v814 = vpop.f32.mrb[0].mxu0
  %v815 = vadd.f32 %v510, %v814
  %v816 = vpop.f32.mrb[0].mxu0
  %817 = vmatprep.mubr.bf16.mxu0 0
  %818 = vmatmul.mubr.bf16.gmra.mrb[0].mxu0 %v298
  %v819 = vpop.f32.mrb[0].mxu0
  %v820 = vadd.f32 %v515, %v819
  %v821 = vpop.f32.mrb[0].mxu0
  %v822 = vpop.f32.mrb[0].mxu0
  %v823 = vadd.f32 %v518, %v822
  %v824 = vpop.f32.mrb[0].mxu0
  %825 = vmatprep.mubr.bf16.mxu0 0
  %826 = vmatmul.mubr.bf16.gmra.mrb[0].mxu0 %v301
  %v827 = vpop.f32.mrb[0].mxu0
  %v828 = vadd.f32 %v523, %v827
  %v829 = vpop.f32.mrb[0].mxu0
  %v830 = vpop.f32.mrb[0].mxu0
  %v831 = vadd.f32 %v526, %v830
  %v832 = vpop.f32.mrb[0].mxu0
  %833 = vmatprep.mubr.bf16.mxu0 0
  %834 = vmatmul.mubr.bf16.gmra.mrb[0].mxu0 %v304
  %v835 = vpop.f32.mrb[0].mxu0
  %v836 = vadd.f32 %v531, %v835
  %v837 = vpop.f32.mrb[0].mxu0
  %v838 = vpop.f32.mrb[0].mxu0
  %v839 = vadd.f32 %v534, %v838
  %v840 = vpop.f32.mrb[0].mxu0
  %841 = vmatprep.mubr.bf16.mxu0 0
  %842 = vmatmul.mubr.bf16.gmra.mrb[0].mxu0 %v307
  %v843 = vpop.f32.mrb[0].mxu0
  %v844 = vadd.f32 %v539, %v843
  %v845 = vpop.f32.mrb[0].mxu0
  %v846 = vpop.f32.mrb[0].mxu0
  %v847 = vadd.f32 %v542, %v846
  %v848 = vpop.f32.mrb[0].mxu0
  %849 = vmatprep.mubr.bf16.mxu0 0
  %850 = vmatmul.mubr.bf16.gmra.mrb[0].mxu0 %v310
  %v851 = vpop.f32.mrb[0].mxu0
  %v852 = vadd.f32 %v547, %v851
  %v853 = vpop.f32.mrb[0].mxu0
  %v854 = vpop.f32.mrb[0].mxu0
  %v855 = vadd.f32 %v550, %v854
  %v856 = vpop.f32.mrb[0].mxu0
  %857 = vmatprep.mubr.bf16.mxu0 0
  %858 = vmatmul.mubr.bf16.gmra.mrb[0].mxu0 %v313
  %v859 = vpop.f32.mrb[0].mxu0
  %v860 = vadd.f32 %v555, %v859
  %v861 = vpop.f32.mrb[0].mxu0
  %v862 = vpop.f32.mrb[0].mxu0
  %v863 = vadd.f32 %v558, %v862
  %v864 = vpop.f32.mrb[0].mxu0
  %865 = vmatprep.mubr.bf16.mxu0 0
  %866 = vmatmul.mubr.bf16.gmra.mrb[0].mxu0 %v316
  %v867 = vpop.f32.mrb[0].mxu0
  %v868 = vadd.f32 %v563, %v867
  %v869 = vpop.f32.mrb[0].mxu0
  %v870 = vpop.f32.mrb[0].mxu0
  %v871 = vadd.f32 %v566, %v870
  %v872 = vpop.f32.mrb[0].mxu0
  %873 = vmatprep.mubr.bf16.mxu0 0
  %874 = vmatmul.mubr.bf16.gmra.mrb[0].mxu0 %v319
  %v875 = vpop.f32.mrb[0].mxu0
  %v876 = vadd.f32 %v571, %v875
  %v877 = vpop.f32.mrb[0].mxu0
  %v878 = vpop.f32.mrb[0].mxu0
  %v879 = vadd.f32 %v574, %v878
  %v880 = vpop.f32.mrb[0].mxu0
  %881 = vmatprep.mubr.bf16.mxu0 0
  %882 = vmatmul.mubr.bf16.gmra.mrb[0].mxu0 %v322
  %v883 = vpop.f32.mrb[0].mxu0
  %v884 = vadd.f32 %v579, %v883
  %v885 = vpop.f32.mrb[0].mxu0
  %v886 = vpop.f32.mrb[0].mxu0
  %v887 = vadd.f32 %v582, %v886
  %v888 = vpop.f32.mrb[0].mxu0
  %889 = vmatprep.mubr.bf16.mxu0 0
  %890 = vmatmul.mubr.bf16.gmra.mrb[0].mxu0 %v325
  %v891 = vpop.f32.mrb[0].mxu0
  %v892 = vadd.f32 %v587, %v891
  %v893 = vpop.f32.mrb[0].mxu0
  %v894 = vpop.f32.mrb[0].mxu0
  %v895 = vadd.f32 %v590, %v894
  %v896 = vpop.f32.mrb[0].mxu0
  %897 = vmatprep.mubr.bf16.mxu0 0
  %898 = vmatmul.mubr.bf16.gmra.mrb[0].mxu0 %v328
  %v899 = vpop.f32.mrb[0].mxu0
  %v900 = vadd.f32 %v595, %v899
  %v901 = vpop.f32.mrb[0].mxu0
  %v902 = vpop.f32.mrb[0].mxu0
  %v903 = vadd.f32 %v598, %v902
  %v904 = vpop.f32.mrb[0].mxu0
  %905 = vmatprep.mubr.bf16.mxu0 0
  %906 = vmatmul.mubr.bf16.gmra.mrb[0].mxu0 %v331
  %v907 = vpop.f32.mrb[0].mxu0
  %v908 = vadd.f32 %v603, %v907
  %v909 = vpop.f32.mrb[0].mxu0
  %v910 = vpop.f32.mrb[0].mxu0
  %v911 = vadd.f32 %v606, %v910
  %v912 = vpop.f32.mrb[0].mxu0
  %913 = vmatprep.mubr.bf16.mxu0 0
  %914 = vmatmul.mubr.bf16.gmra.mrb[0].mxu0 %v334
  %v915 = vpop.f32.mrb[0].mxu0
  %v916 = vadd.f32 %v611, %v915
  %v917 = vpop.f32.mrb[0].mxu0
  %v918 = vpop.f32.mrb[0].mxu0
  %v919 = vadd.f32 %v614, %v918
  %v920 = vpop.f32.mrb[0].mxu0
  %921 = vmatprep.mubr.bf16.mxu0 0
  %922 = vmatmul.mubr.bf16.gmra.mrb[0].mxu0 %v337
  %v923 = vpop.f32.mrb[0].mxu0
  %v924 = vadd.f32 %v619, %v923
  %v925 = vpop.f32.mrb[0].mxu0
  %v926 = vpop.f32.mrb[0].mxu0
  %v927 = vadd.f32 %v622, %v926
  %v928 = vpop.f32.mrb[0].mxu0
  %929 = vmatprep.mubr.bf16.mxu0 0
  %930 = vmatmul.mubr.bf16.gmra.mrb[0].mxu0 %v340
  %v931 = vpop.f32.mrb[0].mxu0
  %v932 = vadd.f32 %v627, %v931
  %v933 = vpop.f32.mrb[0].mxu0
  %v934 = vpop.f32.mrb[0].mxu0
  %v935 = vadd.f32 %v630, %v934
  %v936 = vpop.f32.mrb[0].mxu0
  %937 = vmatprep.mubr.bf16.mxu0 0
  %938 = vmatmul.mubr.bf16.gmra.mrb[0].mxu0 %v343
  %v939 = vpop.f32.mrb[0].mxu0
  %v940 = vadd.f32 %v635, %v939
  %v941 = vpop.f32.mrb[0].mxu0
  %v942 = vpop.f32.mrb[0].mxu0
  %v943 = vadd.f32 %v638, %v942
  %v944 = vpop.f32.mrb[0].mxu0
  %945 = vdwg.mxu0
  %v946 = vld [vmem:[%s0 + $0x10] sm:$0xf]
  %v947 = vld [vmem:[%s0 + $0x14] sm:$0xf]
  %v948 = vld [vmem:[%s0 + $0x18] sm:$0xf]
  %v949 = vld [vmem:[%s0 + $0x1c] sm:$0xf]
  %v950 = vld [vmem:[%s0 + $0x20] sm:$0xf]
  %v951 = vld [vmem:[%s0 + $0x24] sm:$0xf]
  %v952 = vld [vmem:[%s0 + $0x28] sm:$0xf]
  %v953 = vld [vmem:[%s0 + $0x2c] sm:$0xf]
  %v954 = vld [vmem:[%s0 + $0x30] sm:$0xf]
  %v955 = vld [vmem:[%s0 + $0x34] sm:$0xf]
  %v956 = vld [vmem:[%s0 + $0x38] sm:$0xf]
  %v957 = vld [vmem:[%s0 + $0x3c] sm:$0xf]
  %v958 = vld [vmem:[%s0 + $0x40] sm:$0xf]
  %v959 = vld [vmem:[%s0 + $0x44] sm:$0xf]
  %v960 = vld [vmem:[%s0 + $0x48] sm:$0xf]
  %v961 = vld [vmem:[%s0 + $0x4c] sm:$0xf]
  %v962 = vld [vmem:[%s0 + $0x50] sm:$0xf]
  %v963 = vld [vmem:[%s0 + $0x54] sm:$0xf]
  %v964 = vld [vmem:[%s0 + $0x58] sm:$0xf]
  %v965 = vld [vmem:[%s0 + $0x5c] sm:$0xf]
  %v966 = vld [vmem:[%s0 + $0x60] sm:$0xf]
  %v967 = vld [vmem:[%s0 + $0x64] sm:$0xf]
  %v968 = vld [vmem:[%s0 + $0x68] sm:$0xf]
  %v969 = vld [vmem:[%s0 + $0x6c] sm:$0xf]
  %v970 = vld [vmem:[%s0 + $0x70] sm:$0xf]
  %v971 = vld [vmem:[%s0 + $0x74] sm:$0xf]
  %v972 = vld [vmem:[%s0 + $0x78] sm:$0xf]
  %v973 = vld [vmem:[%s0 + $0x7c] sm:$0xf]
  %v974 = vld [vmem:[%s0 + $0x80] sm:$0xf]
  %v975 = vld [vmem:[%s0 + $0x84] sm:$0xf]
  %v976 = vld [vmem:[%s0 + $0x88] sm:$0xf]
  %v977 = vld [vmem:[%s0 + $0x8c] sm:$0xf]
  %v978 = vld [vmem:[%s0 + $0x90] sm:$0xf]
  %v979 = vld [vmem:[%s0 + $0x94] sm:$0xf]
  %v980 = vld [vmem:[%s0 + $0x98] sm:$0xf]
  %v981 = vld [vmem:[%s0 + $0x9c] sm:$0xf]
  %v982 = vld [vmem:[%s0 + $0xa0] sm:$0xf]
  %v983 = vld [vmem:[%s0 + $0xa4] sm:$0xf]
  %v984 = vld [vmem:[%s0 + $0xa8] sm:$0xf]
  %v985 = vld [vmem:[%s0 + $0xac] sm:$0xf]
  %v986 = vld [vmem:[%s0 + $0xb0] sm:$0xf]
  %v987 = vld [vmem:[%s0 + $0xb4] sm:$0xf]
  %v988 = vld [vmem:[%s0 + $0xb8] sm:$0xf]
  %v989 = vld [vmem:[%s0 + $0xbc] sm:$0xf]
  %v990 = vld [vmem:[%s0 + $0xc0] sm:$0xf]
  %v991 = vld [vmem:[%s0 + $0xc4] sm:$0xf]
  %v992 = vld [vmem:[%s0 + $0xc8] sm:$0xf]
  %v993 = vld [vmem:[%s0 + $0xcc] sm:$0xf]
  %v994 = vld [vmem:[%s0 + $0xd0] sm:$0xf]
  %v995 = vld [vmem:[%s0 + $0xd4] sm:$0xf]
  %v996 = vld [vmem:[%s0 + $0xd8] sm:$0xf]
  %v997 = vld [vmem:[%s0 + $0xdc] sm:$0xf]
  %v998 = vld [vmem:[%s0 + $0xe0] sm:$0xf]
  %v999 = vld [vmem:[%s0 + $0xe4] sm:$0xf]
  %v1000 = vld [vmem:[%s0 + $0xe8] sm:$0xf]
  %v1001 = vld [vmem:[%s0 + $0xec] sm:$0xf]
  %v1002 = vld [vmem:[%s0 + $0xf0] sm:$0xf]
  %v1003 = vld [vmem:[%s0 + $0xf4] sm:$0xf]
  %v1004 = vld [vmem:[%s0 + $0xf8] sm:$0xf]
  %v1005 = vld [vmem:[%s0 + $0xfc] sm:$0xf]
  %v1006 = vld [vmem:[%s0 + $0x100] sm:$0xf]
  %v1007 = vld [vmem:[%s0 + $0x104] sm:$0xf]
  %v1008 = vld [vmem:[%s0 + $0x108] sm:$0xf]
  %v1009 = vld [vmem:[%s0 + $0x10c] sm:$0xf]
  %s1010 = scalar_lea.vmem %s1, 16
  %v1011 = vld [vmem:[%s1010] sm:$0xf]
  %v1012 = vld [vmem:[%s1010 + $0x4] sm:$0x3]
  %v1077 = vunpack.c.l.b16 %v946
  %v1078 = vunpack.c.l.b16 %v947
  %v1079 = vunpack.c.l.b16 %v948
  %v1080 = vunpack.c.l.b16 %v949
  %v1081 = vunpack.c.l.b16 %v950
  %v1082 = vunpack.c.l.b16 %v951
  %v1083 = vunpack.c.l.b16 %v952
  %v1084 = vunpack.c.l.b16 %v953
  %v1085 = vunpack.c.l.b16 %v954
  %v1086 = vunpack.c.l.b16 %v955
  %v1087 = vunpack.c.l.b16 %v956
  %v1088 = vunpack.c.l.b16 %v957
  %v1089 = vunpack.c.l.b16 %v958
  %v1090 = vunpack.c.l.b16 %v959
  %v1091 = vunpack.c.l.b16 %v960
  %v1092 = vunpack.c.l.b16 %v961
  %v1093 = vunpack.c.l.b16 %v962
  %v1094 = vunpack.c.l.b16 %v963
  %v1095 = vunpack.c.l.b16 %v964
  %v1096 = vunpack.c.l.b16 %v965
  %v1097 = vunpack.c.l.b16 %v966
  %v1098 = vunpack.c.l.b16 %v967
  %v1099 = vunpack.c.l.b16 %v968
  %v1100 = vunpack.c.l.b16 %v969
  %v1101 = vunpack.c.l.b16 %v970
  %v1102 = vunpack.c.l.b16 %v971
  %v1103 = vunpack.c.l.b16 %v972
  %v1104 = vunpack.c.l.b16 %v973
  %v1105 = vunpack.c.l.b16 %v974
  %v1106 = vunpack.c.l.b16 %v975
  %v1107 = vunpack.c.l.b16 %v976
  %v1108 = vunpack.c.l.b16 %v977
  %v1109 = vunpack.c.l.b16 %v978
  %v1110 = vunpack.c.l.b16 %v979
  %v1111 = vunpack.c.l.b16 %v980
  %v1112 = vunpack.c.l.b16 %v981
  %v1113 = vunpack.c.l.b16 %v982
  %v1114 = vunpack.c.l.b16 %v983
  %v1115 = vunpack.c.l.b16 %v984
  %v1116 = vunpack.c.l.b16 %v985
  %v1117 = vunpack.c.l.b16 %v986
  %v1118 = vunpack.c.l.b16 %v987
  %v1119 = vunpack.c.l.b16 %v988
  %v1120 = vunpack.c.l.b16 %v989
  %v1121 = vunpack.c.l.b16 %v990
  %v1122 = vunpack.c.l.b16 %v991
  %v1123 = vunpack.c.l.b16 %v992
  %v1124 = vunpack.c.l.b16 %v993
  %v1125 = vunpack.c.l.b16 %v994
  %v1126 = vunpack.c.l.b16 %v995
  %v1127 = vunpack.c.l.b16 %v996
  %v1128 = vunpack.c.l.b16 %v997
  %v1129 = vunpack.c.l.b16 %v998
  %v1130 = vunpack.c.l.b16 %v999
  %v1131 = vunpack.c.l.b16 %v1000
  %v1132 = vunpack.c.l.b16 %v1001
  %v1133 = vunpack.c.l.b16 %v1002
  %v1134 = vunpack.c.l.b16 %v1003
  %v1135 = vunpack.c.l.b16 %v1004
  %v1136 = vunpack.c.l.b16 %v1005
  %v1137 = vunpack.c.l.b16 %v1006
  %v1138 = vunpack.c.l.b16 %v1007
  %v1139 = vunpack.c.l.b16 %v1008
  %v1140 = vunpack.c.l.b16 %v1009
  %v1141 = vpack.c.b16 %v1078, %v1077
  %v1142 = vpack.c.b16 %v1080, %v1079
  %v1143 = vpack.c.b16 %v1082, %v1081
  %v1144 = vpack.c.b16 %v1084, %v1083
  %v1145 = vpack.c.b16 %v1086, %v1085
  %v1146 = vpack.c.b16 %v1088, %v1087
  %v1147 = vpack.c.b16 %v1090, %v1089
  %v1148 = vpack.c.b16 %v1092, %v1091
  %v1149 = vpack.c.b16 %v1094, %v1093
  %v1150 = vpack.c.b16 %v1096, %v1095
  %v1151 = vpack.c.b16 %v1098, %v1097
  %v1152 = vpack.c.b16 %v1100, %v1099
  %v1153 = vpack.c.b16 %v1102, %v1101
  %v1154 = vpack.c.b16 %v1104, %v1103
  %v1155 = vpack.c.b16 %v1106, %v1105
  %v1156 = vpack.c.b16 %v1108, %v1107
  %v1157 = vpack.c.b16 %v1110, %v1109
  %v1158 = vpack.c.b16 %v1112, %v1111
  %v1159 = vpack.c.b16 %v1114, %v1113
  %v1160 = vpack.c.b16 %v1116, %v1115
  %v1161 = vpack.c.b16 %v1118, %v1117
  %v1162 = vpack.c.b16 %v1120, %v1119
  %v1163 = vpack.c.b16 %v1122, %v1121
  %v1164 = vpack.c.b16 %v1124, %v1123
  %v1165 = vpack.c.b16 %v1126, %v1125
  %v1166 = vpack.c.b16 %v1128, %v1127
  %v1167 = vpack.c.b16 %v1130, %v1129
  %v1168 = vpack.c.b16 %v1132, %v1131
  %v1169 = vpack.c.b16 %v1134, %v1133
  %v1170 = vpack.c.b16 %v1136, %v1135
  %v1171 = vpack.c.b16 %v1138, %v1137
  %v1172 = vpack.c.b16 %v1140, %v1139
  %v1175 = vunpack.c.l.b16 %v1011
  %v1176 = vunpack.c.l.b16 %v1012
  %v1177 = vpack.c.b16 %v1176, %v1175
  %v1179 = vsel %vm251, %v1141, 0
  %v1182 = vsel %vm251, %v1142, 0
  %v1185 = vsel %vm251, %v1143, 0
  %v1188 = vsel %vm251, %v1144, 0
  %v1191 = vsel %vm251, %v1145, 0
  %v1194 = vsel %vm251, %v1146, 0
  %v1197 = vsel %vm251, %v1147, 0
  %v1200 = vsel %vm251, %v1148, 0
  %v1203 = vsel %vm251, %v1149, 0
  %v1206 = vsel %vm251, %v1150, 0
  %v1209 = vsel %vm251, %v1151, 0
  %v1212 = vsel %vm251, %v1152, 0
  %v1215 = vsel %vm251, %v1153, 0
  %v1218 = vsel %vm251, %v1154, 0
  %v1221 = vsel %vm251, %v1155, 0
  %v1224 = vsel %vm251, %v1156, 0
  %v1227 = vsel %vm251, %v1157, 0
  %v1230 = vsel %vm251, %v1158, 0
  %v1233 = vsel %vm251, %v1159, 0
  %v1236 = vsel %vm251, %v1160, 0
  %v1239 = vsel %vm251, %v1161, 0
  %v1242 = vsel %vm251, %v1162, 0
  %v1245 = vsel %vm251, %v1163, 0
  %v1248 = vsel %vm251, %v1164, 0
  %v1251 = vsel %vm251, %v1165, 0
  %v1254 = vsel %vm251, %v1166, 0
  %v1257 = vsel %vm251, %v1167, 0
  %v1260 = vsel %vm251, %v1168, 0
  %v1263 = vsel %vm251, %v1169, 0
  %v1266 = vsel %vm251, %v1170, 0
  %v1269 = vsel %vm251, %v1171, 0
  %v1272 = vsel %vm251, %v1172, 0
  %v1275 = vsel %vm348, %v1177, 0
  %1277 = vmatprep.subr.bf16.mxu0 0
  %1278 = vmatpush1.bf16.msra.mxu0 %v1275
  %1279 = vmatprep.subr.bf16.mxu0 0
  %1280 = vmatpush1.bf16.msra.mxu0 0
  %1281 = vmatprep.subr.bf16.mxu0 0
  %1282 = vmatpush1.bf16.msra.mxu0 0
  %1283 = vmatprep.subr.bf16.mxu0 0
  %1284 = vmatpush1.bf16.msra.mxu0 0
  %1285 = vmatprep.subr.bf16.mxu0 0
  %1286 = vmatpush1.bf16.msra.mxu0 0
  %1287 = vmatprep.subr.bf16.mxu0 0
  %1288 = vmatpush1.bf16.msra.mxu0 0
  %1289 = vmatprep.subr.bf16.mxu0 0
  %1290 = vmatpush1.bf16.msra.mxu0 0
  %1291 = vmatprep.subr.bf16.mxu0 0
  %1292 = vmatpush1.bf16.msra.mxu0 0
  %1293 = vmatprep.subr.bf16.mxu0 0
  %1294 = vmatpush1.bf16.msra.mxu0 0
  %1295 = vmatprep.subr.bf16.mxu0 0
  %1296 = vmatpush1.bf16.msra.mxu0 0
  %1297 = vmatprep.subr.bf16.mxu0 0
  %1298 = vmatpush1.bf16.msra.mxu0 0
  %1299 = vmatprep.subr.bf16.mxu0 0
  %1300 = vmatpush1.bf16.msra.mxu0 0
  %1301 = vmatprep.subr.bf16.mxu0 0
  %1302 = vmatpush1.bf16.msra.mxu0 0
  %1303 = vmatprep.subr.bf16.mxu0 0
  %1304 = vmatpush1.bf16.msra.mxu0 0
  %1305 = vmatprep.subr.bf16.mxu0 0
  %1306 = vmatpush1.bf16.msra.mxu0 0
  %1307 = vmatprep.subr.bf16.mxu0 0
  %1308 = vmatpush1.bf16.msra.mxu0 0
  %1309 = vmatprep.mubr.bf16.mxu0 0
  %1310 = vmatmul.mubr.bf16.gmra.mrb[0].mxu0 %v1179
  %v1311 = vpop.f32.mrb[0].mxu0
  %v1312 = vadd.f32 0.0, %v1311
  %v1313 = vpop.f32.mrb[0].mxu0
  %v1314 = vpop.f32.mrb[0].mxu0
  %v1315 = vadd.f32 0.0, %v1314
  %v1316 = vpop.f32.mrb[0].mxu0
  %1317 = vmatprep.mubr.bf16.mxu0 0
  %1318 = vmatmul.mubr.bf16.gmra.mrb[0].mxu0 %v1182
  %v1319 = vpop.f32.mrb[0].mxu0
  %v1320 = vadd.f32 0.0, %v1319
  %v1321 = vpop.f32.mrb[0].mxu0
  %v1322 = vpop.f32.mrb[0].mxu0
  %v1323 = vadd.f32 0.0, %v1322
  %v1324 = vpop.f32.mrb[0].mxu0
  %1325 = vmatprep.mubr.bf16.mxu0 0
  %1326 = vmatmul.mubr.bf16.gmra.mrb[0].mxu0 %v1185
  %v1327 = vpop.f32.mrb[0].mxu0
  %v1328 = vadd.f32 0.0, %v1327
  %v1329 = vpop.f32.mrb[0].mxu0
  %v1330 = vpop.f32.mrb[0].mxu0
  %v1331 = vadd.f32 0.0, %v1330
  %v1332 = vpop.f32.mrb[0].mxu0
  %1333 = vmatprep.mubr.bf16.mxu0 0
  %1334 = vmatmul.mubr.bf16.gmra.mrb[0].mxu0 %v1188
  %v1335 = vpop.f32.mrb[0].mxu0
  %v1336 = vadd.f32 0.0, %v1335
  %v1337 = vpop.f32.mrb[0].mxu0
  %v1338 = vpop.f32.mrb[0].mxu0
  %v1339 = vadd.f32 0.0, %v1338
  %v1340 = vpop.f32.mrb[0].mxu0
  %1341 = vmatprep.mubr.bf16.mxu0 0
  %1342 = vmatmul.mubr.bf16.gmra.mrb[0].mxu0 %v1191
  %v1343 = vpop.f32.mrb[0].mxu0
  %v1344 = vadd.f32 0.0, %v1343
  %v1345 = vpop.f32.mrb[0].mxu0
  %v1346 = vpop.f32.mrb[0].mxu0
  %v1347 = vadd.f32 0.0, %v1346
  %v1348 = vpop.f32.mrb[0].mxu0
  %1349 = vmatprep.mubr.bf16.mxu0 0
  %1350 = vmatmul.mubr.bf16.gmra.mrb[0].mxu0 %v1194
  %v1351 = vpop.f32.mrb[0].mxu0
  %v1352 = vadd.f32 0.0, %v1351
  %v1353 = vpop.f32.mrb[0].mxu0
  %v1354 = vpop.f32.mrb[0].mxu0
  %v1355 = vadd.f32 0.0, %v1354
  %v1356 = vpop.f32.mrb[0].mxu0
  %1357 = vmatprep.mubr.bf16.mxu0 0
  %1358 = vmatmul.mubr.bf16.gmra.mrb[0].mxu0 %v1197
  %v1359 = vpop.f32.mrb[0].mxu0
  %v1360 = vadd.f32 0.0, %v1359
  %v1361 = vpop.f32.mrb[0].mxu0
  %v1362 = vpop.f32.mrb[0].mxu0
  %v1363 = vadd.f32 0.0, %v1362
  %v1364 = vpop.f32.mrb[0].mxu0
  %1365 = vmatprep.mubr.bf16.mxu0 0
  %1366 = vmatmul.mubr.bf16.gmra.mrb[0].mxu0 %v1200
  %v1367 = vpop.f32.mrb[0].mxu0
  %v1368 = vadd.f32 0.0, %v1367
  %v1369 = vpop.f32.mrb[0].mxu0
  %v1370 = vpop.f32.mrb[0].mxu0
  %v1371 = vadd.f32 0.0, %v1370
  %v1372 = vpop.f32.mrb[0].mxu0
  %1373 = vmatprep.mubr.bf16.mxu0 0
  %1374 = vmatmul.mubr.bf16.gmra.mrb[0].mxu0 %v1203
  %v1375 = vpop.f32.mrb[0].mxu0
  %v1376 = vadd.f32 0.0, %v1375
  %v1377 = vpop.f32.mrb[0].mxu0
  %v1378 = vpop.f32.mrb[0].mxu0
  %v1379 = vadd.f32 0.0, %v1378
  %v1380 = vpop.f32.mrb[0].mxu0
  %1381 = vmatprep.mubr.bf16.mxu0 0
  %1382 = vmatmul.mubr.bf16.gmra.mrb[0].mxu0 %v1206
  %v1383 = vpop.f32.mrb[0].mxu0
  %v1384 = vadd.f32 0.0, %v1383
  %v1385 = vpop.f32.mrb[0].mxu0
  %v1386 = vpop.f32.mrb[0].mxu0
  %v1387 = vadd.f32 0.0, %v1386
  %v1388 = vpop.f32.mrb[0].mxu0
  %1389 = vmatprep.mubr.bf16.mxu0 0
  %1390 = vmatmul.mubr.bf16.gmra.mrb[0].mxu0 %v1209
  %v1391 = vpop.f32.mrb[0].mxu0
  %v1392 = vadd.f32 0.0, %v1391
  %v1393 = vpop.f32.mrb[0].mxu0
  %v1394 = vpop.f32.mrb[0].mxu0
  %v1395 = vadd.f32 0.0, %v1394
  %v1396 = vpop.f32.mrb[0].mxu0
  %1397 = vmatprep.mubr.bf16.mxu0 0
  %1398 = vmatmul.mubr.bf16.gmra.mrb[0].mxu0 %v1212
  %v1399 = vpop.f32.mrb[0].mxu0
  %v1400 = vadd.f32 0.0, %v1399
  %v1401 = vpop.f32.mrb[0].mxu0
  %v1402 = vpop.f32.mrb[0].mxu0
  %v1403 = vadd.f32 0.0, %v1402
  %v1404 = vpop.f32.mrb[0].mxu0
  %1405 = vmatprep.mubr.bf16.mxu0 0
  %1406 = vmatmul.mubr.bf16.gmra.mrb[0].mxu0 %v1215
  %v1407 = vpop.f32.mrb[0].mxu0
  %v1408 = vadd.f32 0.0, %v1407
  %v1409 = vpop.f32.mrb[0].mxu0
  %v1410 = vpop.f32.mrb[0].mxu0
  %v1411 = vadd.f32 0.0, %v1410
  %v1412 = vpop.f32.mrb[0].mxu0
  %1413 = vmatprep.mubr.bf16.mxu0 0
  %1414 = vmatmul.mubr.bf16.gmra.mrb[0].mxu0 %v1218
  %v1415 = vpop.f32.mrb[0].mxu0
  %v1416 = vadd.f32 0.0, %v1415
  %v1417 = vpop.f32.mrb[0].mxu0
  %v1418 = vpop.f32.mrb[0].mxu0
  %v1419 = vadd.f32 0.0, %v1418
  %v1420 = vpop.f32.mrb[0].mxu0
  %1421 = vmatprep.mubr.bf16.mxu0 0
  %1422 = vmatmul.mubr.bf16.gmra.mrb[0].mxu0 %v1221
  %v1423 = vpop.f32.mrb[0].mxu0
  %v1424 = vadd.f32 0.0, %v1423
  %v1425 = vpop.f32.mrb[0].mxu0
  %v1426 = vpop.f32.mrb[0].mxu0
  %v1427 = vadd.f32 0.0, %v1426
  %v1428 = vpop.f32.mrb[0].mxu0
  %1429 = vmatprep.mubr.bf16.mxu0 0
  %1430 = vmatmul.mubr.bf16.gmra.mrb[0].mxu0 %v1224
  %v1431 = vpop.f32.mrb[0].mxu0
  %v1432 = vadd.f32 0.0, %v1431
  %v1433 = vpop.f32.mrb[0].mxu0
  %v1434 = vpop.f32.mrb[0].mxu0
  %v1435 = vadd.f32 0.0, %v1434
  %v1436 = vpop.f32.mrb[0].mxu0
  %1437 = vmatprep.mubr.bf16.mxu0 0
  %1438 = vmatmul.mubr.bf16.gmra.mrb[0].mxu0 %v1227
  %v1439 = vpop.f32.mrb[0].mxu0
  %v1440 = vadd.f32 0.0, %v1439
  %v1441 = vpop.f32.mrb[0].mxu0
  %v1442 = vpop.f32.mrb[0].mxu0
  %v1443 = vadd.f32 0.0, %v1442
  %v1444 = vpop.f32.mrb[0].mxu0
  %1445 = vmatprep.mubr.bf16.mxu0 0
  %1446 = vmatmul.mubr.bf16.gmra.mrb[0].mxu0 %v1230
  %v1447 = vpop.f32.mrb[0].mxu0
  %v1448 = vadd.f32 0.0, %v1447
  %v1449 = vpop.f32.mrb[0].mxu0
  %v1450 = vpop.f32.mrb[0].mxu0
  %v1451 = vadd.f32 0.0, %v1450
  %v1452 = vpop.f32.mrb[0].mxu0
  %1453 = vmatprep.mubr.bf16.mxu0 0
  %1454 = vmatmul.mubr.bf16.gmra.mrb[0].mxu0 %v1233
  %v1455 = vpop.f32.mrb[0].mxu0
  %v1456 = vadd.f32 0.0, %v1455
  %v1457 = vpop.f32.mrb[0].mxu0
  %v1458 = vpop.f32.mrb[0].mxu0
  %v1459 = vadd.f32 0.0, %v1458
  %v1460 = vpop.f32.mrb[0].mxu0
  %1461 = vmatprep.mubr.bf16.mxu0 0
  %1462 = vmatmul.mubr.bf16.gmra.mrb[0].mxu0 %v1236
  %v1463 = vpop.f32.mrb[0].mxu0
  %v1464 = vadd.f32 0.0, %v1463
  %v1465 = vpop.f32.mrb[0].mxu0
  %v1466 = vpop.f32.mrb[0].mxu0
  %v1467 = vadd.f32 0.0, %v1466
  %v1468 = vpop.f32.mrb[0].mxu0
  %1469 = vmatprep.mubr.bf16.mxu0 0
  %1470 = vmatmul.mubr.bf16.gmra.mrb[0].mxu0 %v1239
  %v1471 = vpop.f32.mrb[0].mxu0
  %v1472 = vadd.f32 0.0, %v1471
  %v1473 = vpop.f32.mrb[0].mxu0
  %v1474 = vpop.f32.mrb[0].mxu0
  %v1475 = vadd.f32 0.0, %v1474
  %v1476 = vpop.f32.mrb[0].mxu0
  %1477 = vmatprep.mubr.bf16.mxu0 0
  %1478 = vmatmul.mubr.bf16.gmra.mrb[0].mxu0 %v1242
  %v1479 = vpop.f32.mrb[0].mxu0
  %v1480 = vadd.f32 0.0, %v1479
  %v1481 = vpop.f32.mrb[0].mxu0
  %v1482 = vpop.f32.mrb[0].mxu0
  %v1483 = vadd.f32 0.0, %v1482
  %v1484 = vpop.f32.mrb[0].mxu0
  %1485 = vmatprep.mubr.bf16.mxu0 0
  %1486 = vmatmul.mubr.bf16.gmra.mrb[0].mxu0 %v1245
  %v1487 = vpop.f32.mrb[0].mxu0
  %v1488 = vadd.f32 0.0, %v1487
  %v1489 = vpop.f32.mrb[0].mxu0
  %v1490 = vpop.f32.mrb[0].mxu0
  %v1491 = vadd.f32 0.0, %v1490
  %v1492 = vpop.f32.mrb[0].mxu0
  %1493 = vmatprep.mubr.bf16.mxu0 0
  %1494 = vmatmul.mubr.bf16.gmra.mrb[0].mxu0 %v1248
  %v1495 = vpop.f32.mrb[0].mxu0
  %v1496 = vadd.f32 0.0, %v1495
  %v1497 = vpop.f32.mrb[0].mxu0
  %v1498 = vpop.f32.mrb[0].mxu0
  %v1499 = vadd.f32 0.0, %v1498
  %v1500 = vpop.f32.mrb[0].mxu0
  %1501 = vmatprep.mubr.bf16.mxu0 0
  %1502 = vmatmul.mubr.bf16.gmra.mrb[0].mxu0 %v1251
  %v1503 = vpop.f32.mrb[0].mxu0
  %v1504 = vadd.f32 0.0, %v1503
  %v1505 = vpop.f32.mrb[0].mxu0
  %v1506 = vpop.f32.mrb[0].mxu0
  %v1507 = vadd.f32 0.0, %v1506
  %v1508 = vpop.f32.mrb[0].mxu0
  %1509 = vmatprep.mubr.bf16.mxu0 0
  %1510 = vmatmul.mubr.bf16.gmra.mrb[0].mxu0 %v1254
  %v1511 = vpop.f32.mrb[0].mxu0
  %v1512 = vadd.f32 0.0, %v1511
  %v1513 = vpop.f32.mrb[0].mxu0
  %v1514 = vpop.f32.mrb[0].mxu0
  %v1515 = vadd.f32 0.0, %v1514
  %v1516 = vpop.f32.mrb[0].mxu0
  %1517 = vmatprep.mubr.bf16.mxu0 0
  %1518 = vmatmul.mubr.bf16.gmra.mrb[0].mxu0 %v1257
  %v1519 = vpop.f32.mrb[0].mxu0
  %v1520 = vadd.f32 0.0, %v1519
  %v1521 = vpop.f32.mrb[0].mxu0
  %v1522 = vpop.f32.mrb[0].mxu0
  %v1523 = vadd.f32 0.0, %v1522
  %v1524 = vpop.f32.mrb[0].mxu0
  %1525 = vmatprep.mubr.bf16.mxu0 0
  %1526 = vmatmul.mubr.bf16.gmra.mrb[0].mxu0 %v1260
  %v1527 = vpop.f32.mrb[0].mxu0
  %v1528 = vadd.f32 0.0, %v1527
  %v1529 = vpop.f32.mrb[0].mxu0
  %v1530 = vpop.f32.mrb[0].mxu0
  %v1531 = vadd.f32 0.0, %v1530
  %v1532 = vpop.f32.mrb[0].mxu0
  %1533 = vmatprep.mubr.bf16.mxu0 0
  %1534 = vmatmul.mubr.bf16.gmra.mrb[0].mxu0 %v1263
  %v1535 = vpop.f32.mrb[0].mxu0
  %v1536 = vadd.f32 0.0, %v1535
  %v1537 = vpop.f32.mrb[0].mxu0
  %v1538 = vpop.f32.mrb[0].mxu0
  %v1539 = vadd.f32 0.0, %v1538
  %v1540 = vpop.f32.mrb[0].mxu0
  %1541 = vmatprep.mubr.bf16.mxu0 0
  %1542 = vmatmul.mubr.bf16.gmra.mrb[0].mxu0 %v1266
  %v1543 = vpop.f32.mrb[0].mxu0
  %v1544 = vadd.f32 0.0, %v1543
  %v1545 = vpop.f32.mrb[0].mxu0
  %v1546 = vpop.f32.mrb[0].mxu0
  %v1547 = vadd.f32 0.0, %v1546
  %v1548 = vpop.f32.mrb[0].mxu0
  %1549 = vmatprep.mubr.bf16.mxu0 0
  %1550 = vmatmul.mubr.bf16.gmra.mrb[0].mxu0 %v1269
  %v1551 = vpop.f32.mrb[0].mxu0
  %v1552 = vadd.f32 0.0, %v1551
  %v1553 = vpop.f32.mrb[0].mxu0
  %v1554 = vpop.f32.mrb[0].mxu0
  %v1555 = vadd.f32 0.0, %v1554
  %v1556 = vpop.f32.mrb[0].mxu0
  %1557 = vmatprep.mubr.bf16.mxu0 0
  %1558 = vmatmul.mubr.bf16.gmra.mrb[0].mxu0 %v1272
  %v1559 = vpop.f32.mrb[0].mxu0
  %v1560 = vadd.f32 0.0, %v1559
  %v1561 = vpop.f32.mrb[0].mxu0
  %v1562 = vpop.f32.mrb[0].mxu0
  %v1563 = vadd.f32 0.0, %v1562
  %v1564 = vpop.f32.mrb[0].mxu0
  %1565 = vdwg.mxu0
  %v1566 = vadd.f32 %v692, %v1312
  %v1567 = vadd.f32 %v695, %v1315
  %v1568 = vadd.f32 %v700, %v1320
  %v1569 = vadd.f32 %v703, %v1323
  %v1570 = vadd.f32 %v708, %v1328
  %v1571 = vadd.f32 %v711, %v1331
  %v1572 = vadd.f32 %v716, %v1336
  %v1573 = vadd.f32 %v719, %v1339
  %v1574 = vadd.f32 %v724, %v1344
  %v1575 = vadd.f32 %v727, %v1347
  %v1576 = vadd.f32 %v732, %v1352
  %v1577 = vadd.f32 %v735, %v1355
  %v1578 = vadd.f32 %v740, %v1360
  %v1579 = vadd.f32 %v743, %v1363
  %v1580 = vadd.f32 %v748, %v1368
  %v1581 = vadd.f32 %v751, %v1371
  %v1582 = vadd.f32 %v756, %v1376
  %v1583 = vadd.f32 %v759, %v1379
  %v1584 = vadd.f32 %v764, %v1384
  %v1585 = vadd.f32 %v767, %v1387
  %v1586 = vadd.f32 %v772, %v1392
  %v1587 = vadd.f32 %v775, %v1395
  %v1588 = vadd.f32 %v780, %v1400
  %v1589 = vadd.f32 %v783, %v1403
  %v1590 = vadd.f32 %v788, %v1408
  %v1591 = vadd.f32 %v791, %v1411
  %v1592 = vadd.f32 %v796, %v1416
  %v1593 = vadd.f32 %v799, %v1419
  %v1594 = vadd.f32 %v804, %v1424
  %v1595 = vadd.f32 %v807, %v1427
  %v1596 = vadd.f32 %v812, %v1432
  %v1597 = vadd.f32 %v815, %v1435
  %v1598 = vadd.f32 %v820, %v1440
  %v1599 = vadd.f32 %v823, %v1443
  %v1600 = vadd.f32 %v828, %v1448
  %v1601 = vadd.f32 %v831, %v1451
  %v1602 = vadd.f32 %v836, %v1456
  %v1603 = vadd.f32 %v839, %v1459
  %v1604 = vadd.f32 %v844, %v1464
  %v1605 = vadd.f32 %v847, %v1467
  %v1606 = vadd.f32 %v852, %v1472
  %v1607 = vadd.f32 %v855, %v1475
  %v1608 = vadd.f32 %v860, %v1480
  %v1609 = vadd.f32 %v863, %v1483
  %v1610 = vadd.f32 %v868, %v1488
  %v1611 = vadd.f32 %v871, %v1491
  %v1612 = vadd.f32 %v876, %v1496
  %v1613 = vadd.f32 %v879, %v1499
  %v1614 = vadd.f32 %v884, %v1504
  %v1615 = vadd.f32 %v887, %v1507
  %v1616 = vadd.f32 %v892, %v1512
  %v1617 = vadd.f32 %v895, %v1515
  %v1618 = vadd.f32 %v900, %v1520
  %v1619 = vadd.f32 %v903, %v1523
  %v1620 = vadd.f32 %v908, %v1528
  %v1621 = vadd.f32 %v911, %v1531
  %v1622 = vadd.f32 %v916, %v1536
  %v1623 = vadd.f32 %v919, %v1539
  %v1624 = vadd.f32 %v924, %v1544
  %v1625 = vadd.f32 %v927, %v1547
  %v1626 = vadd.f32 %v932, %v1552
  %v1627 = vadd.f32 %v935, %v1555
  %v1628 = vadd.f32 %v940, %v1560
  %v1629 = vadd.f32 %v943, %v1563
  %1694 = vrot.lane.b32.xlu0 %v1566, 112
  %v1695 = vpop.permute.xlu0 %1694
  %1696 = vrot.lane.b32.xlu0 %v1567, 112
  %v1697 = vpop.permute.xlu0 %1696
  %1698 = vrot.lane.b32.xlu0 %v1568, 112
  %v1699 = vpop.permute.xlu0 %1698
  %1700 = vrot.lane.b32.xlu0 %v1569, 112
  %v1701 = vpop.permute.xlu0 %1700
  %1702 = vrot.lane.b32.xlu0 %v1570, 112
  %v1703 = vpop.permute.xlu0 %1702
  %1704 = vrot.lane.b32.xlu0 %v1571, 112
  %v1705 = vpop.permute.xlu0 %1704
  %1706 = vrot.lane.b32.xlu0 %v1572, 112
  %v1707 = vpop.permute.xlu0 %1706
  %1708 = vrot.lane.b32.xlu0 %v1573, 112
  %v1709 = vpop.permute.xlu0 %1708
  %1710 = vrot.lane.b32.xlu0 %v1574, 112
  %v1711 = vpop.permute.xlu0 %1710
  %1712 = vrot.lane.b32.xlu0 %v1575, 112
  %v1713 = vpop.permute.xlu0 %1712
  %1714 = vrot.lane.b32.xlu0 %v1576, 112
  %v1715 = vpop.permute.xlu0 %1714
  %1716 = vrot.lane.b32.xlu0 %v1577, 112
  %v1717 = vpop.permute.xlu0 %1716
  %1718 = vrot.lane.b32.xlu0 %v1578, 112
  %v1719 = vpop.permute.xlu0 %1718
  %1720 = vrot.lane.b32.xlu0 %v1579, 112
  %v1721 = vpop.permute.xlu0 %1720
  %1722 = vrot.lane.b32.xlu0 %v1580, 112
  %v1723 = vpop.permute.xlu0 %1722
  %1724 = vrot.lane.b32.xlu0 %v1581, 112
  %v1725 = vpop.permute.xlu0 %1724
  %1726 = vrot.lane.b32.xlu0 %v1582, 112
  %v1727 = vpop.permute.xlu0 %1726
  %1728 = vrot.lane.b32.xlu0 %v1583, 112
  %v1729 = vpop.permute.xlu0 %1728
  %1730 = vrot.lane.b32.xlu0 %v1584, 112
  %v1731 = vpop.permute.xlu0 %1730
  %1732 = vrot.lane.b32.xlu0 %v1585, 112
  %v1733 = vpop.permute.xlu0 %1732
  %1734 = vrot.lane.b32.xlu0 %v1586, 112
  %v1735 = vpop.permute.xlu0 %1734
  %1736 = vrot.lane.b32.xlu0 %v1587, 112
  %v1737 = vpop.permute.xlu0 %1736
  %1738 = vrot.lane.b32.xlu0 %v1588, 112
  %v1739 = vpop.permute.xlu0 %1738
  %1740 = vrot.lane.b32.xlu0 %v1589, 112
  %v1741 = vpop.permute.xlu0 %1740
  %1742 = vrot.lane.b32.xlu0 %v1590, 112
  %v1743 = vpop.permute.xlu0 %1742
  %1744 = vrot.lane.b32.xlu0 %v1591, 112
  %v1745 = vpop.permute.xlu0 %1744
  %1746 = vrot.lane.b32.xlu0 %v1592, 112
  %v1747 = vpop.permute.xlu0 %1746
  %1748 = vrot.lane.b32.xlu0 %v1593, 112
  %v1749 = vpop.permute.xlu0 %1748
  %1750 = vrot.lane.b32.xlu0 %v1594, 112
  %v1751 = vpop.permute.xlu0 %1750
  %1752 = vrot.lane.b32.xlu0 %v1595, 112
  %v1753 = vpop.permute.xlu0 %1752
  %1754 = vrot.lane.b32.xlu0 %v1596, 112
  %v1755 = vpop.permute.xlu0 %1754
  %1756 = vrot.lane.b32.xlu0 %v1597, 112
  %v1757 = vpop.permute.xlu0 %1756
  %1758 = vrot.lane.b32.xlu0 %v1598, 112
  %v1759 = vpop.permute.xlu0 %1758
  %1760 = vrot.lane.b32.xlu0 %v1599, 112
  %v1761 = vpop.permute.xlu0 %1760
  %1762 = vrot.lane.b32.xlu0 %v1600, 112
  %v1763 = vpop.permute.xlu0 %1762
  %1764 = vrot.lane.b32.xlu0 %v1601, 112
  %v1765 = vpop.permute.xlu0 %1764
  %1766 = vrot.lane.b32.xlu0 %v1602, 112
  %v1767 = vpop.permute.xlu0 %1766
  %1768 = vrot.lane.b32.xlu0 %v1603, 112
  %v1769 = vpop.permute.xlu0 %1768
  %1770 = vrot.lane.b32.xlu0 %v1604, 112
  %v1771 = vpop.permute.xlu0 %1770
  %1772 = vrot.lane.b32.xlu0 %v1605, 112
  %v1773 = vpop.permute.xlu0 %1772
  %1774 = vrot.lane.b32.xlu0 %v1606, 112
  %v1775 = vpop.permute.xlu0 %1774
  %1776 = vrot.lane.b32.xlu0 %v1607, 112
  %v1777 = vpop.permute.xlu0 %1776
  %1778 = vrot.lane.b32.xlu0 %v1608, 112
  %v1779 = vpop.permute.xlu0 %1778
  %1780 = vrot.lane.b32.xlu0 %v1609, 112
  %v1781 = vpop.permute.xlu0 %1780
  %1782 = vrot.lane.b32.xlu0 %v1610, 112
  %v1783 = vpop.permute.xlu0 %1782
  %1784 = vrot.lane.b32.xlu0 %v1611, 112
  %v1785 = vpop.permute.xlu0 %1784
  %1786 = vrot.lane.b32.xlu0 %v1612, 112
  %v1787 = vpop.permute.xlu0 %1786
  %1788 = vrot.lane.b32.xlu0 %v1613, 112
  %v1789 = vpop.permute.xlu0 %1788
  %1790 = vrot.lane.b32.xlu0 %v1614, 112
  %v1791 = vpop.permute.xlu0 %1790
  %1792 = vrot.lane.b32.xlu0 %v1615, 112
  %v1793 = vpop.permute.xlu0 %1792
  %1794 = vrot.lane.b32.xlu0 %v1616, 112
  %v1795 = vpop.permute.xlu0 %1794
  %1796 = vrot.lane.b32.xlu0 %v1617, 112
  %v1797 = vpop.permute.xlu0 %1796
  %1798 = vrot.lane.b32.xlu0 %v1618, 112
  %v1799 = vpop.permute.xlu0 %1798
  %1800 = vrot.lane.b32.xlu0 %v1619, 112
  %v1801 = vpop.permute.xlu0 %1800
  %1802 = vrot.lane.b32.xlu0 %v1620, 112
  %v1803 = vpop.permute.xlu0 %1802
  %1804 = vrot.lane.b32.xlu0 %v1621, 112
  %v1805 = vpop.permute.xlu0 %1804
  %1806 = vrot.lane.b32.xlu0 %v1622, 112
  %v1807 = vpop.permute.xlu0 %1806
  %1808 = vrot.lane.b32.xlu0 %v1623, 112
  %v1809 = vpop.permute.xlu0 %1808
  %1810 = vrot.lane.b32.xlu0 %v1624, 112
  %v1811 = vpop.permute.xlu0 %1810
  %1812 = vrot.lane.b32.xlu0 %v1625, 112
  %v1813 = vpop.permute.xlu0 %1812
  %1814 = vrot.lane.b32.xlu0 %v1626, 112
  %v1815 = vpop.permute.xlu0 %1814
  %1816 = vrot.lane.b32.xlu0 %v1627, 112
  %v1817 = vpop.permute.xlu0 %1816
  %1818 = vrot.lane.b32.xlu0 %v1628, 112
  %v1819 = vpop.permute.xlu0 %1818
  %1820 = vrot.lane.b32.xlu0 %v1629, 112
  %v1821 = vpop.permute.xlu0 %1820
  %v1886 = vmax.f32 %v1566, %v1695
  %v1887 = vmax.f32 %v1567, %v1697
  %v1888 = vmax.f32 %v1568, %v1699
  %v1889 = vmax.f32 %v1569, %v1701
  %v1890 = vmax.f32 %v1570, %v1703
  %v1891 = vmax.f32 %v1571, %v1705
  %v1892 = vmax.f32 %v1572, %v1707
  %v1893 = vmax.f32 %v1573, %v1709
  %v1894 = vmax.f32 %v1574, %v1711
  %v1895 = vmax.f32 %v1575, %v1713
  %v1896 = vmax.f32 %v1576, %v1715
  %v1897 = vmax.f32 %v1577, %v1717
  %v1898 = vmax.f32 %v1578, %v1719
  %v1899 = vmax.f32 %v1579, %v1721
  %v1900 = vmax.f32 %v1580, %v1723
  %v1901 = vmax.f32 %v1581, %v1725
  %v1902 = vmax.f32 %v1582, %v1727
  %v1903 = vmax.f32 %v1583, %v1729
  %v1904 = vmax.f32 %v1584, %v1731
  %v1905 = vmax.f32 %v1585, %v1733
  %v1906 = vmax.f32 %v1586, %v1735
  %v1907 = vmax.f32 %v1587, %v1737
  %v1908 = vmax.f32 %v1588, %v1739
  %v1909 = vmax.f32 %v1589, %v1741
  %v1910 = vmax.f32 %v1590, %v1743
  %v1911 = vmax.f32 %v1591, %v1745
  %v1912 = vmax.f32 %v1592, %v1747
  %v1913 = vmax.f32 %v1593, %v1749
  %v1914 = vmax.f32 %v1594, %v1751
  %v1915 = vmax.f32 %v1595, %v1753
  %v1916 = vmax.f32 %v1596, %v1755
  %v1917 = vmax.f32 %v1597, %v1757
  %v1918 = vmax.f32 %v1598, %v1759
  %v1919 = vmax.f32 %v1599, %v1761
  %v1920 = vmax.f32 %v1600, %v1763
  %v1921 = vmax.f32 %v1601, %v1765
  %v1922 = vmax.f32 %v1602, %v1767
  %v1923 = vmax.f32 %v1603, %v1769
  %v1924 = vmax.f32 %v1604, %v1771
  %v1925 = vmax.f32 %v1605, %v1773
  %v1926 = vmax.f32 %v1606, %v1775
  %v1927 = vmax.f32 %v1607, %v1777
  %v1928 = vmax.f32 %v1608, %v1779
  %v1929 = vmax.f32 %v1609, %v1781
  %v1930 = vmax.f32 %v1610, %v1783
  %v1931 = vmax.f32 %v1611, %v1785
  %v1932 = vmax.f32 %v1612, %v1787
  %v1933 = vmax.f32 %v1613, %v1789
  %v1934 = vmax.f32 %v1614, %v1791
  %v1935 = vmax.f32 %v1615, %v1793
  %v1936 = vmax.f32 %v1616, %v1795
  %v1937 = vmax.f32 %v1617, %v1797
  %v1938 = vmax.f32 %v1618, %v1799
  %v1939 = vmax.f32 %v1619, %v1801
  %v1940 = vmax.f32 %v1620, %v1803
  %v1941 = vmax.f32 %v1621, %v1805
  %v1942 = vmax.f32 %v1622, %v1807
  %v1943 = vmax.f32 %v1623, %v1809
  %v1944 = vmax.f32 %v1624, %v1811
  %v1945 = vmax.f32 %v1625, %v1813
  %v1946 = vmax.f32 %v1626, %v1815
  %v1947 = vmax.f32 %v1627, %v1817
  %v1948 = vmax.f32 %v1628, %v1819
  %v1949 = vmax.f32 %v1629, %v1821
  %2014 = vrot.lane.b32.xlu0 %v1886, 96
  %v2015 = vpop.permute.xlu0 %2014
  %2016 = vrot.lane.b32.xlu0 %v1887, 96
  %v2017 = vpop.permute.xlu0 %2016
  %2018 = vrot.lane.b32.xlu0 %v1888, 96
  %v2019 = vpop.permute.xlu0 %2018
  %2020 = vrot.lane.b32.xlu0 %v1889, 96
  %v2021 = vpop.permute.xlu0 %2020
  %2022 = vrot.lane.b32.xlu0 %v1890, 96
  %v2023 = vpop.permute.xlu0 %2022
  %2024 = vrot.lane.b32.xlu0 %v1891, 96
  %v2025 = vpop.permute.xlu0 %2024
  %2026 = vrot.lane.b32.xlu0 %v1892, 96
  %v2027 = vpop.permute.xlu0 %2026
  %2028 = vrot.lane.b32.xlu0 %v1893, 96
  %v2029 = vpop.permute.xlu0 %2028
  %2030 = vrot.lane.b32.xlu0 %v1894, 96
  %v2031 = vpop.permute.xlu0 %2030
  %2032 = vrot.lane.b32.xlu0 %v1895, 96
  %v2033 = vpop.permute.xlu0 %2032
  %2034 = vrot.lane.b32.xlu0 %v1896, 96
  %v2035 = vpop.permute.xlu0 %2034
  %2036 = vrot.lane.b32.xlu0 %v1897, 96
  %v2037 = vpop.permute.xlu0 %2036
  %2038 = vrot.lane.b32.xlu0 %v1898, 96
  %v2039 = vpop.permute.xlu0 %2038
  %2040 = vrot.lane.b32.xlu0 %v1899, 96
  %v2041 = vpop.permute.xlu0 %2040
  %2042 = vrot.lane.b32.xlu0 %v1900, 96
  %v2043 = vpop.permute.xlu0 %2042
  %2044 = vrot.lane.b32.xlu0 %v1901, 96
  %v2045 = vpop.permute.xlu0 %2044
  %2046 = vrot.lane.b32.xlu0 %v1902, 96
  %v2047 = vpop.permute.xlu0 %2046
  %2048 = vrot.lane.b32.xlu0 %v1903, 96
  %v2049 = vpop.permute.xlu0 %2048
  %2050 = vrot.lane.b32.xlu0 %v1904, 96
  %v2051 = vpop.permute.xlu0 %2050
  %2052 = vrot.lane.b32.xlu0 %v1905, 96
  %v2053 = vpop.permute.xlu0 %2052
  %2054 = vrot.lane.b32.xlu0 %v1906, 96
  %v2055 = vpop.permute.xlu0 %2054
  %2056 = vrot.lane.b32.xlu0 %v1907, 96
  %v2057 = vpop.permute.xlu0 %2056
  %2058 = vrot.lane.b32.xlu0 %v1908, 96
  %v2059 = vpop.permute.xlu0 %2058
  %2060 = vrot.lane.b32.xlu0 %v1909, 96
  %v2061 = vpop.permute.xlu0 %2060
  %2062 = vrot.lane.b32.xlu0 %v1910, 96
  %v2063 = vpop.permute.xlu0 %2062
  %2064 = vrot.lane.b32.xlu0 %v1911, 96
  %v2065 = vpop.permute.xlu0 %2064
  %2066 = vrot.lane.b32.xlu0 %v1912, 96
  %v2067 = vpop.permute.xlu0 %2066
  %2068 = vrot.lane.b32.xlu0 %v1913, 96
  %v2069 = vpop.permute.xlu0 %2068
  %2070 = vrot.lane.b32.xlu0 %v1914, 96
  %v2071 = vpop.permute.xlu0 %2070
  %2072 = vrot.lane.b32.xlu0 %v1915, 96
  %v2073 = vpop.permute.xlu0 %2072
  %2074 = vrot.lane.b32.xlu0 %v1916, 96
  %v2075 = vpop.permute.xlu0 %2074
  %2076 = vrot.lane.b32.xlu0 %v1917, 96
  %v2077 = vpop.permute.xlu0 %2076
  %2078 = vrot.lane.b32.xlu0 %v1918, 96
  %v2079 = vpop.permute.xlu0 %2078
  %2080 = vrot.lane.b32.xlu0 %v1919, 96
  %v2081 = vpop.permute.xlu0 %2080
  %2082 = vrot.lane.b32.xlu0 %v1920, 96
  %v2083 = vpop.permute.xlu0 %2082
  %2084 = vrot.lane.b32.xlu0 %v1921, 96
  %v2085 = vpop.permute.xlu0 %2084
  %2086 = vrot.lane.b32.xlu0 %v1922, 96
  %v2087 = vpop.permute.xlu0 %2086
  %2088 = vrot.lane.b32.xlu0 %v1923, 96
  %v2089 = vpop.permute.xlu0 %2088
  %2090 = vrot.lane.b32.xlu0 %v1924, 96
  %v2091 = vpop.permute.xlu0 %2090
  %2092 = vrot.lane.b32.xlu0 %v1925, 96
  %v2093 = vpop.permute.xlu0 %2092
  %2094 = vrot.lane.b32.xlu0 %v1926, 96
  %v2095 = vpop.permute.xlu0 %2094
  %2096 = vrot.lane.b32.xlu0 %v1927, 96
  %v2097 = vpop.permute.xlu0 %2096
  %2098 = vrot.lane.b32.xlu0 %v1928, 96
  %v2099 = vpop.permute.xlu0 %2098
  %2100 = vrot.lane.b32.xlu0 %v1929, 96
  %v2101 = vpop.permute.xlu0 %2100
  %2102 = vrot.lane.b32.xlu0 %v1930, 96
  %v2103 = vpop.permute.xlu0 %2102
  %2104 = vrot.lane.b32.xlu0 %v1931, 96
  %v2105 = vpop.permute.xlu0 %2104
  %2106 = vrot.lane.b32.xlu0 %v1932, 96
  %v2107 = vpop.permute.xlu0 %2106
  %2108 = vrot.lane.b32.xlu0 %v1933, 96
  %v2109 = vpop.permute.xlu0 %2108
  %2110 = vrot.lane.b32.xlu0 %v1934, 96
  %v2111 = vpop.permute.xlu0 %2110
  %2112 = vrot.lane.b32.xlu0 %v1935, 96
  %v2113 = vpop.permute.xlu0 %2112
  %2114 = vrot.lane.b32.xlu0 %v1936, 96
  %v2115 = vpop.permute.xlu0 %2114
  %2116 = vrot.lane.b32.xlu0 %v1937, 96
  %v2117 = vpop.permute.xlu0 %2116
  %2118 = vrot.lane.b32.xlu0 %v1938, 96
  %v2119 = vpop.permute.xlu0 %2118
  %2120 = vrot.lane.b32.xlu0 %v1939, 96
  %v2121 = vpop.permute.xlu0 %2120
  %2122 = vrot.lane.b32.xlu0 %v1940, 96
  %v2123 = vpop.permute.xlu0 %2122
  %2124 = vrot.lane.b32.xlu0 %v1941, 96
  %v2125 = vpop.permute.xlu0 %2124
  %2126 = vrot.lane.b32.xlu0 %v1942, 96
  %v2127 = vpop.permute.xlu0 %2126
  %2128 = vrot.lane.b32.xlu0 %v1943, 96
  %v2129 = vpop.permute.xlu0 %2128
  %2130 = vrot.lane.b32.xlu0 %v1944, 96
  %v2131 = vpop.permute.xlu0 %2130
  %2132 = vrot.lane.b32.xlu0 %v1945, 96
  %v2133 = vpop.permute.xlu0 %2132
  %2134 = vrot.lane.b32.xlu0 %v1946, 96
  %v2135 = vpop.permute.xlu0 %2134
  %2136 = vrot.lane.b32.xlu0 %v1947, 96
  %v2137 = vpop.permute.xlu0 %2136
  %2138 = vrot.lane.b32.xlu0 %v1948, 96
  %v2139 = vpop.permute.xlu0 %2138
  %2140 = vrot.lane.b32.xlu0 %v1949, 96
  %v2141 = vpop.permute.xlu0 %2140
  %v2206 = vmax.f32 %v1886, %v2015
  %v2207 = vmax.f32 %v1887, %v2017
  %v2208 = vmax.f32 %v1888, %v2019
  %v2209 = vmax.f32 %v1889, %v2021
  %v2210 = vmax.f32 %v1890, %v2023
  %v2211 = vmax.f32 %v1891, %v2025
  %v2212 = vmax.f32 %v1892, %v2027
  %v2213 = vmax.f32 %v1893, %v2029
  %v2214 = vmax.f32 %v1894, %v2031
  %v2215 = vmax.f32 %v1895, %v2033
  %v2216 = vmax.f32 %v1896, %v2035
  %v2217 = vmax.f32 %v1897, %v2037
  %v2218 = vmax.f32 %v1898, %v2039
  %v2219 = vmax.f32 %v1899, %v2041
  %v2220 = vmax.f32 %v1900, %v2043
  %v2221 = vmax.f32 %v1901, %v2045
  %v2222 = vmax.f32 %v1902, %v2047
  %v2223 = vmax.f32 %v1903, %v2049
  %v2224 = vmax.f32 %v1904, %v2051
  %v2225 = vmax.f32 %v1905, %v2053
  %v2226 = vmax.f32 %v1906, %v2055
  %v2227 = vmax.f32 %v1907, %v2057
  %v2228 = vmax.f32 %v1908, %v2059
  %v2229 = vmax.f32 %v1909, %v2061
  %v2230 = vmax.f32 %v1910, %v2063
  %v2231 = vmax.f32 %v1911, %v2065
  %v2232 = vmax.f32 %v1912, %v2067
  %v2233 = vmax.f32 %v1913, %v2069
  %v2234 = vmax.f32 %v1914, %v2071
  %v2235 = vmax.f32 %v1915, %v2073
  %v2236 = vmax.f32 %v1916, %v2075
  %v2237 = vmax.f32 %v1917, %v2077
  %v2238 = vmax.f32 %v1918, %v2079
  %v2239 = vmax.f32 %v1919, %v2081
  %v2240 = vmax.f32 %v1920, %v2083
  %v2241 = vmax.f32 %v1921, %v2085
  %v2242 = vmax.f32 %v1922, %v2087
  %v2243 = vmax.f32 %v1923, %v2089
  %v2244 = vmax.f32 %v1924, %v2091
  %v2245 = vmax.f32 %v1925, %v2093
  %v2246 = vmax.f32 %v1926, %v2095
  %v2247 = vmax.f32 %v1927, %v2097
  %v2248 = vmax.f32 %v1928, %v2099
  %v2249 = vmax.f32 %v1929, %v2101
  %v2250 = vmax.f32 %v1930, %v2103
  %v2251 = vmax.f32 %v1931, %v2105
  %v2252 = vmax.f32 %v1932, %v2107
  %v2253 = vmax.f32 %v1933, %v2109
  %v2254 = vmax.f32 %v1934, %v2111
  %v2255 = vmax.f32 %v1935, %v2113
  %v2256 = vmax.f32 %v1936, %v2115
  %v2257 = vmax.f32 %v1937, %v2117
  %v2258 = vmax.f32 %v1938, %v2119
  %v2259 = vmax.f32 %v1939, %v2121
  %v2260 = vmax.f32 %v1940, %v2123
  %v2261 = vmax.f32 %v1941, %v2125
  %v2262 = vmax.f32 %v1942, %v2127
  %v2263 = vmax.f32 %v1943, %v2129
  %v2264 = vmax.f32 %v1944, %v2131
  %v2265 = vmax.f32 %v1945, %v2133
  %v2266 = vmax.f32 %v1946, %v2135
  %v2267 = vmax.f32 %v1947, %v2137
  %v2268 = vmax.f32 %v1948, %v2139
  %v2269 = vmax.f32 %v1949, %v2141
  %v2270 = vld [vmem:[%s2] sm:$0x1]
  %v2272 = vlaneseq
  %v2273 = vshrl.u32 %v2272, 7
  %v2274 = vsub.s32 0, %v2273
  %v2275 = vrot.slane %v2270, %v2274
  %v2277 = vadd.f32 %v2206, %v2275
  %v2278 = vadd.f32 %v2207, %v2275
  %v2279 = vadd.f32 %v2208, %v2275
  %v2280 = vadd.f32 %v2209, %v2275
  %v2281 = vadd.f32 %v2210, %v2275
  %v2282 = vadd.f32 %v2211, %v2275
  %v2283 = vadd.f32 %v2212, %v2275
  %v2284 = vadd.f32 %v2213, %v2275
  %v2285 = vadd.f32 %v2214, %v2275
  %v2286 = vadd.f32 %v2215, %v2275
  %v2287 = vadd.f32 %v2216, %v2275
  %v2288 = vadd.f32 %v2217, %v2275
  %v2289 = vadd.f32 %v2218, %v2275
  %v2290 = vadd.f32 %v2219, %v2275
  %v2291 = vadd.f32 %v2220, %v2275
  %v2292 = vadd.f32 %v2221, %v2275
  %v2293 = vadd.f32 %v2222, %v2275
  %v2294 = vadd.f32 %v2223, %v2275
  %v2295 = vadd.f32 %v2224, %v2275
  %v2296 = vadd.f32 %v2225, %v2275
  %v2297 = vadd.f32 %v2226, %v2275
  %v2298 = vadd.f32 %v2227, %v2275
  %v2299 = vadd.f32 %v2228, %v2275
  %v2300 = vadd.f32 %v2229, %v2275
  %v2301 = vadd.f32 %v2230, %v2275
  %v2302 = vadd.f32 %v2231, %v2275
  %v2303 = vadd.f32 %v2232, %v2275
  %v2304 = vadd.f32 %v2233, %v2275
  %v2305 = vadd.f32 %v2234, %v2275
  %v2306 = vadd.f32 %v2235, %v2275
  %v2307 = vadd.f32 %v2236, %v2275
  %v2308 = vadd.f32 %v2237, %v2275
  %v2309 = vadd.f32 %v2238, %v2275
  %v2310 = vadd.f32 %v2239, %v2275
  %v2311 = vadd.f32 %v2240, %v2275
  %v2312 = vadd.f32 %v2241, %v2275
  %v2313 = vadd.f32 %v2242, %v2275
  %v2314 = vadd.f32 %v2243, %v2275
  %v2315 = vadd.f32 %v2244, %v2275
  %v2316 = vadd.f32 %v2245, %v2275
  %v2317 = vadd.f32 %v2246, %v2275
  %v2318 = vadd.f32 %v2247, %v2275
  %v2319 = vadd.f32 %v2248, %v2275
  %v2320 = vadd.f32 %v2249, %v2275
  %v2321 = vadd.f32 %v2250, %v2275
  %v2322 = vadd.f32 %v2251, %v2275
  %v2323 = vadd.f32 %v2252, %v2275
  %v2324 = vadd.f32 %v2253, %v2275
  %v2325 = vadd.f32 %v2254, %v2275
  %v2326 = vadd.f32 %v2255, %v2275
  %v2327 = vadd.f32 %v2256, %v2275
  %v2328 = vadd.f32 %v2257, %v2275
  %v2329 = vadd.f32 %v2258, %v2275
  %v2330 = vadd.f32 %v2259, %v2275
  %v2331 = vadd.f32 %v2260, %v2275
  %v2332 = vadd.f32 %v2261, %v2275
  %v2333 = vadd.f32 %v2262, %v2275
  %v2334 = vadd.f32 %v2263, %v2275
  %v2335 = vadd.f32 %v2264, %v2275
  %v2336 = vadd.f32 %v2265, %v2275
  %v2337 = vadd.f32 %v2266, %v2275
  %v2338 = vadd.f32 %v2267, %v2275
  %v2339 = vadd.f32 %v2268, %v2275
  %v2340 = vadd.f32 %v2269, %v2275
  %v2341 = vmax.f32 %v2277, 0.0
  %v2342 = vmax.f32 %v2278, 0.0
  %v2343 = vmax.f32 %v2279, 0.0
  %v2344 = vmax.f32 %v2280, 0.0
  %v2345 = vmax.f32 %v2281, 0.0
  %v2346 = vmax.f32 %v2282, 0.0
  %v2347 = vmax.f32 %v2283, 0.0
  %v2348 = vmax.f32 %v2284, 0.0
  %v2349 = vmax.f32 %v2285, 0.0
  %v2350 = vmax.f32 %v2286, 0.0
  %v2351 = vmax.f32 %v2287, 0.0
  %v2352 = vmax.f32 %v2288, 0.0
  %v2353 = vmax.f32 %v2289, 0.0
  %v2354 = vmax.f32 %v2290, 0.0
  %v2355 = vmax.f32 %v2291, 0.0
  %v2356 = vmax.f32 %v2292, 0.0
  %v2357 = vmax.f32 %v2293, 0.0
  %v2358 = vmax.f32 %v2294, 0.0
  %v2359 = vmax.f32 %v2295, 0.0
  %v2360 = vmax.f32 %v2296, 0.0
  %v2361 = vmax.f32 %v2297, 0.0
  %v2362 = vmax.f32 %v2298, 0.0
  %v2363 = vmax.f32 %v2299, 0.0
  %v2364 = vmax.f32 %v2300, 0.0
  %v2365 = vmax.f32 %v2301, 0.0
  %v2366 = vmax.f32 %v2302, 0.0
  %v2367 = vmax.f32 %v2303, 0.0
  %v2368 = vmax.f32 %v2304, 0.0
  %v2369 = vmax.f32 %v2305, 0.0
  %v2370 = vmax.f32 %v2306, 0.0
  %v2371 = vmax.f32 %v2307, 0.0
  %v2372 = vmax.f32 %v2308, 0.0
  %v2373 = vmax.f32 %v2309, 0.0
  %v2374 = vmax.f32 %v2310, 0.0
  %v2375 = vmax.f32 %v2311, 0.0
  %v2376 = vmax.f32 %v2312, 0.0
  %v2377 = vmax.f32 %v2313, 0.0
  %v2378 = vmax.f32 %v2314, 0.0
  %v2379 = vmax.f32 %v2315, 0.0
  %v2380 = vmax.f32 %v2316, 0.0
  %v2381 = vmax.f32 %v2317, 0.0
  %v2382 = vmax.f32 %v2318, 0.0
  %v2383 = vmax.f32 %v2319, 0.0
  %v2384 = vmax.f32 %v2320, 0.0
  %v2385 = vmax.f32 %v2321, 0.0
  %v2386 = vmax.f32 %v2322, 0.0
  %v2387 = vmax.f32 %v2323, 0.0
  %v2388 = vmax.f32 %v2324, 0.0
  %v2389 = vmax.f32 %v2325, 0.0
  %v2390 = vmax.f32 %v2326, 0.0
  %v2391 = vmax.f32 %v2327, 0.0
  %v2392 = vmax.f32 %v2328, 0.0
  %v2393 = vmax.f32 %v2329, 0.0
  %v2394 = vmax.f32 %v2330, 0.0
  %v2395 = vmax.f32 %v2331, 0.0
  %v2396 = vmax.f32 %v2332, 0.0
  %v2397 = vmax.f32 %v2333, 0.0
  %v2398 = vmax.f32 %v2334, 0.0
  %v2399 = vmax.f32 %v2335, 0.0
  %v2400 = vmax.f32 %v2336, 0.0
  %v2401 = vmax.f32 %v2337, 0.0
  %v2402 = vmax.f32 %v2338, 0.0
  %v2403 = vmax.f32 %v2339, 0.0
  %v2404 = vmax.f32 %v2340, 0.0
  %v2405 = vpack.c.bf16 %v2342, %v2341
  %v2406 = vpack.c.bf16 %v2344, %v2343
  %v2407 = vpack.c.bf16 %v2346, %v2345
  %v2408 = vpack.c.bf16 %v2348, %v2347
  %v2409 = vpack.c.bf16 %v2350, %v2349
  %v2410 = vpack.c.bf16 %v2352, %v2351
  %v2411 = vpack.c.bf16 %v2354, %v2353
  %v2412 = vpack.c.bf16 %v2356, %v2355
  %v2413 = vpack.c.bf16 %v2358, %v2357
  %v2414 = vpack.c.bf16 %v2360, %v2359
  %v2415 = vpack.c.bf16 %v2362, %v2361
  %v2416 = vpack.c.bf16 %v2364, %v2363
  %v2417 = vpack.c.bf16 %v2366, %v2365
  %v2418 = vpack.c.bf16 %v2368, %v2367
  %v2419 = vpack.c.bf16 %v2370, %v2369
  %v2420 = vpack.c.bf16 %v2372, %v2371
  %v2421 = vpack.c.bf16 %v2374, %v2373
  %v2422 = vpack.c.bf16 %v2376, %v2375
  %v2423 = vpack.c.bf16 %v2378, %v2377
  %v2424 = vpack.c.bf16 %v2380, %v2379
  %v2425 = vpack.c.bf16 %v2382, %v2381
  %v2426 = vpack.c.bf16 %v2384, %v2383
  %v2427 = vpack.c.bf16 %v2386, %v2385
  %v2428 = vpack.c.bf16 %v2388, %v2387
  %v2429 = vpack.c.bf16 %v2390, %v2389
  %v2430 = vpack.c.bf16 %v2392, %v2391
  %v2431 = vpack.c.bf16 %v2394, %v2393
  %v2432 = vpack.c.bf16 %v2396, %v2395
  %v2433 = vpack.c.bf16 %v2398, %v2397
  %v2434 = vpack.c.bf16 %v2400, %v2399
  %v2435 = vpack.c.bf16 %v2402, %v2401
  %v2436 = vpack.c.bf16 %v2404, %v2403
  %v2469 = vunpack.c.l.b16 %v2405
  %v2470 = vunpack.c.h.b16 %v2405
  %v2471 = vunpack.c.l.b16 %v2406
  %v2472 = vunpack.c.h.b16 %v2406
  %v2473 = vunpack.c.l.b16 %v2407
  %v2474 = vunpack.c.h.b16 %v2407
  %v2475 = vunpack.c.l.b16 %v2408
  %v2476 = vunpack.c.h.b16 %v2408
  %v2477 = vunpack.c.l.b16 %v2409
  %v2478 = vunpack.c.h.b16 %v2409
  %v2479 = vunpack.c.l.b16 %v2410
  %v2480 = vunpack.c.h.b16 %v2410
  %v2481 = vunpack.c.l.b16 %v2411
  %v2482 = vunpack.c.h.b16 %v2411
  %v2483 = vunpack.c.l.b16 %v2412
  %v2484 = vunpack.c.h.b16 %v2412
  %v2485 = vunpack.c.l.b16 %v2413
  %v2486 = vunpack.c.h.b16 %v2413
  %v2487 = vunpack.c.l.b16 %v2414
  %v2488 = vunpack.c.h.b16 %v2414
  %v2489 = vunpack.c.l.b16 %v2415
  %v2490 = vunpack.c.h.b16 %v2415
  %v2491 = vunpack.c.l.b16 %v2416
  %v2492 = vunpack.c.h.b16 %v2416
  %v2493 = vunpack.c.l.b16 %v2417
  %v2494 = vunpack.c.h.b16 %v2417
  %v2495 = vunpack.c.l.b16 %v2418
  %v2496 = vunpack.c.h.b16 %v2418
  %v2497 = vunpack.c.l.b16 %v2419
  %v2498 = vunpack.c.h.b16 %v2419
  %v2499 = vunpack.c.l.b16 %v2420
  %v2500 = vunpack.c.h.b16 %v2420
  %v2501 = vunpack.c.l.b16 %v2421
  %v2502 = vunpack.c.h.b16 %v2421
  %v2503 = vunpack.c.l.b16 %v2422
  %v2504 = vunpack.c.h.b16 %v2422
  %v2505 = vunpack.c.l.b16 %v2423
  %v2506 = vunpack.c.h.b16 %v2423
  %v2507 = vunpack.c.l.b16 %v2424
  %v2508 = vunpack.c.h.b16 %v2424
  %v2509 = vunpack.c.l.b16 %v2425
  %v2510 = vunpack.c.h.b16 %v2425
  %v2511 = vunpack.c.l.b16 %v2426
  %v2512 = vunpack.c.h.b16 %v2426
  %v2513 = vunpack.c.l.b16 %v2427
  %v2514 = vunpack.c.h.b16 %v2427
  %v2515 = vunpack.c.l.b16 %v2428
  %v2516 = vunpack.c.h.b16 %v2428
  %v2517 = vunpack.c.l.b16 %v2429
  %v2518 = vunpack.c.h.b16 %v2429
  %v2519 = vunpack.c.l.b16 %v2430
  %v2520 = vunpack.c.h.b16 %v2430
  %v2521 = vunpack.c.l.b16 %v2431
  %v2522 = vunpack.c.h.b16 %v2431
  %v2523 = vunpack.c.l.b16 %v2432
  %v2524 = vunpack.c.h.b16 %v2432
  %v2525 = vunpack.c.l.b16 %v2433
  %v2526 = vunpack.c.h.b16 %v2433
  %v2527 = vunpack.c.l.b16 %v2434
  %v2528 = vunpack.c.h.b16 %v2434
  %v2529 = vunpack.c.l.b16 %v2435
  %v2530 = vunpack.c.h.b16 %v2435
  %v2531 = vunpack.c.l.b16 %v2436
  %v2532 = vunpack.c.h.b16 %v2436
  %v2533 = vpack.c.b16 %v2469, %v2469
  %v2534 = vpack.c.b16 %v2470, %v2470
  %v2535 = vpack.c.b16 %v2471, %v2471
  %v2536 = vpack.c.b16 %v2472, %v2472
  %v2537 = vpack.c.b16 %v2473, %v2473
  %v2538 = vpack.c.b16 %v2474, %v2474
  %v2539 = vpack.c.b16 %v2475, %v2475
  %v2540 = vpack.c.b16 %v2476, %v2476
  %v2541 = vpack.c.b16 %v2477, %v2477
  %v2542 = vpack.c.b16 %v2478, %v2478
  %v2543 = vpack.c.b16 %v2479, %v2479
  %v2544 = vpack.c.b16 %v2480, %v2480
  %v2545 = vpack.c.b16 %v2481, %v2481
  %v2546 = vpack.c.b16 %v2482, %v2482
  %v2547 = vpack.c.b16 %v2483, %v2483
  %v2548 = vpack.c.b16 %v2484, %v2484
  %v2549 = vpack.c.b16 %v2485, %v2485
  %v2550 = vpack.c.b16 %v2486, %v2486
  %v2551 = vpack.c.b16 %v2487, %v2487
  %v2552 = vpack.c.b16 %v2488, %v2488
  %v2553 = vpack.c.b16 %v2489, %v2489
  %v2554 = vpack.c.b16 %v2490, %v2490
  %v2555 = vpack.c.b16 %v2491, %v2491
  %v2556 = vpack.c.b16 %v2492, %v2492
  %v2557 = vpack.c.b16 %v2493, %v2493
  %v2558 = vpack.c.b16 %v2494, %v2494
  %v2559 = vpack.c.b16 %v2495, %v2495
  %v2560 = vpack.c.b16 %v2496, %v2496
  %v2561 = vpack.c.b16 %v2497, %v2497
  %v2562 = vpack.c.b16 %v2498, %v2498
  %v2563 = vpack.c.b16 %v2499, %v2499
  %v2564 = vpack.c.b16 %v2500, %v2500
  %v2565 = vpack.c.b16 %v2501, %v2501
  %v2566 = vpack.c.b16 %v2502, %v2502
  %v2567 = vpack.c.b16 %v2503, %v2503
  %v2568 = vpack.c.b16 %v2504, %v2504
  %v2569 = vpack.c.b16 %v2505, %v2505
  %v2570 = vpack.c.b16 %v2506, %v2506
  %v2571 = vpack.c.b16 %v2507, %v2507
  %v2572 = vpack.c.b16 %v2508, %v2508
  %v2573 = vpack.c.b16 %v2509, %v2509
  %v2574 = vpack.c.b16 %v2510, %v2510
  %v2575 = vpack.c.b16 %v2511, %v2511
  %v2576 = vpack.c.b16 %v2512, %v2512
  %v2577 = vpack.c.b16 %v2513, %v2513
  %v2578 = vpack.c.b16 %v2514, %v2514
  %v2579 = vpack.c.b16 %v2515, %v2515
  %v2580 = vpack.c.b16 %v2516, %v2516
  %v2581 = vpack.c.b16 %v2517, %v2517
  %v2582 = vpack.c.b16 %v2518, %v2518
  %v2583 = vpack.c.b16 %v2519, %v2519
  %v2584 = vpack.c.b16 %v2520, %v2520
  %v2585 = vpack.c.b16 %v2521, %v2521
  %v2586 = vpack.c.b16 %v2522, %v2522
  %v2587 = vpack.c.b16 %v2523, %v2523
  %v2588 = vpack.c.b16 %v2524, %v2524
  %v2589 = vpack.c.b16 %v2525, %v2525
  %v2590 = vpack.c.b16 %v2526, %v2526
  %v2591 = vpack.c.b16 %v2527, %v2527
  %v2592 = vpack.c.b16 %v2528, %v2528
  %v2593 = vpack.c.b16 %v2529, %v2529
  %v2594 = vpack.c.b16 %v2530, %v2530
  %v2595 = vpack.c.b16 %v2531, %v2531
  %v2596 = vpack.c.b16 %v2532, %v2532
  %vm2661 = vcmask 125952
  %2662 = vst.msk [vmem:[%s3] sm:$0xf] %vm2661, %v2533
  %2663 = vst.msk [vmem:[%s3 + $0x4] sm:$0xf] %vm2661, %v2534
  %2664 = vst.msk [vmem:[%s3 + $0x8] sm:$0xf] %vm2661, %v2535
  %2665 = vst.msk [vmem:[%s3 + $0xc] sm:$0xf] %vm2661, %v2536
  %2666 = vst.msk [vmem:[%s3 + $0x10] sm:$0xf] %vm2661, %v2537
  %2667 = vst.msk [vmem:[%s3 + $0x14] sm:$0xf] %vm2661, %v2538
  %2668 = vst.msk [vmem:[%s3 + $0x18] sm:$0xf] %vm2661, %v2539
  %2669 = vst.msk [vmem:[%s3 + $0x1c] sm:$0xf] %vm2661, %v2540
  %2670 = vst.msk [vmem:[%s3 + $0x20] sm:$0xf] %vm2661, %v2541
  %2671 = vst.msk [vmem:[%s3 + $0x24] sm:$0xf] %vm2661, %v2542
  %2672 = vst.msk [vmem:[%s3 + $0x28] sm:$0xf] %vm2661, %v2543
  %2673 = vst.msk [vmem:[%s3 + $0x2c] sm:$0xf] %vm2661, %v2544
  %2674 = vst.msk [vmem:[%s3 + $0x30] sm:$0xf] %vm2661, %v2545
  %2675 = vst.msk [vmem:[%s3 + $0x34] sm:$0xf] %vm2661, %v2546
  %2676 = vst.msk [vmem:[%s3 + $0x38] sm:$0xf] %vm2661, %v2547
  %2677 = vst.msk [vmem:[%s3 + $0x3c] sm:$0xf] %vm2661, %v2548
  %2678 = vst.msk [vmem:[%s3 + $0x40] sm:$0xf] %vm2661, %v2549
  %2679 = vst.msk [vmem:[%s3 + $0x44] sm:$0xf] %vm2661, %v2550
  %2680 = vst.msk [vmem:[%s3 + $0x48] sm:$0xf] %vm2661, %v2551
  %2681 = vst.msk [vmem:[%s3 + $0x4c] sm:$0xf] %vm2661, %v2552
  %2682 = vst.msk [vmem:[%s3 + $0x50] sm:$0xf] %vm2661, %v2553
  %2683 = vst.msk [vmem:[%s3 + $0x54] sm:$0xf] %vm2661, %v2554
  %2684 = vst.msk [vmem:[%s3 + $0x58] sm:$0xf] %vm2661, %v2555
  %2685 = vst.msk [vmem:[%s3 + $0x5c] sm:$0xf] %vm2661, %v2556
  %2686 = vst.msk [vmem:[%s3 + $0x60] sm:$0xf] %vm2661, %v2557
  %2687 = vst.msk [vmem:[%s3 + $0x64] sm:$0xf] %vm2661, %v2558
  %2688 = vst.msk [vmem:[%s3 + $0x68] sm:$0xf] %vm2661, %v2559
  %2689 = vst.msk [vmem:[%s3 + $0x6c] sm:$0xf] %vm2661, %v2560
  %2690 = vst.msk [vmem:[%s3 + $0x70] sm:$0xf] %vm2661, %v2561
  %2691 = vst.msk [vmem:[%s3 + $0x74] sm:$0xf] %vm2661, %v2562
  %2692 = vst.msk [vmem:[%s3 + $0x78] sm:$0xf] %vm2661, %v2563
  %2693 = vst.msk [vmem:[%s3 + $0x7c] sm:$0xf] %vm2661, %v2564
  %2694 = vst.msk [vmem:[%s3 + $0x80] sm:$0xf] %vm2661, %v2565
  %2695 = vst.msk [vmem:[%s3 + $0x84] sm:$0xf] %vm2661, %v2566
  %2696 = vst.msk [vmem:[%s3 + $0x88] sm:$0xf] %vm2661, %v2567
  %2697 = vst.msk [vmem:[%s3 + $0x8c] sm:$0xf] %vm2661, %v2568
  %2698 = vst.msk [vmem:[%s3 + $0x90] sm:$0xf] %vm2661, %v2569
  %2699 = vst.msk [vmem:[%s3 + $0x94] sm:$0xf] %vm2661, %v2570
  %2700 = vst.msk [vmem:[%s3 + $0x98] sm:$0xf] %vm2661, %v2571
  %2701 = vst.msk [vmem:[%s3 + $0x9c] sm:$0xf] %vm2661, %v2572
  %2702 = vst.msk [vmem:[%s3 + $0xa0] sm:$0xf] %vm2661, %v2573
  %2703 = vst.msk [vmem:[%s3 + $0xa4] sm:$0xf] %vm2661, %v2574
  %2704 = vst.msk [vmem:[%s3 + $0xa8] sm:$0xf] %vm2661, %v2575
  %2705 = vst.msk [vmem:[%s3 + $0xac] sm:$0xf] %vm2661, %v2576
  %2706 = vst.msk [vmem:[%s3 + $0xb0] sm:$0xf] %vm2661, %v2577
  %2707 = vst.msk [vmem:[%s3 + $0xb4] sm:$0xf] %vm2661, %v2578
  %2708 = vst.msk [vmem:[%s3 + $0xb8] sm:$0xf] %vm2661, %v2579
  %2709 = vst.msk [vmem:[%s3 + $0xbc] sm:$0xf] %vm2661, %v2580
  %2710 = vst.msk [vmem:[%s3 + $0xc0] sm:$0xf] %vm2661, %v2581
  %2711 = vst.msk [vmem:[%s3 + $0xc4] sm:$0xf] %vm2661, %v2582
  %2712 = vst.msk [vmem:[%s3 + $0xc8] sm:$0xf] %vm2661, %v2583
  %2713 = vst.msk [vmem:[%s3 + $0xcc] sm:$0xf] %vm2661, %v2584
  %2714 = vst.msk [vmem:[%s3 + $0xd0] sm:$0xf] %vm2661, %v2585
  %2715 = vst.msk [vmem:[%s3 + $0xd4] sm:$0xf] %vm2661, %v2586
  %2716 = vst.msk [vmem:[%s3 + $0xd8] sm:$0xf] %vm2661, %v2587
  %2717 = vst.msk [vmem:[%s3 + $0xdc] sm:$0xf] %vm2661, %v2588
  %2718 = vst.msk [vmem:[%s3 + $0xe0] sm:$0xf] %vm2661, %v2589
  %2719 = vst.msk [vmem:[%s3 + $0xe4] sm:$0xf] %vm2661, %v2590
  %2720 = vst.msk [vmem:[%s3 + $0xe8] sm:$0xf] %vm2661, %v2591
  %2721 = vst.msk [vmem:[%s3 + $0xec] sm:$0xf] %vm2661, %v2592
  %2722 = vst.msk [vmem:[%s3 + $0xf0] sm:$0xf] %vm2661, %v2593
  %2723 = vst.msk [vmem:[%s3 + $0xf4] sm:$0xf] %vm2661, %v2594
  %2724 = vst.msk [vmem:[%s3 + $0xf8] sm:$0xf] %vm2661, %v2595
  %2725 = vst.msk [vmem:[%s3 + $0xfc] sm:$0xf] %vm2661, %v2596
  // Predicated region
  $region14: #{conv_model_forward.3} parent=0 // pred_check
    _
  $region15: #{conv_model_forward.3} parent=0 // pred_check_branch
    %2727 = sbr.rel (0) target = $region17
  $region16: #{conv_model_forward.3} parent=0 // pred_region
    _
  $region17: #{conv_model_forward.3} parent=0 // pred_fallthru
    _
  // Predicated region
  $region18: #{conv_model_forward.3} parent=0 // pred_check
    _
  $region19: #{conv_model_forward.3} parent=0 // pred_check_branch
    %2729 = sbr.rel (0) target = $region21
  $region20: #{conv_model_forward.3} parent=0 // pred_region
    _
  $region21: #{conv_model_forward.3} parent=0 // pred_fallthru
    _

// kernel: conv_model_forward.4
$region0: #{conv_model_forward.4}
  #allocation0 [shape = 'u32[]', space=smem, size = 0x4, offset = 0x4, fixed_abs, tag = 'smem constant byte address 0x4 - core index']
  #allocation1 [shape = 'u32[144,128]{1,0:T(1,128)}', space=vmem, size = 0x12000, scoped, tag = 'internal scratch']
  %s0 = inlined_call_operand.vmem [shape: bf16[1,186,192], index: 0, kind: input, shape index: {}]
  %s1 = inlined_call_operand.vmem [shape: bf16[3,192,128], index: 1, kind: input, shape index: {}]
  %s2 = inlined_call_operand.vmem [shape: f32[1,32], index: 2, kind: input, shape index: {}]
  %s3 = inlined_call_operand.vmem [shape: bf16[1,162,32], index: 3, kind: output, shape index: {}]
  %s4 = sld [smem:[#allocation0]]
  $region22: #{conv_model_forward.4} parent=0
    _
  %s6 = ssub.s32 1, %s4
  %s7 = scalar_select 0, %s6, %s4
  // Predicated region
  $region2: #{conv_model_forward.4} parent=0 // pred_check
    _
  $region3: #{conv_model_forward.4} parent=0 // pred_check_branch
    %9 = sbr.rel (0) target = $region5
  $region4: #{conv_model_forward.4} parent=0 // pred_region
    _
  $region5: #{conv_model_forward.4} parent=0 // pred_fallthru
    _
  // Predicated region
  $region6: #{conv_model_forward.4} parent=0 // pred_check
    _
  $region7: #{conv_model_forward.4} parent=0 // pred_check_branch
    %11 = sbr.rel (0) target = $region9
  $region8: #{conv_model_forward.4} parent=0 // pred_region
    _
  $region9: #{conv_model_forward.4} parent=0 // pred_fallthru
    _
  // Predicated region
  $region10: #{conv_model_forward.4} parent=0 // pred_check
    _
  $region11: #{conv_model_forward.4} parent=0 // pred_check_branch
    %13 = sbr.rel (0) target = $region13
  $region12: #{conv_model_forward.4} parent=0 // pred_region
    _
  $region13: #{conv_model_forward.4} parent=0 // pred_fallthru
    _
  %v15 = vld [vmem:[%s0] sm:$0xff]
  %v16 = vld [vmem:[%s0 + $0x8] sm:$0xff]
  %v17 = vld [vmem:[%s0 + $0x10] sm:$0xff]
  %v18 = vld [vmem:[%s0 + $0x18] sm:$0xff]
  %v19 = vld [vmem:[%s0 + $0x20] sm:$0xff]
  %v20 = vld [vmem:[%s0 + $0x28] sm:$0xff]
  %v21 = vld [vmem:[%s0 + $0x30] sm:$0xff]
  %v22 = vld [vmem:[%s0 + $0x38] sm:$0xff]
  %v23 = vld [vmem:[%s0 + $0x40] sm:$0xff]
  %v24 = vld [vmem:[%s0 + $0x48] sm:$0xff]
  %v25 = vld [vmem:[%s0 + $0x50] sm:$0xff]
  %v26 = vld [vmem:[%s0 + $0x58] sm:$0xff]
  %v27 = vld [vmem:[%s0 + $0x60] sm:$0xff]
  %v28 = vld [vmem:[%s0 + $0x68] sm:$0xff]
  %v29 = vld [vmem:[%s0 + $0x70] sm:$0xff]
  %v30 = vld [vmem:[%s0 + $0x78] sm:$0xff]
  %v31 = vld [vmem:[%s0 + $0x80] sm:$0xff]
  %v32 = vld [vmem:[%s0 + $0x88] sm:$0xff]
  %v33 = vld [vmem:[%s0 + $0x90] sm:$0xff]
  %v34 = vld [vmem:[%s0 + $0x98] sm:$0xff]
  %v35 = vld [vmem:[%s0 + $0xa0] sm:$0x11]
  %v36 = vld [vmem:[%s1] sm:$0xf]
  %v37 = vld [vmem:[%s1 + $0x4] sm:$0xf]
  %v38 = vld [vmem:[%s1 + $0x8] sm:$0xf]
  %v39 = vld [vmem:[%s1 + $0xc] sm:$0xf]
  %v40 = vld [vmem:[%s1 + $0x10] sm:$0xf]
  %v41 = vld [vmem:[%s1 + $0x14] sm:$0xf]
  %v42 = vld [vmem:[%s1 + $0x18] sm:$0xf]
  %v43 = vld [vmem:[%s1 + $0x1c] sm:$0xf]
  %v44 = vld [vmem:[%s1 + $0x20] sm:$0xf]
  %v45 = vld [vmem:[%s1 + $0x24] sm:$0xf]
  %v46 = vld [vmem:[%s1 + $0x28] sm:$0xf]
  %v47 = vld [vmem:[%s1 + $0x2c] sm:$0xf]
  %v48 = vld [vmem:[%s1 + $0x30] sm:$0xf]
  %v49 = vld [vmem:[%s1 + $0x34] sm:$0xf]
  %v50 = vld [vmem:[%s1 + $0x38] sm:$0xf]
  %v51 = vld [vmem:[%s1 + $0x3c] sm:$0xf]
  %v52 = vld [vmem:[%s1 + $0x40] sm:$0xf]
  %v53 = vld [vmem:[%s1 + $0x44] sm:$0xf]
  %v54 = vld [vmem:[%s1 + $0x48] sm:$0xf]
  %v55 = vld [vmem:[%s1 + $0x4c] sm:$0xf]
  %v56 = vld [vmem:[%s1 + $0x50] sm:$0xf]
  %v57 = vld [vmem:[%s1 + $0x54] sm:$0xf]
  %v58 = vld [vmem:[%s1 + $0x58] sm:$0xf]
  %v59 = vld [vmem:[%s1 + $0x5c] sm:$0xf]
  %v60 = vld [vmem:[%s0 + $0xa0] sm:$0xff]
  %v61 = vld [vmem:[%s0 + $0xa8] sm:$0x33]
  %s62 = scalar_lea.vmem %s1, 96
  %v63 = vld [vmem:[%s62] sm:$0xf]
  %v64 = vld [vmem:[%s62 + $0x4] sm:$0xf]
  %v65 = vld [vmem:[%s62 + $0x8] sm:$0xf]
  %v66 = vld [vmem:[%s62 + $0xc] sm:$0xf]
  %v67 = vld [vmem:[%s62 + $0x10] sm:$0xf]
  %v68 = vld [vmem:[%s62 + $0x14] sm:$0xf]
  %v69 = vld [vmem:[%s62 + $0x18] sm:$0xf]
  %v70 = vld [vmem:[%s62 + $0x1c] sm:$0xf]
  %v71 = vld [vmem:[%s62 + $0x20] sm:$0xf]
  %v72 = vld [vmem:[%s62 + $0x24] sm:$0xf]
  %v73 = vld [vmem:[%s62 + $0x28] sm:$0xf]
  %v74 = vld [vmem:[%s62 + $0x2c] sm:$0xf]
  %v75 = vld [vmem:[%s62 + $0x30] sm:$0xf]
  %v76 = vld [vmem:[%s62 + $0x34] sm:$0xf]
  %v77 = vld [vmem:[%s62 + $0x38] sm:$0xf]
  %v78 = vld [vmem:[%s62 + $0x3c] sm:$0xf]
  %v79 = vld [vmem:[%s62 + $0x40] sm:$0xf]
  %v80 = vld [vmem:[%s62 + $0x44] sm:$0xf]
  %v81 = vld [vmem:[%s62 + $0x48] sm:$0xf]
  %v82 = vld [vmem:[%s62 + $0x4c] sm:$0xf]
  %v83 = vld [vmem:[%s62 + $0x50] sm:$0xf]
  %v84 = vld [vmem:[%s62 + $0x54] sm:$0xf]
  %v85 = vld [vmem:[%s62 + $0x58] sm:$0xf]
  %v86 = vld [vmem:[%s62 + $0x5c] sm:$0xf]
  %v108 = vunpack.c.l.b16 %v16
  %v109 = vunpack.c.h.b16 %v16
  %v110 = vunpack.c.l.b16 %v17
  %v111 = vunpack.c.h.b16 %v17
  %v112 = vunpack.c.l.b16 %v18
  %v113 = vunpack.c.h.b16 %v18
  %v114 = vunpack.c.l.b16 %v19
  %v115 = vunpack.c.h.b16 %v19
  %v116 = vunpack.c.l.b16 %v20
  %v117 = vunpack.c.h.b16 %v20
  %v118 = vunpack.c.l.b16 %v21
  %v119 = vunpack.c.h.b16 %v21
  %v120 = vunpack.c.l.b16 %v22
  %v121 = vunpack.c.h.b16 %v22
  %v122 = vunpack.c.l.b16 %v23
  %v123 = vunpack.c.h.b16 %v23
  %v124 = vunpack.c.l.b16 %v24
  %v125 = vunpack.c.h.b16 %v24
  %v126 = vunpack.c.l.b16 %v25
  %v127 = vunpack.c.h.b16 %v25
  %v128 = vunpack.c.l.b16 %v26
  %v129 = vunpack.c.h.b16 %v26
  %v130 = vunpack.c.l.b16 %v27
  %v131 = vunpack.c.h.b16 %v27
  %v132 = vunpack.c.l.b16 %v28
  %v133 = vunpack.c.h.b16 %v28
  %v134 = vunpack.c.l.b16 %v29
  %v135 = vunpack.c.h.b16 %v29
  %v136 = vunpack.c.l.b16 %v30
  %v137 = vunpack.c.h.b16 %v30
  %v138 = vunpack.c.l.b16 %v31
  %v139 = vunpack.c.h.b16 %v31
  %v140 = vunpack.c.l.b16 %v32
  %v141 = vunpack.c.h.b16 %v32
  %v142 = vunpack.c.l.b16 %v33
  %v143 = vunpack.c.h.b16 %v33
  %v144 = vunpack.c.l.b16 %v34
  %v145 = vunpack.c.h.b16 %v34
  %v146 = vunpack.c.l.b16 %v60
  %v147 = vunpack.c.h.b16 %v60
  %v148 = vunpack.c.l.b16 %v61
  %v149 = vunpack.c.h.b16 %v61
  %v150 = vpack.c.b16 %v110, %v108
  %v151 = vpack.c.b16 %v111, %v109
  %v152 = vpack.c.b16 %v114, %v112
  %v153 = vpack.c.b16 %v115, %v113
  %v154 = vpack.c.b16 %v118, %v116
  %v155 = vpack.c.b16 %v119, %v117
  %v156 = vpack.c.b16 %v122, %v120
  %v157 = vpack.c.b16 %v123, %v121
  %v158 = vpack.c.b16 %v126, %v124
  %v159 = vpack.c.b16 %v127, %v125
  %v160 = vpack.c.b16 %v130, %v128
  %v161 = vpack.c.b16 %v131, %v129
  %v162 = vpack.c.b16 %v134, %v132
  %v163 = vpack.c.b16 %v135, %v133
  %v164 = vpack.c.b16 %v138, %v136
  %v165 = vpack.c.b16 %v139, %v137
  %v166 = vpack.c.b16 %v142, %v140
  %v167 = vpack.c.b16 %v143, %v141
  %v168 = vpack.c.b16 %v146, %v144
  %v169 = vpack.c.b16 %v147, %v145
  %v170 = vpack.c.b16 %v148, %v148
  %v171 = vpack.c.b16 %v149, %v149
  %vm172 = vsmask.f32 7424
  %v174 = vshrl.u32 %v150, 16
  %v176 = vshll.u32 %v150, 16
  %v178 = vrot.slane %v176, 1
  %v179 = vor.u32 %v174, %v178
  %v181 = vshll.u32 %v152, 16
  %v183 = vrot.slane %v181, 1
  %v184 = vsel %vm172, %v179, %v183
  %v186 = vshrl.u32 %v151, 16
  %v188 = vshll.u32 %v151, 16
  %v190 = vrot.slane %v188, 1
  %v191 = vor.u32 %v186, %v190
  %v193 = vshll.u32 %v153, 16
  %v195 = vrot.slane %v193, 1
  %v196 = vsel %vm172, %v191, %v195
  %v197 = vshrl.u32 %v152, 16
  %v199 = vor.u32 %v197, %v183
  %v201 = vshll.u32 %v154, 16
  %v203 = vrot.slane %v201, 1
  %v204 = vsel %vm172, %v199, %v203
  %v205 = vshrl.u32 %v153, 16
  %v207 = vor.u32 %v205, %v195
  %v209 = vshll.u32 %v155, 16
  %v211 = vrot.slane %v209, 1
  %v212 = vsel %vm172, %v207, %v211
  %v213 = vshrl.u32 %v154, 16
  %v215 = vor.u32 %v213, %v203
  %v217 = vshll.u32 %v156, 16
  %v219 = vrot.slane %v217, 1
  %v220 = vsel %vm172, %v215, %v219
  %v221 = vshrl.u32 %v155, 16
  %v223 = vor.u32 %v221, %v211
  %v225 = vshll.u32 %v157, 16
  %v227 = vrot.slane %v225, 1
  %v228 = vsel %vm172, %v223, %v227
  %v229 = vshrl.u32 %v156, 16
  %v231 = vor.u32 %v229, %v219
  %v233 = vshll.u32 %v158, 16
  %v235 = vrot.slane %v233, 1
  %v236 = vsel %vm172, %v231, %v235
  %v237 = vshrl.u32 %v157, 16
  %v239 = vor.u32 %v237, %v227
  %v241 = vshll.u32 %v159, 16
  %v243 = vrot.slane %v241, 1
  %v244 = vsel %vm172, %v239, %v243
  %v245 = vshrl.u32 %v158, 16
  %v247 = vor.u32 %v245, %v235
  %v249 = vshll.u32 %v160, 16
  %v251 = vrot.slane %v249, 1
  %v252 = vsel %vm172, %v247, %v251
  %v253 = vshrl.u32 %v159, 16
  %v255 = vor.u32 %v253, %v243
  %v257 = vshll.u32 %v161, 16
  %v259 = vrot.slane %v257, 1
  %v260 = vsel %vm172, %v255, %v259
  %v261 = vshrl.u32 %v160, 16
  %v263 = vor.u32 %v261, %v251
  %v265 = vshll.u32 %v162, 16
  %v267 = vrot.slane %v265, 1
  %v268 = vsel %vm172, %v263, %v267
  %v269 = vshrl.u32 %v161, 16
  %v271 = vor.u32 %v269, %v259
  %v273 = vshll.u32 %v163, 16
  %v275 = vrot.slane %v273, 1
  %v276 = vsel %vm172, %v271, %v275
  %v277 = vshrl.u32 %v162, 16
  %v279 = vor.u32 %v277, %v267
  %v281 = vshll.u32 %v164, 16
  %v283 = vrot.slane %v281, 1
  %v284 = vsel %vm172, %v279, %v283
  %v285 = vshrl.u32 %v163, 16
  %v287 = vor.u32 %v285, %v275
  %v289 = vshll.u32 %v165, 16
  %v291 = vrot.slane %v289, 1
  %v292 = vsel %vm172, %v287, %v291
  %v293 = vshrl.u32 %v164, 16
  %v295 = vor.u32 %v293, %v283
  %v297 = vshll.u32 %v166, 16
  %v299 = vrot.slane %v297, 1
  %v300 = vsel %vm172, %v295, %v299
  %v301 = vshrl.u32 %v165, 16
  %v303 = vor.u32 %v301, %v291
  %v305 = vshll.u32 %v167, 16
  %v307 = vrot.slane %v305, 1
  %v308 = vsel %vm172, %v303, %v307
  %v309 = vshrl.u32 %v166, 16
  %v311 = vor.u32 %v309, %v299
  %v313 = vshll.u32 %v168, 16
  %v315 = vrot.slane %v313, 1
  %v316 = vsel %vm172, %v311, %v315
  %v317 = vshrl.u32 %v167, 16
  %v319 = vor.u32 %v317, %v307
  %v321 = vshll.u32 %v169, 16
  %v323 = vrot.slane %v321, 1
  %v324 = vsel %vm172, %v319, %v323
  %v325 = vshrl.u32 %v168, 16
  %v327 = vor.u32 %v325, %v315
  %v329 = vshll.u32 %v170, 16
  %v331 = vrot.slane %v329, 1
  %v332 = vsel %vm172, %v327, %v331
  %v333 = vshrl.u32 %v169, 16
  %v335 = vor.u32 %v333, %v323
  %v337 = vshll.u32 %v171, 16
  %v339 = vrot.slane %v337, 1
  %v340 = vsel %vm172, %v335, %v339
  %v341 = vshrl.u32 %v170, 16
  %v343 = vor.u32 %v341, %v331
  %v344 = vshrl.u32 %v171, 16
  %v346 = vor.u32 %v344, %v339
  %v382 = vunpack.c.l.b16 %v63
  %v383 = vunpack.c.l.b16 %v64
  %v384 = vunpack.c.l.b16 %v65
  %v385 = vunpack.c.l.b16 %v66
  %v386 = vunpack.c.l.b16 %v67
  %v387 = vunpack.c.l.b16 %v68
  %v388 = vunpack.c.l.b16 %v69
  %v389 = vunpack.c.l.b16 %v70
  %v390 = vunpack.c.l.b16 %v71
  %v391 = vunpack.c.l.b16 %v72
  %v392 = vunpack.c.l.b16 %v73
  %v393 = vunpack.c.l.b16 %v74
  %v394 = vunpack.c.l.b16 %v75
  %v395 = vunpack.c.l.b16 %v76
  %v396 = vunpack.c.l.b16 %v77
  %v397 = vunpack.c.l.b16 %v78
  %v398 = vunpack.c.l.b16 %v79
  %v399 = vunpack.c.l.b16 %v80
  %v400 = vunpack.c.l.b16 %v81
  %v401 = vunpack.c.l.b16 %v82
  %v402 = vunpack.c.l.b16 %v83
  %v403 = vunpack.c.l.b16 %v84
  %v404 = vunpack.c.l.b16 %v85
  %v405 = vunpack.c.l.b16 %v86
  %v406 = vpack.c.b16 %v383, %v382
  %v407 = vpack.c.b16 %v385, %v384
  %v408 = vpack.c.b16 %v387, %v386
  %v409 = vpack.c.b16 %v389, %v388
  %v410 = vpack.c.b16 %v391, %v390
  %v411 = vpack.c.b16 %v393, %v392
  %v412 = vpack.c.b16 %v395, %v394
  %v413 = vpack.c.b16 %v397, %v396
  %v414 = vpack.c.b16 %v399, %v398
  %v415 = vpack.c.b16 %v401, %v400
  %v416 = vpack.c.b16 %v403, %v402
  %v417 = vpack.c.b16 %v405, %v404
  %vm430 = vcmask 523264
  %v432 = vsel %vm430, %v196, 0
  %v435 = vsel %vm430, %v212, 0
  %v438 = vsel %vm430, %v228, 0
  %v441 = vsel %vm430, %v244, 0
  %v444 = vsel %vm430, %v260, 0
  %v447 = vsel %vm430, %v276, 0
  %v450 = vsel %vm430, %v292, 0
  %v453 = vsel %vm430, %v308, 0
  %v456 = vsel %vm430, %v324, 0
  %v459 = vsel %vm430, %v340, 0
  %v462 = vsel %vm430, %v346, 0
  %464 = vmatprep.subr.bf16.mxu0 0
  %465 = vmatpush1.bf16.msra.mxu0 %v406
  %466 = vmatprep.subr.bf16.mxu0 0
  %467 = vmatpush1.bf16.msra.mxu0 %v407
  %468 = vmatprep.subr.bf16.mxu0 0
  %469 = vmatpush1.bf16.msra.mxu0 %v408
  %470 = vmatprep.subr.bf16.mxu0 0
  %471 = vmatpush1.bf16.msra.mxu0 %v409
  %472 = vmatprep.subr.bf16.mxu0 0
  %473 = vmatpush1.bf16.msra.mxu0 %v410
  %474 = vmatprep.subr.bf16.mxu0 0
  %475 = vmatpush1.bf16.msra.mxu0 %v411
  %476 = vmatprep.subr.bf16.mxu0 0
  %477 = vmatpush1.bf16.msra.mxu0 %v412
  %478 = vmatprep.subr.bf16.mxu0 0
  %479 = vmatpush1.bf16.msra.mxu0 %v413
  %480 = vmatprep.subr.bf16.mxu0 0
  %481 = vmatpush1.bf16.msra.mxu0 %v414
  %482 = vmatprep.subr.bf16.mxu0 0
  %483 = vmatpush1.bf16.msra.mxu0 %v415
  %484 = vmatprep.subr.bf16.mxu0 0
  %485 = vmatpush1.bf16.msra.mxu0 %v416
  %486 = vmatprep.subr.bf16.mxu0 0
  %487 = vmatpush1.bf16.msra.mxu0 %v417
  %488 = vmatprep.subr.bf16.mxu0 0
  %489 = vmatpush1.bf16.msra.mxu0 0
  %490 = vmatprep.subr.bf16.mxu0 0
  %491 = vmatpush1.bf16.msra.mxu0 0
  %492 = vmatprep.subr.bf16.mxu0 0
  %493 = vmatpush1.bf16.msra.mxu0 0
  %494 = vmatprep.subr.bf16.mxu0 0
  %495 = vmatpush1.bf16.msra.mxu0 0
  %496 = vmatprep.mubr.bf16.mxu0 %v432
  %497 = vmatmul.mubr.bf16.gmra.mrb[0].mxu0 %v184
  %v498 = vpop.f32.mrb[0].mxu0
  %v499 = vadd.f32 0.0, %v498
  %v500 = vpop.f32.mrb[0].mxu0
  %v501 = vpop.f32.mrb[0].mxu0
  %v502 = vadd.f32 0.0, %v501
  %v503 = vpop.f32.mrb[0].mxu0
  %504 = vmatprep.mubr.bf16.mxu0 %v435
  %505 = vmatmul.mubr.bf16.gmra.mrb[0].mxu0 %v204
  %v506 = vpop.f32.mrb[0].mxu0
  %v507 = vadd.f32 0.0, %v506
  %v508 = vpop.f32.mrb[0].mxu0
  %v509 = vpop.f32.mrb[0].mxu0
  %v510 = vadd.f32 0.0, %v509
  %v511 = vpop.f32.mrb[0].mxu0
  %512 = vmatprep.mubr.bf16.mxu0 %v438
  %513 = vmatmul.mubr.bf16.gmra.mrb[0].mxu0 %v220
  %v514 = vpop.f32.mrb[0].mxu0
  %v515 = vadd.f32 0.0, %v514
  %v516 = vpop.f32.mrb[0].mxu0
  %v517 = vpop.f32.mrb[0].mxu0
  %v518 = vadd.f32 0.0, %v517
  %v519 = vpop.f32.mrb[0].mxu0
  %520 = vmatprep.mubr.bf16.mxu0 %v441
  %521 = vmatmul.mubr.bf16.gmra.mrb[0].mxu0 %v236
  %v522 = vpop.f32.mrb[0].mxu0
  %v523 = vadd.f32 0.0, %v522
  %v524 = vpop.f32.mrb[0].mxu0
  %v525 = vpop.f32.mrb[0].mxu0
  %v526 = vadd.f32 0.0, %v525
  %v527 = vpop.f32.mrb[0].mxu0
  %528 = vmatprep.mubr.bf16.mxu0 %v444
  %529 = vmatmul.mubr.bf16.gmra.mrb[0].mxu0 %v252
  %v530 = vpop.f32.mrb[0].mxu0
  %v531 = vadd.f32 0.0, %v530
  %v532 = vpop.f32.mrb[0].mxu0
  %v533 = vpop.f32.mrb[0].mxu0
  %v534 = vadd.f32 0.0, %v533
  %v535 = vpop.f32.mrb[0].mxu0
  %536 = vmatprep.mubr.bf16.mxu0 %v447
  %537 = vmatmul.mubr.bf16.gmra.mrb[0].mxu0 %v268
  %v538 = vpop.f32.mrb[0].mxu0
  %v539 = vadd.f32 0.0, %v538
  %v540 = vpop.f32.mrb[0].mxu0
  %v541 = vpop.f32.mrb[0].mxu0
  %v542 = vadd.f32 0.0, %v541
  %v543 = vpop.f32.mrb[0].mxu0
  %544 = vmatprep.mubr.bf16.mxu0 %v450
  %545 = vmatmul.mubr.bf16.gmra.mrb[0].mxu0 %v284
  %v546 = vpop.f32.mrb[0].mxu0
  %v547 = vadd.f32 0.0, %v546
  %v548 = vpop.f32.mrb[0].mxu0
  %v549 = vpop.f32.mrb[0].mxu0
  %v550 = vadd.f32 0.0, %v549
  %v551 = vpop.f32.mrb[0].mxu0
  %552 = vmatprep.mubr.bf16.mxu0 %v453
  %553 = vmatmul.mubr.bf16.gmra.mrb[0].mxu0 %v300
  %v554 = vpop.f32.mrb[0].mxu0
  %v555 = vadd.f32 0.0, %v554
  %v556 = vpop.f32.mrb[0].mxu0
  %v557 = vpop.f32.mrb[0].mxu0
  %v558 = vadd.f32 0.0, %v557
  %v559 = vpop.f32.mrb[0].mxu0
  %560 = vmatprep.mubr.bf16.mxu0 %v456
  %561 = vmatmul.mubr.bf16.gmra.mrb[0].mxu0 %v316
  %v562 = vpop.f32.mrb[0].mxu0
  %v563 = vadd.f32 0.0, %v562
  %v564 = vpop.f32.mrb[0].mxu0
  %v565 = vpop.f32.mrb[0].mxu0
  %v566 = vadd.f32 0.0, %v565
  %v567 = vpop.f32.mrb[0].mxu0
  %568 = vmatprep.mubr.bf16.mxu0 %v459
  %569 = vmatmul.mubr.bf16.gmra.mrb[0].mxu0 %v332
  %v570 = vpop.f32.mrb[0].mxu0
  %v571 = vadd.f32 0.0, %v570
  %v572 = vpop.f32.mrb[0].mxu0
  %v573 = vpop.f32.mrb[0].mxu0
  %v574 = vadd.f32 0.0, %v573
  %v575 = vpop.f32.mrb[0].mxu0
  %576 = vmatprep.mubr.bf16.mxu0 %v462
  %577 = vmatmul.mubr.bf16.gmra.mrb[0].mxu0 %v343
  %v578 = vpop.f32.mrb[0].mxu0
  %v579 = vadd.f32 0.0, %v578
  %v580 = vpop.f32.mrb[0].mxu0
  %v581 = vpop.f32.mrb[0].mxu0
  %v582 = vpop.f32.mrb[0].mxu0
  %583 = vdwg.mxu0
  %v586 = vunpack.c.l.b16 %v15
  %v587 = vunpack.c.h.b16 %v15
  %v588 = vunpack.c.l.b16 %v35
  %v589 = vunpack.c.h.b16 %v35
  %v590 = vpack.c.b16 %v108, %v586
  %v591 = vpack.c.b16 %v109, %v587
  %v592 = vpack.c.b16 %v112, %v110
  %v593 = vpack.c.b16 %v113, %v111
  %v594 = vpack.c.b16 %v116, %v114
  %v595 = vpack.c.b16 %v117, %v115
  %v596 = vpack.c.b16 %v120, %v118
  %v597 = vpack.c.b16 %v121, %v119
  %v598 = vpack.c.b16 %v124, %v122
  %v599 = vpack.c.b16 %v125, %v123
  %v600 = vpack.c.b16 %v128, %v126
  %v601 = vpack.c.b16 %v129, %v127
  %v602 = vpack.c.b16 %v132, %v130
  %v603 = vpack.c.b16 %v133, %v131
  %v604 = vpack.c.b16 %v136, %v134
  %v605 = vpack.c.b16 %v137, %v135
  %v606 = vpack.c.b16 %v140, %v138
  %v607 = vpack.c.b16 %v141, %v139
  %v608 = vpack.c.b16 %v144, %v142
  %v609 = vpack.c.b16 %v145, %v143
  %v610 = vpack.c.b16 %v588, %v588
  %v611 = vpack.c.b16 %v589, %v589
  %v647 = vunpack.c.l.b16 %v36
  %v648 = vunpack.c.l.b16 %v37
  %v649 = vunpack.c.l.b16 %v38
  %v650 = vunpack.c.l.b16 %v39
  %v651 = vunpack.c.l.b16 %v40
  %v652 = vunpack.c.l.b16 %v41
  %v653 = vunpack.c.l.b16 %v42
  %v654 = vunpack.c.l.b16 %v43
  %v655 = vunpack.c.l.b16 %v44
  %v656 = vunpack.c.l.b16 %v45
  %v657 = vunpack.c.l.b16 %v46
  %v658 = vunpack.c.l.b16 %v47
  %v659 = vunpack.c.l.b16 %v48
  %v660 = vunpack.c.l.b16 %v49
  %v661 = vunpack.c.l.b16 %v50
  %v662 = vunpack.c.l.b16 %v51
  %v663 = vunpack.c.l.b16 %v52
  %v664 = vunpack.c.l.b16 %v53
  %v665 = vunpack.c.l.b16 %v54
  %v666 = vunpack.c.l.b16 %v55
  %v667 = vunpack.c.l.b16 %v56
  %v668 = vunpack.c.l.b16 %v57
  %v669 = vunpack.c.l.b16 %v58
  %v670 = vunpack.c.l.b16 %v59
  %v671 = vpack.c.b16 %v648, %v647
  %v672 = vpack.c.b16 %v650, %v649
  %v673 = vpack.c.b16 %v652, %v651
  %v674 = vpack.c.b16 %v654, %v653
  %v675 = vpack.c.b16 %v656, %v655
  %v676 = vpack.c.b16 %v658, %v657
  %v677 = vpack.c.b16 %v660, %v659
  %v678 = vpack.c.b16 %v662, %v661
  %v679 = vpack.c.b16 %v664, %v663
  %v680 = vpack.c.b16 %v666, %v665
  %v681 = vpack.c.b16 %v668, %v667
  %v682 = vpack.c.b16 %v670, %v669
  %v696 = vsel %vm430, %v591, 0
  %v699 = vsel %vm430, %v593, 0
  %v702 = vsel %vm430, %v595, 0
  %v705 = vsel %vm430, %v597, 0
  %v708 = vsel %vm430, %v599, 0
  %v711 = vsel %vm430, %v601, 0
  %v714 = vsel %vm430, %v603, 0
  %v717 = vsel %vm430, %v605, 0
  %v720 = vsel %vm430, %v607, 0
  %v723 = vsel %vm430, %v609, 0
  %v726 = vsel %vm430, %v611, 0
  %728 = vmatprep.subr.bf16.mxu0 0
  %729 = vmatpush1.bf16.msra.mxu0 %v671
  %730 = vmatprep.subr.bf16.mxu0 0
  %731 = vmatpush1.bf16.msra.mxu0 %v672
  %732 = vmatprep.subr.bf16.mxu0 0
  %733 = vmatpush1.bf16.msra.mxu0 %v673
  %734 = vmatprep.subr.bf16.mxu0 0
  %735 = vmatpush1.bf16.msra.mxu0 %v674
  %736 = vmatprep.subr.bf16.mxu0 0
  %737 = vmatpush1.bf16.msra.mxu0 %v675
  %738 = vmatprep.subr.bf16.mxu0 0
  %739 = vmatpush1.bf16.msra.mxu0 %v676
  %740 = vmatprep.subr.bf16.mxu0 0
  %741 = vmatpush1.bf16.msra.mxu0 %v677
  %742 = vmatprep.subr.bf16.mxu0 0
  %743 = vmatpush1.bf16.msra.mxu0 %v678
  %744 = vmatprep.subr.bf16.mxu0 0
  %745 = vmatpush1.bf16.msra.mxu0 %v679
  %746 = vmatprep.subr.bf16.mxu0 0
  %747 = vmatpush1.bf16.msra.mxu0 %v680
  %748 = vmatprep.subr.bf16.mxu0 0
  %749 = vmatpush1.bf16.msra.mxu0 %v681
  %750 = vmatprep.subr.bf16.mxu0 0
  %751 = vmatpush1.bf16.msra.mxu0 %v682
  %752 = vmatprep.subr.bf16.mxu0 0
  %753 = vmatpush1.bf16.msra.mxu0 0
  %754 = vmatprep.subr.bf16.mxu0 0
  %755 = vmatpush1.bf16.msra.mxu0 0
  %756 = vmatprep.subr.bf16.mxu0 0
  %757 = vmatpush1.bf16.msra.mxu0 0
  %758 = vmatprep.subr.bf16.mxu0 0
  %759 = vmatpush1.bf16.msra.mxu0 0
  %760 = vmatprep.mubr.bf16.mxu0 %v696
  %761 = vmatmul.mubr.bf16.gmra.mrb[0].mxu0 %v590
  %v762 = vpop.f32.mrb[0].mxu0
  %v763 = vadd.f32 %v499, %v762
  %v764 = vpop.f32.mrb[0].mxu0
  %v765 = vpop.f32.mrb[0].mxu0
  %v766 = vadd.f32 %v502, %v765
  %v767 = vpop.f32.mrb[0].mxu0
  %768 = vmatprep.mubr.bf16.mxu0 %v699
  %769 = vmatmul.mubr.bf16.gmra.mrb[0].mxu0 %v592
  %v770 = vpop.f32.mrb[0].mxu0
  %v771 = vadd.f32 %v507, %v770
  %v772 = vpop.f32.mrb[0].mxu0
  %v773 = vpop.f32.mrb[0].mxu0
  %v774 = vadd.f32 %v510, %v773
  %v775 = vpop.f32.mrb[0].mxu0
  %776 = vmatprep.mubr.bf16.mxu0 %v702
  %777 = vmatmul.mubr.bf16.gmra.mrb[0].mxu0 %v594
  %v778 = vpop.f32.mrb[0].mxu0
  %v779 = vadd.f32 %v515, %v778
  %v780 = vpop.f32.mrb[0].mxu0
  %v781 = vpop.f32.mrb[0].mxu0
  %v782 = vadd.f32 %v518, %v781
  %v783 = vpop.f32.mrb[0].mxu0
  %784 = vmatprep.mubr.bf16.mxu0 %v705
  %785 = vmatmul.mubr.bf16.gmra.mrb[0].mxu0 %v596
  %v786 = vpop.f32.mrb[0].mxu0
  %v787 = vadd.f32 %v523, %v786
  %v788 = vpop.f32.mrb[0].mxu0
  %v789 = vpop.f32.mrb[0].mxu0
  %v790 = vadd.f32 %v526, %v789
  %v791 = vpop.f32.mrb[0].mxu0
  %792 = vmatprep.mubr.bf16.mxu0 %v708
  %793 = vmatmul.mubr.bf16.gmra.mrb[0].mxu0 %v598
  %v794 = vpop.f32.mrb[0].mxu0
  %v795 = vadd.f32 %v531, %v794
  %v796 = vpop.f32.mrb[0].mxu0
  %v797 = vpop.f32.mrb[0].mxu0
  %v798 = vadd.f32 %v534, %v797
  %v799 = vpop.f32.mrb[0].mxu0
  %800 = vmatprep.mubr.bf16.mxu0 %v711
  %801 = vmatmul.mubr.bf16.gmra.mrb[0].mxu0 %v600
  %v802 = vpop.f32.mrb[0].mxu0
  %v803 = vadd.f32 %v539, %v802
  %v804 = vpop.f32.mrb[0].mxu0
  %v805 = vpop.f32.mrb[0].mxu0
  %v806 = vadd.f32 %v542, %v805
  %v807 = vpop.f32.mrb[0].mxu0
  %808 = vmatprep.mubr.bf16.mxu0 %v714
  %809 = vmatmul.mubr.bf16.gmra.mrb[0].mxu0 %v602
  %v810 = vpop.f32.mrb[0].mxu0
  %v811 = vadd.f32 %v547, %v810
  %v812 = vpop.f32.mrb[0].mxu0
  %v813 = vpop.f32.mrb[0].mxu0
  %v814 = vadd.f32 %v550, %v813
  %v815 = vpop.f32.mrb[0].mxu0
  %816 = vmatprep.mubr.bf16.mxu0 %v717
  %817 = vmatmul.mubr.bf16.gmra.mrb[0].mxu0 %v604
  %v818 = vpop.f32.mrb[0].mxu0
  %v819 = vadd.f32 %v555, %v818
  %v820 = vpop.f32.mrb[0].mxu0
  %v821 = vpop.f32.mrb[0].mxu0
  %v822 = vadd.f32 %v558, %v821
  %v823 = vpop.f32.mrb[0].mxu0
  %824 = vmatprep.mubr.bf16.mxu0 %v720
  %825 = vmatmul.mubr.bf16.gmra.mrb[0].mxu0 %v606
  %v826 = vpop.f32.mrb[0].mxu0
  %v827 = vadd.f32 %v563, %v826
  %v828 = vpop.f32.mrb[0].mxu0
  %v829 = vpop.f32.mrb[0].mxu0
  %v830 = vadd.f32 %v566, %v829
  %v831 = vpop.f32.mrb[0].mxu0
  %832 = vmatprep.mubr.bf16.mxu0 %v723
  %833 = vmatmul.mubr.bf16.gmra.mrb[0].mxu0 %v608
  %v834 = vpop.f32.mrb[0].mxu0
  %v835 = vadd.f32 %v571, %v834
  %v836 = vpop.f32.mrb[0].mxu0
  %v837 = vpop.f32.mrb[0].mxu0
  %v838 = vadd.f32 %v574, %v837
  %v839 = vpop.f32.mrb[0].mxu0
  %840 = vmatprep.mubr.bf16.mxu0 %v726
  %841 = vmatmul.mubr.bf16.gmra.mrb[0].mxu0 %v610
  %v842 = vpop.f32.mrb[0].mxu0
  %v843 = vadd.f32 %v579, %v842
  %v844 = vpop.f32.mrb[0].mxu0
  %v845 = vpop.f32.mrb[0].mxu0
  %v846 = vpop.f32.mrb[0].mxu0
  %847 = vdwg.mxu0
  %v848 = vld [vmem:[%s0 + $0x10] sm:$0xee]
  %v849 = vld [vmem:[%s0 + $0x18] sm:$0xff]
  %v850 = vld [vmem:[%s0 + $0x20] sm:$0xff]
  %v851 = vld [vmem:[%s0 + $0x28] sm:$0xff]
  %v852 = vld [vmem:[%s0 + $0x30] sm:$0xff]
  %v853 = vld [vmem:[%s0 + $0x38] sm:$0xff]
  %v854 = vld [vmem:[%s0 + $0x40] sm:$0xff]
  %v855 = vld [vmem:[%s0 + $0x48] sm:$0xff]
  %v856 = vld [vmem:[%s0 + $0x50] sm:$0xff]
  %v857 = vld [vmem:[%s0 + $0x58] sm:$0xff]
  %v858 = vld [vmem:[%s0 + $0x60] sm:$0xff]
  %v859 = vld [vmem:[%s0 + $0x68] sm:$0xff]
  %v860 = vld [vmem:[%s0 + $0x70] sm:$0xff]
  %v861 = vld [vmem:[%s0 + $0x78] sm:$0xff]
  %v862 = vld [vmem:[%s0 + $0x80] sm:$0xff]
  %v863 = vld [vmem:[%s0 + $0x88] sm:$0xff]
  %v864 = vld [vmem:[%s0 + $0x90] sm:$0xff]
  %v865 = vld [vmem:[%s0 + $0x98] sm:$0xff]
  %v866 = vld [vmem:[%s0 + $0xa0] sm:$0xff]
  %v867 = vld [vmem:[%s0 + $0xa8] sm:$0xff]
  %v868 = vld [vmem:[%s0 + $0xb0] sm:$0x33]
  %s869 = scalar_lea.vmem %s1, 192
  %v870 = vld [vmem:[%s869] sm:$0xf]
  %v871 = vld [vmem:[%s869 + $0x4] sm:$0xf]
  %v872 = vld [vmem:[%s869 + $0x8] sm:$0xf]
  %v873 = vld [vmem:[%s869 + $0xc] sm:$0xf]
  %v874 = vld [vmem:[%s869 + $0x10] sm:$0xf]
  %v875 = vld [vmem:[%s869 + $0x14] sm:$0xf]
  %v876 = vld [vmem:[%s869 + $0x18] sm:$0xf]
  %v877 = vld [vmem:[%s869 + $0x1c] sm:$0xf]
  %v878 = vld [vmem:[%s869 + $0x20] sm:$0xf]
  %v879 = vld [vmem:[%s869 + $0x24] sm:$0xf]
  %v880 = vld [vmem:[%s869 + $0x28] sm:$0xf]
  %v881 = vld [vmem:[%s869 + $0x2c] sm:$0xf]
  %v882 = vld [vmem:[%s869 + $0x30] sm:$0xf]
  %v883 = vld [vmem:[%s869 + $0x34] sm:$0xf]
  %v884 = vld [vmem:[%s869 + $0x38] sm:$0xf]
  %v885 = vld [vmem:[%s869 + $0x3c] sm:$0xf]
  %v886 = vld [vmem:[%s869 + $0x40] sm:$0xf]
  %v887 = vld [vmem:[%s869 + $0x44] sm:$0xf]
  %v888 = vld [vmem:[%s869 + $0x48] sm:$0xf]
  %v889 = vld [vmem:[%s869 + $0x4c] sm:$0xf]
  %v890 = vld [vmem:[%s869 + $0x50] sm:$0xf]
  %v891 = vld [vmem:[%s869 + $0x54] sm:$0xf]
  %v892 = vld [vmem:[%s869 + $0x58] sm:$0xf]
  %v893 = vld [vmem:[%s869 + $0x5c] sm:$0xf]
  %v915 = vunpack.c.l.b16 %v848
  %v916 = vunpack.c.h.b16 %v848
  %v917 = vunpack.c.l.b16 %v849
  %v918 = vunpack.c.h.b16 %v849
  %v919 = vunpack.c.l.b16 %v850
  %v920 = vunpack.c.h.b16 %v850
  %v921 = vunpack.c.l.b16 %v851
  %v922 = vunpack.c.h.b16 %v851
  %v923 = vunpack.c.l.b16 %v852
  %v924 = vunpack.c.h.b16 %v852
  %v925 = vunpack.c.l.b16 %v853
  %v926 = vunpack.c.h.b16 %v853
  %v927 = vunpack.c.l.b16 %v854
  %v928 = vunpack.c.h.b16 %v854
  %v929 = vunpack.c.l.b16 %v855
  %v930 = vunpack.c.h.b16 %v855
  %v931 = vunpack.c.l.b16 %v856
  %v932 = vunpack.c.h.b16 %v856
  %v933 = vunpack.c.l.b16 %v857
  %v934 = vunpack.c.h.b16 %v857
  %v935 = vunpack.c.l.b16 %v858
  %v936 = vunpack.c.h.b16 %v858
  %v937 = vunpack.c.l.b16 %v859
  %v938 = vunpack.c.h.b16 %v859
  %v939 = vunpack.c.l.b16 %v860
  %v940 = vunpack.c.h.b16 %v860
  %v941 = vunpack.c.l.b16 %v861
  %v942 = vunpack.c.h.b16 %v861
  %v943 = vunpack.c.l.b16 %v862
  %v944 = vunpack.c.h.b16 %v862
  %v945 = vunpack.c.l.b16 %v863
  %v946 = vunpack.c.h.b16 %v863
  %v947 = vunpack.c.l.b16 %v864
  %v948 = vunpack.c.h.b16 %v864
  %v949 = vunpack.c.l.b16 %v865
  %v950 = vunpack.c.h.b16 %v865
  %v951 = vunpack.c.l.b16 %v866
  %v952 = vunpack.c.h.b16 %v866
  %v953 = vunpack.c.l.b16 %v867
  %v954 = vunpack.c.h.b16 %v867
  %v955 = vunpack.c.l.b16 %v868
  %v956 = vunpack.c.h.b16 %v868
  %v957 = vpack.c.b16 %v917, %v915
  %v958 = vpack.c.b16 %v918, %v916
  %v959 = vpack.c.b16 %v921, %v919
  %v960 = vpack.c.b16 %v922, %v920
  %v961 = vpack.c.b16 %v925, %v923
  %v962 = vpack.c.b16 %v926, %v924
  %v963 = vpack.c.b16 %v929, %v927
  %v964 = vpack.c.b16 %v930, %v928
  %v965 = vpack.c.b16 %v933, %v931
  %v966 = vpack.c.b16 %v934, %v932
  %v967 = vpack.c.b16 %v937, %v935
  %v968 = vpack.c.b16 %v938, %v936
  %v969 = vpack.c.b16 %v941, %v939
  %v970 = vpack.c.b16 %v942, %v940
  %v971 = vpack.c.b16 %v945, %v943
  %v972 = vpack.c.b16 %v946, %v944
  %v973 = vpack.c.b16 %v949, %v947
  %v974 = vpack.c.b16 %v950, %v948
  %v975 = vpack.c.b16 %v953, %v951
  %v976 = vpack.c.b16 %v954, %v952
  %v977 = vpack.c.b16 %v955, %v955
  %v978 = vpack.c.b16 %v956, %v956
  %vm979 = vcmask 1046528
  %v980 = vrot.slane %v957, 1
  %v981 = vrot.slane %v959, 1
  %v982 = vsel %vm979, %v980, %v981
  %v983 = vrot.slane %v958, 1
  %v984 = vrot.slane %v960, 1
  %v985 = vsel %vm979, %v983, %v984
  %v986 = vrot.slane %v961, 1
  %v987 = vsel %vm979, %v981, %v986
  %v988 = vrot.slane %v962, 1
  %v989 = vsel %vm979, %v984, %v988
  %v990 = vrot.slane %v963, 1
  %v991 = vsel %vm979, %v986, %v990
  %v992 = vrot.slane %v964, 1
  %v993 = vsel %vm979, %v988, %v992
  %v994 = vrot.slane %v965, 1
  %v995 = vsel %vm979, %v990, %v994
  %v996 = vrot.slane %v966, 1
  %v997 = vsel %vm979, %v992, %v996
  %v998 = vrot.slane %v967, 1
  %v999 = vsel %vm979, %v994, %v998
  %v1000 = vrot.slane %v968, 1
  %v1001 = vsel %vm979, %v996, %v1000
  %v1002 = vrot.slane %v969, 1
  %v1003 = vsel %vm979, %v998, %v1002
  %v1004 = vrot.slane %v970, 1
  %v1005 = vsel %vm979, %v1000, %v1004
  %v1006 = vrot.slane %v971, 1
  %v1007 = vsel %vm979, %v1002, %v1006
  %v1008 = vrot.slane %v972, 1
  %v1009 = vsel %vm979, %v1004, %v1008
  %v1010 = vrot.slane %v973, 1
  %v1011 = vsel %vm979, %v1006, %v1010
  %v1012 = vrot.slane %v974, 1
  %v1013 = vsel %vm979, %v1008, %v1012
  %v1014 = vrot.slane %v975, 1
  %v1015 = vsel %vm979, %v1010, %v1014
  %v1016 = vrot.slane %v976, 1
  %v1017 = vsel %vm979, %v1012, %v1016
  %v1018 = vrot.slane %v977, 1
  %v1019 = vsel %vm979, %v1014, %v1018
  %v1020 = vrot.slane %v978, 1
  %v1021 = vsel %vm979, %v1016, %v1020
  %v1057 = vunpack.c.l.b16 %v870
  %v1058 = vunpack.c.l.b16 %v871
  %v1059 = vunpack.c.l.b16 %v872
  %v1060 = vunpack.c.l.b16 %v873
  %v1061 = vunpack.c.l.b16 %v874
  %v1062 = vunpack.c.l.b16 %v875
  %v1063 = vunpack.c.l.b16 %v876
  %v1064 = vunpack.c.l.b16 %v877
  %v1065 = vunpack.c.l.b16 %v878
  %v1066 = vunpack.c.l.b16 %v879
  %v1067 = vunpack.c.l.b16 %v880
  %v1068 = vunpack.c.l.b16 %v881
  %v1069 = vunpack.c.l.b16 %v882
  %v1070 = vunpack.c.l.b16 %v883
  %v1071 = vunpack.c.l.b16 %v884
  %v1072 = vunpack.c.l.b16 %v885
  %v1073 = vunpack.c.l.b16 %v886
  %v1074 = vunpack.c.l.b16 %v887
  %v1075 = vunpack.c.l.b16 %v888
  %v1076 = vunpack.c.l.b16 %v889
  %v1077 = vunpack.c.l.b16 %v890
  %v1078 = vunpack.c.l.b16 %v891
  %v1079 = vunpack.c.l.b16 %v892
  %v1080 = vunpack.c.l.b16 %v893
  %v1081 = vpack.c.b16 %v1058, %v1057
  %v1082 = vpack.c.b16 %v1060, %v1059
  %v1083 = vpack.c.b16 %v1062, %v1061
  %v1084 = vpack.c.b16 %v1064, %v1063
  %v1085 = vpack.c.b16 %v1066, %v1065
  %v1086 = vpack.c.b16 %v1068, %v1067
  %v1087 = vpack.c.b16 %v1070, %v1069
  %v1088 = vpack.c.b16 %v1072, %v1071
  %v1089 = vpack.c.b16 %v1074, %v1073
  %v1090 = vpack.c.b16 %v1076, %v1075
  %v1091 = vpack.c.b16 %v1078, %v1077
  %v1092 = vpack.c.b16 %v1080, %v1079
  %v1106 = vsel %vm430, %v985, 0
  %v1109 = vsel %vm430, %v989, 0
  %v1112 = vsel %vm430, %v993, 0
  %v1115 = vsel %vm430, %v997, 0
  %v1118 = vsel %vm430, %v1001, 0
  %v1121 = vsel %vm430, %v1005, 0
  %v1124 = vsel %vm430, %v1009, 0
  %v1127 = vsel %vm430, %v1013, 0
  %v1130 = vsel %vm430, %v1017, 0
  %v1133 = vsel %vm430, %v1021, 0
  %v1136 = vsel %vm430, %v1020, 0
  %1138 = vmatprep.subr.bf16.mxu0 0
  %1139 = vmatpush1.bf16.msra.mxu0 %v1081
  %1140 = vmatprep.subr.bf16.mxu0 0
  %1141 = vmatpush1.bf16.msra.mxu0 %v1082
  %1142 = vmatprep.subr.bf16.mxu0 0
  %1143 = vmatpush1.bf16.msra.mxu0 %v1083
  %1144 = vmatprep.subr.bf16.mxu0 0
  %1145 = vmatpush1.bf16.msra.mxu0 %v1084
  %1146 = vmatprep.subr.bf16.mxu0 0
  %1147 = vmatpush1.bf16.msra.mxu0 %v1085
  %1148 = vmatprep.subr.bf16.mxu0 0
  %1149 = vmatpush1.bf16.msra.mxu0 %v1086
  %1150 = vmatprep.subr.bf16.mxu0 0
  %1151 = vmatpush1.bf16.msra.mxu0 %v1087
  %1152 = vmatprep.subr.bf16.mxu0 0
  %1153 = vmatpush1.bf16.msra.mxu0 %v1088
  %1154 = vmatprep.subr.bf16.mxu0 0
  %1155 = vmatpush1.bf16.msra.mxu0 %v1089
  %1156 = vmatprep.subr.bf16.mxu0 0
  %1157 = vmatpush1.bf16.msra.mxu0 %v1090
  %1158 = vmatprep.subr.bf16.mxu0 0
  %1159 = vmatpush1.bf16.msra.mxu0 %v1091
  %1160 = vmatprep.subr.bf16.mxu0 0
  %1161 = vmatpush1.bf16.msra.mxu0 %v1092
  %1162 = vmatprep.subr.bf16.mxu0 0
  %1163 = vmatpush1.bf16.msra.mxu0 0
  %1164 = vmatprep.subr.bf16.mxu0 0
  %1165 = vmatpush1.bf16.msra.mxu0 0
  %1166 = vmatprep.subr.bf16.mxu0 0
  %1167 = vmatpush1.bf16.msra.mxu0 0
  %1168 = vmatprep.subr.bf16.mxu0 0
  %1169 = vmatpush1.bf16.msra.mxu0 0
  %1170 = vmatprep.mubr.bf16.mxu0 %v1106
  %1171 = vmatmul.mubr.bf16.gmra.mrb[0].mxu0 %v982
  %v1172 = vpop.f32.mrb[0].mxu0
  %v1173 = vadd.f32 0.0, %v1172
  %v1174 = vpop.f32.mrb[0].mxu0
  %v1175 = vpop.f32.mrb[0].mxu0
  %v1176 = vadd.f32 0.0, %v1175
  %v1177 = vpop.f32.mrb[0].mxu0
  %1178 = vmatprep.mubr.bf16.mxu0 %v1109
  %1179 = vmatmul.mubr.bf16.gmra.mrb[0].mxu0 %v987
  %v1180 = vpop.f32.mrb[0].mxu0
  %v1181 = vadd.f32 0.0, %v1180
  %v1182 = vpop.f32.mrb[0].mxu0
  %v1183 = vpop.f32.mrb[0].mxu0
  %v1184 = vadd.f32 0.0, %v1183
  %v1185 = vpop.f32.mrb[0].mxu0
  %1186 = vmatprep.mubr.bf16.mxu0 %v1112
  %1187 = vmatmul.mubr.bf16.gmra.mrb[0].mxu0 %v991
  %v1188 = vpop.f32.mrb[0].mxu0
  %v1189 = vadd.f32 0.0, %v1188
  %v1190 = vpop.f32.mrb[0].mxu0
  %v1191 = vpop.f32.mrb[0].mxu0
  %v1192 = vadd.f32 0.0, %v1191
  %v1193 = vpop.f32.mrb[0].mxu0
  %1194 = vmatprep.mubr.bf16.mxu0 %v1115
  %1195 = vmatmul.mubr.bf16.gmra.mrb[0].mxu0 %v995
  %v1196 = vpop.f32.mrb[0].mxu0
  %v1197 = vadd.f32 0.0, %v1196
  %v1198 = vpop.f32.mrb[0].mxu0
  %v1199 = vpop.f32.mrb[0].mxu0
  %v1200 = vadd.f32 0.0, %v1199
  %v1201 = vpop.f32.mrb[0].mxu0
  %1202 = vmatprep.mubr.bf16.mxu0 %v1118
  %1203 = vmatmul.mubr.bf16.gmra.mrb[0].mxu0 %v999
  %v1204 = vpop.f32.mrb[0].mxu0
  %v1205 = vadd.f32 0.0, %v1204
  %v1206 = vpop.f32.mrb[0].mxu0
  %v1207 = vpop.f32.mrb[0].mxu0
  %v1208 = vadd.f32 0.0, %v1207
  %v1209 = vpop.f32.mrb[0].mxu0
  %1210 = vmatprep.mubr.bf16.mxu0 %v1121
  %1211 = vmatmul.mubr.bf16.gmra.mrb[0].mxu0 %v1003
  %v1212 = vpop.f32.mrb[0].mxu0
  %v1213 = vadd.f32 0.0, %v1212
  %v1214 = vpop.f32.mrb[0].mxu0
  %v1215 = vpop.f32.mrb[0].mxu0
  %v1216 = vadd.f32 0.0, %v1215
  %v1217 = vpop.f32.mrb[0].mxu0
  %1218 = vmatprep.mubr.bf16.mxu0 %v1124
  %1219 = vmatmul.mubr.bf16.gmra.mrb[0].mxu0 %v1007
  %v1220 = vpop.f32.mrb[0].mxu0
  %v1221 = vadd.f32 0.0, %v1220
  %v1222 = vpop.f32.mrb[0].mxu0
  %v1223 = vpop.f32.mrb[0].mxu0
  %v1224 = vadd.f32 0.0, %v1223
  %v1225 = vpop.f32.mrb[0].mxu0
  %1226 = vmatprep.mubr.bf16.mxu0 %v1127
  %1227 = vmatmul.mubr.bf16.gmra.mrb[0].mxu0 %v1011
  %v1228 = vpop.f32.mrb[0].mxu0
  %v1229 = vadd.f32 0.0, %v1228
  %v1230 = vpop.f32.mrb[0].mxu0
  %v1231 = vpop.f32.mrb[0].mxu0
  %v1232 = vadd.f32 0.0, %v1231
  %v1233 = vpop.f32.mrb[0].mxu0
  %1234 = vmatprep.mubr.bf16.mxu0 %v1130
  %1235 = vmatmul.mubr.bf16.gmra.mrb[0].mxu0 %v1015
  %v1236 = vpop.f32.mrb[0].mxu0
  %v1237 = vadd.f32 0.0, %v1236
  %v1238 = vpop.f32.mrb[0].mxu0
  %v1239 = vpop.f32.mrb[0].mxu0
  %v1240 = vadd.f32 0.0, %v1239
  %v1241 = vpop.f32.mrb[0].mxu0
  %1242 = vmatprep.mubr.bf16.mxu0 %v1133
  %1243 = vmatmul.mubr.bf16.gmra.mrb[0].mxu0 %v1019
  %v1244 = vpop.f32.mrb[0].mxu0
  %v1245 = vadd.f32 0.0, %v1244
  %v1246 = vpop.f32.mrb[0].mxu0
  %v1247 = vpop.f32.mrb[0].mxu0
  %v1248 = vadd.f32 0.0, %v1247
  %v1249 = vpop.f32.mrb[0].mxu0
  %1250 = vmatprep.mubr.bf16.mxu0 %v1136
  %1251 = vmatmul.mubr.bf16.gmra.mrb[0].mxu0 %v1018
  %v1252 = vpop.f32.mrb[0].mxu0
  %v1253 = vadd.f32 0.0, %v1252
  %v1254 = vpop.f32.mrb[0].mxu0
  %v1255 = vpop.f32.mrb[0].mxu0
  %v1256 = vpop.f32.mrb[0].mxu0
  %1257 = vdwg.mxu0
  %v1258 = vadd.f32 %v763, %v1173
  %v1259 = vadd.f32 %v766, %v1176
  %v1260 = vadd.f32 %v771, %v1181
  %v1261 = vadd.f32 %v774, %v1184
  %v1262 = vadd.f32 %v779, %v1189
  %v1263 = vadd.f32 %v782, %v1192
  %v1264 = vadd.f32 %v787, %v1197
  %v1265 = vadd.f32 %v790, %v1200
  %v1266 = vadd.f32 %v795, %v1205
  %v1267 = vadd.f32 %v798, %v1208
  %v1268 = vadd.f32 %v803, %v1213
  %v1269 = vadd.f32 %v806, %v1216
  %v1270 = vadd.f32 %v811, %v1221
  %v1271 = vadd.f32 %v814, %v1224
  %v1272 = vadd.f32 %v819, %v1229
  %v1273 = vadd.f32 %v822, %v1232
  %v1274 = vadd.f32 %v827, %v1237
  %v1275 = vadd.f32 %v830, %v1240
  %v1276 = vadd.f32 %v835, %v1245
  %v1277 = vadd.f32 %v838, %v1248
  %v1278 = vadd.f32 %v843, %v1253
  %1300 = vrot.lane.b32.xlu0 %v1258, 96
  %v1301 = vpop.permute.xlu0 %1300
  %1302 = vrot.lane.b32.xlu0 %v1259, 96
  %v1303 = vpop.permute.xlu0 %1302
  %1304 = vrot.lane.b32.xlu0 %v1260, 96
  %v1305 = vpop.permute.xlu0 %1304
  %1306 = vrot.lane.b32.xlu0 %v1261, 96
  %v1307 = vpop.permute.xlu0 %1306
  %1308 = vrot.lane.b32.xlu0 %v1262, 96
  %v1309 = vpop.permute.xlu0 %1308
  %1310 = vrot.lane.b32.xlu0 %v1263, 96
  %v1311 = vpop.permute.xlu0 %1310
  %1312 = vrot.lane.b32.xlu0 %v1264, 96
  %v1313 = vpop.permute.xlu0 %1312
  %1314 = vrot.lane.b32.xlu0 %v1265, 96
  %v1315 = vpop.permute.xlu0 %1314
  %1316 = vrot.lane.b32.xlu0 %v1266, 96
  %v1317 = vpop.permute.xlu0 %1316
  %1318 = vrot.lane.b32.xlu0 %v1267, 96
  %v1319 = vpop.permute.xlu0 %1318
  %1320 = vrot.lane.b32.xlu0 %v1268, 96
  %v1321 = vpop.permute.xlu0 %1320
  %1322 = vrot.lane.b32.xlu0 %v1269, 96
  %v1323 = vpop.permute.xlu0 %1322
  %1324 = vrot.lane.b32.xlu0 %v1270, 96
  %v1325 = vpop.permute.xlu0 %1324
  %1326 = vrot.lane.b32.xlu0 %v1271, 96
  %v1327 = vpop.permute.xlu0 %1326
  %1328 = vrot.lane.b32.xlu0 %v1272, 96
  %v1329 = vpop.permute.xlu0 %1328
  %1330 = vrot.lane.b32.xlu0 %v1273, 96
  %v1331 = vpop.permute.xlu0 %1330
  %1332 = vrot.lane.b32.xlu0 %v1274, 96
  %v1333 = vpop.permute.xlu0 %1332
  %1334 = vrot.lane.b32.xlu0 %v1275, 96
  %v1335 = vpop.permute.xlu0 %1334
  %1336 = vrot.lane.b32.xlu0 %v1276, 96
  %v1337 = vpop.permute.xlu0 %1336
  %1338 = vrot.lane.b32.xlu0 %v1277, 96
  %v1339 = vpop.permute.xlu0 %1338
  %1340 = vrot.lane.b32.xlu0 %v1278, 96
  %v1341 = vpop.permute.xlu0 %1340
  %v1363 = vmax.f32 %v1258, %v1301
  %v1364 = vmax.f32 %v1259, %v1303
  %v1365 = vmax.f32 %v1260, %v1305
  %v1366 = vmax.f32 %v1261, %v1307
  %v1367 = vmax.f32 %v1262, %v1309
  %v1368 = vmax.f32 %v1263, %v1311
  %v1369 = vmax.f32 %v1264, %v1313
  %v1370 = vmax.f32 %v1265, %v1315
  %v1371 = vmax.f32 %v1266, %v1317
  %v1372 = vmax.f32 %v1267, %v1319
  %v1373 = vmax.f32 %v1268, %v1321
  %v1374 = vmax.f32 %v1269, %v1323
  %v1375 = vmax.f32 %v1270, %v1325
  %v1376 = vmax.f32 %v1271, %v1327
  %v1377 = vmax.f32 %v1272, %v1329
  %v1378 = vmax.f32 %v1273, %v1331
  %v1379 = vmax.f32 %v1274, %v1333
  %v1380 = vmax.f32 %v1275, %v1335
  %v1381 = vmax.f32 %v1276, %v1337
  %v1382 = vmax.f32 %v1277, %v1339
  %v1383 = vmax.f32 %v1278, %v1341
  %1405 = vrot.lane.b32.xlu0 %v1363, 64
  %v1406 = vpop.permute.xlu0 %1405
  %1407 = vrot.lane.b32.xlu0 %v1364, 64
  %v1408 = vpop.permute.xlu0 %1407
  %1409 = vrot.lane.b32.xlu0 %v1365, 64
  %v1410 = vpop.permute.xlu0 %1409
  %1411 = vrot.lane.b32.xlu0 %v1366, 64
  %v1412 = vpop.permute.xlu0 %1411
  %1413 = vrot.lane.b32.xlu0 %v1367, 64
  %v1414 = vpop.permute.xlu0 %1413
  %1415 = vrot.lane.b32.xlu0 %v1368, 64
  %v1416 = vpop.permute.xlu0 %1415
  %1417 = vrot.lane.b32.xlu0 %v1369, 64
  %v1418 = vpop.permute.xlu0 %1417
  %1419 = vrot.lane.b32.xlu0 %v1370, 64
  %v1420 = vpop.permute.xlu0 %1419
  %1421 = vrot.lane.b32.xlu0 %v1371, 64
  %v1422 = vpop.permute.xlu0 %1421
  %1423 = vrot.lane.b32.xlu0 %v1372, 64
  %v1424 = vpop.permute.xlu0 %1423
  %1425 = vrot.lane.b32.xlu0 %v1373, 64
  %v1426 = vpop.permute.xlu0 %1425
  %1427 = vrot.lane.b32.xlu0 %v1374, 64
  %v1428 = vpop.permute.xlu0 %1427
  %1429 = vrot.lane.b32.xlu0 %v1375, 64
  %v1430 = vpop.permute.xlu0 %1429
  %1431 = vrot.lane.b32.xlu0 %v1376, 64
  %v1432 = vpop.permute.xlu0 %1431
  %1433 = vrot.lane.b32.xlu0 %v1377, 64
  %v1434 = vpop.permute.xlu0 %1433
  %1435 = vrot.lane.b32.xlu0 %v1378, 64
  %v1436 = vpop.permute.xlu0 %1435
  %1437 = vrot.lane.b32.xlu0 %v1379, 64
  %v1438 = vpop.permute.xlu0 %1437
  %1439 = vrot.lane.b32.xlu0 %v1380, 64
  %v1440 = vpop.permute.xlu0 %1439
  %1441 = vrot.lane.b32.xlu0 %v1381, 64
  %v1442 = vpop.permute.xlu0 %1441
  %1443 = vrot.lane.b32.xlu0 %v1382, 64
  %v1444 = vpop.permute.xlu0 %1443
  %1445 = vrot.lane.b32.xlu0 %v1383, 64
  %v1446 = vpop.permute.xlu0 %1445
  %v1468 = vmax.f32 %v1363, %v1406
  %v1469 = vmax.f32 %v1364, %v1408
  %v1470 = vmax.f32 %v1365, %v1410
  %v1471 = vmax.f32 %v1366, %v1412
  %v1472 = vmax.f32 %v1367, %v1414
  %v1473 = vmax.f32 %v1368, %v1416
  %v1474 = vmax.f32 %v1369, %v1418
  %v1475 = vmax.f32 %v1370, %v1420
  %v1476 = vmax.f32 %v1371, %v1422
  %v1477 = vmax.f32 %v1372, %v1424
  %v1478 = vmax.f32 %v1373, %v1426
  %v1479 = vmax.f32 %v1374, %v1428
  %v1480 = vmax.f32 %v1375, %v1430
  %v1481 = vmax.f32 %v1376, %v1432
  %v1482 = vmax.f32 %v1377, %v1434
  %v1483 = vmax.f32 %v1378, %v1436
  %v1484 = vmax.f32 %v1379, %v1438
  %v1485 = vmax.f32 %v1380, %v1440
  %v1486 = vmax.f32 %v1381, %v1442
  %v1487 = vmax.f32 %v1382, %v1444
  %v1488 = vmax.f32 %v1383, %v1446
  %v1489 = vld [vmem:[%s2] sm:$0x1]
  %v1491 = vlaneseq
  %v1492 = vshrl.u32 %v1491, 7
  %v1493 = vsub.s32 0, %v1492
  %v1494 = vrot.slane %v1489, %v1493
  %v1496 = vadd.f32 %v1468, %v1494
  %v1497 = vadd.f32 %v1469, %v1494
  %v1498 = vadd.f32 %v1470, %v1494
  %v1499 = vadd.f32 %v1471, %v1494
  %v1500 = vadd.f32 %v1472, %v1494
  %v1501 = vadd.f32 %v1473, %v1494
  %v1502 = vadd.f32 %v1474, %v1494
  %v1503 = vadd.f32 %v1475, %v1494
  %v1504 = vadd.f32 %v1476, %v1494
  %v1505 = vadd.f32 %v1477, %v1494
  %v1506 = vadd.f32 %v1478, %v1494
  %v1507 = vadd.f32 %v1479, %v1494
  %v1508 = vadd.f32 %v1480, %v1494
  %v1509 = vadd.f32 %v1481, %v1494
  %v1510 = vadd.f32 %v1482, %v1494
  %v1511 = vadd.f32 %v1483, %v1494
  %v1512 = vadd.f32 %v1484, %v1494
  %v1513 = vadd.f32 %v1485, %v1494
  %v1514 = vadd.f32 %v1486, %v1494
  %v1515 = vadd.f32 %v1487, %v1494
  %v1516 = vadd.f32 %v1488, %v1494
  %v1517 = vmax.f32 %v1496, 0.0
  %v1518 = vmax.f32 %v1497, 0.0
  %v1519 = vmax.f32 %v1498, 0.0
  %v1520 = vmax.f32 %v1499, 0.0
  %v1521 = vmax.f32 %v1500, 0.0
  %v1522 = vmax.f32 %v1501, 0.0
  %v1523 = vmax.f32 %v1502, 0.0
  %v1524 = vmax.f32 %v1503, 0.0
  %v1525 = vmax.f32 %v1504, 0.0
  %v1526 = vmax.f32 %v1505, 0.0
  %v1527 = vmax.f32 %v1506, 0.0
  %v1528 = vmax.f32 %v1507, 0.0
  %v1529 = vmax.f32 %v1508, 0.0
  %v1530 = vmax.f32 %v1509, 0.0
  %v1531 = vmax.f32 %v1510, 0.0
  %v1532 = vmax.f32 %v1511, 0.0
  %v1533 = vmax.f32 %v1512, 0.0
  %v1534 = vmax.f32 %v1513, 0.0
  %v1535 = vmax.f32 %v1514, 0.0
  %v1536 = vmax.f32 %v1515, 0.0
  %v1537 = vmax.f32 %v1516, 0.0
  %v1538 = vpack.c.bf16 %v1518, %v1517
  %v1539 = vpack.c.bf16 %v1520, %v1519
  %v1540 = vpack.c.bf16 %v1522, %v1521
  %v1541 = vpack.c.bf16 %v1524, %v1523
  %v1542 = vpack.c.bf16 %v1526, %v1525
  %v1543 = vpack.c.bf16 %v1528, %v1527
  %v1544 = vpack.c.bf16 %v1530, %v1529
  %v1545 = vpack.c.bf16 %v1532, %v1531
  %v1546 = vpack.c.bf16 %v1534, %v1533
  %v1547 = vpack.c.bf16 %v1536, %v1535
  %v1548 = vpack.c.bf16 %v1537, %v1537
  %v1560 = vunpack.c.l.b16 %v1538
  %v1561 = vunpack.c.h.b16 %v1538
  %v1562 = vunpack.c.l.b16 %v1539
  %v1563 = vunpack.c.h.b16 %v1539
  %v1564 = vunpack.c.l.b16 %v1540
  %v1565 = vunpack.c.h.b16 %v1540
  %v1566 = vunpack.c.l.b16 %v1541
  %v1567 = vunpack.c.h.b16 %v1541
  %v1568 = vunpack.c.l.b16 %v1542
  %v1569 = vunpack.c.h.b16 %v1542
  %v1570 = vunpack.c.l.b16 %v1543
  %v1571 = vunpack.c.h.b16 %v1543
  %v1572 = vunpack.c.l.b16 %v1544
  %v1573 = vunpack.c.h.b16 %v1544
  %v1574 = vunpack.c.l.b16 %v1545
  %v1575 = vunpack.c.h.b16 %v1545
  %v1576 = vunpack.c.l.b16 %v1546
  %v1577 = vunpack.c.h.b16 %v1546
  %v1578 = vunpack.c.l.b16 %v1547
  %v1579 = vunpack.c.h.b16 %v1547
  %v1580 = vunpack.c.l.b16 %v1548
  %v1581 = vpack.c.b16 %v1560, %v1560
  %v1582 = vpack.c.b16 %v1561, %v1561
  %v1583 = vpack.c.b16 %v1562, %v1562
  %v1584 = vpack.c.b16 %v1563, %v1563
  %v1585 = vpack.c.b16 %v1564, %v1564
  %v1586 = vpack.c.b16 %v1565, %v1565
  %v1587 = vpack.c.b16 %v1566, %v1566
  %v1588 = vpack.c.b16 %v1567, %v1567
  %v1589 = vpack.c.b16 %v1568, %v1568
  %v1590 = vpack.c.b16 %v1569, %v1569
  %v1591 = vpack.c.b16 %v1570, %v1570
  %v1592 = vpack.c.b16 %v1571, %v1571
  %v1593 = vpack.c.b16 %v1572, %v1572
  %v1594 = vpack.c.b16 %v1573, %v1573
  %v1595 = vpack.c.b16 %v1574, %v1574
  %v1596 = vpack.c.b16 %v1575, %v1575
  %v1597 = vpack.c.b16 %v1576, %v1576
  %v1598 = vpack.c.b16 %v1577, %v1577
  %v1599 = vpack.c.b16 %v1578, %v1578
  %v1600 = vpack.c.b16 %v1579, %v1579
  %v1601 = vpack.c.b16 %v1580, %v1580
  %vm1623 = vcmask 257024
  %1624 = vst.msk [vmem:[%s3] sm:$0xf] %vm1623, %v1581
  %1625 = vst.msk [vmem:[%s3 + $0x4] sm:$0xf] %vm1623, %v1582
  %1626 = vst.msk [vmem:[%s3 + $0x8] sm:$0xf] %vm1623, %v1583
  %1627 = vst.msk [vmem:[%s3 + $0xc] sm:$0xf] %vm1623, %v1584
  %1628 = vst.msk [vmem:[%s3 + $0x10] sm:$0xf] %vm1623, %v1585
  %1629 = vst.msk [vmem:[%s3 + $0x14] sm:$0xf] %vm1623, %v1586
  %1630 = vst.msk [vmem:[%s3 + $0x18] sm:$0xf] %vm1623, %v1587
  %1631 = vst.msk [vmem:[%s3 + $0x1c] sm:$0xf] %vm1623, %v1588
  %1632 = vst.msk [vmem:[%s3 + $0x20] sm:$0xf] %vm1623, %v1589
  %1633 = vst.msk [vmem:[%s3 + $0x24] sm:$0xf] %vm1623, %v1590
  %1634 = vst.msk [vmem:[%s3 + $0x28] sm:$0xf] %vm1623, %v1591
  %1635 = vst.msk [vmem:[%s3 + $0x2c] sm:$0xf] %vm1623, %v1592
  %1636 = vst.msk [vmem:[%s3 + $0x30] sm:$0xf] %vm1623, %v1593
  %1637 = vst.msk [vmem:[%s3 + $0x34] sm:$0xf] %vm1623, %v1594
  %1638 = vst.msk [vmem:[%s3 + $0x38] sm:$0xf] %vm1623, %v1595
  %1639 = vst.msk [vmem:[%s3 + $0x3c] sm:$0xf] %vm1623, %v1596
  %1640 = vst.msk [vmem:[%s3 + $0x40] sm:$0xf] %vm1623, %v1597
  %1641 = vst.msk [vmem:[%s3 + $0x44] sm:$0xf] %vm1623, %v1598
  %1642 = vst.msk [vmem:[%s3 + $0x48] sm:$0xf] %vm1623, %v1599
  %1643 = vst.msk [vmem:[%s3 + $0x4c] sm:$0xf] %vm1623, %v1600
  %vm1644 = vcmask 253952
  %1645 = vst.msk [vmem:[%s3 + $0x50] sm:$0x1] %vm1644, %v1601
  // Predicated region
  $region14: #{conv_model_forward.4} parent=0 // pred_check
    _
  $region15: #{conv_model_forward.4} parent=0 // pred_check_branch
    %1647 = sbr.rel (0) target = $region17
  $region16: #{conv_model_forward.4} parent=0 // pred_region
    _
  $region17: #{conv_model_forward.4} parent=0 // pred_fallthru
    _
  // Predicated region
  $region18: #{conv_model_forward.4} parent=0 // pred_check
    _
  $region19: #{conv_model_forward.4} parent=0 // pred_check_branch
    %1649 = sbr.rel (0) target = $region21
  $region20: #{conv_model_forward.4} parent=0 // pred_region
    _
  $region21: #{conv_model_forward.4} parent=0 // pred_fallthru
    _

// kernel: conv_model_forward.5
$region0: #{conv_model_forward.5}
  #allocation0 [shape = 'u32[]', space=smem, size = 0x4, offset = 0x4, fixed_abs, tag = 'smem constant byte address 0x4 - core index']
  #allocation1 [shape = 'u32[144,128]{1,0:T(1,128)}', space=vmem, size = 0x12000, scoped, tag = 'internal scratch']
  %s0 = inlined_call_operand.vmem [shape: bf16[2,1568], index: 0, kind: input, shape index: {}]
  %s1 = inlined_call_operand.vmem [shape: bf16[1568,512], index: 1, kind: input, shape index: {}]
  %s2 = inlined_call_operand.vmem [shape: f32[1,512], index: 2, kind: input, shape index: {}]
  %s3 = inlined_call_operand.vmem [shape: bf16[512,128], index: 3, kind: input, shape index: {}]
  %s4 = inlined_call_operand.vmem [shape: f32[1,128], index: 4, kind: input, shape index: {}]
  %s5 = inlined_call_operand.hbm [shape: f32[2,128], index: 5, kind: output, shape index: {}]
  %s6 = sld [smem:[#allocation0]]
  $region30: #{conv_model_forward.5} parent=0
    _
  %s8 = ssub.s32 1, %s6
  %s9 = scalar_select 0, %s8, %s6
  $region1: #{conv_model_forward.5} parent=0
    #allocation2 [shape = 'u8[1024]{0}', space=vmem, size = 0x400, scoped, tag = 'output window, operand 0, single buffered']
    #allocation3 [shape = 's32[1]{0}', space=sflag, size = 0x4, scoped, tag = 'scoped memory for conv_model_forward.5']
    %10 = vsyncpa [#allocation3], 0
    // Predicated region
    $region2: #{conv_model_forward.5} parent=1 // pred_check
      _
    $region3: #{conv_model_forward.5} parent=1 // pred_check_branch
      %12 = sbr.rel (0) target = $region5
    $region4: #{conv_model_forward.5} parent=1 // pred_region
      _
    $region5: #{conv_model_forward.5} parent=1 // pred_fallthru
      _
    // Predicated region
    $region6: #{conv_model_forward.5} parent=1 // pred_check
      _
    $region7: #{conv_model_forward.5} parent=1 // pred_check_branch
      %14 = sbr.rel (0) target = $region9
    $region8: #{conv_model_forward.5} parent=1 // pred_region
      _
    $region9: #{conv_model_forward.5} parent=1 // pred_fallthru
      _
    // Predicated region
    $region10: #{conv_model_forward.5} parent=1 // pred_check
      _
    $region11: #{conv_model_forward.5} parent=1 // pred_check_branch
      %16 = sbr.rel (0) target = $region13
    $region12: #{conv_model_forward.5} parent=1 // pred_region
      _
    $region13: #{conv_model_forward.5} parent=1 // pred_fallthru
      _
    // Predicated region
    $region14: #{conv_model_forward.5} parent=1 // pred_check
      _
    $region15: #{conv_model_forward.5} parent=1 // pred_check_branch
      %18 = sbr.rel (0) target = $region17
    $region16: #{conv_model_forward.5} parent=1 // pred_region
      _
    $region17: #{conv_model_forward.5} parent=1 // pred_fallthru
      _
    // Predicated region
    $region18: #{conv_model_forward.5} parent=1 // pred_check
      _
    $region19: #{conv_model_forward.5} parent=1 // pred_check_branch
      %20 = sbr.rel (0) target = $region21
    $region20: #{conv_model_forward.5} parent=1 // pred_region
      _
    $region21: #{conv_model_forward.5} parent=1 // pred_fallthru
      _
    %v22 = vld [vmem:[%s0] sm:$0xff]
    %v23 = vld [vmem:[%s0 + $0x8] sm:$0x1f]
    %v24 = vld [vmem:[%s1] sm:$0xff]
    %v25 = vld [vmem:[%s1 + $0x8] sm:$0xff]
    %v26 = vld [vmem:[%s1 + $0x10] sm:$0xff]
    %v27 = vld [vmem:[%s1 + $0x18] sm:$0xff]
    %v28 = vld [vmem:[%s1 + $0x20] sm:$0xff]
    %v29 = vld [vmem:[%s1 + $0x28] sm:$0xff]
    %v30 = vld [vmem:[%s1 + $0x30] sm:$0xff]
    %v31 = vld [vmem:[%s1 + $0x38] sm:$0xff]
    %v32 = vld [vmem:[%s1 + $0x40] sm:$0xff]
    %v33 = vld [vmem:[%s1 + $0x48] sm:$0xff]
    %v34 = vld [vmem:[%s1 + $0x50] sm:$0xff]
    %v35 = vld [vmem:[%s1 + $0x58] sm:$0xff]
    %v36 = vld [vmem:[%s1 + $0x60] sm:$0xff]
    %v37 = vld [vmem:[%s1 + $0x68] sm:$0xff]
    %v38 = vld [vmem:[%s1 + $0x70] sm:$0xff]
    %v39 = vld [vmem:[%s1 + $0x78] sm:$0xff]
    %v40 = vld [vmem:[%s1 + $0x80] sm:$0xff]
    %v41 = vld [vmem:[%s1 + $0x88] sm:$0xff]
    %v42 = vld [vmem:[%s1 + $0x90] sm:$0xff]
    %v43 = vld [vmem:[%s1 + $0x98] sm:$0xff]
    %v44 = vld [vmem:[%s1 + $0xa0] sm:$0xff]
    %v45 = vld [vmem:[%s1 + $0xa8] sm:$0xff]
    %v46 = vld [vmem:[%s1 + $0xb0] sm:$0xff]
    %v47 = vld [vmem:[%s1 + $0xb8] sm:$0xff]
    %v48 = vld [vmem:[%s1 + $0xc0] sm:$0xff]
    %v49 = vld [vmem:[%s1 + $0xc8] sm:$0xff]
    %v50 = vld [vmem:[%s1 + $0xd0] sm:$0xff]
    %v51 = vld [vmem:[%s1 + $0xd8] sm:$0xff]
    %v52 = vld [vmem:[%s1 + $0xe0] sm:$0xff]
    %v53 = vld [vmem:[%s1 + $0xe8] sm:$0xff]
    %v54 = vld [vmem:[%s1 + $0xf0] sm:$0xff]
    %v55 = vld [vmem:[%s1 + $0xf8] sm:$0xff]
    %v56 = vld [vmem:[%s1 + $0x100] sm:$0xff]
    %v57 = vld [vmem:[%s1 + $0x108] sm:$0xff]
    %v58 = vld [vmem:[%s1 + $0x110] sm:$0xff]
    %v59 = vld [vmem:[%s1 + $0x118] sm:$0xff]
    %v60 = vld [vmem:[%s1 + $0x120] sm:$0xff]
    %v61 = vld [vmem:[%s1 + $0x128] sm:$0xff]
    %v62 = vld [vmem:[%s1 + $0x130] sm:$0xff]
    %v63 = vld [vmem:[%s1 + $0x138] sm:$0xff]
    %v64 = vld [vmem:[%s1 + $0x140] sm:$0xff]
    %v65 = vld [vmem:[%s1 + $0x148] sm:$0xff]
    %v66 = vld [vmem:[%s1 + $0x150] sm:$0xff]
    %v67 = vld [vmem:[%s1 + $0x158] sm:$0xff]
    %v68 = vld [vmem:[%s1 + $0x160] sm:$0xff]
    %v69 = vld [vmem:[%s1 + $0x168] sm:$0xff]
    %v70 = vld [vmem:[%s1 + $0x170] sm:$0xff]
    %v71 = vld [vmem:[%s1 + $0x178] sm:$0xff]
    %v72 = vld [vmem:[%s1 + $0x180] sm:$0xff]
    %v73 = vld [vmem:[%s1 + $0x188] sm:$0xff]
    %v74 = vld [vmem:[%s1 + $0x190] sm:$0xff]
    %v75 = vld [vmem:[%s1 + $0x198] sm:$0xff]
    %v76 = vld [vmem:[%s1 + $0x1a0] sm:$0xff]
    %v77 = vld [vmem:[%s1 + $0x1a8] sm:$0xff]
    %v78 = vld [vmem:[%s1 + $0x1b0] sm:$0xff]
    %v79 = vld [vmem:[%s1 + $0x1b8] sm:$0xff]
    %v80 = vld [vmem:[%s1 + $0x1c0] sm:$0xff]
    %v81 = vld [vmem:[%s1 + $0x1c8] sm:$0xff]
    %v82 = vld [vmem:[%s1 + $0x1d0] sm:$0xff]
    %v83 = vld [vmem:[%s1 + $0x1d8] sm:$0xff]
    %v84 = vld [vmem:[%s1 + $0x1e0] sm:$0xff]
    %v85 = vld [vmem:[%s1 + $0x1e8] sm:$0xff]
    %v86 = vld [vmem:[%s1 + $0x1f0] sm:$0xff]
    %v87 = vld [vmem:[%s1 + $0x1f8] sm:$0xff]
    %v88 = vld [vmem:[%s1 + $0x200] sm:$0xff]
    %v89 = vld [vmem:[%s1 + $0x208] sm:$0xff]
    %v90 = vld [vmem:[%s1 + $0x210] sm:$0xff]
    %v91 = vld [vmem:[%s1 + $0x218] sm:$0xff]
    %v92 = vld [vmem:[%s1 + $0x220] sm:$0xff]
    %v93 = vld [vmem:[%s1 + $0x228] sm:$0xff]
    %v94 = vld [vmem:[%s1 + $0x230] sm:$0xff]
    %v95 = vld [vmem:[%s1 + $0x238] sm:$0xff]
    %v96 = vld [vmem:[%s1 + $0x240] sm:$0xff]
    %v97 = vld [vmem:[%s1 + $0x248] sm:$0xff]
    %v98 = vld [vmem:[%s1 + $0x250] sm:$0xff]
    %v99 = vld [vmem:[%s1 + $0x258] sm:$0xff]
    %v100 = vld [vmem:[%s1 + $0x260] sm:$0xff]
    %v101 = vld [vmem:[%s1 + $0x268] sm:$0xff]
    %v102 = vld [vmem:[%s1 + $0x270] sm:$0xff]
    %v103 = vld [vmem:[%s1 + $0x278] sm:$0xff]
    %v104 = vld [vmem:[%s1 + $0x280] sm:$0xff]
    %v105 = vld [vmem:[%s1 + $0x288] sm:$0xff]
    %v106 = vld [vmem:[%s1 + $0x290] sm:$0xff]
    %v107 = vld [vmem:[%s1 + $0x298] sm:$0xff]
    %v108 = vld [vmem:[%s1 + $0x2a0] sm:$0xff]
    %v109 = vld [vmem:[%s1 + $0x2a8] sm:$0xff]
    %v110 = vld [vmem:[%s1 + $0x2b0] sm:$0xff]
    %v111 = vld [vmem:[%s1 + $0x2b8] sm:$0xff]
    %v112 = vld [vmem:[%s1 + $0x2c0] sm:$0xff]
    %v113 = vld [vmem:[%s1 + $0x2c8] sm:$0xff]
    %v114 = vld [vmem:[%s1 + $0x2d0] sm:$0xff]
    %v115 = vld [vmem:[%s1 + $0x2d8] sm:$0xff]
    %v116 = vld [vmem:[%s1 + $0x2e0] sm:$0xff]
    %v117 = vld [vmem:[%s1 + $0x2e8] sm:$0xff]
    %v118 = vld [vmem:[%s1 + $0x2f0] sm:$0xff]
    %v119 = vld [vmem:[%s1 + $0x2f8] sm:$0xff]
    %v120 = vld [vmem:[%s1 + $0x300] sm:$0xff]
    %v121 = vld [vmem:[%s1 + $0x308] sm:$0xff]
    %v122 = vld [vmem:[%s1 + $0x310] sm:$0xff]
    %v123 = vld [vmem:[%s1 + $0x318] sm:$0xff]
    %v124 = vld [vmem:[%s1 + $0x320] sm:$0xff]
    %v125 = vld [vmem:[%s1 + $0x328] sm:$0xff]
    %v126 = vld [vmem:[%s1 + $0x330] sm:$0xff]
    %v127 = vld [vmem:[%s1 + $0x338] sm:$0xff]
    %v128 = vld [vmem:[%s1 + $0x340] sm:$0xff]
    %v129 = vld [vmem:[%s1 + $0x348] sm:$0xff]
    %v130 = vld [vmem:[%s1 + $0x350] sm:$0xff]
    %v131 = vld [vmem:[%s1 + $0x358] sm:$0xff]
    %v132 = vld [vmem:[%s1 + $0x360] sm:$0xff]
    %v133 = vld [vmem:[%s1 + $0x368] sm:$0xff]
    %v134 = vld [vmem:[%s1 + $0x370] sm:$0xff]
    %v135 = vld [vmem:[%s1 + $0x378] sm:$0xff]
    %v136 = vld [vmem:[%s1 + $0x380] sm:$0xff]
    %v137 = vld [vmem:[%s1 + $0x388] sm:$0xff]
    %v138 = vld [vmem:[%s1 + $0x390] sm:$0xff]
    %v139 = vld [vmem:[%s1 + $0x398] sm:$0xff]
    %v140 = vld [vmem:[%s1 + $0x3a0] sm:$0xff]
    %v141 = vld [vmem:[%s1 + $0x3a8] sm:$0xff]
    %v142 = vld [vmem:[%s1 + $0x3b0] sm:$0xff]
    %v143 = vld [vmem:[%s1 + $0x3b8] sm:$0xff]
    %v144 = vld [vmem:[%s1 + $0x3c0] sm:$0xff]
    %v145 = vld [vmem:[%s1 + $0x3c8] sm:$0xff]
    %v146 = vld [vmem:[%s1 + $0x3d0] sm:$0xff]
    %v147 = vld [vmem:[%s1 + $0x3d8] sm:$0xff]
    %v148 = vld [vmem:[%s1 + $0x3e0] sm:$0xff]
    %v149 = vld [vmem:[%s1 + $0x3e8] sm:$0xff]
    %v150 = vld [vmem:[%s1 + $0x3f0] sm:$0xff]
    %v151 = vld [vmem:[%s1 + $0x3f8] sm:$0xff]
    %v152 = vld [vmem:[%s1 + $0x400] sm:$0xff]
    %v153 = vld [vmem:[%s1 + $0x408] sm:$0xff]
    %v154 = vld [vmem:[%s1 + $0x410] sm:$0xff]
    %v155 = vld [vmem:[%s1 + $0x418] sm:$0xff]
    %v156 = vld [vmem:[%s1 + $0x420] sm:$0xff]
    %v157 = vld [vmem:[%s1 + $0x428] sm:$0xff]
    %v158 = vld [vmem:[%s1 + $0x430] sm:$0xff]
    %v159 = vld [vmem:[%s1 + $0x438] sm:$0xff]
    %v160 = vld [vmem:[%s1 + $0x440] sm:$0xff]
    %v161 = vld [vmem:[%s1 + $0x448] sm:$0xff]
    %v162 = vld [vmem:[%s1 + $0x450] sm:$0xff]
    %v163 = vld [vmem:[%s1 + $0x458] sm:$0xff]
    %v164 = vld [vmem:[%s1 + $0x460] sm:$0xff]
    %v165 = vld [vmem:[%s1 + $0x468] sm:$0xff]
    %v166 = vld [vmem:[%s1 + $0x470] sm:$0xff]
    %v167 = vld [vmem:[%s1 + $0x478] sm:$0xff]
    %v168 = vld [vmem:[%s1 + $0x480] sm:$0xff]
    %v169 = vld [vmem:[%s1 + $0x488] sm:$0xff]
    %v170 = vld [vmem:[%s1 + $0x490] sm:$0xff]
    %v171 = vld [vmem:[%s1 + $0x498] sm:$0xff]
    %v172 = vld [vmem:[%s1 + $0x4a0] sm:$0xff]
    %v173 = vld [vmem:[%s1 + $0x4a8] sm:$0xff]
    %v174 = vld [vmem:[%s1 + $0x4b0] sm:$0xff]
    %v175 = vld [vmem:[%s1 + $0x4b8] sm:$0xff]
    %v176 = vld [vmem:[%s1 + $0x4c0] sm:$0xff]
    %v177 = vld [vmem:[%s1 + $0x4c8] sm:$0xff]
    %v178 = vld [vmem:[%s1 + $0x4d0] sm:$0xff]
    %v179 = vld [vmem:[%s1 + $0x4d8] sm:$0xff]
    %v180 = vld [vmem:[%s1 + $0x4e0] sm:$0xff]
    %v181 = vld [vmem:[%s1 + $0x4e8] sm:$0xff]
    %v182 = vld [vmem:[%s1 + $0x4f0] sm:$0xff]
    %v183 = vld [vmem:[%s1 + $0x4f8] sm:$0xff]
    %v184 = vld [vmem:[%s1 + $0x500] sm:$0xff]
    %v185 = vld [vmem:[%s1 + $0x508] sm:$0xff]
    %v186 = vld [vmem:[%s1 + $0x510] sm:$0xff]
    %v187 = vld [vmem:[%s1 + $0x518] sm:$0xff]
    %v188 = vld [vmem:[%s1 + $0x520] sm:$0xff]
    %v189 = vld [vmem:[%s1 + $0x528] sm:$0xff]
    %v190 = vld [vmem:[%s1 + $0x530] sm:$0xff]
    %v191 = vld [vmem:[%s1 + $0x538] sm:$0xff]
    %v192 = vld [vmem:[%s1 + $0x540] sm:$0xff]
    %v193 = vld [vmem:[%s1 + $0x548] sm:$0xff]
    %v194 = vld [vmem:[%s1 + $0x550] sm:$0xff]
    %v195 = vld [vmem:[%s1 + $0x558] sm:$0xff]
    %v196 = vld [vmem:[%s1 + $0x560] sm:$0xff]
    %v197 = vld [vmem:[%s1 + $0x568] sm:$0xff]
    %v198 = vld [vmem:[%s1 + $0x570] sm:$0xff]
    %v199 = vld [vmem:[%s1 + $0x578] sm:$0xff]
    %v200 = vld [vmem:[%s1 + $0x580] sm:$0xff]
    %v201 = vld [vmem:[%s1 + $0x588] sm:$0xff]
    %v202 = vld [vmem:[%s1 + $0x590] sm:$0xff]
    %v203 = vld [vmem:[%s1 + $0x598] sm:$0xff]
    %v204 = vld [vmem:[%s1 + $0x5a0] sm:$0xff]
    %v205 = vld [vmem:[%s1 + $0x5a8] sm:$0xff]
    %v206 = vld [vmem:[%s1 + $0x5b0] sm:$0xff]
    %v207 = vld [vmem:[%s1 + $0x5b8] sm:$0xff]
    %v208 = vld [vmem:[%s1 + $0x5c0] sm:$0xff]
    %v209 = vld [vmem:[%s1 + $0x5c8] sm:$0xff]
    %v210 = vld [vmem:[%s1 + $0x5d0] sm:$0xff]
    %v211 = vld [vmem:[%s1 + $0x5d8] sm:$0xff]
    %v212 = vld [vmem:[%s1 + $0x5e0] sm:$0xff]
    %v213 = vld [vmem:[%s1 + $0x5e8] sm:$0xff]
    %v214 = vld [vmem:[%s1 + $0x5f0] sm:$0xff]
    %v215 = vld [vmem:[%s1 + $0x5f8] sm:$0xff]
    %v216 = vld [vmem:[%s1 + $0x600] sm:$0xff]
    %v217 = vld [vmem:[%s1 + $0x608] sm:$0xff]
    %v218 = vld [vmem:[%s1 + $0x610] sm:$0xff]
    %v219 = vld [vmem:[%s1 + $0x618] sm:$0xff]
    %v220 = vld [vmem:[%s1 + $0x620] sm:$0xff]
    %v221 = vld [vmem:[%s1 + $0x628] sm:$0xff]
    %v222 = vld [vmem:[%s1 + $0x630] sm:$0xff]
    %v223 = vld [vmem:[%s1 + $0x638] sm:$0xff]
    %v224 = vld [vmem:[%s1 + $0x640] sm:$0xff]
    %v225 = vld [vmem:[%s1 + $0x648] sm:$0xff]
    %v226 = vld [vmem:[%s1 + $0x650] sm:$0xff]
    %v227 = vld [vmem:[%s1 + $0x658] sm:$0xff]
    %v228 = vld [vmem:[%s1 + $0x660] sm:$0xff]
    %v229 = vld [vmem:[%s1 + $0x668] sm:$0xff]
    %v230 = vld [vmem:[%s1 + $0x670] sm:$0xff]
    %v231 = vld [vmem:[%s1 + $0x678] sm:$0xff]
    %v232 = vld [vmem:[%s1 + $0x680] sm:$0xff]
    %v233 = vld [vmem:[%s1 + $0x688] sm:$0xff]
    %v234 = vld [vmem:[%s1 + $0x690] sm:$0xff]
    %v235 = vld [vmem:[%s1 + $0x698] sm:$0xff]
    %v236 = vld [vmem:[%s1 + $0x6a0] sm:$0xff]
    %v237 = vld [vmem:[%s1 + $0x6a8] sm:$0xff]
    %v238 = vld [vmem:[%s1 + $0x6b0] sm:$0xff]
    %v239 = vld [vmem:[%s1 + $0x6b8] sm:$0xff]
    %v240 = vld [vmem:[%s1 + $0x6c0] sm:$0xff]
    %v241 = vld [vmem:[%s1 + $0x6c8] sm:$0xff]
    %v242 = vld [vmem:[%s1 + $0x6d0] sm:$0xff]
    %v243 = vld [vmem:[%s1 + $0x6d8] sm:$0xff]
    %v244 = vld [vmem:[%s1 + $0x6e0] sm:$0xff]
    %v245 = vld [vmem:[%s1 + $0x6e8] sm:$0xff]
    %v246 = vld [vmem:[%s1 + $0x6f0] sm:$0xff]
    %v247 = vld [vmem:[%s1 + $0x6f8] sm:$0xff]
    %v248 = vld [vmem:[%s1 + $0x700] sm:$0xff]
    %v249 = vld [vmem:[%s1 + $0x708] sm:$0xff]
    %v250 = vld [vmem:[%s1 + $0x710] sm:$0xff]
    %v251 = vld [vmem:[%s1 + $0x718] sm:$0xff]
    %v252 = vld [vmem:[%s1 + $0x720] sm:$0xff]
    %v253 = vld [vmem:[%s1 + $0x728] sm:$0xff]
    %v254 = vld [vmem:[%s1 + $0x730] sm:$0xff]
    %v255 = vld [vmem:[%s1 + $0x738] sm:$0xff]
    %v256 = vld [vmem:[%s1 + $0x740] sm:$0xff]
    %v257 = vld [vmem:[%s1 + $0x748] sm:$0xff]
    %v258 = vld [vmem:[%s1 + $0x750] sm:$0xff]
    %v259 = vld [vmem:[%s1 + $0x758] sm:$0xff]
    %v260 = vld [vmem:[%s1 + $0x760] sm:$0xff]
    %v261 = vld [vmem:[%s1 + $0x768] sm:$0xff]
    %v262 = vld [vmem:[%s1 + $0x770] sm:$0xff]
    %v263 = vld [vmem:[%s1 + $0x778] sm:$0xff]
    %v264 = vld [vmem:[%s1 + $0x780] sm:$0xff]
    %v265 = vld [vmem:[%s1 + $0x788] sm:$0xff]
    %v266 = vld [vmem:[%s1 + $0x790] sm:$0xff]
    %v267 = vld [vmem:[%s1 + $0x798] sm:$0xff]
    %v268 = vld [vmem:[%s1 + $0x7a0] sm:$0xff]
    %v269 = vld [vmem:[%s1 + $0x7a8] sm:$0xff]
    %v270 = vld [vmem:[%s1 + $0x7b0] sm:$0xff]
    %v271 = vld [vmem:[%s1 + $0x7b8] sm:$0xff]
    %v272 = vld [vmem:[%s1 + $0x7c0] sm:$0xff]
    %v273 = vld [vmem:[%s1 + $0x7c8] sm:$0xff]
    %v274 = vld [vmem:[%s1 + $0x7d0] sm:$0xff]
    %v275 = vld [vmem:[%s1 + $0x7d8] sm:$0xff]
    %v276 = vld [vmem:[%s1 + $0x7e0] sm:$0xff]
    %v277 = vld [vmem:[%s1 + $0x7e8] sm:$0xff]
    %v278 = vld [vmem:[%s1 + $0x7f0] sm:$0xff]
    %v279 = vld [vmem:[%s1 + $0x7f8] sm:$0xff]
    %v280 = vld [vmem:[%s1 + $0x800] sm:$0xff]
    %v281 = vld [vmem:[%s1 + $0x808] sm:$0xff]
    %v282 = vld [vmem:[%s1 + $0x810] sm:$0xff]
    %v283 = vld [vmem:[%s1 + $0x818] sm:$0xff]
    %v284 = vld [vmem:[%s1 + $0x820] sm:$0xff]
    %v285 = vld [vmem:[%s1 + $0x828] sm:$0xff]
    %v286 = vld [vmem:[%s1 + $0x830] sm:$0xff]
    %v287 = vld [vmem:[%s1 + $0x838] sm:$0xff]
    %v288 = vld [vmem:[%s1 + $0x840] sm:$0xff]
    %v289 = vld [vmem:[%s1 + $0x848] sm:$0xff]
    %v290 = vld [vmem:[%s1 + $0x850] sm:$0xff]
    %v291 = vld [vmem:[%s1 + $0x858] sm:$0xff]
    %v292 = vld [vmem:[%s1 + $0x860] sm:$0xff]
    %v293 = vld [vmem:[%s1 + $0x868] sm:$0xff]
    %v294 = vld [vmem:[%s1 + $0x870] sm:$0xff]
    %v295 = vld [vmem:[%s1 + $0x878] sm:$0xff]
    %v296 = vld [vmem:[%s1 + $0x880] sm:$0xff]
    %v297 = vld [vmem:[%s1 + $0x888] sm:$0xff]
    %v298 = vld [vmem:[%s1 + $0x890] sm:$0xff]
    %v299 = vld [vmem:[%s1 + $0x898] sm:$0xff]
    %v300 = vld [vmem:[%s1 + $0x8a0] sm:$0xff]
    %v301 = vld [vmem:[%s1 + $0x8a8] sm:$0xff]
    %v302 = vld [vmem:[%s1 + $0x8b0] sm:$0xff]
    %v303 = vld [vmem:[%s1 + $0x8b8] sm:$0xff]
    %v304 = vld [vmem:[%s1 + $0x8c0] sm:$0xff]
    %v305 = vld [vmem:[%s1 + $0x8c8] sm:$0xff]
    %v306 = vld [vmem:[%s1 + $0x8d0] sm:$0xff]
    %v307 = vld [vmem:[%s1 + $0x8d8] sm:$0xff]
    %v308 = vld [vmem:[%s1 + $0x8e0] sm:$0xff]
    %v309 = vld [vmem:[%s1 + $0x8e8] sm:$0xff]
    %v310 = vld [vmem:[%s1 + $0x8f0] sm:$0xff]
    %v311 = vld [vmem:[%s1 + $0x8f8] sm:$0xff]
    %v312 = vld [vmem:[%s1 + $0x900] sm:$0xff]
    %v313 = vld [vmem:[%s1 + $0x908] sm:$0xff]
    %v314 = vld [vmem:[%s1 + $0x910] sm:$0xff]
    %v315 = vld [vmem:[%s1 + $0x918] sm:$0xff]
    %v316 = vld [vmem:[%s1 + $0x920] sm:$0xff]
    %v317 = vld [vmem:[%s1 + $0x928] sm:$0xff]
    %v318 = vld [vmem:[%s1 + $0x930] sm:$0xff]
    %v319 = vld [vmem:[%s1 + $0x938] sm:$0xff]
    %v320 = vld [vmem:[%s1 + $0x940] sm:$0xff]
    %v321 = vld [vmem:[%s1 + $0x948] sm:$0xff]
    %v322 = vld [vmem:[%s1 + $0x950] sm:$0xff]
    %v323 = vld [vmem:[%s1 + $0x958] sm:$0xff]
    %v324 = vld [vmem:[%s1 + $0x960] sm:$0xff]
    %v325 = vld [vmem:[%s1 + $0x968] sm:$0xff]
    %v326 = vld [vmem:[%s1 + $0x970] sm:$0xff]
    %v327 = vld [vmem:[%s1 + $0x978] sm:$0xff]
    %v328 = vld [vmem:[%s1 + $0x980] sm:$0xff]
    %v329 = vld [vmem:[%s1 + $0x988] sm:$0xff]
    %v330 = vld [vmem:[%s1 + $0x990] sm:$0xff]
    %v331 = vld [vmem:[%s1 + $0x998] sm:$0xff]
    %v332 = vld [vmem:[%s1 + $0x9a0] sm:$0xff]
    %v333 = vld [vmem:[%s1 + $0x9a8] sm:$0xff]
    %v334 = vld [vmem:[%s1 + $0x9b0] sm:$0xff]
    %v335 = vld [vmem:[%s1 + $0x9b8] sm:$0xff]
    %v336 = vld [vmem:[%s1 + $0x9c0] sm:$0xff]
    %v337 = vld [vmem:[%s1 + $0x9c8] sm:$0xff]
    %v338 = vld [vmem:[%s1 + $0x9d0] sm:$0xff]
    %v339 = vld [vmem:[%s1 + $0x9d8] sm:$0xff]
    %v340 = vld [vmem:[%s1 + $0x9e0] sm:$0xff]
    %v341 = vld [vmem:[%s1 + $0x9e8] sm:$0xff]
    %v342 = vld [vmem:[%s1 + $0x9f0] sm:$0xff]
    %v343 = vld [vmem:[%s1 + $0x9f8] sm:$0xff]
    %v344 = vld [vmem:[%s1 + $0xa00] sm:$0xff]
    %v345 = vld [vmem:[%s1 + $0xa08] sm:$0xff]
    %v346 = vld [vmem:[%s1 + $0xa10] sm:$0xff]
    %v347 = vld [vmem:[%s1 + $0xa18] sm:$0xff]
    %v348 = vld [vmem:[%s1 + $0xa20] sm:$0xff]
    %v349 = vld [vmem:[%s1 + $0xa28] sm:$0xff]
    %v350 = vld [vmem:[%s1 + $0xa30] sm:$0xff]
    %v351 = vld [vmem:[%s1 + $0xa38] sm:$0xff]
    %v352 = vld [vmem:[%s1 + $0xa40] sm:$0xff]
    %v353 = vld [vmem:[%s1 + $0xa48] sm:$0xff]
    %v354 = vld [vmem:[%s1 + $0xa50] sm:$0xff]
    %v355 = vld [vmem:[%s1 + $0xa58] sm:$0xff]
    %v356 = vld [vmem:[%s1 + $0xa60] sm:$0xff]
    %v357 = vld [vmem:[%s1 + $0xa68] sm:$0xff]
    %v358 = vld [vmem:[%s1 + $0xa70] sm:$0xff]
    %v359 = vld [vmem:[%s1 + $0xa78] sm:$0xff]
    %v360 = vld [vmem:[%s1 + $0xa80] sm:$0xff]
    %v361 = vld [vmem:[%s1 + $0xa88] sm:$0xff]
    %v362 = vld [vmem:[%s1 + $0xa90] sm:$0xff]
    %v363 = vld [vmem:[%s1 + $0xa98] sm:$0xff]
    %v364 = vld [vmem:[%s1 + $0xaa0] sm:$0xff]
    %v365 = vld [vmem:[%s1 + $0xaa8] sm:$0xff]
    %v366 = vld [vmem:[%s1 + $0xab0] sm:$0xff]
    %v367 = vld [vmem:[%s1 + $0xab8] sm:$0xff]
    %v368 = vld [vmem:[%s1 + $0xac0] sm:$0xff]
    %v369 = vld [vmem:[%s1 + $0xac8] sm:$0xff]
    %v370 = vld [vmem:[%s1 + $0xad0] sm:$0xff]
    %v371 = vld [vmem:[%s1 + $0xad8] sm:$0xff]
    %v372 = vld [vmem:[%s1 + $0xae0] sm:$0xff]
    %v373 = vld [vmem:[%s1 + $0xae8] sm:$0xff]
    %v374 = vld [vmem:[%s1 + $0xaf0] sm:$0xff]
    %v375 = vld [vmem:[%s1 + $0xaf8] sm:$0xff]
    %v376 = vld [vmem:[%s1 + $0xb00] sm:$0xff]
    %v377 = vld [vmem:[%s1 + $0xb08] sm:$0xff]
    %v378 = vld [vmem:[%s1 + $0xb10] sm:$0xff]
    %v379 = vld [vmem:[%s1 + $0xb18] sm:$0xff]
    %v380 = vld [vmem:[%s1 + $0xb20] sm:$0xff]
    %v381 = vld [vmem:[%s1 + $0xb28] sm:$0xff]
    %v382 = vld [vmem:[%s1 + $0xb30] sm:$0xff]
    %v383 = vld [vmem:[%s1 + $0xb38] sm:$0xff]
    %v384 = vld [vmem:[%s1 + $0xb40] sm:$0xff]
    %v385 = vld [vmem:[%s1 + $0xb48] sm:$0xff]
    %v386 = vld [vmem:[%s1 + $0xb50] sm:$0xff]
    %v387 = vld [vmem:[%s1 + $0xb58] sm:$0xff]
    %v388 = vld [vmem:[%s1 + $0xb60] sm:$0xff]
    %v389 = vld [vmem:[%s1 + $0xb68] sm:$0xff]
    %v390 = vld [vmem:[%s1 + $0xb70] sm:$0xff]
    %v391 = vld [vmem:[%s1 + $0xb78] sm:$0xff]
    %v392 = vld [vmem:[%s1 + $0xb80] sm:$0xff]
    %v393 = vld [vmem:[%s1 + $0xb88] sm:$0xff]
    %v394 = vld [vmem:[%s1 + $0xb90] sm:$0xff]
    %v395 = vld [vmem:[%s1 + $0xb98] sm:$0xff]
    %v396 = vld [vmem:[%s1 + $0xba0] sm:$0xff]
    %v397 = vld [vmem:[%s1 + $0xba8] sm:$0xff]
    %v398 = vld [vmem:[%s1 + $0xbb0] sm:$0xff]
    %v399 = vld [vmem:[%s1 + $0xbb8] sm:$0xff]
    %v400 = vld [vmem:[%s1 + $0xbc0] sm:$0xff]
    %v401 = vld [vmem:[%s1 + $0xbc8] sm:$0xff]
    %v402 = vld [vmem:[%s1 + $0xbd0] sm:$0xff]
    %v403 = vld [vmem:[%s1 + $0xbd8] sm:$0xff]
    %v404 = vld [vmem:[%s1 + $0xbe0] sm:$0xff]
    %v405 = vld [vmem:[%s1 + $0xbe8] sm:$0xff]
    %v406 = vld [vmem:[%s1 + $0xbf0] sm:$0xff]
    %v407 = vld [vmem:[%s1 + $0xbf8] sm:$0xff]
    %v408 = vld [vmem:[%s1 + $0xc00] sm:$0xff]
    %v409 = vld [vmem:[%s1 + $0xc08] sm:$0xff]
    %v410 = vld [vmem:[%s1 + $0xc10] sm:$0xff]
    %v411 = vld [vmem:[%s1 + $0xc18] sm:$0xff]
    %v412 = vld [vmem:[%s1 + $0xc20] sm:$0xff]
    %v413 = vld [vmem:[%s1 + $0xc28] sm:$0xff]
    %v414 = vld [vmem:[%s1 + $0xc30] sm:$0xff]
    %v415 = vld [vmem:[%s1 + $0xc38] sm:$0xff]
    %v416 = vld [vmem:[%s2] sm:$0xf]
    %v418 = vlaneseq
    %v419 = vshrl.u32 %v418, 7
    %v420 = vsub.s32 0, %v419
    %v421 = vrot.slane %v416, %v420
    %v422 = vlaneseq
    %v423 = vshrl.u32 %v422, 7
    %v424 = vsub.s32 1, %v423
    %v425 = vrot.slane %v416, %v424
    %v426 = vlaneseq
    %v427 = vshrl.u32 %v426, 7
    %v428 = vsub.s32 2, %v427
    %v429 = vrot.slane %v416, %v428
    %v430 = vlaneseq
    %v431 = vshrl.u32 %v430, 7
    %v432 = vsub.s32 3, %v431
    %v433 = vrot.slane %v416, %v432
    %v440 = vcombine.high %v22, %v22
    %v442 = vunpack.c.l.s4 1966171168
    %v443 = vunpack.c.0.s8 %v442
    %v444 = vlaneseq
    %v445 = vshrl.u32 %v444, 7
    %v446 = vsub.s32 %v443, %v445
    %v447 = vrot.slane %v22, %v446
    %v449 = vunpack.c.l.s4 1966171168
    %v450 = vunpack.c.0.s8 %v449
    %v451 = vlaneseq
    %v452 = vshrl.u32 %v451, 7
    %v453 = vsub.s32 %v450, %v452
    %v454 = vrot.slane %v440, %v453
    %v455 = vcombine.high %v447, %v447
    %v456 = vcombine.high %v454, %v454
    %v458 = vunpack.c.l.s4 1966171168
    %v459 = vunpack.c.0.s8 %v458
    %v460 = vlaneseq
    %v461 = vshrl.u32 %v460, 7
    %v462 = vsub.s32 %v459, %v461
    %v463 = vrot.slane %v447, %v462
    %v465 = vunpack.c.l.s4 1966171168
    %v466 = vunpack.c.0.s8 %v465
    %v467 = vlaneseq
    %v468 = vshrl.u32 %v467, 7
    %v469 = vsub.s32 %v466, %v468
    %v470 = vrot.slane %v454, %v469
    %v472 = vunpack.c.l.s4 1966171168
    %v473 = vunpack.c.0.s8 %v472
    %v474 = vlaneseq
    %v475 = vshrl.u32 %v474, 7
    %v476 = vsub.s32 %v473, %v475
    %v477 = vrot.slane %v455, %v476
    %v479 = vunpack.c.l.s4 1966171168
    %v480 = vunpack.c.0.s8 %v479
    %v481 = vlaneseq
    %v482 = vshrl.u32 %v481, 7
    %v483 = vsub.s32 %v480, %v482
    %v484 = vrot.slane %v456, %v483
    %v485 = vcombine.high %v463, %v463
    %v486 = vcombine.high %v470, %v470
    %v487 = vcombine.high %v477, %v477
    %v488 = vcombine.high %v484, %v484
    %v489 = vcombine.high %v23, %v23
    %v491 = vunpack.c.l.s4 1966171168
    %v492 = vunpack.c.0.s8 %v491
    %v493 = vlaneseq
    %v494 = vshrl.u32 %v493, 7
    %v495 = vsub.s32 %v492, %v494
    %v496 = vrot.slane %v23, %v495
    %v498 = vunpack.c.l.s4 1966171168
    %v499 = vunpack.c.0.s8 %v498
    %v500 = vlaneseq
    %v501 = vshrl.u32 %v500, 7
    %v502 = vsub.s32 %v499, %v501
    %v503 = vrot.slane %v489, %v502
    %v504 = vcombine.high %v496, %v496
    %v506 = vunpack.c.l.s4 1966171168
    %v507 = vunpack.c.0.s8 %v506
    %v508 = vlaneseq
    %v509 = vshrl.u32 %v508, 7
    %v510 = vsub.s32 %v507, %v509
    %v511 = vrot.slane %v496, %v510
    %v513 = vunpack.c.l.s4 1966171168
    %v514 = vunpack.c.0.s8 %v513
    %v515 = vlaneseq
    %v516 = vshrl.u32 %v515, 7
    %v517 = vsub.s32 %v514, %v516
    %v518 = vrot.slane %v503, %v517
    %v520 = vunpack.c.l.s4 1966171168
    %v521 = vunpack.c.0.s8 %v520
    %v522 = vlaneseq
    %v523 = vshrl.u32 %v522, 7
    %v524 = vsub.s32 %v521, %v523
    %v525 = vrot.slane %v504, %v524
    %v526 = vcombine.high %v511, %v511
    %v527 = vcombine.high %v525, %v525
    %v932 = vunpack.c.l.b16 %v24
    %v933 = vunpack.c.h.b16 %v24
    %v934 = vunpack.c.l.b16 %v25
    %v935 = vunpack.c.h.b16 %v25
    %v936 = vunpack.c.l.b16 %v26
    %v937 = vunpack.c.h.b16 %v26
    %v938 = vunpack.c.l.b16 %v27
    %v939 = vunpack.c.h.b16 %v27
    %v940 = vunpack.c.l.b16 %v28
    %v941 = vunpack.c.h.b16 %v28
    %v942 = vunpack.c.l.b16 %v29
    %v943 = vunpack.c.h.b16 %v29
    %v944 = vunpack.c.l.b16 %v30
    %v945 = vunpack.c.h.b16 %v30
    %v946 = vunpack.c.l.b16 %v31
    %v947 = vunpack.c.h.b16 %v31
    %v948 = vunpack.c.l.b16 %v32
    %v949 = vunpack.c.h.b16 %v32
    %v950 = vunpack.c.l.b16 %v33
    %v951 = vunpack.c.h.b16 %v33
    %v952 = vunpack.c.l.b16 %v34
    %v953 = vunpack.c.h.b16 %v34
    %v954 = vunpack.c.l.b16 %v35
    %v955 = vunpack.c.h.b16 %v35
    %v956 = vunpack.c.l.b16 %v36
    %v957 = vunpack.c.h.b16 %v36
    %v958 = vunpack.c.l.b16 %v37
    %v959 = vunpack.c.h.b16 %v37
    %v960 = vunpack.c.l.b16 %v38
    %v961 = vunpack.c.h.b16 %v38
    %v962 = vunpack.c.l.b16 %v39
    %v963 = vunpack.c.h.b16 %v39
    %v964 = vunpack.c.l.b16 %v40
    %v965 = vunpack.c.h.b16 %v40
    %v966 = vunpack.c.l.b16 %v41
    %v967 = vunpack.c.h.b16 %v41
    %v968 = vunpack.c.l.b16 %v42
    %v969 = vunpack.c.h.b16 %v42
    %v970 = vunpack.c.l.b16 %v43
    %v971 = vunpack.c.h.b16 %v43
    %v972 = vunpack.c.l.b16 %v44
    %v973 = vunpack.c.h.b16 %v44
    %v974 = vunpack.c.l.b16 %v45
    %v975 = vunpack.c.h.b16 %v45
    %v976 = vunpack.c.l.b16 %v46
    %v977 = vunpack.c.h.b16 %v46
    %v978 = vunpack.c.l.b16 %v47
    %v979 = vunpack.c.h.b16 %v47
    %v980 = vunpack.c.l.b16 %v48
    %v981 = vunpack.c.h.b16 %v48
    %v982 = vunpack.c.l.b16 %v49
    %v983 = vunpack.c.h.b16 %v49
    %v984 = vunpack.c.l.b16 %v50
    %v985 = vunpack.c.h.b16 %v50
    %v986 = vunpack.c.l.b16 %v51
    %v987 = vunpack.c.h.b16 %v51
    %v988 = vunpack.c.l.b16 %v52
    %v989 = vunpack.c.h.b16 %v52
    %v990 = vunpack.c.l.b16 %v53
    %v991 = vunpack.c.h.b16 %v53
    %v992 = vunpack.c.l.b16 %v54
    %v993 = vunpack.c.h.b16 %v54
    %v994 = vunpack.c.l.b16 %v55
    %v995 = vunpack.c.h.b16 %v55
    %v996 = vunpack.c.l.b16 %v56
    %v997 = vunpack.c.h.b16 %v56
    %v998 = vunpack.c.l.b16 %v57
    %v999 = vunpack.c.h.b16 %v57
    %v1000 = vunpack.c.l.b16 %v58
    %v1001 = vunpack.c.h.b16 %v58
    %v1002 = vunpack.c.l.b16 %v59
    %v1003 = vunpack.c.h.b16 %v59
    %v1004 = vunpack.c.l.b16 %v60
    %v1005 = vunpack.c.h.b16 %v60
    %v1006 = vunpack.c.l.b16 %v61
    %v1007 = vunpack.c.h.b16 %v61
    %v1008 = vunpack.c.l.b16 %v62
    %v1009 = vunpack.c.h.b16 %v62
    %v1010 = vunpack.c.l.b16 %v63
    %v1011 = vunpack.c.h.b16 %v63
    %v1012 = vunpack.c.l.b16 %v64
    %v1013 = vunpack.c.h.b16 %v64
    %v1014 = vunpack.c.l.b16 %v65
    %v1015 = vunpack.c.h.b16 %v65
    %v1016 = vunpack.c.l.b16 %v66
    %v1017 = vunpack.c.h.b16 %v66
    %v1018 = vunpack.c.l.b16 %v67
    %v1019 = vunpack.c.h.b16 %v67
    %v1020 = vunpack.c.l.b16 %v68
    %v1021 = vunpack.c.h.b16 %v68
    %v1022 = vunpack.c.l.b16 %v69
    %v1023 = vunpack.c.h.b16 %v69
    %v1024 = vunpack.c.l.b16 %v70
    %v1025 = vunpack.c.h.b16 %v70
    %v1026 = vunpack.c.l.b16 %v71
    %v1027 = vunpack.c.h.b16 %v71
    %v1028 = vunpack.c.l.b16 %v72
    %v1029 = vunpack.c.h.b16 %v72
    %v1030 = vunpack.c.l.b16 %v73
    %v1031 = vunpack.c.h.b16 %v73
    %v1032 = vunpack.c.l.b16 %v74
    %v1033 = vunpack.c.h.b16 %v74
    %v1034 = vunpack.c.l.b16 %v75
    %v1035 = vunpack.c.h.b16 %v75
    %v1036 = vunpack.c.l.b16 %v76
    %v1037 = vunpack.c.h.b16 %v76
    %v1038 = vunpack.c.l.b16 %v77
    %v1039 = vunpack.c.h.b16 %v77
    %v1040 = vunpack.c.l.b16 %v78
    %v1041 = vunpack.c.h.b16 %v78
    %v1042 = vunpack.c.l.b16 %v79
    %v1043 = vunpack.c.h.b16 %v79
    %v1044 = vunpack.c.l.b16 %v80
    %v1045 = vunpack.c.h.b16 %v80
    %v1046 = vunpack.c.l.b16 %v81
    %v1047 = vunpack.c.h.b16 %v81
    %v1048 = vunpack.c.l.b16 %v82
    %v1049 = vunpack.c.h.b16 %v82
    %v1050 = vunpack.c.l.b16 %v83
    %v1051 = vunpack.c.h.b16 %v83
    %v1052 = vunpack.c.l.b16 %v84
    %v1053 = vunpack.c.h.b16 %v84
    %v1054 = vunpack.c.l.b16 %v85
    %v1055 = vunpack.c.h.b16 %v85
    %v1056 = vunpack.c.l.b16 %v86
    %v1057 = vunpack.c.h.b16 %v86
    %v1058 = vunpack.c.l.b16 %v87
    %v1059 = vunpack.c.h.b16 %v87
    %v1060 = vunpack.c.l.b16 %v88
    %v1061 = vunpack.c.h.b16 %v88
    %v1062 = vunpack.c.l.b16 %v89
    %v1063 = vunpack.c.h.b16 %v89
    %v1064 = vunpack.c.l.b16 %v90
    %v1065 = vunpack.c.h.b16 %v90
    %v1066 = vunpack.c.l.b16 %v91
    %v1067 = vunpack.c.h.b16 %v91
    %v1068 = vunpack.c.l.b16 %v92
    %v1069 = vunpack.c.h.b16 %v92
    %v1070 = vunpack.c.l.b16 %v93
    %v1071 = vunpack.c.h.b16 %v93
    %v1072 = vunpack.c.l.b16 %v94
    %v1073 = vunpack.c.h.b16 %v94
    %v1074 = vunpack.c.l.b16 %v95
    %v1075 = vunpack.c.h.b16 %v95
    %v1076 = vunpack.c.l.b16 %v96
    %v1077 = vunpack.c.h.b16 %v96
    %v1078 = vunpack.c.l.b16 %v97
    %v1079 = vunpack.c.h.b16 %v97
    %v1080 = vunpack.c.l.b16 %v98
    %v1081 = vunpack.c.h.b16 %v98
    %v1082 = vunpack.c.l.b16 %v99
    %v1083 = vunpack.c.h.b16 %v99
    %v1084 = vunpack.c.l.b16 %v100
    %v1085 = vunpack.c.h.b16 %v100
    %v1086 = vunpack.c.l.b16 %v101
    %v1087 = vunpack.c.h.b16 %v101
    %v1088 = vunpack.c.l.b16 %v102
    %v1089 = vunpack.c.h.b16 %v102
    %v1090 = vunpack.c.l.b16 %v103
    %v1091 = vunpack.c.h.b16 %v103
    %v1092 = vunpack.c.l.b16 %v104
    %v1093 = vunpack.c.h.b16 %v104
    %v1094 = vunpack.c.l.b16 %v105
    %v1095 = vunpack.c.h.b16 %v105
    %v1096 = vunpack.c.l.b16 %v106
    %v1097 = vunpack.c.h.b16 %v106
    %v1098 = vunpack.c.l.b16 %v107
    %v1099 = vunpack.c.h.b16 %v107
    %v1100 = vunpack.c.l.b16 %v108
    %v1101 = vunpack.c.h.b16 %v108
    %v1102 = vunpack.c.l.b16 %v109
    %v1103 = vunpack.c.h.b16 %v109
    %v1104 = vunpack.c.l.b16 %v110
    %v1105 = vunpack.c.h.b16 %v110
    %v1106 = vunpack.c.l.b16 %v111
    %v1107 = vunpack.c.h.b16 %v111
    %v1108 = vunpack.c.l.b16 %v112
    %v1109 = vunpack.c.h.b16 %v112
    %v1110 = vunpack.c.l.b16 %v113
    %v1111 = vunpack.c.h.b16 %v113
    %v1112 = vunpack.c.l.b16 %v114
    %v1113 = vunpack.c.h.b16 %v114
    %v1114 = vunpack.c.l.b16 %v115
    %v1115 = vunpack.c.h.b16 %v115
    %v1116 = vunpack.c.l.b16 %v116
    %v1117 = vunpack.c.h.b16 %v116
    %v1118 = vunpack.c.l.b16 %v117
    %v1119 = vunpack.c.h.b16 %v117
    %v1120 = vunpack.c.l.b16 %v118
    %v1121 = vunpack.c.h.b16 %v118
    %v1122 = vunpack.c.l.b16 %v119
    %v1123 = vunpack.c.h.b16 %v119
    %v1124 = vunpack.c.l.b16 %v120
    %v1125 = vunpack.c.h.b16 %v120
    %v1126 = vunpack.c.l.b16 %v121
    %v1127 = vunpack.c.h.b16 %v121
    %v1128 = vunpack.c.l.b16 %v122
    %v1129 = vunpack.c.h.b16 %v122
    %v1130 = vunpack.c.l.b16 %v123
    %v1131 = vunpack.c.h.b16 %v123
    %v1132 = vunpack.c.l.b16 %v124
    %v1133 = vunpack.c.h.b16 %v124
    %v1134 = vunpack.c.l.b16 %v125
    %v1135 = vunpack.c.h.b16 %v125
    %v1136 = vunpack.c.l.b16 %v126
    %v1137 = vunpack.c.h.b16 %v126
    %v1138 = vunpack.c.l.b16 %v127
    %v1139 = vunpack.c.h.b16 %v127
    %v1140 = vunpack.c.l.b16 %v128
    %v1141 = vunpack.c.h.b16 %v128
    %v1142 = vunpack.c.l.b16 %v129
    %v1143 = vunpack.c.h.b16 %v129
    %v1144 = vunpack.c.l.b16 %v130
    %v1145 = vunpack.c.h.b16 %v130
    %v1146 = vunpack.c.l.b16 %v131
    %v1147 = vunpack.c.h.b16 %v131
    %v1148 = vunpack.c.l.b16 %v132
    %v1149 = vunpack.c.h.b16 %v132
    %v1150 = vunpack.c.l.b16 %v133
    %v1151 = vunpack.c.h.b16 %v133
    %v1152 = vunpack.c.l.b16 %v134
    %v1153 = vunpack.c.h.b16 %v134
    %v1154 = vunpack.c.l.b16 %v135
    %v1155 = vunpack.c.h.b16 %v135
    %v1156 = vunpack.c.l.b16 %v136
    %v1157 = vunpack.c.h.b16 %v136
    %v1158 = vunpack.c.l.b16 %v137
    %v1159 = vunpack.c.h.b16 %v137
    %v1160 = vunpack.c.l.b16 %v138
    %v1161 = vunpack.c.h.b16 %v138
    %v1162 = vunpack.c.l.b16 %v139
    %v1163 = vunpack.c.h.b16 %v139
    %v1164 = vunpack.c.l.b16 %v140
    %v1165 = vunpack.c.h.b16 %v140
    %v1166 = vunpack.c.l.b16 %v141
    %v1167 = vunpack.c.h.b16 %v141
    %v1168 = vunpack.c.l.b16 %v142
    %v1169 = vunpack.c.h.b16 %v142
    %v1170 = vunpack.c.l.b16 %v143
    %v1171 = vunpack.c.h.b16 %v143
    %v1172 = vunpack.c.l.b16 %v144
    %v1173 = vunpack.c.h.b16 %v144
    %v1174 = vunpack.c.l.b16 %v145
    %v1175 = vunpack.c.h.b16 %v145
    %v1176 = vunpack.c.l.b16 %v146
    %v1177 = vunpack.c.h.b16 %v146
    %v1178 = vunpack.c.l.b16 %v147
    %v1179 = vunpack.c.h.b16 %v147
    %v1180 = vunpack.c.l.b16 %v148
    %v1181 = vunpack.c.h.b16 %v148
    %v1182 = vunpack.c.l.b16 %v149
    %v1183 = vunpack.c.h.b16 %v149
    %v1184 = vunpack.c.l.b16 %v150
    %v1185 = vunpack.c.h.b16 %v150
    %v1186 = vunpack.c.l.b16 %v151
    %v1187 = vunpack.c.h.b16 %v151
    %v1188 = vunpack.c.l.b16 %v152
    %v1189 = vunpack.c.h.b16 %v152
    %v1190 = vunpack.c.l.b16 %v153
    %v1191 = vunpack.c.h.b16 %v153
    %v1192 = vunpack.c.l.b16 %v154
    %v1193 = vunpack.c.h.b16 %v154
    %v1194 = vunpack.c.l.b16 %v155
    %v1195 = vunpack.c.h.b16 %v155
    %v1196 = vunpack.c.l.b16 %v156
    %v1197 = vunpack.c.h.b16 %v156
    %v1198 = vunpack.c.l.b16 %v157
    %v1199 = vunpack.c.h.b16 %v157
    %v1200 = vunpack.c.l.b16 %v158
    %v1201 = vunpack.c.h.b16 %v158
    %v1202 = vunpack.c.l.b16 %v159
    %v1203 = vunpack.c.h.b16 %v159
    %v1204 = vunpack.c.l.b16 %v160
    %v1205 = vunpack.c.h.b16 %v160
    %v1206 = vunpack.c.l.b16 %v161
    %v1207 = vunpack.c.h.b16 %v161
    %v1208 = vunpack.c.l.b16 %v162
    %v1209 = vunpack.c.h.b16 %v162
    %v1210 = vunpack.c.l.b16 %v163
    %v1211 = vunpack.c.h.b16 %v163
    %v1212 = vunpack.c.l.b16 %v164
    %v1213 = vunpack.c.h.b16 %v164
    %v1214 = vunpack.c.l.b16 %v165
    %v1215 = vunpack.c.h.b16 %v165
    %v1216 = vunpack.c.l.b16 %v166
    %v1217 = vunpack.c.h.b16 %v166
    %v1218 = vunpack.c.l.b16 %v167
    %v1219 = vunpack.c.h.b16 %v167
    %v1220 = vunpack.c.l.b16 %v168
    %v1221 = vunpack.c.h.b16 %v168
    %v1222 = vunpack.c.l.b16 %v169
    %v1223 = vunpack.c.h.b16 %v169
    %v1224 = vunpack.c.l.b16 %v170
    %v1225 = vunpack.c.h.b16 %v170
    %v1226 = vunpack.c.l.b16 %v171
    %v1227 = vunpack.c.h.b16 %v171
    %v1228 = vunpack.c.l.b16 %v172
    %v1229 = vunpack.c.h.b16 %v172
    %v1230 = vunpack.c.l.b16 %v173
    %v1231 = vunpack.c.h.b16 %v173
    %v1232 = vunpack.c.l.b16 %v174
    %v1233 = vunpack.c.h.b16 %v174
    %v1234 = vunpack.c.l.b16 %v175
    %v1235 = vunpack.c.h.b16 %v175
    %v1236 = vunpack.c.l.b16 %v176
    %v1237 = vunpack.c.h.b16 %v176
    %v1238 = vunpack.c.l.b16 %v177
    %v1239 = vunpack.c.h.b16 %v177
    %v1240 = vunpack.c.l.b16 %v178
    %v1241 = vunpack.c.h.b16 %v178
    %v1242 = vunpack.c.l.b16 %v179
    %v1243 = vunpack.c.h.b16 %v179
    %v1244 = vunpack.c.l.b16 %v180
    %v1245 = vunpack.c.h.b16 %v180
    %v1246 = vunpack.c.l.b16 %v181
    %v1247 = vunpack.c.h.b16 %v181
    %v1248 = vunpack.c.l.b16 %v182
    %v1249 = vunpack.c.h.b16 %v182
    %v1250 = vunpack.c.l.b16 %v183
    %v1251 = vunpack.c.h.b16 %v183
    %v1252 = vunpack.c.l.b16 %v184
    %v1253 = vunpack.c.h.b16 %v184
    %v1254 = vunpack.c.l.b16 %v185
    %v1255 = vunpack.c.h.b16 %v185
    %v1256 = vunpack.c.l.b16 %v186
    %v1257 = vunpack.c.h.b16 %v186
    %v1258 = vunpack.c.l.b16 %v187
    %v1259 = vunpack.c.h.b16 %v187
    %v1260 = vunpack.c.l.b16 %v188
    %v1261 = vunpack.c.h.b16 %v188
    %v1262 = vunpack.c.l.b16 %v189
    %v1263 = vunpack.c.h.b16 %v189
    %v1264 = vunpack.c.l.b16 %v190
    %v1265 = vunpack.c.h.b16 %v190
    %v1266 = vunpack.c.l.b16 %v191
    %v1267 = vunpack.c.h.b16 %v191
    %v1268 = vunpack.c.l.b16 %v192
    %v1269 = vunpack.c.h.b16 %v192
    %v1270 = vunpack.c.l.b16 %v193
    %v1271 = vunpack.c.h.b16 %v193
    %v1272 = vunpack.c.l.b16 %v194
    %v1273 = vunpack.c.h.b16 %v194
    %v1274 = vunpack.c.l.b16 %v195
    %v1275 = vunpack.c.h.b16 %v195
    %v1276 = vunpack.c.l.b16 %v196
    %v1277 = vunpack.c.h.b16 %v196
    %v1278 = vunpack.c.l.b16 %v197
    %v1279 = vunpack.c.h.b16 %v197
    %v1280 = vunpack.c.l.b16 %v198
    %v1281 = vunpack.c.h.b16 %v198
    %v1282 = vunpack.c.l.b16 %v199
    %v1283 = vunpack.c.h.b16 %v199
    %v1284 = vunpack.c.l.b16 %v200
    %v1285 = vunpack.c.h.b16 %v200
    %v1286 = vunpack.c.l.b16 %v201
    %v1287 = vunpack.c.h.b16 %v201
    %v1288 = vunpack.c.l.b16 %v202
    %v1289 = vunpack.c.h.b16 %v202
    %v1290 = vunpack.c.l.b16 %v203
    %v1291 = vunpack.c.h.b16 %v203
    %v1292 = vunpack.c.l.b16 %v204
    %v1293 = vunpack.c.h.b16 %v204
    %v1294 = vunpack.c.l.b16 %v205
    %v1295 = vunpack.c.h.b16 %v205
    %v1296 = vunpack.c.l.b16 %v206
    %v1297 = vunpack.c.h.b16 %v206
    %v1298 = vunpack.c.l.b16 %v207
    %v1299 = vunpack.c.h.b16 %v207
    %v1300 = vunpack.c.l.b16 %v208
    %v1301 = vunpack.c.h.b16 %v208
    %v1302 = vunpack.c.l.b16 %v209
    %v1303 = vunpack.c.h.b16 %v209
    %v1304 = vunpack.c.l.b16 %v210
    %v1305 = vunpack.c.h.b16 %v210
    %v1306 = vunpack.c.l.b16 %v211
    %v1307 = vunpack.c.h.b16 %v211
    %v1308 = vunpack.c.l.b16 %v212
    %v1309 = vunpack.c.h.b16 %v212
    %v1310 = vunpack.c.l.b16 %v213
    %v1311 = vunpack.c.h.b16 %v213
    %v1312 = vunpack.c.l.b16 %v214
    %v1313 = vunpack.c.h.b16 %v214
    %v1314 = vunpack.c.l.b16 %v215
    %v1315 = vunpack.c.h.b16 %v215
    %v1316 = vunpack.c.l.b16 %v216
    %v1317 = vunpack.c.h.b16 %v216
    %v1318 = vunpack.c.l.b16 %v217
    %v1319 = vunpack.c.h.b16 %v217
    %v1320 = vunpack.c.l.b16 %v218
    %v1321 = vunpack.c.h.b16 %v218
    %v1322 = vunpack.c.l.b16 %v219
    %v1323 = vunpack.c.h.b16 %v219
    %v1324 = vunpack.c.l.b16 %v220
    %v1325 = vunpack.c.h.b16 %v220
    %v1326 = vunpack.c.l.b16 %v221
    %v1327 = vunpack.c.h.b16 %v221
    %v1328 = vunpack.c.l.b16 %v222
    %v1329 = vunpack.c.h.b16 %v222
    %v1330 = vunpack.c.l.b16 %v223
    %v1331 = vunpack.c.h.b16 %v223
    %v1332 = vunpack.c.l.b16 %v224
    %v1333 = vunpack.c.h.b16 %v224
    %v1334 = vunpack.c.l.b16 %v225
    %v1335 = vunpack.c.h.b16 %v225
    %v1336 = vunpack.c.l.b16 %v226
    %v1337 = vunpack.c.h.b16 %v226
    %v1338 = vunpack.c.l.b16 %v227
    %v1339 = vunpack.c.h.b16 %v227
    %v1340 = vunpack.c.l.b16 %v228
    %v1341 = vunpack.c.h.b16 %v228
    %v1342 = vunpack.c.l.b16 %v229
    %v1343 = vunpack.c.h.b16 %v229
    %v1344 = vunpack.c.l.b16 %v230
    %v1345 = vunpack.c.h.b16 %v230
    %v1346 = vunpack.c.l.b16 %v231
    %v1347 = vunpack.c.h.b16 %v231
    %v1348 = vunpack.c.l.b16 %v232
    %v1349 = vunpack.c.h.b16 %v232
    %v1350 = vunpack.c.l.b16 %v233
    %v1351 = vunpack.c.h.b16 %v233
    %v1352 = vunpack.c.l.b16 %v234
    %v1353 = vunpack.c.h.b16 %v234
    %v1354 = vunpack.c.l.b16 %v235
    %v1355 = vunpack.c.h.b16 %v235
    %v1356 = vunpack.c.l.b16 %v236
    %v1357 = vunpack.c.h.b16 %v236
    %v1358 = vunpack.c.l.b16 %v237
    %v1359 = vunpack.c.h.b16 %v237
    %v1360 = vunpack.c.l.b16 %v238
    %v1361 = vunpack.c.h.b16 %v238
    %v1362 = vunpack.c.l.b16 %v239
    %v1363 = vunpack.c.h.b16 %v239
    %v1364 = vunpack.c.l.b16 %v240
    %v1365 = vunpack.c.h.b16 %v240
    %v1366 = vunpack.c.l.b16 %v241
    %v1367 = vunpack.c.h.b16 %v241
    %v1368 = vunpack.c.l.b16 %v242
    %v1369 = vunpack.c.h.b16 %v242
    %v1370 = vunpack.c.l.b16 %v243
    %v1371 = vunpack.c.h.b16 %v243
    %v1372 = vunpack.c.l.b16 %v244
    %v1373 = vunpack.c.h.b16 %v244
    %v1374 = vunpack.c.l.b16 %v245
    %v1375 = vunpack.c.h.b16 %v245
    %v1376 = vunpack.c.l.b16 %v246
    %v1377 = vunpack.c.h.b16 %v246
    %v1378 = vunpack.c.l.b16 %v247
    %v1379 = vunpack.c.h.b16 %v247
    %v1380 = vunpack.c.l.b16 %v248
    %v1381 = vunpack.c.h.b16 %v248
    %v1382 = vunpack.c.l.b16 %v249
    %v1383 = vunpack.c.h.b16 %v249
    %v1384 = vunpack.c.l.b16 %v250
    %v1385 = vunpack.c.h.b16 %v250
    %v1386 = vunpack.c.l.b16 %v251
    %v1387 = vunpack.c.h.b16 %v251
    %v1388 = vunpack.c.l.b16 %v252
    %v1389 = vunpack.c.h.b16 %v252
    %v1390 = vunpack.c.l.b16 %v253
    %v1391 = vunpack.c.h.b16 %v253
    %v1392 = vunpack.c.l.b16 %v254
    %v1393 = vunpack.c.h.b16 %v254
    %v1394 = vunpack.c.l.b16 %v255
    %v1395 = vunpack.c.h.b16 %v255
    %v1396 = vunpack.c.l.b16 %v256
    %v1397 = vunpack.c.h.b16 %v256
    %v1398 = vunpack.c.l.b16 %v257
    %v1399 = vunpack.c.h.b16 %v257
    %v1400 = vunpack.c.l.b16 %v258
    %v1401 = vunpack.c.h.b16 %v258
    %v1402 = vunpack.c.l.b16 %v259
    %v1403 = vunpack.c.h.b16 %v259
    %v1404 = vunpack.c.l.b16 %v260
    %v1405 = vunpack.c.h.b16 %v260
    %v1406 = vunpack.c.l.b16 %v261
    %v1407 = vunpack.c.h.b16 %v261
    %v1408 = vunpack.c.l.b16 %v262
    %v1409 = vunpack.c.h.b16 %v262
    %v1410 = vunpack.c.l.b16 %v263
    %v1411 = vunpack.c.h.b16 %v263
    %v1412 = vunpack.c.l.b16 %v264
    %v1413 = vunpack.c.h.b16 %v264
    %v1414 = vunpack.c.l.b16 %v265
    %v1415 = vunpack.c.h.b16 %v265
    %v1416 = vunpack.c.l.b16 %v266
    %v1417 = vunpack.c.h.b16 %v266
    %v1418 = vunpack.c.l.b16 %v267
    %v1419 = vunpack.c.h.b16 %v267
    %v1420 = vunpack.c.l.b16 %v268
    %v1421 = vunpack.c.h.b16 %v268
    %v1422 = vunpack.c.l.b16 %v269
    %v1423 = vunpack.c.h.b16 %v269
    %v1424 = vunpack.c.l.b16 %v270
    %v1425 = vunpack.c.h.b16 %v270
    %v1426 = vunpack.c.l.b16 %v271
    %v1427 = vunpack.c.h.b16 %v271
    %v1428 = vunpack.c.l.b16 %v272
    %v1429 = vunpack.c.h.b16 %v272
    %v1430 = vunpack.c.l.b16 %v273
    %v1431 = vunpack.c.h.b16 %v273
    %v1432 = vunpack.c.l.b16 %v274
    %v1433 = vunpack.c.h.b16 %v274
    %v1434 = vunpack.c.l.b16 %v275
    %v1435 = vunpack.c.h.b16 %v275
    %v1436 = vunpack.c.l.b16 %v276
    %v1437 = vunpack.c.h.b16 %v276
    %v1438 = vunpack.c.l.b16 %v277
    %v1439 = vunpack.c.h.b16 %v277
    %v1440 = vunpack.c.l.b16 %v278
    %v1441 = vunpack.c.h.b16 %v278
    %v1442 = vunpack.c.l.b16 %v279
    %v1443 = vunpack.c.h.b16 %v279
    %v1444 = vunpack.c.l.b16 %v280
    %v1445 = vunpack.c.h.b16 %v280
    %v1446 = vunpack.c.l.b16 %v281
    %v1447 = vunpack.c.h.b16 %v281
    %v1448 = vunpack.c.l.b16 %v282
    %v1449 = vunpack.c.h.b16 %v282
    %v1450 = vunpack.c.l.b16 %v283
    %v1451 = vunpack.c.h.b16 %v283
    %v1452 = vunpack.c.l.b16 %v284
    %v1453 = vunpack.c.h.b16 %v284
    %v1454 = vunpack.c.l.b16 %v285
    %v1455 = vunpack.c.h.b16 %v285
    %v1456 = vunpack.c.l.b16 %v286
    %v1457 = vunpack.c.h.b16 %v286
    %v1458 = vunpack.c.l.b16 %v287
    %v1459 = vunpack.c.h.b16 %v287
    %v1460 = vunpack.c.l.b16 %v288
    %v1461 = vunpack.c.h.b16 %v288
    %v1462 = vunpack.c.l.b16 %v289
    %v1463 = vunpack.c.h.b16 %v289
    %v1464 = vunpack.c.l.b16 %v290
    %v1465 = vunpack.c.h.b16 %v290
    %v1466 = vunpack.c.l.b16 %v291
    %v1467 = vunpack.c.h.b16 %v291
    %v1468 = vunpack.c.l.b16 %v292
    %v1469 = vunpack.c.h.b16 %v292
    %v1470 = vunpack.c.l.b16 %v293
    %v1471 = vunpack.c.h.b16 %v293
    %v1472 = vunpack.c.l.b16 %v294
    %v1473 = vunpack.c.h.b16 %v294
    %v1474 = vunpack.c.l.b16 %v295
    %v1475 = vunpack.c.h.b16 %v295
    %v1476 = vunpack.c.l.b16 %v296
    %v1477 = vunpack.c.h.b16 %v296
    %v1478 = vunpack.c.l.b16 %v297
    %v1479 = vunpack.c.h.b16 %v297
    %v1480 = vunpack.c.l.b16 %v298
    %v1481 = vunpack.c.h.b16 %v298
    %v1482 = vunpack.c.l.b16 %v299
    %v1483 = vunpack.c.h.b16 %v299
    %v1484 = vunpack.c.l.b16 %v300
    %v1485 = vunpack.c.h.b16 %v300
    %v1486 = vunpack.c.l.b16 %v301
    %v1487 = vunpack.c.h.b16 %v301
    %v1488 = vunpack.c.l.b16 %v302
    %v1489 = vunpack.c.h.b16 %v302
    %v1490 = vunpack.c.l.b16 %v303
    %v1491 = vunpack.c.h.b16 %v303
    %v1492 = vunpack.c.l.b16 %v304
    %v1493 = vunpack.c.h.b16 %v304
    %v1494 = vunpack.c.l.b16 %v305
    %v1495 = vunpack.c.h.b16 %v305
    %v1496 = vunpack.c.l.b16 %v306
    %v1497 = vunpack.c.h.b16 %v306
    %v1498 = vunpack.c.l.b16 %v307
    %v1499 = vunpack.c.h.b16 %v307
    %v1500 = vunpack.c.l.b16 %v308
    %v1501 = vunpack.c.h.b16 %v308
    %v1502 = vunpack.c.l.b16 %v309
    %v1503 = vunpack.c.h.b16 %v309
    %v1504 = vunpack.c.l.b16 %v310
    %v1505 = vunpack.c.h.b16 %v310
    %v1506 = vunpack.c.l.b16 %v311
    %v1507 = vunpack.c.h.b16 %v311
    %v1508 = vunpack.c.l.b16 %v312
    %v1509 = vunpack.c.h.b16 %v312
    %v1510 = vunpack.c.l.b16 %v313
    %v1511 = vunpack.c.h.b16 %v313
    %v1512 = vunpack.c.l.b16 %v314
    %v1513 = vunpack.c.h.b16 %v314
    %v1514 = vunpack.c.l.b16 %v315
    %v1515 = vunpack.c.h.b16 %v315
    %v1516 = vunpack.c.l.b16 %v316
    %v1517 = vunpack.c.h.b16 %v316
    %v1518 = vunpack.c.l.b16 %v317
    %v1519 = vunpack.c.h.b16 %v317
    %v1520 = vunpack.c.l.b16 %v318
    %v1521 = vunpack.c.h.b16 %v318
    %v1522 = vunpack.c.l.b16 %v319
    %v1523 = vunpack.c.h.b16 %v319
    %v1524 = vunpack.c.l.b16 %v320
    %v1525 = vunpack.c.h.b16 %v320
    %v1526 = vunpack.c.l.b16 %v321
    %v1527 = vunpack.c.h.b16 %v321
    %v1528 = vunpack.c.l.b16 %v322
    %v1529 = vunpack.c.h.b16 %v322
    %v1530 = vunpack.c.l.b16 %v323
    %v1531 = vunpack.c.h.b16 %v323
    %v1532 = vunpack.c.l.b16 %v324
    %v1533 = vunpack.c.h.b16 %v324
    %v1534 = vunpack.c.l.b16 %v325
    %v1535 = vunpack.c.h.b16 %v325
    %v1536 = vunpack.c.l.b16 %v326
    %v1537 = vunpack.c.h.b16 %v326
    %v1538 = vunpack.c.l.b16 %v327
    %v1539 = vunpack.c.h.b16 %v327
    %v1540 = vunpack.c.l.b16 %v328
    %v1541 = vunpack.c.h.b16 %v328
    %v1542 = vunpack.c.l.b16 %v329
    %v1543 = vunpack.c.h.b16 %v329
    %v1544 = vunpack.c.l.b16 %v330
    %v1545 = vunpack.c.h.b16 %v330
    %v1546 = vunpack.c.l.b16 %v331
    %v1547 = vunpack.c.h.b16 %v331
    %v1548 = vunpack.c.l.b16 %v332
    %v1549 = vunpack.c.h.b16 %v332
    %v1550 = vunpack.c.l.b16 %v333
    %v1551 = vunpack.c.h.b16 %v333
    %v1552 = vunpack.c.l.b16 %v334
    %v1553 = vunpack.c.h.b16 %v334
    %v1554 = vunpack.c.l.b16 %v335
    %v1555 = vunpack.c.h.b16 %v335
    %v1556 = vunpack.c.l.b16 %v336
    %v1557 = vunpack.c.h.b16 %v336
    %v1558 = vunpack.c.l.b16 %v337
    %v1559 = vunpack.c.h.b16 %v337
    %v1560 = vunpack.c.l.b16 %v338
    %v1561 = vunpack.c.h.b16 %v338
    %v1562 = vunpack.c.l.b16 %v339
    %v1563 = vunpack.c.h.b16 %v339
    %v1564 = vunpack.c.l.b16 %v340
    %v1565 = vunpack.c.h.b16 %v340
    %v1566 = vunpack.c.l.b16 %v341
    %v1567 = vunpack.c.h.b16 %v341
    %v1568 = vunpack.c.l.b16 %v342
    %v1569 = vunpack.c.h.b16 %v342
    %v1570 = vunpack.c.l.b16 %v343
    %v1571 = vunpack.c.h.b16 %v343
    %v1572 = vunpack.c.l.b16 %v344
    %v1573 = vunpack.c.h.b16 %v344
    %v1574 = vunpack.c.l.b16 %v345
    %v1575 = vunpack.c.h.b16 %v345
    %v1576 = vunpack.c.l.b16 %v346
    %v1577 = vunpack.c.h.b16 %v346
    %v1578 = vunpack.c.l.b16 %v347
    %v1579 = vunpack.c.h.b16 %v347
    %v1580 = vunpack.c.l.b16 %v348
    %v1581 = vunpack.c.h.b16 %v348
    %v1582 = vunpack.c.l.b16 %v349
    %v1583 = vunpack.c.h.b16 %v349
    %v1584 = vunpack.c.l.b16 %v350
    %v1585 = vunpack.c.h.b16 %v350
    %v1586 = vunpack.c.l.b16 %v351
    %v1587 = vunpack.c.h.b16 %v351
    %v1588 = vunpack.c.l.b16 %v352
    %v1589 = vunpack.c.h.b16 %v352
    %v1590 = vunpack.c.l.b16 %v353
    %v1591 = vunpack.c.h.b16 %v353
    %v1592 = vunpack.c.l.b16 %v354
    %v1593 = vunpack.c.h.b16 %v354
    %v1594 = vunpack.c.l.b16 %v355
    %v1595 = vunpack.c.h.b16 %v355
    %v1596 = vunpack.c.l.b16 %v356
    %v1597 = vunpack.c.h.b16 %v356
    %v1598 = vunpack.c.l.b16 %v357
    %v1599 = vunpack.c.h.b16 %v357
    %v1600 = vunpack.c.l.b16 %v358
    %v1601 = vunpack.c.h.b16 %v358
    %v1602 = vunpack.c.l.b16 %v359
    %v1603 = vunpack.c.h.b16 %v359
    %v1604 = vunpack.c.l.b16 %v360
    %v1605 = vunpack.c.h.b16 %v360
    %v1606 = vunpack.c.l.b16 %v361
    %v1607 = vunpack.c.h.b16 %v361
    %v1608 = vunpack.c.l.b16 %v362
    %v1609 = vunpack.c.h.b16 %v362
    %v1610 = vunpack.c.l.b16 %v363
    %v1611 = vunpack.c.h.b16 %v363
    %v1612 = vunpack.c.l.b16 %v364
    %v1613 = vunpack.c.h.b16 %v364
    %v1614 = vunpack.c.l.b16 %v365
    %v1615 = vunpack.c.h.b16 %v365
    %v1616 = vunpack.c.l.b16 %v366
    %v1617 = vunpack.c.h.b16 %v366
    %v1618 = vunpack.c.l.b16 %v367
    %v1619 = vunpack.c.h.b16 %v367
    %v1620 = vunpack.c.l.b16 %v368
    %v1621 = vunpack.c.h.b16 %v368
    %v1622 = vunpack.c.l.b16 %v369
    %v1623 = vunpack.c.h.b16 %v369
    %v1624 = vunpack.c.l.b16 %v370
    %v1625 = vunpack.c.h.b16 %v370
    %v1626 = vunpack.c.l.b16 %v371
    %v1627 = vunpack.c.h.b16 %v371
    %v1628 = vunpack.c.l.b16 %v372
    %v1629 = vunpack.c.h.b16 %v372
    %v1630 = vunpack.c.l.b16 %v373
    %v1631 = vunpack.c.h.b16 %v373
    %v1632 = vunpack.c.l.b16 %v374
    %v1633 = vunpack.c.h.b16 %v374
    %v1634 = vunpack.c.l.b16 %v375
    %v1635 = vunpack.c.h.b16 %v375
    %v1636 = vunpack.c.l.b16 %v376
    %v1637 = vunpack.c.h.b16 %v376
    %v1638 = vunpack.c.l.b16 %v377
    %v1639 = vunpack.c.h.b16 %v377
    %v1640 = vunpack.c.l.b16 %v378
    %v1641 = vunpack.c.h.b16 %v378
    %v1642 = vunpack.c.l.b16 %v379
    %v1643 = vunpack.c.h.b16 %v379
    %v1644 = vunpack.c.l.b16 %v380
    %v1645 = vunpack.c.h.b16 %v380
    %v1646 = vunpack.c.l.b16 %v381
    %v1647 = vunpack.c.h.b16 %v381
    %v1648 = vunpack.c.l.b16 %v382
    %v1649 = vunpack.c.h.b16 %v382
    %v1650 = vunpack.c.l.b16 %v383
    %v1651 = vunpack.c.h.b16 %v383
    %v1652 = vunpack.c.l.b16 %v384
    %v1653 = vunpack.c.h.b16 %v384
    %v1654 = vunpack.c.l.b16 %v385
    %v1655 = vunpack.c.h.b16 %v385
    %v1656 = vunpack.c.l.b16 %v386
    %v1657 = vunpack.c.h.b16 %v386
    %v1658 = vunpack.c.l.b16 %v387
    %v1659 = vunpack.c.h.b16 %v387
    %v1660 = vunpack.c.l.b16 %v388
    %v1661 = vunpack.c.h.b16 %v388
    %v1662 = vunpack.c.l.b16 %v389
    %v1663 = vunpack.c.h.b16 %v389
    %v1664 = vunpack.c.l.b16 %v390
    %v1665 = vunpack.c.h.b16 %v390
    %v1666 = vunpack.c.l.b16 %v391
    %v1667 = vunpack.c.h.b16 %v391
    %v1668 = vunpack.c.l.b16 %v392
    %v1669 = vunpack.c.h.b16 %v392
    %v1670 = vunpack.c.l.b16 %v393
    %v1671 = vunpack.c.h.b16 %v393
    %v1672 = vunpack.c.l.b16 %v394
    %v1673 = vunpack.c.h.b16 %v394
    %v1674 = vunpack.c.l.b16 %v395
    %v1675 = vunpack.c.h.b16 %v395
    %v1676 = vunpack.c.l.b16 %v396
    %v1677 = vunpack.c.h.b16 %v396
    %v1678 = vunpack.c.l.b16 %v397
    %v1679 = vunpack.c.h.b16 %v397
    %v1680 = vunpack.c.l.b16 %v398
    %v1681 = vunpack.c.h.b16 %v398
    %v1682 = vunpack.c.l.b16 %v399
    %v1683 = vunpack.c.h.b16 %v399
    %v1684 = vunpack.c.l.b16 %v400
    %v1685 = vunpack.c.h.b16 %v400
    %v1686 = vunpack.c.l.b16 %v401
    %v1687 = vunpack.c.h.b16 %v401
    %v1688 = vunpack.c.l.b16 %v402
    %v1689 = vunpack.c.h.b16 %v402
    %v1690 = vunpack.c.l.b16 %v403
    %v1691 = vunpack.c.h.b16 %v403
    %v1692 = vunpack.c.l.b16 %v404
    %v1693 = vunpack.c.h.b16 %v404
    %v1694 = vunpack.c.l.b16 %v405
    %v1695 = vunpack.c.h.b16 %v405
    %v1696 = vunpack.c.l.b16 %v406
    %v1697 = vunpack.c.h.b16 %v406
    %v1698 = vunpack.c.l.b16 %v407
    %v1699 = vunpack.c.h.b16 %v407
    %v1700 = vunpack.c.l.b16 %v408
    %v1701 = vunpack.c.h.b16 %v408
    %v1702 = vunpack.c.l.b16 %v409
    %v1703 = vunpack.c.h.b16 %v409
    %v1704 = vunpack.c.l.b16 %v410
    %v1705 = vunpack.c.h.b16 %v410
    %v1706 = vunpack.c.l.b16 %v411
    %v1707 = vunpack.c.h.b16 %v411
    %v1708 = vunpack.c.l.b16 %v412
    %v1709 = vunpack.c.h.b16 %v412
    %v1710 = vunpack.c.l.b16 %v413
    %v1711 = vunpack.c.h.b16 %v413
    %v1712 = vunpack.c.l.b16 %v414
    %v1713 = vunpack.c.h.b16 %v414
    %v1714 = vunpack.c.l.b16 %v415
    %v1715 = vunpack.c.h.b16 %v415
    %v1716 = vpack.c.b16 %v936, %v932
    %v1717 = vpack.c.b16 %v937, %v933
    %v1718 = vpack.c.b16 %v938, %v934
    %v1719 = vpack.c.b16 %v939, %v935
    %v1720 = vpack.c.b16 %v944, %v940
    %v1721 = vpack.c.b16 %v945, %v941
    %v1722 = vpack.c.b16 %v946, %v942
    %v1723 = vpack.c.b16 %v947, %v943
    %v1724 = vpack.c.b16 %v952, %v948
    %v1725 = vpack.c.b16 %v953, %v949
    %v1726 = vpack.c.b16 %v954, %v950
    %v1727 = vpack.c.b16 %v955, %v951
    %v1728 = vpack.c.b16 %v960, %v956
    %v1729 = vpack.c.b16 %v961, %v957
    %v1730 = vpack.c.b16 %v962, %v958
    %v1731 = vpack.c.b16 %v963, %v959
    %v1732 = vpack.c.b16 %v968, %v964
    %v1733 = vpack.c.b16 %v969, %v965
    %v1734 = vpack.c.b16 %v970, %v966
    %v1735 = vpack.c.b16 %v971, %v967
    %v1736 = vpack.c.b16 %v976, %v972
    %v1737 = vpack.c.b16 %v977, %v973
    %v1738 = vpack.c.b16 %v978, %v974
    %v1739 = vpack.c.b16 %v979, %v975
    %v1740 = vpack.c.b16 %v984, %v980
    %v1741 = vpack.c.b16 %v985, %v981
    %v1742 = vpack.c.b16 %v986, %v982
    %v1743 = vpack.c.b16 %v987, %v983
    %v1744 = vpack.c.b16 %v992, %v988
    %v1745 = vpack.c.b16 %v993, %v989
    %v1746 = vpack.c.b16 %v994, %v990
    %v1747 = vpack.c.b16 %v995, %v991
    %v1748 = vpack.c.b16 %v1000, %v996
    %v1749 = vpack.c.b16 %v1001, %v997
    %v1750 = vpack.c.b16 %v1002, %v998
    %v1751 = vpack.c.b16 %v1003, %v999
    %v1752 = vpack.c.b16 %v1008, %v1004
    %v1753 = vpack.c.b16 %v1009, %v1005
    %v1754 = vpack.c.b16 %v1010, %v1006
    %v1755 = vpack.c.b16 %v1011, %v1007
    %v1756 = vpack.c.b16 %v1016, %v1012
    %v1757 = vpack.c.b16 %v1017, %v1013
    %v1758 = vpack.c.b16 %v1018, %v1014
    %v1759 = vpack.c.b16 %v1019, %v1015
    %v1760 = vpack.c.b16 %v1024, %v1020
    %v1761 = vpack.c.b16 %v1025, %v1021
    %v1762 = vpack.c.b16 %v1026, %v1022
    %v1763 = vpack.c.b16 %v1027, %v1023
    %v1764 = vpack.c.b16 %v1032, %v1028
    %v1765 = vpack.c.b16 %v1033, %v1029
    %v1766 = vpack.c.b16 %v1034, %v1030
    %v1767 = vpack.c.b16 %v1035, %v1031
    %v1768 = vpack.c.b16 %v1040, %v1036
    %v1769 = vpack.c.b16 %v1041, %v1037
    %v1770 = vpack.c.b16 %v1042, %v1038
    %v1771 = vpack.c.b16 %v1043, %v1039
    %v1772 = vpack.c.b16 %v1048, %v1044
    %v1773 = vpack.c.b16 %v1049, %v1045
    %v1774 = vpack.c.b16 %v1050, %v1046
    %v1775 = vpack.c.b16 %v1051, %v1047
    %v1776 = vpack.c.b16 %v1056, %v1052
    %v1777 = vpack.c.b16 %v1057, %v1053
    %v1778 = vpack.c.b16 %v1058, %v1054
    %v1779 = vpack.c.b16 %v1059, %v1055
    %v1780 = vpack.c.b16 %v1064, %v1060
    %v1781 = vpack.c.b16 %v1065, %v1061
    %v1782 = vpack.c.b16 %v1066, %v1062
    %v1783 = vpack.c.b16 %v1067, %v1063
    %v1784 = vpack.c.b16 %v1072, %v1068
    %v1785 = vpack.c.b16 %v1073, %v1069
    %v1786 = vpack.c.b16 %v1074, %v1070
    %v1787 = vpack.c.b16 %v1075, %v1071
    %v1788 = vpack.c.b16 %v1080, %v1076
    %v1789 = vpack.c.b16 %v1081, %v1077
    %v1790 = vpack.c.b16 %v1082, %v1078
    %v1791 = vpack.c.b16 %v1083, %v1079
    %v1792 = vpack.c.b16 %v1088, %v1084
    %v1793 = vpack.c.b16 %v1089, %v1085
    %v1794 = vpack.c.b16 %v1090, %v1086
    %v1795 = vpack.c.b16 %v1091, %v1087
    %v1796 = vpack.c.b16 %v1096, %v1092
    %v1797 = vpack.c.b16 %v1097, %v1093
    %v1798 = vpack.c.b16 %v1098, %v1094
    %v1799 = vpack.c.b16 %v1099, %v1095
    %v1800 = vpack.c.b16 %v1104, %v1100
    %v1801 = vpack.c.b16 %v1105, %v1101
    %v1802 = vpack.c.b16 %v1106, %v1102
    %v1803 = vpack.c.b16 %v1107, %v1103
    %v1804 = vpack.c.b16 %v1112, %v1108
    %v1805 = vpack.c.b16 %v1113, %v1109
    %v1806 = vpack.c.b16 %v1114, %v1110
    %v1807 = vpack.c.b16 %v1115, %v1111
    %v1808 = vpack.c.b16 %v1120, %v1116
    %v1809 = vpack.c.b16 %v1121, %v1117
    %v1810 = vpack.c.b16 %v1122, %v1118
    %v1811 = vpack.c.b16 %v1123, %v1119
    %v1812 = vpack.c.b16 %v1128, %v1124
    %v1813 = vpack.c.b16 %v1129, %v1125
    %v1814 = vpack.c.b16 %v1130, %v1126
    %v1815 = vpack.c.b16 %v1131, %v1127
    %v1816 = vpack.c.b16 %v1136, %v1132
    %v1817 = vpack.c.b16 %v1137, %v1133
    %v1818 = vpack.c.b16 %v1138, %v1134
    %v1819 = vpack.c.b16 %v1139, %v1135
    %v1820 = vpack.c.b16 %v1144, %v1140
    %v1821 = vpack.c.b16 %v1145, %v1141
    %v1822 = vpack.c.b16 %v1146, %v1142
    %v1823 = vpack.c.b16 %v1147, %v1143
    %v1824 = vpack.c.b16 %v1152, %v1148
    %v1825 = vpack.c.b16 %v1153, %v1149
    %v1826 = vpack.c.b16 %v1154, %v1150
    %v1827 = vpack.c.b16 %v1155, %v1151
    %v1828 = vpack.c.b16 %v1160, %v1156
    %v1829 = vpack.c.b16 %v1161, %v1157
    %v1830 = vpack.c.b16 %v1162, %v1158
    %v1831 = vpack.c.b16 %v1163, %v1159
    %v1832 = vpack.c.b16 %v1168, %v1164
    %v1833 = vpack.c.b16 %v1169, %v1165
    %v1834 = vpack.c.b16 %v1170, %v1166
    %v1835 = vpack.c.b16 %v1171, %v1167
    %v1836 = vpack.c.b16 %v1176, %v1172
    %v1837 = vpack.c.b16 %v1177, %v1173
    %v1838 = vpack.c.b16 %v1178, %v1174
    %v1839 = vpack.c.b16 %v1179, %v1175
    %v1840 = vpack.c.b16 %v1184, %v1180
    %v1841 = vpack.c.b16 %v1185, %v1181
    %v1842 = vpack.c.b16 %v1186, %v1182
    %v1843 = vpack.c.b16 %v1187, %v1183
    %v1844 = vpack.c.b16 %v1192, %v1188
    %v1845 = vpack.c.b16 %v1193, %v1189
    %v1846 = vpack.c.b16 %v1194, %v1190
    %v1847 = vpack.c.b16 %v1195, %v1191
    %v1848 = vpack.c.b16 %v1200, %v1196
    %v1849 = vpack.c.b16 %v1201, %v1197
    %v1850 = vpack.c.b16 %v1202, %v1198
    %v1851 = vpack.c.b16 %v1203, %v1199
    %v1852 = vpack.c.b16 %v1208, %v1204
    %v1853 = vpack.c.b16 %v1209, %v1205
    %v1854 = vpack.c.b16 %v1210, %v1206
    %v1855 = vpack.c.b16 %v1211, %v1207
    %v1856 = vpack.c.b16 %v1216, %v1212
    %v1857 = vpack.c.b16 %v1217, %v1213
    %v1858 = vpack.c.b16 %v1218, %v1214
    %v1859 = vpack.c.b16 %v1219, %v1215
    %v1860 = vpack.c.b16 %v1224, %v1220
    %v1861 = vpack.c.b16 %v1225, %v1221
    %v1862 = vpack.c.b16 %v1226, %v1222
    %v1863 = vpack.c.b16 %v1227, %v1223
    %v1864 = vpack.c.b16 %v1232, %v1228
    %v1865 = vpack.c.b16 %v1233, %v1229
    %v1866 = vpack.c.b16 %v1234, %v1230
    %v1867 = vpack.c.b16 %v1235, %v1231
    %v1868 = vpack.c.b16 %v1240, %v1236
    %v1869 = vpack.c.b16 %v1241, %v1237
    %v1870 = vpack.c.b16 %v1242, %v1238
    %v1871 = vpack.c.b16 %v1243, %v1239
    %v1872 = vpack.c.b16 %v1248, %v1244
    %v1873 = vpack.c.b16 %v1249, %v1245
    %v1874 = vpack.c.b16 %v1250, %v1246
    %v1875 = vpack.c.b16 %v1251, %v1247
    %v1876 = vpack.c.b16 %v1256, %v1252
    %v1877 = vpack.c.b16 %v1257, %v1253
    %v1878 = vpack.c.b16 %v1258, %v1254
    %v1879 = vpack.c.b16 %v1259, %v1255
    %v1880 = vpack.c.b16 %v1264, %v1260
    %v1881 = vpack.c.b16 %v1265, %v1261
    %v1882 = vpack.c.b16 %v1266, %v1262
    %v1883 = vpack.c.b16 %v1267, %v1263
    %v1884 = vpack.c.b16 %v1272, %v1268
    %v1885 = vpack.c.b16 %v1273, %v1269
    %v1886 = vpack.c.b16 %v1274, %v1270
    %v1887 = vpack.c.b16 %v1275, %v1271
    %v1888 = vpack.c.b16 %v1280, %v1276
    %v1889 = vpack.c.b16 %v1281, %v1277
    %v1890 = vpack.c.b16 %v1282, %v1278
    %v1891 = vpack.c.b16 %v1283, %v1279
    %v1892 = vpack.c.b16 %v1288, %v1284
    %v1893 = vpack.c.b16 %v1289, %v1285
    %v1894 = vpack.c.b16 %v1290, %v1286
    %v1895 = vpack.c.b16 %v1291, %v1287
    %v1896 = vpack.c.b16 %v1296, %v1292
    %v1897 = vpack.c.b16 %v1297, %v1293
    %v1898 = vpack.c.b16 %v1298, %v1294
    %v1899 = vpack.c.b16 %v1299, %v1295
    %v1900 = vpack.c.b16 %v1304, %v1300
    %v1901 = vpack.c.b16 %v1305, %v1301
    %v1902 = vpack.c.b16 %v1306, %v1302
    %v1903 = vpack.c.b16 %v1307, %v1303
    %v1904 = vpack.c.b16 %v1312, %v1308
    %v1905 = vpack.c.b16 %v1313, %v1309
    %v1906 = vpack.c.b16 %v1314, %v1310
    %v1907 = vpack.c.b16 %v1315, %v1311
    %v1908 = vpack.c.b16 %v1320, %v1316
    %v1909 = vpack.c.b16 %v1321, %v1317
    %v1910 = vpack.c.b16 %v1322, %v1318
    %v1911 = vpack.c.b16 %v1323, %v1319
    %v1912 = vpack.c.b16 %v1328, %v1324
    %v1913 = vpack.c.b16 %v1329, %v1325
    %v1914 = vpack.c.b16 %v1330, %v1326
    %v1915 = vpack.c.b16 %v1331, %v1327
    %v1916 = vpack.c.b16 %v1336, %v1332
    %v1917 = vpack.c.b16 %v1337, %v1333
    %v1918 = vpack.c.b16 %v1338, %v1334
    %v1919 = vpack.c.b16 %v1339, %v1335
    %v1920 = vpack.c.b16 %v1344, %v1340
    %v1921 = vpack.c.b16 %v1345, %v1341
    %v1922 = vpack.c.b16 %v1346, %v1342
    %v1923 = vpack.c.b16 %v1347, %v1343
    %v1924 = vpack.c.b16 %v1352, %v1348
    %v1925 = vpack.c.b16 %v1353, %v1349
    %v1926 = vpack.c.b16 %v1354, %v1350
    %v1927 = vpack.c.b16 %v1355, %v1351
    %v1928 = vpack.c.b16 %v1360, %v1356
    %v1929 = vpack.c.b16 %v1361, %v1357
    %v1930 = vpack.c.b16 %v1362, %v1358
    %v1931 = vpack.c.b16 %v1363, %v1359
    %v1932 = vpack.c.b16 %v1368, %v1364
    %v1933 = vpack.c.b16 %v1369, %v1365
    %v1934 = vpack.c.b16 %v1370, %v1366
    %v1935 = vpack.c.b16 %v1371, %v1367
    %v1936 = vpack.c.b16 %v1376, %v1372
    %v1937 = vpack.c.b16 %v1377, %v1373
    %v1938 = vpack.c.b16 %v1378, %v1374
    %v1939 = vpack.c.b16 %v1379, %v1375
    %v1940 = vpack.c.b16 %v1384, %v1380
    %v1941 = vpack.c.b16 %v1385, %v1381
    %v1942 = vpack.c.b16 %v1386, %v1382
    %v1943 = vpack.c.b16 %v1387, %v1383
    %v1944 = vpack.c.b16 %v1392, %v1388
    %v1945 = vpack.c.b16 %v1393, %v1389
    %v1946 = vpack.c.b16 %v1394, %v1390
    %v1947 = vpack.c.b16 %v1395, %v1391
    %v1948 = vpack.c.b16 %v1400, %v1396
    %v1949 = vpack.c.b16 %v1401, %v1397
    %v1950 = vpack.c.b16 %v1402, %v1398
    %v1951 = vpack.c.b16 %v1403, %v1399
    %v1952 = vpack.c.b16 %v1408, %v1404
    %v1953 = vpack.c.b16 %v1409, %v1405
    %v1954 = vpack.c.b16 %v1410, %v1406
    %v1955 = vpack.c.b16 %v1411, %v1407
    %v1956 = vpack.c.b16 %v1416, %v1412
    %v1957 = vpack.c.b16 %v1417, %v1413
    %v1958 = vpack.c.b16 %v1418, %v1414
    %v1959 = vpack.c.b16 %v1419, %v1415
    %v1960 = vpack.c.b16 %v1424, %v1420
    %v1961 = vpack.c.b16 %v1425, %v1421
    %v1962 = vpack.c.b16 %v1426, %v1422
    %v1963 = vpack.c.b16 %v1427, %v1423
    %v1964 = vpack.c.b16 %v1432, %v1428
    %v1965 = vpack.c.b16 %v1433, %v1429
    %v1966 = vpack.c.b16 %v1434, %v1430
    %v1967 = vpack.c.b16 %v1435, %v1431
    %v1968 = vpack.c.b16 %v1440, %v1436
    %v1969 = vpack.c.b16 %v1441, %v1437
    %v1970 = vpack.c.b16 %v1442, %v1438
    %v1971 = vpack.c.b16 %v1443, %v1439
    %v1972 = vpack.c.b16 %v1448, %v1444
    %v1973 = vpack.c.b16 %v1449, %v1445
    %v1974 = vpack.c.b16 %v1450, %v1446
    %v1975 = vpack.c.b16 %v1451, %v1447
    %v1976 = vpack.c.b16 %v1456, %v1452
    %v1977 = vpack.c.b16 %v1457, %v1453
    %v1978 = vpack.c.b16 %v1458, %v1454
    %v1979 = vpack.c.b16 %v1459, %v1455
    %v1980 = vpack.c.b16 %v1464, %v1460
    %v1981 = vpack.c.b16 %v1465, %v1461
    %v1982 = vpack.c.b16 %v1466, %v1462
    %v1983 = vpack.c.b16 %v1467, %v1463
    %v1984 = vpack.c.b16 %v1472, %v1468
    %v1985 = vpack.c.b16 %v1473, %v1469
    %v1986 = vpack.c.b16 %v1474, %v1470
    %v1987 = vpack.c.b16 %v1475, %v1471
    %v1988 = vpack.c.b16 %v1480, %v1476
    %v1989 = vpack.c.b16 %v1481, %v1477
    %v1990 = vpack.c.b16 %v1482, %v1478
    %v1991 = vpack.c.b16 %v1483, %v1479
    %v1992 = vpack.c.b16 %v1488, %v1484
    %v1993 = vpack.c.b16 %v1489, %v1485
    %v1994 = vpack.c.b16 %v1490, %v1486
    %v1995 = vpack.c.b16 %v1491, %v1487
    %v1996 = vpack.c.b16 %v1496, %v1492
    %v1997 = vpack.c.b16 %v1497, %v1493
    %v1998 = vpack.c.b16 %v1498, %v1494
    %v1999 = vpack.c.b16 %v1499, %v1495
    %v2000 = vpack.c.b16 %v1504, %v1500
    %v2001 = vpack.c.b16 %v1505, %v1501
    %v2002 = vpack.c.b16 %v1506, %v1502
    %v2003 = vpack.c.b16 %v1507, %v1503
    %v2004 = vpack.c.b16 %v1512, %v1508
    %v2005 = vpack.c.b16 %v1513, %v1509
    %v2006 = vpack.c.b16 %v1514, %v1510
    %v2007 = vpack.c.b16 %v1515, %v1511
    %v2008 = vpack.c.b16 %v1520, %v1516
    %v2009 = vpack.c.b16 %v1521, %v1517
    %v2010 = vpack.c.b16 %v1522, %v1518
    %v2011 = vpack.c.b16 %v1523, %v1519
    %v2012 = vpack.c.b16 %v1528, %v1524
    %v2013 = vpack.c.b16 %v1529, %v1525
    %v2014 = vpack.c.b16 %v1530, %v1526
    %v2015 = vpack.c.b16 %v1531, %v1527
    %v2016 = vpack.c.b16 %v1536, %v1532
    %v2017 = vpack.c.b16 %v1537, %v1533
    %v2018 = vpack.c.b16 %v1538, %v1534
    %v2019 = vpack.c.b16 %v1539, %v1535
    %v2020 = vpack.c.b16 %v1544, %v1540
    %v2021 = vpack.c.b16 %v1545, %v1541
    %v2022 = vpack.c.b16 %v1546, %v1542
    %v2023 = vpack.c.b16 %v1547, %v1543
    %v2024 = vpack.c.b16 %v1552, %v1548
    %v2025 = vpack.c.b16 %v1553, %v1549
    %v2026 = vpack.c.b16 %v1554, %v1550
    %v2027 = vpack.c.b16 %v1555, %v1551
    %v2028 = vpack.c.b16 %v1560, %v1556
    %v2029 = vpack.c.b16 %v1561, %v1557
    %v2030 = vpack.c.b16 %v1562, %v1558
    %v2031 = vpack.c.b16 %v1563, %v1559
    %v2032 = vpack.c.b16 %v1568, %v1564
    %v2033 = vpack.c.b16 %v1569, %v1565
    %v2034 = vpack.c.b16 %v1570, %v1566
    %v2035 = vpack.c.b16 %v1571, %v1567
    %v2036 = vpack.c.b16 %v1576, %v1572
    %v2037 = vpack.c.b16 %v1577, %v1573
    %v2038 = vpack.c.b16 %v1578, %v1574
    %v2039 = vpack.c.b16 %v1579, %v1575
    %v2040 = vpack.c.b16 %v1584, %v1580
    %v2041 = vpack.c.b16 %v1585, %v1581
    %v2042 = vpack.c.b16 %v1586, %v1582
    %v2043 = vpack.c.b16 %v1587, %v1583
    %v2044 = vpack.c.b16 %v1592, %v1588
    %v2045 = vpack.c.b16 %v1593, %v1589
    %v2046 = vpack.c.b16 %v1594, %v1590
    %v2047 = vpack.c.b16 %v1595, %v1591
    %v2048 = vpack.c.b16 %v1600, %v1596
    %v2049 = vpack.c.b16 %v1601, %v1597
    %v2050 = vpack.c.b16 %v1602, %v1598
    %v2051 = vpack.c.b16 %v1603, %v1599
    %v2052 = vpack.c.b16 %v1608, %v1604
    %v2053 = vpack.c.b16 %v1609, %v1605
    %v2054 = vpack.c.b16 %v1610, %v1606
    %v2055 = vpack.c.b16 %v1611, %v1607
    %v2056 = vpack.c.b16 %v1616, %v1612
    %v2057 = vpack.c.b16 %v1617, %v1613
    %v2058 = vpack.c.b16 %v1618, %v1614
    %v2059 = vpack.c.b16 %v1619, %v1615
    %v2060 = vpack.c.b16 %v1624, %v1620
    %v2061 = vpack.c.b16 %v1625, %v1621
    %v2062 = vpack.c.b16 %v1626, %v1622
    %v2063 = vpack.c.b16 %v1627, %v1623
    %v2064 = vpack.c.b16 %v1632, %v1628
    %v2065 = vpack.c.b16 %v1633, %v1629
    %v2066 = vpack.c.b16 %v1634, %v1630
    %v2067 = vpack.c.b16 %v1635, %v1631
    %v2068 = vpack.c.b16 %v1640, %v1636
    %v2069 = vpack.c.b16 %v1641, %v1637
    %v2070 = vpack.c.b16 %v1642, %v1638
    %v2071 = vpack.c.b16 %v1643, %v1639
    %v2072 = vpack.c.b16 %v1648, %v1644
    %v2073 = vpack.c.b16 %v1649, %v1645
    %v2074 = vpack.c.b16 %v1650, %v1646
    %v2075 = vpack.c.b16 %v1651, %v1647
    %v2076 = vpack.c.b16 %v1656, %v1652
    %v2077 = vpack.c.b16 %v1657, %v1653
    %v2078 = vpack.c.b16 %v1658, %v1654
    %v2079 = vpack.c.b16 %v1659, %v1655
    %v2080 = vpack.c.b16 %v1664, %v1660
    %v2081 = vpack.c.b16 %v1665, %v1661
    %v2082 = vpack.c.b16 %v1666, %v1662
    %v2083 = vpack.c.b16 %v1667, %v1663
    %v2084 = vpack.c.b16 %v1672, %v1668
    %v2085 = vpack.c.b16 %v1673, %v1669
    %v2086 = vpack.c.b16 %v1674, %v1670
    %v2087 = vpack.c.b16 %v1675, %v1671
    %v2088 = vpack.c.b16 %v1680, %v1676
    %v2089 = vpack.c.b16 %v1681, %v1677
    %v2090 = vpack.c.b16 %v1682, %v1678
    %v2091 = vpack.c.b16 %v1683, %v1679
    %v2092 = vpack.c.b16 %v1688, %v1684
    %v2093 = vpack.c.b16 %v1689, %v1685
    %v2094 = vpack.c.b16 %v1690, %v1686
    %v2095 = vpack.c.b16 %v1691, %v1687
    %v2096 = vpack.c.b16 %v1696, %v1692
    %v2097 = vpack.c.b16 %v1697, %v1693
    %v2098 = vpack.c.b16 %v1698, %v1694
    %v2099 = vpack.c.b16 %v1699, %v1695
    %v2100 = vpack.c.b16 %v1704, %v1700
    %v2101 = vpack.c.b16 %v1705, %v1701
    %v2102 = vpack.c.b16 %v1706, %v1702
    %v2103 = vpack.c.b16 %v1707, %v1703
    %v2104 = vpack.c.b16 %v1712, %v1708
    %v2105 = vpack.c.b16 %v1713, %v1709
    %v2106 = vpack.c.b16 %v1714, %v1710
    %v2107 = vpack.c.b16 %v1715, %v1711
    %vm2500 = vcmask 261120
    %v2502 = vsel %vm2500, %v518, 0
    %2504 = vmatprep.subr.bf16.mxu0 %v1717
    %2505 = vmatpush1.bf16.msra.mxu0 %v1716
    %2506 = vmatprep.subr.bf16.mxu0 %v1721
    %2507 = vmatpush1.bf16.msra.mxu0 %v1720
    %2508 = vmatprep.subr.bf16.mxu0 %v1725
    %2509 = vmatpush1.bf16.msra.mxu0 %v1724
    %2510 = vmatprep.subr.bf16.mxu0 %v1729
    %2511 = vmatpush1.bf16.msra.mxu0 %v1728
    %2512 = vmatprep.subr.bf16.mxu0 %v1733
    %2513 = vmatpush1.bf16.msra.mxu0 %v1732
    %2514 = vmatprep.subr.bf16.mxu0 %v1737
    %2515 = vmatpush1.bf16.msra.mxu0 %v1736
    %2516 = vmatprep.subr.bf16.mxu0 %v1741
    %2517 = vmatpush1.bf16.msra.mxu0 %v1740
    %2518 = vmatprep.subr.bf16.mxu0 %v1745
    %2519 = vmatpush1.bf16.msra.mxu0 %v1744
    %2520 = vmatprep.subr.bf16.mxu0 %v1749
    %2521 = vmatpush1.bf16.msra.mxu0 %v1748
    %2522 = vmatprep.subr.bf16.mxu0 %v1753
    %2523 = vmatpush1.bf16.msra.mxu0 %v1752
    %2524 = vmatprep.subr.bf16.mxu0 %v1757
    %2525 = vmatpush1.bf16.msra.mxu0 %v1756
    %2526 = vmatprep.subr.bf16.mxu0 %v1761
    %2527 = vmatpush1.bf16.msra.mxu0 %v1760
    %2528 = vmatprep.subr.bf16.mxu0 %v1765
    %2529 = vmatpush1.bf16.msra.mxu0 %v1764
    %2530 = vmatprep.subr.bf16.mxu0 %v1769
    %2531 = vmatpush1.bf16.msra.mxu0 %v1768
    %2532 = vmatprep.subr.bf16.mxu0 %v1773
    %2533 = vmatpush1.bf16.msra.mxu0 %v1772
    %2534 = vmatprep.subr.bf16.mxu0 %v1777
    %2535 = vmatpush1.bf16.msra.mxu0 %v1776
    %2536 = vmatprep.mubr.bf16.mxu0 %v477
    %2537 = vmatmul.mubr.bf16.gmra.mrb[0].mxu0 %v463
    %v2538 = vpop.f32.mrb[0].mxu0
    %v2539 = vadd.f32 %v421, %v2538
    %v2540 = vpop.f32.mrb[0].mxu0
    %v2541 = vadd.f32 %v425, %v2540
    %v2542 = vpop.f32.mrb[0].mxu0
    %v2543 = vpop.f32.mrb[0].mxu0
    %2544 = vdwg.mxu0
    %2545 = vmatprep.subr.bf16.mxu0 %v1781
    %2546 = vmatpush1.bf16.msra.mxu0 %v1780
    %2547 = vmatprep.subr.bf16.mxu0 %v1785
    %2548 = vmatpush1.bf16.msra.mxu0 %v1784
    %2549 = vmatprep.subr.bf16.mxu0 %v1789
    %2550 = vmatpush1.bf16.msra.mxu0 %v1788
    %2551 = vmatprep.subr.bf16.mxu0 %v1793
    %2552 = vmatpush1.bf16.msra.mxu0 %v1792
    %2553 = vmatprep.subr.bf16.mxu0 %v1797
    %2554 = vmatpush1.bf16.msra.mxu0 %v1796
    %2555 = vmatprep.subr.bf16.mxu0 %v1801
    %2556 = vmatpush1.bf16.msra.mxu0 %v1800
    %2557 = vmatprep.subr.bf16.mxu0 %v1805
    %2558 = vmatpush1.bf16.msra.mxu0 %v1804
    %2559 = vmatprep.subr.bf16.mxu0 %v1809
    %2560 = vmatpush1.bf16.msra.mxu0 %v1808
    %2561 = vmatprep.subr.bf16.mxu0 %v1813
    %2562 = vmatpush1.bf16.msra.mxu0 %v1812
    %2563 = vmatprep.subr.bf16.mxu0 %v1817
    %2564 = vmatpush1.bf16.msra.mxu0 %v1816
    %2565 = vmatprep.subr.bf16.mxu0 %v1821
    %2566 = vmatpush1.bf16.msra.mxu0 %v1820
    %2567 = vmatprep.subr.bf16.mxu0 %v1825
    %2568 = vmatpush1.bf16.msra.mxu0 %v1824
    %2569 = vmatprep.subr.bf16.mxu0 %v1829
    %2570 = vmatpush1.bf16.msra.mxu0 %v1828
    %2571 = vmatprep.subr.bf16.mxu0 %v1833
    %2572 = vmatpush1.bf16.msra.mxu0 %v1832
    %2573 = vmatprep.subr.bf16.mxu0 %v1837
    %2574 = vmatpush1.bf16.msra.mxu0 %v1836
    %2575 = vmatprep.subr.bf16.mxu0 %v1841
    %2576 = vmatpush1.bf16.msra.mxu0 %v1840
    %2577 = vmatprep.mubr.bf16.mxu0 %v487
    %2578 = vmatmul.mubr.bf16.gmra.mrb[0].mxu0 %v485
    %v2579 = vpop.f32.mrb[0].mxu0
    %v2580 = vadd.f32 %v2539, %v2579
    %v2581 = vpop.f32.mrb[0].mxu0
    %v2582 = vadd.f32 %v2541, %v2581
    %v2583 = vpop.f32.mrb[0].mxu0
    %v2584 = vpop.f32.mrb[0].mxu0
    %2585 = vdwg.mxu0
    %2586 = vmatprep.subr.bf16.mxu0 %v1845
    %2587 = vmatpush1.bf16.msra.mxu0 %v1844
    %2588 = vmatprep.subr.bf16.mxu0 %v1849
    %2589 = vmatpush1.bf16.msra.mxu0 %v1848
    %2590 = vmatprep.subr.bf16.mxu0 %v1853
    %2591 = vmatpush1.bf16.msra.mxu0 %v1852
    %2592 = vmatprep.subr.bf16.mxu0 %v1857
    %2593 = vmatpush1.bf16.msra.mxu0 %v1856
    %2594 = vmatprep.subr.bf16.mxu0 %v1861
    %2595 = vmatpush1.bf16.msra.mxu0 %v1860
    %2596 = vmatprep.subr.bf16.mxu0 %v1865
    %2597 = vmatpush1.bf16.msra.mxu0 %v1864
    %2598 = vmatprep.subr.bf16.mxu0 %v1869
    %2599 = vmatpush1.bf16.msra.mxu0 %v1868
    %2600 = vmatprep.subr.bf16.mxu0 %v1873
    %2601 = vmatpush1.bf16.msra.mxu0 %v1872
    %2602 = vmatprep.subr.bf16.mxu0 %v1877
    %2603 = vmatpush1.bf16.msra.mxu0 %v1876
    %2604 = vmatprep.subr.bf16.mxu0 %v1881
    %2605 = vmatpush1.bf16.msra.mxu0 %v1880
    %2606 = vmatprep.subr.bf16.mxu0 %v1885
    %2607 = vmatpush1.bf16.msra.mxu0 %v1884
    %2608 = vmatprep.subr.bf16.mxu0 %v1889
    %2609 = vmatpush1.bf16.msra.mxu0 %v1888
    %2610 = vmatprep.subr.bf16.mxu0 %v1893
    %2611 = vmatpush1.bf16.msra.mxu0 %v1892
    %2612 = vmatprep.subr.bf16.mxu0 %v1897
    %2613 = vmatpush1.bf16.msra.mxu0 %v1896
    %2614 = vmatprep.subr.bf16.mxu0 %v1901
    %2615 = vmatpush1.bf16.msra.mxu0 %v1900
    %2616 = vmatprep.subr.bf16.mxu0 %v1905
    %2617 = vmatpush1.bf16.msra.mxu0 %v1904
    %2618 = vmatprep.mubr.bf16.mxu0 %v484
    %2619 = vmatmul.mubr.bf16.gmra.mrb[0].mxu0 %v470
    %v2620 = vpop.f32.mrb[0].mxu0
    %v2621 = vadd.f32 %v2580, %v2620
    %v2622 = vpop.f32.mrb[0].mxu0
    %v2623 = vadd.f32 %v2582, %v2622
    %v2624 = vpop.f32.mrb[0].mxu0
    %v2625 = vpop.f32.mrb[0].mxu0
    %2626 = vdwg.mxu0
    %2627 = vmatprep.subr.bf16.mxu0 %v1909
    %2628 = vmatpush1.bf16.msra.mxu0 %v1908
    %2629 = vmatprep.subr.bf16.mxu0 %v1913
    %2630 = vmatpush1.bf16.msra.mxu0 %v1912
    %2631 = vmatprep.subr.bf16.mxu0 %v1917
    %2632 = vmatpush1.bf16.msra.mxu0 %v1916
    %2633 = vmatprep.subr.bf16.mxu0 %v1921
    %2634 = vmatpush1.bf16.msra.mxu0 %v1920
    %2635 = vmatprep.subr.bf16.mxu0 %v1925
    %2636 = vmatpush1.bf16.msra.mxu0 %v1924
    %2637 = vmatprep.subr.bf16.mxu0 %v1929
    %2638 = vmatpush1.bf16.msra.mxu0 %v1928
    %2639 = vmatprep.subr.bf16.mxu0 %v1933
    %2640 = vmatpush1.bf16.msra.mxu0 %v1932
    %2641 = vmatprep.subr.bf16.mxu0 %v1937
    %2642 = vmatpush1.bf16.msra.mxu0 %v1936
    %2643 = vmatprep.subr.bf16.mxu0 %v1941
    %2644 = vmatpush1.bf16.msra.mxu0 %v1940
    %2645 = vmatprep.subr.bf16.mxu0 %v1945
    %2646 = vmatpush1.bf16.msra.mxu0 %v1944
    %2647 = vmatprep.subr.bf16.mxu0 %v1949
    %2648 = vmatpush1.bf16.msra.mxu0 %v1948
    %2649 = vmatprep.subr.bf16.mxu0 %v1953
    %2650 = vmatpush1.bf16.msra.mxu0 %v1952
    %2651 = vmatprep.subr.bf16.mxu0 %v1957
    %2652 = vmatpush1.bf16.msra.mxu0 %v1956
    %2653 = vmatprep.subr.bf16.mxu0 %v1961
    %2654 = vmatpush1.bf16.msra.mxu0 %v1960
    %2655 = vmatprep.subr.bf16.mxu0 %v1965
    %2656 = vmatpush1.bf16.msra.mxu0 %v1964
    %2657 = vmatprep.subr.bf16.mxu0 %v1969
    %2658 = vmatpush1.bf16.msra.mxu0 %v1968
    %2659 = vmatprep.mubr.bf16.mxu0 %v488
    %2660 = vmatmul.mubr.bf16.gmra.mrb[0].mxu0 %v486
    %v2661 = vpop.f32.mrb[0].mxu0
    %v2662 = vadd.f32 %v2621, %v2661
    %v2663 = vpop.f32.mrb[0].mxu0
    %v2664 = vadd.f32 %v2623, %v2663
    %v2665 = vpop.f32.mrb[0].mxu0
    %v2666 = vpop.f32.mrb[0].mxu0
    %2667 = vdwg.mxu0
    %2668 = vmatprep.subr.bf16.mxu0 %v1973
    %2669 = vmatpush1.bf16.msra.mxu0 %v1972
    %2670 = vmatprep.subr.bf16.mxu0 %v1977
    %2671 = vmatpush1.bf16.msra.mxu0 %v1976
    %2672 = vmatprep.subr.bf16.mxu0 %v1981
    %2673 = vmatpush1.bf16.msra.mxu0 %v1980
    %2674 = vmatprep.subr.bf16.mxu0 %v1985
    %2675 = vmatpush1.bf16.msra.mxu0 %v1984
    %2676 = vmatprep.subr.bf16.mxu0 %v1989
    %2677 = vmatpush1.bf16.msra.mxu0 %v1988
    %2678 = vmatprep.subr.bf16.mxu0 %v1993
    %2679 = vmatpush1.bf16.msra.mxu0 %v1992
    %2680 = vmatprep.subr.bf16.mxu0 %v1997
    %2681 = vmatpush1.bf16.msra.mxu0 %v1996
    %2682 = vmatprep.subr.bf16.mxu0 %v2001
    %2683 = vmatpush1.bf16.msra.mxu0 %v2000
    %2684 = vmatprep.subr.bf16.mxu0 %v2005
    %2685 = vmatpush1.bf16.msra.mxu0 %v2004
    %2686 = vmatprep.subr.bf16.mxu0 %v2009
    %2687 = vmatpush1.bf16.msra.mxu0 %v2008
    %2688 = vmatprep.subr.bf16.mxu0 %v2013
    %2689 = vmatpush1.bf16.msra.mxu0 %v2012
    %2690 = vmatprep.subr.bf16.mxu0 %v2017
    %2691 = vmatpush1.bf16.msra.mxu0 %v2016
    %2692 = vmatprep.subr.bf16.mxu0 %v2021
    %2693 = vmatpush1.bf16.msra.mxu0 %v2020
    %2694 = vmatprep.subr.bf16.mxu0 %v2025
    %2695 = vmatpush1.bf16.msra.mxu0 %v2024
    %2696 = vmatprep.subr.bf16.mxu0 %v2029
    %2697 = vmatpush1.bf16.msra.mxu0 %v2028
    %2698 = vmatprep.subr.bf16.mxu0 %v2033
    %2699 = vmatpush1.bf16.msra.mxu0 %v2032
    %2700 = vmatprep.mubr.bf16.mxu0 %v525
    %2701 = vmatmul.mubr.bf16.gmra.mrb[0].mxu0 %v511
    %v2702 = vpop.f32.mrb[0].mxu0
    %v2703 = vadd.f32 %v2662, %v2702
    %v2704 = vpop.f32.mrb[0].mxu0
    %v2705 = vadd.f32 %v2664, %v2704
    %v2706 = vpop.f32.mrb[0].mxu0
    %v2707 = vpop.f32.mrb[0].mxu0
    %2708 = vdwg.mxu0
    %2709 = vmatprep.subr.bf16.mxu0 %v2037
    %2710 = vmatpush1.bf16.msra.mxu0 %v2036
    %2711 = vmatprep.subr.bf16.mxu0 %v2041
    %2712 = vmatpush1.bf16.msra.mxu0 %v2040
    %2713 = vmatprep.subr.bf16.mxu0 %v2045
    %2714 = vmatpush1.bf16.msra.mxu0 %v2044
    %2715 = vmatprep.subr.bf16.mxu0 %v2049
    %2716 = vmatpush1.bf16.msra.mxu0 %v2048
    %2717 = vmatprep.subr.bf16.mxu0 %v2053
    %2718 = vmatpush1.bf16.msra.mxu0 %v2052
    %2719 = vmatprep.subr.bf16.mxu0 %v2057
    %2720 = vmatpush1.bf16.msra.mxu0 %v2056
    %2721 = vmatprep.subr.bf16.mxu0 %v2061
    %2722 = vmatpush1.bf16.msra.mxu0 %v2060
    %2723 = vmatprep.subr.bf16.mxu0 %v2065
    %2724 = vmatpush1.bf16.msra.mxu0 %v2064
    %2725 = vmatprep.subr.bf16.mxu0 %v2069
    %2726 = vmatpush1.bf16.msra.mxu0 %v2068
    %2727 = vmatprep.subr.bf16.mxu0 %v2073
    %2728 = vmatpush1.bf16.msra.mxu0 %v2072
    %2729 = vmatprep.subr.bf16.mxu0 %v2077
    %2730 = vmatpush1.bf16.msra.mxu0 %v2076
    %2731 = vmatprep.subr.bf16.mxu0 %v2081
    %2732 = vmatpush1.bf16.msra.mxu0 %v2080
    %2733 = vmatprep.subr.bf16.mxu0 %v2085
    %2734 = vmatpush1.bf16.msra.mxu0 %v2084
    %2735 = vmatprep.subr.bf16.mxu0 %v2089
    %2736 = vmatpush1.bf16.msra.mxu0 %v2088
    %2737 = vmatprep.subr.bf16.mxu0 %v2093
    %2738 = vmatpush1.bf16.msra.mxu0 %v2092
    %2739 = vmatprep.subr.bf16.mxu0 %v2097
    %2740 = vmatpush1.bf16.msra.mxu0 %v2096
    %2741 = vmatprep.mubr.bf16.mxu0 %v527
    %2742 = vmatmul.mubr.bf16.gmra.mrb[0].mxu0 %v526
    %v2743 = vpop.f32.mrb[0].mxu0
    %v2744 = vadd.f32 %v2703, %v2743
    %v2745 = vpop.f32.mrb[0].mxu0
    %v2746 = vadd.f32 %v2705, %v2745
    %v2747 = vpop.f32.mrb[0].mxu0
    %v2748 = vpop.f32.mrb[0].mxu0
    %2749 = vdwg.mxu0
    %2750 = vmatprep.subr.bf16.mxu0 %v2101
    %2751 = vmatpush1.bf16.msra.mxu0 %v2100
    %2752 = vmatprep.subr.bf16.mxu0 %v2105
    %2753 = vmatpush1.bf16.msra.mxu0 %v2104
    %2754 = vmatprep.subr.bf16.mxu0 0
    %2755 = vmatpush1.bf16.msra.mxu0 0
    %2756 = vmatprep.subr.bf16.mxu0 0
    %2757 = vmatpush1.bf16.msra.mxu0 0
    %2758 = vmatprep.subr.bf16.mxu0 0
    %2759 = vmatpush1.bf16.msra.mxu0 0
    %2760 = vmatprep.subr.bf16.mxu0 0
    %2761 = vmatpush1.bf16.msra.mxu0 0
    %2762 = vmatprep.subr.bf16.mxu0 0
    %2763 = vmatpush1.bf16.msra.mxu0 0
    %2764 = vmatprep.subr.bf16.mxu0 0
    %2765 = vmatpush1.bf16.msra.mxu0 0
    %2766 = vmatprep.subr.bf16.mxu0 0
    %2767 = vmatpush1.bf16.msra.mxu0 0
    %2768 = vmatprep.subr.bf16.mxu0 0
    %2769 = vmatpush1.bf16.msra.mxu0 0
    %2770 = vmatprep.subr.bf16.mxu0 0
    %2771 = vmatpush1.bf16.msra.mxu0 0
    %2772 = vmatprep.subr.bf16.mxu0 0
    %2773 = vmatpush1.bf16.msra.mxu0 0
    %2774 = vmatprep.subr.bf16.mxu0 0
    %2775 = vmatpush1.bf16.msra.mxu0 0
    %2776 = vmatprep.subr.bf16.mxu0 0
    %2777 = vmatpush1.bf16.msra.mxu0 0
    %2778 = vmatprep.subr.bf16.mxu0 0
    %2779 = vmatpush1.bf16.msra.mxu0 0
    %2780 = vmatprep.subr.bf16.mxu0 0
    %2781 = vmatpush1.bf16.msra.mxu0 0
    %2782 = vmatprep.mubr.bf16.mxu0 0
    %2783 = vmatmul.mubr.bf16.gmra.mrb[0].mxu0 %v2502
    %v2784 = vpop.f32.mrb[0].mxu0
    %v2785 = vadd.f32 %v2744, %v2784
    %v2786 = vpop.f32.mrb[0].mxu0
    %v2787 = vadd.f32 %v2746, %v2786
    %v2788 = vpop.f32.mrb[0].mxu0
    %v2789 = vpop.f32.mrb[0].mxu0
    %2790 = vdwg.mxu0
    %2791 = vmatprep.subr.bf16.mxu0 %v1719
    %2792 = vmatpush1.bf16.msra.mxu0 %v1718
    %2793 = vmatprep.subr.bf16.mxu0 %v1723
    %2794 = vmatpush1.bf16.msra.mxu0 %v1722
    %2795 = vmatprep.subr.bf16.mxu0 %v1727
    %2796 = vmatpush1.bf16.msra.mxu0 %v1726
    %2797 = vmatprep.subr.bf16.mxu0 %v1731
    %2798 = vmatpush1.bf16.msra.mxu0 %v1730
    %2799 = vmatprep.subr.bf16.mxu0 %v1735
    %2800 = vmatpush1.bf16.msra.mxu0 %v1734
    %2801 = vmatprep.subr.bf16.mxu0 %v1739
    %2802 = vmatpush1.bf16.msra.mxu0 %v1738
    %2803 = vmatprep.subr.bf16.mxu0 %v1743
    %2804 = vmatpush1.bf16.msra.mxu0 %v1742
    %2805 = vmatprep.subr.bf16.mxu0 %v1747
    %2806 = vmatpush1.bf16.msra.mxu0 %v1746
    %2807 = vmatprep.subr.bf16.mxu0 %v1751
    %2808 = vmatpush1.bf16.msra.mxu0 %v1750
    %2809 = vmatprep.subr.bf16.mxu0 %v1755
    %2810 = vmatpush1.bf16.msra.mxu0 %v1754
    %2811 = vmatprep.subr.bf16.mxu0 %v1759
    %2812 = vmatpush1.bf16.msra.mxu0 %v1758
    %2813 = vmatprep.subr.bf16.mxu0 %v1763
    %2814 = vmatpush1.bf16.msra.mxu0 %v1762
    %2815 = vmatprep.subr.bf16.mxu0 %v1767
    %2816 = vmatpush1.bf16.msra.mxu0 %v1766
    %2817 = vmatprep.subr.bf16.mxu0 %v1771
    %2818 = vmatpush1.bf16.msra.mxu0 %v1770
    %2819 = vmatprep.subr.bf16.mxu0 %v1775
    %2820 = vmatpush1.bf16.msra.mxu0 %v1774
    %2821 = vmatprep.subr.bf16.mxu0 %v1779
    %2822 = vmatpush1.bf16.msra.mxu0 %v1778
    %2823 = vmatprep.mubr.bf16.mxu0 %v477
    %2824 = vmatmul.mubr.bf16.gmra.mrb[0].mxu0 %v463
    %v2825 = vpop.f32.mrb[0].mxu0
    %v2826 = vadd.f32 %v429, %v2825
    %v2827 = vpop.f32.mrb[0].mxu0
    %v2828 = vadd.f32 %v433, %v2827
    %v2829 = vpop.f32.mrb[0].mxu0
    %v2830 = vpop.f32.mrb[0].mxu0
    %2831 = vdwg.mxu0
    %2832 = vmatprep.subr.bf16.mxu0 %v1783
    %2833 = vmatpush1.bf16.msra.mxu0 %v1782
    %2834 = vmatprep.subr.bf16.mxu0 %v1787
    %2835 = vmatpush1.bf16.msra.mxu0 %v1786
    %2836 = vmatprep.subr.bf16.mxu0 %v1791
    %2837 = vmatpush1.bf16.msra.mxu0 %v1790
    %2838 = vmatprep.subr.bf16.mxu0 %v1795
    %2839 = vmatpush1.bf16.msra.mxu0 %v1794
    %2840 = vmatprep.subr.bf16.mxu0 %v1799
    %2841 = vmatpush1.bf16.msra.mxu0 %v1798
    %2842 = vmatprep.subr.bf16.mxu0 %v1803
    %2843 = vmatpush1.bf16.msra.mxu0 %v1802
    %2844 = vmatprep.subr.bf16.mxu0 %v1807
    %2845 = vmatpush1.bf16.msra.mxu0 %v1806
    %2846 = vmatprep.subr.bf16.mxu0 %v1811
    %2847 = vmatpush1.bf16.msra.mxu0 %v1810
    %2848 = vmatprep.subr.bf16.mxu0 %v1815
    %2849 = vmatpush1.bf16.msra.mxu0 %v1814
    %2850 = vmatprep.subr.bf16.mxu0 %v1819
    %2851 = vmatpush1.bf16.msra.mxu0 %v1818
    %2852 = vmatprep.subr.bf16.mxu0 %v1823
    %2853 = vmatpush1.bf16.msra.mxu0 %v1822
    %2854 = vmatprep.subr.bf16.mxu0 %v1827
    %2855 = vmatpush1.bf16.msra.mxu0 %v1826
    %2856 = vmatprep.subr.bf16.mxu0 %v1831
    %2857 = vmatpush1.bf16.msra.mxu0 %v1830
    %2858 = vmatprep.subr.bf16.mxu0 %v1835
    %2859 = vmatpush1.bf16.msra.mxu0 %v1834
    %2860 = vmatprep.subr.bf16.mxu0 %v1839
    %2861 = vmatpush1.bf16.msra.mxu0 %v1838
    %2862 = vmatprep.subr.bf16.mxu0 %v1843
    %2863 = vmatpush1.bf16.msra.mxu0 %v1842
    %2864 = vmatprep.mubr.bf16.mxu0 %v487
    %2865 = vmatmul.mubr.bf16.gmra.mrb[0].mxu0 %v485
    %v2866 = vpop.f32.mrb[0].mxu0
    %v2867 = vadd.f32 %v2826, %v2866
    %v2868 = vpop.f32.mrb[0].mxu0
    %v2869 = vadd.f32 %v2828, %v2868
    %v2870 = vpop.f32.mrb[0].mxu0
    %v2871 = vpop.f32.mrb[0].mxu0
    %2872 = vdwg.mxu0
    %2873 = vmatprep.subr.bf16.mxu0 %v1847
    %2874 = vmatpush1.bf16.msra.mxu0 %v1846
    %2875 = vmatprep.subr.bf16.mxu0 %v1851
    %2876 = vmatpush1.bf16.msra.mxu0 %v1850
    %2877 = vmatprep.subr.bf16.mxu0 %v1855
    %2878 = vmatpush1.bf16.msra.mxu0 %v1854
    %2879 = vmatprep.subr.bf16.mxu0 %v1859
    %2880 = vmatpush1.bf16.msra.mxu0 %v1858
    %2881 = vmatprep.subr.bf16.mxu0 %v1863
    %2882 = vmatpush1.bf16.msra.mxu0 %v1862
    %2883 = vmatprep.subr.bf16.mxu0 %v1867
    %2884 = vmatpush1.bf16.msra.mxu0 %v1866
    %2885 = vmatprep.subr.bf16.mxu0 %v1871
    %2886 = vmatpush1.bf16.msra.mxu0 %v1870
    %2887 = vmatprep.subr.bf16.mxu0 %v1875
    %2888 = vmatpush1.bf16.msra.mxu0 %v1874
    %2889 = vmatprep.subr.bf16.mxu0 %v1879
    %2890 = vmatpush1.bf16.msra.mxu0 %v1878
    %2891 = vmatprep.subr.bf16.mxu0 %v1883
    %2892 = vmatpush1.bf16.msra.mxu0 %v1882
    %2893 = vmatprep.subr.bf16.mxu0 %v1887
    %2894 = vmatpush1.bf16.msra.mxu0 %v1886
    %2895 = vmatprep.subr.bf16.mxu0 %v1891
    %2896 = vmatpush1.bf16.msra.mxu0 %v1890
    %2897 = vmatprep.subr.bf16.mxu0 %v1895
    %2898 = vmatpush1.bf16.msra.mxu0 %v1894
    %2899 = vmatprep.subr.bf16.mxu0 %v1899
    %2900 = vmatpush1.bf16.msra.mxu0 %v1898
    %2901 = vmatprep.subr.bf16.mxu0 %v1903
    %2902 = vmatpush1.bf16.msra.mxu0 %v1902
    %2903 = vmatprep.subr.bf16.mxu0 %v1907
    %2904 = vmatpush1.bf16.msra.mxu0 %v1906
    %2905 = vmatprep.mubr.bf16.mxu0 %v484
    %2906 = vmatmul.mubr.bf16.gmra.mrb[0].mxu0 %v470
    %v2907 = vpop.f32.mrb[0].mxu0
    %v2908 = vadd.f32 %v2867, %v2907
    %v2909 = vpop.f32.mrb[0].mxu0
    %v2910 = vadd.f32 %v2869, %v2909
    %v2911 = vpop.f32.mrb[0].mxu0
    %v2912 = vpop.f32.mrb[0].mxu0
    %2913 = vdwg.mxu0
    %2914 = vmatprep.subr.bf16.mxu0 %v1911
    %2915 = vmatpush1.bf16.msra.mxu0 %v1910
    %2916 = vmatprep.subr.bf16.mxu0 %v1915
    %2917 = vmatpush1.bf16.msra.mxu0 %v1914
    %2918 = vmatprep.subr.bf16.mxu0 %v1919
    %2919 = vmatpush1.bf16.msra.mxu0 %v1918
    %2920 = vmatprep.subr.bf16.mxu0 %v1923
    %2921 = vmatpush1.bf16.msra.mxu0 %v1922
    %2922 = vmatprep.subr.bf16.mxu0 %v1927
    %2923 = vmatpush1.bf16.msra.mxu0 %v1926
    %2924 = vmatprep.subr.bf16.mxu0 %v1931
    %2925 = vmatpush1.bf16.msra.mxu0 %v1930
    %2926 = vmatprep.subr.bf16.mxu0 %v1935
    %2927 = vmatpush1.bf16.msra.mxu0 %v1934
    %2928 = vmatprep.subr.bf16.mxu0 %v1939
    %2929 = vmatpush1.bf16.msra.mxu0 %v1938
    %2930 = vmatprep.subr.bf16.mxu0 %v1943
    %2931 = vmatpush1.bf16.msra.mxu0 %v1942
    %2932 = vmatprep.subr.bf16.mxu0 %v1947
    %2933 = vmatpush1.bf16.msra.mxu0 %v1946
    %2934 = vmatprep.subr.bf16.mxu0 %v1951
    %2935 = vmatpush1.bf16.msra.mxu0 %v1950
    %2936 = vmatprep.subr.bf16.mxu0 %v1955
    %2937 = vmatpush1.bf16.msra.mxu0 %v1954
    %2938 = vmatprep.subr.bf16.mxu0 %v1959
    %2939 = vmatpush1.bf16.msra.mxu0 %v1958
    %2940 = vmatprep.subr.bf16.mxu0 %v1963
    %2941 = vmatpush1.bf16.msra.mxu0 %v1962
    %2942 = vmatprep.subr.bf16.mxu0 %v1967
    %2943 = vmatpush1.bf16.msra.mxu0 %v1966
    %2944 = vmatprep.subr.bf16.mxu0 %v1971
    %2945 = vmatpush1.bf16.msra.mxu0 %v1970
    %2946 = vmatprep.mubr.bf16.mxu0 %v488
    %2947 = vmatmul.mubr.bf16.gmra.mrb[0].mxu0 %v486
    %v2948 = vpop.f32.mrb[0].mxu0
    %v2949 = vadd.f32 %v2908, %v2948
    %v2950 = vpop.f32.mrb[0].mxu0
    %v2951 = vadd.f32 %v2910, %v2950
    %v2952 = vpop.f32.mrb[0].mxu0
    %v2953 = vpop.f32.mrb[0].mxu0
    %2954 = vdwg.mxu0
    %2955 = vmatprep.subr.bf16.mxu0 %v1975
    %2956 = vmatpush1.bf16.msra.mxu0 %v1974
    %2957 = vmatprep.subr.bf16.mxu0 %v1979
    %2958 = vmatpush1.bf16.msra.mxu0 %v1978
    %2959 = vmatprep.subr.bf16.mxu0 %v1983
    %2960 = vmatpush1.bf16.msra.mxu0 %v1982
    %2961 = vmatprep.subr.bf16.mxu0 %v1987
    %2962 = vmatpush1.bf16.msra.mxu0 %v1986
    %2963 = vmatprep.subr.bf16.mxu0 %v1991
    %2964 = vmatpush1.bf16.msra.mxu0 %v1990
    %2965 = vmatprep.subr.bf16.mxu0 %v1995
    %2966 = vmatpush1.bf16.msra.mxu0 %v1994
    %2967 = vmatprep.subr.bf16.mxu0 %v1999
    %2968 = vmatpush1.bf16.msra.mxu0 %v1998
    %2969 = vmatprep.subr.bf16.mxu0 %v2003
    %2970 = vmatpush1.bf16.msra.mxu0 %v2002
    %2971 = vmatprep.subr.bf16.mxu0 %v2007
    %2972 = vmatpush1.bf16.msra.mxu0 %v2006
    %2973 = vmatprep.subr.bf16.mxu0 %v2011
    %2974 = vmatpush1.bf16.msra.mxu0 %v2010
    %2975 = vmatprep.subr.bf16.mxu0 %v2015
    %2976 = vmatpush1.bf16.msra.mxu0 %v2014
    %2977 = vmatprep.subr.bf16.mxu0 %v2019
    %2978 = vmatpush1.bf16.msra.mxu0 %v2018
    %2979 = vmatprep.subr.bf16.mxu0 %v2023
    %2980 = vmatpush1.bf16.msra.mxu0 %v2022
    %2981 = vmatprep.subr.bf16.mxu0 %v2027
    %2982 = vmatpush1.bf16.msra.mxu0 %v2026
    %2983 = vmatprep.subr.bf16.mxu0 %v2031
    %2984 = vmatpush1.bf16.msra.mxu0 %v2030
    %2985 = vmatprep.subr.bf16.mxu0 %v2035
    %2986 = vmatpush1.bf16.msra.mxu0 %v2034
    %2987 = vmatprep.mubr.bf16.mxu0 %v525
    %2988 = vmatmul.mubr.bf16.gmra.mrb[0].mxu0 %v511
    %v2989 = vpop.f32.mrb[0].mxu0
    %v2990 = vadd.f32 %v2949, %v2989
    %v2991 = vpop.f32.mrb[0].mxu0
    %v2992 = vadd.f32 %v2951, %v2991
    %v2993 = vpop.f32.mrb[0].mxu0
    %v2994 = vpop.f32.mrb[0].mxu0
    %2995 = vdwg.mxu0
    %2996 = vmatprep.subr.bf16.mxu0 %v2039
    %2997 = vmatpush1.bf16.msra.mxu0 %v2038
    %2998 = vmatprep.subr.bf16.mxu0 %v2043
    %2999 = vmatpush1.bf16.msra.mxu0 %v2042
    %3000 = vmatprep.subr.bf16.mxu0 %v2047
    %3001 = vmatpush1.bf16.msra.mxu0 %v2046
    %3002 = vmatprep.subr.bf16.mxu0 %v2051
    %3003 = vmatpush1.bf16.msra.mxu0 %v2050
    %3004 = vmatprep.subr.bf16.mxu0 %v2055
    %3005 = vmatpush1.bf16.msra.mxu0 %v2054
    %3006 = vmatprep.subr.bf16.mxu0 %v2059
    %3007 = vmatpush1.bf16.msra.mxu0 %v2058
    %3008 = vmatprep.subr.bf16.mxu0 %v2063
    %3009 = vmatpush1.bf16.msra.mxu0 %v2062
    %3010 = vmatprep.subr.bf16.mxu0 %v2067
    %3011 = vmatpush1.bf16.msra.mxu0 %v2066
    %3012 = vmatprep.subr.bf16.mxu0 %v2071
    %3013 = vmatpush1.bf16.msra.mxu0 %v2070
    %3014 = vmatprep.subr.bf16.mxu0 %v2075
    %3015 = vmatpush1.bf16.msra.mxu0 %v2074
    %3016 = vmatprep.subr.bf16.mxu0 %v2079
    %3017 = vmatpush1.bf16.msra.mxu0 %v2078
    %3018 = vmatprep.subr.bf16.mxu0 %v2083
    %3019 = vmatpush1.bf16.msra.mxu0 %v2082
    %3020 = vmatprep.subr.bf16.mxu0 %v2087
    %3021 = vmatpush1.bf16.msra.mxu0 %v2086
    %3022 = vmatprep.subr.bf16.mxu0 %v2091
    %3023 = vmatpush1.bf16.msra.mxu0 %v2090
    %3024 = vmatprep.subr.bf16.mxu0 %v2095
    %3025 = vmatpush1.bf16.msra.mxu0 %v2094
    %3026 = vmatprep.subr.bf16.mxu0 %v2099
    %3027 = vmatpush1.bf16.msra.mxu0 %v2098
    %3028 = vmatprep.mubr.bf16.mxu0 %v527
    %3029 = vmatmul.mubr.bf16.gmra.mrb[0].mxu0 %v526
    %v3030 = vpop.f32.mrb[0].mxu0
    %v3031 = vadd.f32 %v2990, %v3030
    %v3032 = vpop.f32.mrb[0].mxu0
    %v3033 = vadd.f32 %v2992, %v3032
    %v3034 = vpop.f32.mrb[0].mxu0
    %v3035 = vpop.f32.mrb[0].mxu0
    %3036 = vdwg.mxu0
    %3037 = vmatprep.subr.bf16.mxu0 %v2103
    %3038 = vmatpush1.bf16.msra.mxu0 %v2102
    %3039 = vmatprep.subr.bf16.mxu0 %v2107
    %3040 = vmatpush1.bf16.msra.mxu0 %v2106
    %3041 = vmatprep.subr.bf16.mxu0 0
    %3042 = vmatpush1.bf16.msra.mxu0 0
    %3043 = vmatprep.subr.bf16.mxu0 0
    %3044 = vmatpush1.bf16.msra.mxu0 0
    %3045 = vmatprep.subr.bf16.mxu0 0
    %3046 = vmatpush1.bf16.msra.mxu0 0
    %3047 = vmatprep.subr.bf16.mxu0 0
    %3048 = vmatpush1.bf16.msra.mxu0 0
    %3049 = vmatprep.subr.bf16.mxu0 0
    %3050 = vmatpush1.bf16.msra.mxu0 0
    %3051 = vmatprep.subr.bf16.mxu0 0
    %3052 = vmatpush1.bf16.msra.mxu0 0
    %3053 = vmatprep.subr.bf16.mxu0 0
    %3054 = vmatpush1.bf16.msra.mxu0 0
    %3055 = vmatprep.subr.bf16.mxu0 0
    %3056 = vmatpush1.bf16.msra.mxu0 0
    %3057 = vmatprep.subr.bf16.mxu0 0
    %3058 = vmatpush1.bf16.msra.mxu0 0
    %3059 = vmatprep.subr.bf16.mxu0 0
    %3060 = vmatpush1.bf16.msra.mxu0 0
    %3061 = vmatprep.subr.bf16.mxu0 0
    %3062 = vmatpush1.bf16.msra.mxu0 0
    %3063 = vmatprep.subr.bf16.mxu0 0
    %3064 = vmatpush1.bf16.msra.mxu0 0
    %3065 = vmatprep.subr.bf16.mxu0 0
    %3066 = vmatpush1.bf16.msra.mxu0 0
    %3067 = vmatprep.subr.bf16.mxu0 0
    %3068 = vmatpush1.bf16.msra.mxu0 0
    %3069 = vmatprep.mubr.bf16.mxu0 0
    %3070 = vmatmul.mubr.bf16.gmra.mrb[0].mxu0 %v2502
    %v3071 = vpop.f32.mrb[0].mxu0
    %v3072 = vadd.f32 %v3031, %v3071
    %v3073 = vpop.f32.mrb[0].mxu0
    %v3074 = vadd.f32 %v3033, %v3073
    %v3075 = vpop.f32.mrb[0].mxu0
    %v3076 = vpop.f32.mrb[0].mxu0
    %3077 = vdwg.mxu0
    %v3078 = vmax.f32 %v2785, 0.0
    %v3079 = vmax.f32 %v2787, 0.0
    %v3080 = vmax.f32 %v3072, 0.0
    %v3081 = vmax.f32 %v3074, 0.0
    %v3082 = vpack.c.bf16 %v3078, %v3078
    %v3083 = vpack.c.bf16 %v3079, %v3079
    %v3084 = vpack.c.bf16 %v3080, %v3080
    %v3085 = vpack.c.bf16 %v3081, %v3081
    %v3086 = vld [vmem:[%s3] sm:$0xf]
    %v3087 = vld [vmem:[%s3 + $0x4] sm:$0xf]
    %v3088 = vld [vmem:[%s3 + $0x8] sm:$0xf]
    %v3089 = vld [vmem:[%s3 + $0xc] sm:$0xf]
    %v3090 = vld [vmem:[%s3 + $0x10] sm:$0xf]
    %v3091 = vld [vmem:[%s3 + $0x14] sm:$0xf]
    %v3092 = vld [vmem:[%s3 + $0x18] sm:$0xf]
    %v3093 = vld [vmem:[%s3 + $0x1c] sm:$0xf]
    %v3094 = vld [vmem:[%s3 + $0x20] sm:$0xf]
    %v3095 = vld [vmem:[%s3 + $0x24] sm:$0xf]
    %v3096 = vld [vmem:[%s3 + $0x28] sm:$0xf]
    %v3097 = vld [vmem:[%s3 + $0x2c] sm:$0xf]
    %v3098 = vld [vmem:[%s3 + $0x30] sm:$0xf]
    %v3099 = vld [vmem:[%s3 + $0x34] sm:$0xf]
    %v3100 = vld [vmem:[%s3 + $0x38] sm:$0xf]
    %v3101 = vld [vmem:[%s3 + $0x3c] sm:$0xf]
    %v3102 = vld [vmem:[%s3 + $0x40] sm:$0xf]
    %v3103 = vld [vmem:[%s3 + $0x44] sm:$0xf]
    %v3104 = vld [vmem:[%s3 + $0x48] sm:$0xf]
    %v3105 = vld [vmem:[%s3 + $0x4c] sm:$0xf]
    %v3106 = vld [vmem:[%s3 + $0x50] sm:$0xf]
    %v3107 = vld [vmem:[%s3 + $0x54] sm:$0xf]
    %v3108 = vld [vmem:[%s3 + $0x58] sm:$0xf]
    %v3109 = vld [vmem:[%s3 + $0x5c] sm:$0xf]
    %v3110 = vld [vmem:[%s3 + $0x60] sm:$0xf]
    %v3111 = vld [vmem:[%s3 + $0x64] sm:$0xf]
    %v3112 = vld [vmem:[%s3 + $0x68] sm:$0xf]
    %v3113 = vld [vmem:[%s3 + $0x6c] sm:$0xf]
    %v3114 = vld [vmem:[%s3 + $0x70] sm:$0xf]
    %v3115 = vld [vmem:[%s3 + $0x74] sm:$0xf]
    %v3116 = vld [vmem:[%s3 + $0x78] sm:$0xf]
    %v3117 = vld [vmem:[%s3 + $0x7c] sm:$0xf]
    %v3118 = vld [vmem:[%s3 + $0x80] sm:$0xf]
    %v3119 = vld [vmem:[%s3 + $0x84] sm:$0xf]
    %v3120 = vld [vmem:[%s3 + $0x88] sm:$0xf]
    %v3121 = vld [vmem:[%s3 + $0x8c] sm:$0xf]
    %v3122 = vld [vmem:[%s3 + $0x90] sm:$0xf]
    %v3123 = vld [vmem:[%s3 + $0x94] sm:$0xf]
    %v3124 = vld [vmem:[%s3 + $0x98] sm:$0xf]
    %v3125 = vld [vmem:[%s3 + $0x9c] sm:$0xf]
    %v3126 = vld [vmem:[%s3 + $0xa0] sm:$0xf]
    %v3127 = vld [vmem:[%s3 + $0xa4] sm:$0xf]
    %v3128 = vld [vmem:[%s3 + $0xa8] sm:$0xf]
    %v3129 = vld [vmem:[%s3 + $0xac] sm:$0xf]
    %v3130 = vld [vmem:[%s3 + $0xb0] sm:$0xf]
    %v3131 = vld [vmem:[%s3 + $0xb4] sm:$0xf]
    %v3132 = vld [vmem:[%s3 + $0xb8] sm:$0xf]
    %v3133 = vld [vmem:[%s3 + $0xbc] sm:$0xf]
    %v3134 = vld [vmem:[%s3 + $0xc0] sm:$0xf]
    %v3135 = vld [vmem:[%s3 + $0xc4] sm:$0xf]
    %v3136 = vld [vmem:[%s3 + $0xc8] sm:$0xf]
    %v3137 = vld [vmem:[%s3 + $0xcc] sm:$0xf]
    %v3138 = vld [vmem:[%s3 + $0xd0] sm:$0xf]
    %v3139 = vld [vmem:[%s3 + $0xd4] sm:$0xf]
    %v3140 = vld [vmem:[%s3 + $0xd8] sm:$0xf]
    %v3141 = vld [vmem:[%s3 + $0xdc] sm:$0xf]
    %v3142 = vld [vmem:[%s3 + $0xe0] sm:$0xf]
    %v3143 = vld [vmem:[%s3 + $0xe4] sm:$0xf]
    %v3144 = vld [vmem:[%s3 + $0xe8] sm:$0xf]
    %v3145 = vld [vmem:[%s3 + $0xec] sm:$0xf]
    %v3146 = vld [vmem:[%s3 + $0xf0] sm:$0xf]
    %v3147 = vld [vmem:[%s3 + $0xf4] sm:$0xf]
    %v3148 = vld [vmem:[%s3 + $0xf8] sm:$0xf]
    %v3149 = vld [vmem:[%s3 + $0xfc] sm:$0xf]
    %v3150 = vld [vmem:[%s4] sm:$0x1]
    %v3152 = vlaneseq
    %v3153 = vshrl.u32 %v3152, 7
    %v3154 = vsub.s32 0, %v3153
    %v3155 = vrot.slane %v3150, %v3154
    %v3221 = vunpack.c.l.b16 %v3086
    %v3222 = vunpack.c.l.b16 %v3087
    %v3223 = vunpack.c.l.b16 %v3088
    %v3224 = vunpack.c.l.b16 %v3089
    %v3225 = vunpack.c.l.b16 %v3090
    %v3226 = vunpack.c.l.b16 %v3091
    %v3227 = vunpack.c.l.b16 %v3092
    %v3228 = vunpack.c.l.b16 %v3093
    %v3229 = vunpack.c.l.b16 %v3094
    %v3230 = vunpack.c.l.b16 %v3095
    %v3231 = vunpack.c.l.b16 %v3096
    %v3232 = vunpack.c.l.b16 %v3097
    %v3233 = vunpack.c.l.b16 %v3098
    %v3234 = vunpack.c.l.b16 %v3099
    %v3235 = vunpack.c.l.b16 %v3100
    %v3236 = vunpack.c.l.b16 %v3101
    %v3237 = vunpack.c.l.b16 %v3102
    %v3238 = vunpack.c.l.b16 %v3103
    %v3239 = vunpack.c.l.b16 %v3104
    %v3240 = vunpack.c.l.b16 %v3105
    %v3241 = vunpack.c.l.b16 %v3106
    %v3242 = vunpack.c.l.b16 %v3107
    %v3243 = vunpack.c.l.b16 %v3108
    %v3244 = vunpack.c.l.b16 %v3109
    %v3245 = vunpack.c.l.b16 %v3110
    %v3246 = vunpack.c.l.b16 %v3111
    %v3247 = vunpack.c.l.b16 %v3112
    %v3248 = vunpack.c.l.b16 %v3113
    %v3249 = vunpack.c.l.b16 %v3114
    %v3250 = vunpack.c.l.b16 %v3115
    %v3251 = vunpack.c.l.b16 %v3116
    %v3252 = vunpack.c.l.b16 %v3117
    %v3253 = vunpack.c.l.b16 %v3118
    %v3254 = vunpack.c.l.b16 %v3119
    %v3255 = vunpack.c.l.b16 %v3120
    %v3256 = vunpack.c.l.b16 %v3121
    %v3257 = vunpack.c.l.b16 %v3122
    %v3258 = vunpack.c.l.b16 %v3123
    %v3259 = vunpack.c.l.b16 %v3124
    %v3260 = vunpack.c.l.b16 %v3125
    %v3261 = vunpack.c.l.b16 %v3126
    %v3262 = vunpack.c.l.b16 %v3127
    %v3263 = vunpack.c.l.b16 %v3128
    %v3264 = vunpack.c.l.b16 %v3129
    %v3265 = vunpack.c.l.b16 %v3130
    %v3266 = vunpack.c.l.b16 %v3131
    %v3267 = vunpack.c.l.b16 %v3132
    %v3268 = vunpack.c.l.b16 %v3133
    %v3269 = vunpack.c.l.b16 %v3134
    %v3270 = vunpack.c.l.b16 %v3135
    %v3271 = vunpack.c.l.b16 %v3136
    %v3272 = vunpack.c.l.b16 %v3137
    %v3273 = vunpack.c.l.b16 %v3138
    %v3274 = vunpack.c.l.b16 %v3139
    %v3275 = vunpack.c.l.b16 %v3140
    %v3276 = vunpack.c.l.b16 %v3141
    %v3277 = vunpack.c.l.b16 %v3142
    %v3278 = vunpack.c.l.b16 %v3143
    %v3279 = vunpack.c.l.b16 %v3144
    %v3280 = vunpack.c.l.b16 %v3145
    %v3281 = vunpack.c.l.b16 %v3146
    %v3282 = vunpack.c.l.b16 %v3147
    %v3283 = vunpack.c.l.b16 %v3148
    %v3284 = vunpack.c.l.b16 %v3149
    %v3285 = vpack.c.b16 %v3222, %v3221
    %v3286 = vpack.c.b16 %v3224, %v3223
    %v3287 = vpack.c.b16 %v3226, %v3225
    %v3288 = vpack.c.b16 %v3228, %v3227
    %v3289 = vpack.c.b16 %v3230, %v3229
    %v3290 = vpack.c.b16 %v3232, %v3231
    %v3291 = vpack.c.b16 %v3234, %v3233
    %v3292 = vpack.c.b16 %v3236, %v3235
    %v3293 = vpack.c.b16 %v3238, %v3237
    %v3294 = vpack.c.b16 %v3240, %v3239
    %v3295 = vpack.c.b16 %v3242, %v3241
    %v3296 = vpack.c.b16 %v3244, %v3243
    %v3297 = vpack.c.b16 %v3246, %v3245
    %v3298 = vpack.c.b16 %v3248, %v3247
    %v3299 = vpack.c.b16 %v3250, %v3249
    %v3300 = vpack.c.b16 %v3252, %v3251
    %v3301 = vpack.c.b16 %v3254, %v3253
    %v3302 = vpack.c.b16 %v3256, %v3255
    %v3303 = vpack.c.b16 %v3258, %v3257
    %v3304 = vpack.c.b16 %v3260, %v3259
    %v3305 = vpack.c.b16 %v3262, %v3261
    %v3306 = vpack.c.b16 %v3264, %v3263
    %v3307 = vpack.c.b16 %v3266, %v3265
    %v3308 = vpack.c.b16 %v3268, %v3267
    %v3309 = vpack.c.b16 %v3270, %v3269
    %v3310 = vpack.c.b16 %v3272, %v3271
    %v3311 = vpack.c.b16 %v3274, %v3273
    %v3312 = vpack.c.b16 %v3276, %v3275
    %v3313 = vpack.c.b16 %v3278, %v3277
    %v3314 = vpack.c.b16 %v3280, %v3279
    %v3315 = vpack.c.b16 %v3282, %v3281
    %v3316 = vpack.c.b16 %v3284, %v3283
    %3349 = vmatprep.subr.bf16.mxu0 0
    %3350 = vmatpush1.bf16.msra.mxu0 %v3285
    %3351 = vmatprep.subr.bf16.mxu0 0
    %3352 = vmatpush1.bf16.msra.mxu0 %v3286
    %3353 = vmatprep.subr.bf16.mxu0 0
    %3354 = vmatpush1.bf16.msra.mxu0 %v3287
    %3355 = vmatprep.subr.bf16.mxu0 0
    %3356 = vmatpush1.bf16.msra.mxu0 %v3288
    %3357 = vmatprep.subr.bf16.mxu0 0
    %3358 = vmatpush1.bf16.msra.mxu0 %v3289
    %3359 = vmatprep.subr.bf16.mxu0 0
    %3360 = vmatpush1.bf16.msra.mxu0 %v3290
    %3361 = vmatprep.subr.bf16.mxu0 0
    %3362 = vmatpush1.bf16.msra.mxu0 %v3291
    %3363 = vmatprep.subr.bf16.mxu0 0
    %3364 = vmatpush1.bf16.msra.mxu0 %v3292
    %3365 = vmatprep.subr.bf16.mxu0 0
    %3366 = vmatpush1.bf16.msra.mxu0 %v3293
    %3367 = vmatprep.subr.bf16.mxu0 0
    %3368 = vmatpush1.bf16.msra.mxu0 %v3294
    %3369 = vmatprep.subr.bf16.mxu0 0
    %3370 = vmatpush1.bf16.msra.mxu0 %v3295
    %3371 = vmatprep.subr.bf16.mxu0 0
    %3372 = vmatpush1.bf16.msra.mxu0 %v3296
    %3373 = vmatprep.subr.bf16.mxu0 0
    %3374 = vmatpush1.bf16.msra.mxu0 %v3297
    %3375 = vmatprep.subr.bf16.mxu0 0
    %3376 = vmatpush1.bf16.msra.mxu0 %v3298
    %3377 = vmatprep.subr.bf16.mxu0 0
    %3378 = vmatpush1.bf16.msra.mxu0 %v3299
    %3379 = vmatprep.subr.bf16.mxu0 0
    %3380 = vmatpush1.bf16.msra.mxu0 %v3300
    %3381 = vmatprep.mubr.bf16.mxu0 %v3083
    %3382 = vmatmul.mubr.bf16.gmra.mrb[0].mxu0 %v3082
    %v3383 = vpop.f32.mrb[0].mxu0
    %v3384 = vadd.f32 %v3155, %v3383
    %v3385 = vpop.f32.mrb[0].mxu0
    %v3386 = vpop.f32.mrb[0].mxu0
    %v3387 = vpop.f32.mrb[0].mxu0
    %3388 = vdwg.mxu0
    %3389 = vmatprep.subr.bf16.mxu0 0
    %3390 = vmatpush1.bf16.msra.mxu0 %v3301
    %3391 = vmatprep.subr.bf16.mxu0 0
    %3392 = vmatpush1.bf16.msra.mxu0 %v3302
    %3393 = vmatprep.subr.bf16.mxu0 0
    %3394 = vmatpush1.bf16.msra.mxu0 %v3303
    %3395 = vmatprep.subr.bf16.mxu0 0
    %3396 = vmatpush1.bf16.msra.mxu0 %v3304
    %3397 = vmatprep.subr.bf16.mxu0 0
    %3398 = vmatpush1.bf16.msra.mxu0 %v3305
    %3399 = vmatprep.subr.bf16.mxu0 0
    %3400 = vmatpush1.bf16.msra.mxu0 %v3306
    %3401 = vmatprep.subr.bf16.mxu0 0
    %3402 = vmatpush1.bf16.msra.mxu0 %v3307
    %3403 = vmatprep.subr.bf16.mxu0 0
    %3404 = vmatpush1.bf16.msra.mxu0 %v3308
    %3405 = vmatprep.subr.bf16.mxu0 0
    %3406 = vmatpush1.bf16.msra.mxu0 %v3309
    %3407 = vmatprep.subr.bf16.mxu0 0
    %3408 = vmatpush1.bf16.msra.mxu0 %v3310
    %3409 = vmatprep.subr.bf16.mxu0 0
    %3410 = vmatpush1.bf16.msra.mxu0 %v3311
    %3411 = vmatprep.subr.bf16.mxu0 0
    %3412 = vmatpush1.bf16.msra.mxu0 %v3312
    %3413 = vmatprep.subr.bf16.mxu0 0
    %3414 = vmatpush1.bf16.msra.mxu0 %v3313
    %3415 = vmatprep.subr.bf16.mxu0 0
    %3416 = vmatpush1.bf16.msra.mxu0 %v3314
    %3417 = vmatprep.subr.bf16.mxu0 0
    %3418 = vmatpush1.bf16.msra.mxu0 %v3315
    %3419 = vmatprep.subr.bf16.mxu0 0
    %3420 = vmatpush1.bf16.msra.mxu0 %v3316
    %3421 = vmatprep.mubr.bf16.mxu0 %v3085
    %3422 = vmatmul.mubr.bf16.gmra.mrb[0].mxu0 %v3084
    %v3423 = vpop.f32.mrb[0].mxu0
    %v3424 = vadd.f32 %v3384, %v3423
    %v3425 = vpop.f32.mrb[0].mxu0
    %v3426 = vpop.f32.mrb[0].mxu0
    %v3427 = vpop.f32.mrb[0].mxu0
    %3428 = vdwg.mxu0
    %vm3429 = vcmask 1041408
    %v3430 = vsel %vm3429, %v3424, -inf
    %3431 = vmax.xlane.f32.xlu0 %v3430
    %v3432 = vpop.xlane.xlu0 %3431
    %v3433 = vsub.f32 %v3424, %v3432
    %v3434 = vmul.f32 %v3433, 1.442695
    %v3435 = vpow.pop %v3434
    %v3436 = vsel %vm3429, %v3435, 0.0
    %3437 = vadd.xlane.f32.xlu0 %v3436
    %v3438 = vpop.xlane.xlu0 %3437
    %v3439 = vrcp.pop %v3438
    %v3440 = vmul.f32 %v3435, %v3439
    %3441 = vst [vmem:[#allocation2] sm:$0x3] %v3440
    // Predicated region
    $region22: #{conv_model_forward.5} parent=1 // pred_check
      _
    $region23: #{conv_model_forward.5} parent=1 // pred_check_branch
      %3443 = sbr.rel (0) target = $region25
    $region24: #{conv_model_forward.5} parent=1 // pred_region
      %s3445 = ssub.s32 32, 32
      %3446 = vsyncadd [#allocation3], %s3445
      %s3448 = sshll.u32 [#allocation2], 4
      %s3449 = int_to_ptr.vmem [resolvable:$true] %s3448
      %3451 = dma.vmem_to_hbm [thread:$0]  %s3449, 32, %s5, [#allocation3]
    $region25: #{conv_model_forward.5} parent=1 // pred_fallthru
      _
    // Predicated region
    $region26: #{conv_model_forward.5} parent=1 // pred_check
      _
    $region27: #{conv_model_forward.5} parent=1 // pred_check_branch
      %3453 = sbr.rel (0) target = $region29
    $region28: #{conv_model_forward.5} parent=1 // pred_region
      %3454 = dma.done [#allocation3], 32
    $region29: #{conv_model_forward.5} parent=1 // pred_fallthru
      _
    %3455 = vsyncpa [#allocation3], 1

</llo_original>
